<compile_context>
chip_gen: v5e
topology: v5e:2x2
jax: 0.10.0
libtpu: 0.0.40
codegen_flags: <defaults>
</compile_context>

<pallas_src>
from functools import partial

import jax
import jax.numpy as jnp
from jax.experimental import pallas as pl
from jax.experimental.pallas import tpu as pltpu

# ----------------------------- model hyper-params (small) -------------------
B = 2
IN_CHANS = 1
IMG_SHAPE = (4, 8, 8)          # (D, H, W)
PATCH = (2, 4, 4)              # -> 2*2*2 = 8 patches, +cls = 9 img tokens
EMBED_IMG = 32                 # embed_dim_img
DEPTH = 2                      # CTViT depth
NUM_HEADS = 4
TXT_DIM = 32                   # txt_embed_dim
TXT_DEPTH = 2
TXT_HEADS = 4
VOCAB = 64
TXT_LEN = 8
TA_DIM = 32                    # ta_embed_dim (== ta_prompt_dim, as in defaults)
TA_DEPTH = 2
TA_HEADS = 4
NUM_TASK_REGISTERS = 3
MLP_RATIO = 4.0
MAX_FOLLOWUP = 6
LN_EPS = 1e-6
MASK_NEG = -10000.0


def _round_up(n, m):
    return ((n + m - 1) // m) * m


# ----------------------------- small matmul + bias kernel -------------------


def _matmul_bias_kernel(x_ref, w_ref, b_ref, o_ref):
    o_ref[...] = (
        jnp.dot(x_ref[...], w_ref[...], preferred_element_type=jnp.float32)
        + b_ref[...]
    )


def linear(x, w, b):
    """y = x @ w + b with x:(M,K) w:(K,N) b:(N,). Single full-block matmul."""
    M, K = x.shape
    N = w.shape[1]
    return pl.pallas_call(
        _matmul_bias_kernel,
        out_shape=jax.ShapeDtypeStruct((M, N), jnp.float32),
        grid=(1,),
        in_specs=[
            pl.BlockSpec((M, K), lambda i: (0, 0)),
            pl.BlockSpec((K, N), lambda i: (0, 0)),
            pl.BlockSpec((1, N), lambda i: (0, 0)),
        ],
        out_specs=pl.BlockSpec((M, N), lambda i: (0, 0)),
    )(x, w, b.reshape(1, N))


# ----------------------------- fused transformer encoder --------------------


def _ln(x, g, b):
    mu = jnp.mean(x, axis=-1, keepdims=True)
    xc = x - mu
    var = jnp.mean(xc * xc, axis=-1, keepdims=True)
    return xc * jax.lax.rsqrt(var + LN_EPS) * g + b


def _encoder_kernel(x_ref, m_ref,
                    ln1g_ref, ln1b_ref, qkvw_ref, qkvb_ref,
                    projw_ref, projb_ref, ln2g_ref, ln2b_ref,
                    fc1w_ref, fc1b_ref, fc2w_ref, fc2b_ref,
                    lnfg_ref, lnfb_ref, o_ref, *, num_heads, scale):
    """One (batch, layer) grid step of a pre-LN ViT encoder.

    The activation (T, D) lives in the (VMEM-resident) output block across the
    layer axis; per-layer weights stream in via BlockSpec.  The last layer also
    applies the encoder's final LayerNorm.
    """
    layer = pl.program_id(1)

    @pl.when(layer == 0)
    def _():
        o_ref[0] = x_ref[0]

    x = o_ref[0]                                   # (T, D) f32
    T, D = x.shape
    Dh = D // num_heads
    mrow = m_ref[0]                                # (1, T) additive mask

    # ---- attention sublayer (pre-LN) ----
    h = _ln(x, ln1g_ref[0], ln1b_ref[0])
    qkv = jnp.dot(h.astype(jnp.bfloat16), qkvw_ref[0],
                  preferred_element_type=jnp.float32) + qkvb_ref[0]   # (T, 3D)
    heads = []
    for hd in range(num_heads):                    # unrolled, all in VMEM
        lo = hd * Dh
        qh = qkv[:, lo:lo + Dh].astype(jnp.bfloat16)
        kh = qkv[:, D + lo:D + lo + Dh].astype(jnp.bfloat16)
        vh = qkv[:, 2 * D + lo:2 * D + lo + Dh].astype(jnp.bfloat16)
        s = jax.lax.dot_general(
            qh, kh, (((1,), (1,)), ((), ())),
            preferred_element_type=jnp.float32) * scale               # (T, T)
        s = s + mrow
        s = s - jnp.max(s, axis=-1, keepdims=True)
        p = jnp.exp(s)
        p = p * pl.reciprocal(jnp.sum(p, axis=-1, keepdims=True), approx=True)
        heads.append(jnp.dot(p.astype(jnp.bfloat16), vh,
                             preferred_element_type=jnp.float32))     # (T, Dh)
    a = jnp.concatenate(heads, axis=-1)                               # (T, D)
    a = jnp.dot(a.astype(jnp.bfloat16), projw_ref[0],
                preferred_element_type=jnp.float32) + projb_ref[0]
    x = x + a                                                         # residual

    # ---- MLP sublayer (pre-LN) ----
    h2 = _ln(x, ln2g_ref[0], ln2b_ref[0])
    m1 = jnp.dot(h2.astype(jnp.bfloat16), fc1w_ref[0],
                 preferred_element_type=jnp.float32) + fc1b_ref[0]
    m1 = jax.nn.gelu(m1, approximate=True)
    m2 = jnp.dot(m1.astype(jnp.bfloat16), fc2w_ref[0],
                 preferred_element_type=jnp.float32) + fc2b_ref[0]
    o_ref[0] = x + m2                                                 # residual

    @pl.when(layer == pl.num_programs(1) - 1)
    def _():
        o_ref[0] = _ln(o_ref[0], lnfg_ref[0], lnfb_ref[0])


def fused_encoder(x, mask_add, blocks, lnf_g, lnf_b, num_heads):
    """x:(B,T,D) f32, mask_add:(B,1,T) additive. Whole encoder in one call."""
    Bx, T, D = x.shape
    L = blocks["qkv_w"].shape[0]
    H = blocks["fc1_w"].shape[-1]
    Dh = D // num_heads
    kern = partial(_encoder_kernel, num_heads=num_heads, scale=1.0 / (Dh ** 0.5))
    bat = lambda b, l: (b, 0, 0)
    lyr = lambda b, l: (l, 0, 0)
    fix = lambda b, l: (0, 0, 0)
    return pl.pallas_call(
        kern,
        out_shape=jax.ShapeDtypeStruct((Bx, T, D), jnp.float32),
        grid=(Bx, L),
        in_specs=[
            pl.BlockSpec((1, T, D), bat),        # x (used at layer 0)
            pl.BlockSpec((1, 1, T), bat),        # additive key mask
            pl.BlockSpec((1, 1, D), lyr),        # ln1_g
            pl.BlockSpec((1, 1, D), lyr),        # ln1_b
            pl.BlockSpec((1, D, 3 * D), lyr),    # qkv_w (bf16)
            pl.BlockSpec((1, 1, 3 * D), lyr),    # qkv_b
            pl.BlockSpec((1, D, D), lyr),        # proj_w (bf16)
            pl.BlockSpec((1, 1, D), lyr),        # proj_b
            pl.BlockSpec((1, 1, D), lyr),        # ln2_g
            pl.BlockSpec((1, 1, D), lyr),        # ln2_b
            pl.BlockSpec((1, D, H), lyr),        # fc1_w (bf16)
            pl.BlockSpec((1, 1, H), lyr),        # fc1_b
            pl.BlockSpec((1, H, D), lyr),        # fc2_w (bf16)
            pl.BlockSpec((1, 1, D), lyr),        # fc2_b
            pl.BlockSpec((1, 1, D), fix),        # final ln g
            pl.BlockSpec((1, 1, D), fix),        # final ln b
        ],
        out_specs=pl.BlockSpec((1, T, D), bat),
        compiler_params=pltpu.CompilerParams(
            dimension_semantics=("parallel", "arbitrary")),
    )(x, mask_add,
      blocks["ln1_g"], blocks["ln1_b"], blocks["qkv_w"], blocks["qkv_b"],
      blocks["proj_w"], blocks["proj_b"], blocks["ln2_g"], blocks["ln2_b"],
      blocks["fc1_w"], blocks["fc1_b"], blocks["fc2_w"], blocks["fc2_b"],
      lnf_g.reshape(1, 1, D), lnf_b.reshape(1, 1, D))


# ----------------------------- composite modules ----------------------------


def _pad_seq(x, mask_add, t_pad):
    """Pad (B,T,D) / (B,1,T) along T; padded keys get additive MASK_NEG."""
    T = x.shape[1]
    if t_pad == T:
        return x, mask_add
    x = jnp.pad(x, ((0, 0), (0, t_pad - T), (0, 0)))
    mask_add = jnp.pad(mask_add, ((0, 0), (0, 0), (0, t_pad - T)),
                       constant_values=MASK_NEG)
    return x, mask_add


def text_transformer(ids, mask, p, num_heads):
    """TextTransformer: tok-embed + pos-embed + fused blocks + final LN.
    Returns (embeds (B,L,D), additive attention mask (B,1,L))."""
    Bt, L = ids.shape
    D = p["tok_emb"].shape[1]
    x = jnp.take(p["tok_emb"], ids, axis=0) + p["pos_emb"]          # (B,L,D)
    add_mask = (1.0 - mask.astype(jnp.float32))[:, None, :] * MASK_NEG
    t_pad = _round_up(L, 8)
    x_p, m_p = _pad_seq(x, add_mask, t_pad)
    enc = fused_encoder(x_p, m_p, p["blocks"], p["ln_g"], p["ln_b"], num_heads)
    return enc[:, :L], add_mask


# ----------------------------- parameter init -------------------------------


def _init_blocks(key, L, D, mlp_ratio=MLP_RATIO):
    """Stacked per-layer block weights (leading layer axis, matmul weights bf16)."""
    H = int(D * mlp_ratio)
    k = jax.random.split(key, 4)
    n = lambda kk, s: 0.02 * jax.random.normal(kk, s, jnp.float32)
    return dict(
        ln1_g=jnp.ones((L, 1, D), jnp.float32),
        ln1_b=jnp.zeros((L, 1, D), jnp.float32),
        qkv_w=n(k[0], (L, D, 3 * D)).astype(jnp.bfloat16),
        qkv_b=jnp.zeros((L, 1, 3 * D), jnp.float32),
        proj_w=n(k[1], (L, D, D)).astype(jnp.bfloat16),
        proj_b=jnp.zeros((L, 1, D), jnp.float32),
        ln2_g=jnp.ones((L, 1, D), jnp.float32),
        ln2_b=jnp.zeros((L, 1, D), jnp.float32),
        fc1_w=n(k[2], (L, D, H)).astype(jnp.bfloat16),
        fc1_b=jnp.zeros((L, 1, H), jnp.float32),
        fc2_w=n(k[3], (L, H, D)).astype(jnp.bfloat16),
        fc2_b=jnp.zeros((L, 1, D), jnp.float32),
    )


def init_params(key):
    keys = jax.random.split(key, 16)
    n = lambda kk, s: 0.02 * jax.random.normal(kk, s, jnp.float32)
    patch_vol = IN_CHANS * PATCH[0] * PATCH[1] * PATCH[2]
    n_img_tokens = 1 + (IMG_SHAPE[0] // PATCH[0]) * (IMG_SHAPE[1] // PATCH[1]) * (
        IMG_SHAPE[2] // PATCH[2])
    return dict(
        # --- img tokenizer (ImgTokenizerMSShare) ---
        patch_w=n(keys[0], (patch_vol, EMBED_IMG)),
        patch_b=jnp.zeros((EMBED_IMG,), jnp.float32),
        cls_token=n(keys[1], (1, 1, EMBED_IMG)),
        img_pos_emb=n(keys[2], (1, n_img_tokens, EMBED_IMG)),
        # --- CTViT encoder ---
        img_blocks=_init_blocks(keys[3], DEPTH, EMBED_IMG),
        img_ln_g=jnp.ones((EMBED_IMG,), jnp.float32),
        img_ln_b=jnp.zeros((EMBED_IMG,), jnp.float32),
        cross_img_w=n(keys[4], (EMBED_IMG, TA_DIM)),
        cross_img_b=jnp.zeros((TA_DIM,), jnp.float32),
        # --- TextTransformer (shared by txt and task questions) ---
        txt=dict(
            tok_emb=n(keys[5], (VOCAB, TXT_DIM)),
            pos_emb=n(keys[6], (1, TXT_LEN, TXT_DIM)),
            blocks=_init_blocks(keys[7], TXT_DEPTH, TXT_DIM),
            ln_g=jnp.ones((TXT_DIM,), jnp.float32),
            ln_b=jnp.zeros((TXT_DIM,), jnp.float32),
        ),
        cross_txt_w=n(keys[8], (TXT_DIM, TA_DIM)),
        cross_txt_b=jnp.zeros((TA_DIM,), jnp.float32),
        cross_task_w=n(keys[9], (TXT_DIM, TA_DIM)),
        cross_task_b=jnp.zeros((TA_DIM,), jnp.float32),
        # --- task registers + TaskEncoder ---
        task_registers=n(keys[10], (1, NUM_TASK_REGISTERS, TA_DIM)),
        ta_blocks=_init_blocks(keys[11], TA_DEPTH, TA_DIM),
        ta_ln_g=jnp.ones((TA_DIM,), jnp.float32),
        ta_ln_b=jnp.zeros((TA_DIM,), jnp.float32),
        # --- MTHead (simplified to a single linear head) ---
        head_w=n(keys[12], (TA_DIM, MAX_FOLLOWUP)),
        head_b=jnp.zeros((MAX_FOLLOWUP,), jnp.float32),
    )


# ----------------------------- forward (pred_embeds + head) -----------------


@jax.jit
def m3fm_forward(params, imgs, txt_ids, txt_mask, q_ids, q_mask):
    Bi, C, Z, Y, X = imgs.shape
    pz, py, px = PATCH
    gz, gy, gx = Z // pz, Y // py, X // px
    n_patches = gz * gy * gx

    # ---- img tokenizer: patchify (NCDHW) + Pallas matmul (== Conv3d stride=patch)
    patches = imgs.reshape(Bi, C, gz, pz, gy, py, gx, px)
    patches = patches.transpose(0, 2, 4, 6, 1, 3, 5, 7).reshape(
        Bi * n_patches, C * pz * py * px)
    tok = linear(patches, params["patch_w"], params["patch_b"]).reshape(
        Bi, n_patches, EMBED_IMG)
    cls = jnp.broadcast_to(params["cls_token"], (Bi, 1, EMBED_IMG))
    x_img = jnp.concatenate([cls, tok], axis=1) + params["img_pos_emb"]
    T_img = x_img.shape[1]

    # ---- CTViT encoder (no att_mask supplied -> unmasked attention over the
    #      real tokens; pads masked out)
    attn_img_mask = jnp.zeros((Bi, 1, T_img), jnp.float32)
    T_img_p = _round_up(T_img, 8)
    x_img_p, img_mask_p = _pad_seq(x_img, attn_img_mask, T_img_p)
    x_img_p = fused_encoder(x_img_p, img_mask_p, params["img_blocks"],
                            params["img_ln_g"], params["img_ln_b"], NUM_HEADS)
    img_embeds = linear(
        x_img_p.reshape(Bi * T_img_p, EMBED_IMG),
        params["cross_img_w"], params["cross_img_b"],
    ).reshape(Bi, T_img_p, TA_DIM)[:, :T_img]

    # ---- txt modality
    txt_embeds, attn_txt_mask = text_transformer(
        txt_ids, txt_mask, params["txt"], TXT_HEADS)
    Lt = txt_embeds.shape[1]
    txt_embeds = linear(
        txt_embeds.reshape(Bi * Lt, TXT_DIM),
        params["cross_txt_w"], params["cross_txt_b"],
    ).reshape(Bi, Lt, TA_DIM)

    embeds_all = jnp.concatenate([img_embeds, txt_embeds], axis=1)
    masks_all = jnp.concatenate([attn_img_mask, attn_txt_mask], axis=-1)

    # ---- task registers
    regs = jnp.broadcast_to(params["task_registers"],
                            (Bi, NUM_TASK_REGISTERS, TA_DIM))
    regs_mask = jnp.zeros((Bi, 1, NUM_TASK_REGISTERS), jnp.float32)
    embeds_all = jnp.concatenate([regs, embeds_all], axis=1)
    masks_all = jnp.concatenate([regs_mask, masks_all], axis=-1)

    # ---- task prompt (questions through shared text encoder, take CLS)
    task_full, _ = text_transformer(q_ids, q_mask, params["txt"], TXT_HEADS)
    task_cls = task_full[:, 0, :]                                     # (B, TXT_DIM)
    task_embeds = linear(task_cls, params["cross_task_w"],
                         params["cross_task_b"])[:, None, :]          # (B,1,TA)
    task_mask = jnp.zeros((Bi, 1, 1), jnp.float32)
    embeds_all = jnp.concatenate([task_embeds, embeds_all], axis=1)
    masks_all = jnp.concatenate([task_mask, masks_all], axis=-1)

    # ---- TaskEncoder (fused)
    T_all = embeds_all.shape[1]
    T_all_p = _round_up(T_all, 8)
    embeds_p, masks_p = _pad_seq(embeds_all, masks_all, T_all_p)
    embeds_p = fused_encoder(embeds_p, masks_p, params["ta_blocks"],
                             params["ta_ln_g"], params["ta_ln_b"], TA_HEADS)

    embeds_pred = embeds_p[:, 0, :]                                   # (B, TA)
    logits = linear(embeds_pred, params["head_w"], params["head_b"])
    return embeds_pred, logits


# ----------------------------- main ------------------------------------------

if __name__ == "__main__":
    key = jax.random.PRNGKey(0)
    kp, kd, kt, kq = jax.random.split(key, 4)

    params = init_params(kp)

    # deterministic synthetic inputs (post "load_data" shapes)
    imgs = jax.random.normal(kd, (B, IN_CHANS) + IMG_SHAPE, jnp.float32)
    txt_ids = jax.random.randint(kt, (B, TXT_LEN), 0, VOCAB, jnp.int32)
    txt_mask = jnp.concatenate(
        [jnp.ones((B, TXT_LEN - 2), jnp.int32), jnp.zeros((B, 2), jnp.int32)], axis=1
    )
    q_ids = jax.random.randint(kq, (B, TXT_LEN), 0, VOCAB, jnp.int32)
    q_mask = jnp.ones((B, TXT_LEN), jnp.int32)

    embeds_pred, logits = m3fm_forward(params, imgs, txt_ids, txt_mask, q_ids, q_mask)
    jax.block_until_ready((embeds_pred, logits))

    assert embeds_pred.shape == (B, TA_DIM)
    assert logits.shape == (B, MAX_FOLLOWUP)
    assert bool(jnp.all(jnp.isfinite(embeds_pred))) and bool(jnp.all(jnp.isfinite(logits)))
    print("KERNEL_OK")
</pallas_src>

<mosaic_0001>
module attributes {stable_mosaic.version = 11 : i64} {
  func.func @_matmul_bias_kernel(%arg0: i32, %arg1: memref<16x32xf32, #tpu.memory_space<vmem>>, %arg2: memref<32x32xf32, #tpu.memory_space<vmem>>, %arg3: memref<1x32xf32, #tpu.memory_space<vmem>>, %arg4: memref<16x32xf32, #tpu.memory_space<vmem>>) attributes {dimension_semantics = [#tpu.dimension_semantics<arbitrary>], iteration_bounds = array<i64: 1>, scalar_prefetch = 0 : i64, scratch_operands = 0 : i64, tpu.core_type = #tpu.core_type<tc>, window_params = [{pipeline_mode = #tpu.pipeline_mode<synchronous>, transform_indices = @transform_0, window_bounds = array<i64: 16, 32>}, {pipeline_mode = #tpu.pipeline_mode<synchronous>, transform_indices = @transform_1, window_bounds = array<i64: 32, 32>}, {pipeline_mode = #tpu.pipeline_mode<synchronous>, transform_indices = @transform_2, window_bounds = array<i64: 1, 32>}, {pipeline_mode = #tpu.pipeline_mode<synchronous>, transform_indices = @transform_3, window_bounds = array<i64: 16, 32>}]} {
    %c0 = arith.constant 0 : index
    %c0_0 = arith.constant 0 : index
    %0 = vector.load %arg1[%c0, %c0_0] : memref<16x32xf32, #tpu.memory_space<vmem>>, vector<16x32xf32>
    %c0_1 = arith.constant 0 : index
    %c0_2 = arith.constant 0 : index
    %1 = vector.load %arg2[%c0_1, %c0_2] : memref<32x32xf32, #tpu.memory_space<vmem>>, vector<32x32xf32>
    %cst = arith.constant dense<0.000000e+00> : vector<16x32xf32>
    %2 = tpu.matmul %0, %1, %cst {dimension_numbers = #tpu.dot_dimension_numbers<[1], [0], [0], [1], [0, 0, 1, 1], [], []>} : vector<16x32xf32>, vector<32x32xf32>, vector<16x32xf32> -> vector<16x32xf32>
    %c0_3 = arith.constant 0 : index
    %c0_4 = arith.constant 0 : index
    %3 = vector.load %arg3[%c0_3, %c0_4] : memref<1x32xf32, #tpu.memory_space<vmem>>, vector<1x32xf32>
    %4 = vector.broadcast %3 : vector<1x32xf32> to vector<16x32xf32>
    %5 = arith.addf %2, %4 : vector<16x32xf32>
    %c0_5 = arith.constant 0 : index
    %c0_6 = arith.constant 0 : index
    %6 = vector.load %arg4[%c0_5, %c0_6] : memref<16x32xf32, #tpu.memory_space<vmem>>, vector<16x32xf32>
    tpu.vector_store %arg4[%c0_5, %c0_6], %5 {strides = array<i32>} : memref<16x32xf32, #tpu.memory_space<vmem>>, vector<16x32xf32>,
    return
  }
  func.func @transform_0(%arg0: i32) -> (i32, i32) {
    %c0_i32 = arith.constant 0 : i32
    %c0_i32_0 = arith.constant 0 : i32
    %c0_i32_1 = arith.constant 0 : i32
    return %c0_i32, %c0_i32_0 : i32, i32
  }
  func.func @transform_1(%arg0: i32) -> (i32, i32) {
    %c0_i32 = arith.constant 0 : i32
    %c0_i32_0 = arith.constant 0 : i32
    %c0_i32_1 = arith.constant 0 : i32
    return %c0_i32, %c0_i32_0 : i32, i32
  }
  func.func @transform_2(%arg0: i32) -> (i32, i32) {
    %c0_i32 = arith.constant 0 : i32
    %c0_i32_0 = arith.constant 0 : i32
    %c0_i32_1 = arith.constant 0 : i32
    return %c0_i32, %c0_i32_0 : i32, i32
  }
  func.func @transform_3(%arg0: i32) -> (i32, i32) {
    %c0_i32 = arith.constant 0 : i32
    %c0_i32_0 = arith.constant 0 : i32
    %c0_i32_1 = arith.constant 0 : i32
    return %c0_i32, %c0_i32_0 : i32, i32
  }
}

module attributes {stable_mosaic.version = 11 : i64} {
  func.func @_matmul_bias_kernel(%arg0: i32, %arg1: memref<2x32xf32, #tpu.memory_space<vmem>>, %arg2: memref<32x32xf32, #tpu.memory_space<vmem>>, %arg3: memref<1x32xf32, #tpu.memory_space<vmem>>, %arg4: memref<2x32xf32, #tpu.memory_space<vmem>>) attributes {dimension_semantics = [#tpu.dimension_semantics<arbitrary>], iteration_bounds = array<i64: 1>, scalar_prefetch = 0 : i64, scratch_operands = 0 : i64, tpu.core_type = #tpu.core_type<tc>, window_params = [{pipeline_mode = #tpu.pipeline_mode<synchronous>, transform_indices = @transform_0, window_bounds = array<i64: 2, 32>}, {pipeline_mode = #tpu.pipeline_mode<synchronous>, transform_indices = @transform_1, window_bounds = array<i64: 32, 32>}, {pipeline_mode = #tpu.pipeline_mode<synchronous>, transform_indices = @transform_2, window_bounds = array<i64: 1, 32>}, {pipeline_mode = #tpu.pipeline_mode<synchronous>, transform_indices = @transform_3, window_bounds = array<i64: 2, 32>}]} {
    %c0 = arith.constant 0 : index
    %c0_0 = arith.constant 0 : index
    %0 = vector.load %arg1[%c0, %c0_0] : memref<2x32xf32, #tpu.memory_space<vmem>>, vector<2x32xf32>
    %c0_1 = arith.constant 0 : index
    %c0_2 = arith.constant 0 : index
    %1 = vector.load %arg2[%c0_1, %c0_2] : memref<32x32xf32, #tpu.memory_space<vmem>>, vector<32x32xf32>
    %cst = arith.constant dense<0.000000e+00> : vector<2x32xf32>
    %2 = tpu.matmul %0, %1, %cst {dimension_numbers = #tpu.dot_dimension_numbers<[1], [0], [0], [1], [0, 0, 1, 1], [], []>} : vector<2x32xf32>, vector<32x32xf32>, vector<2x32xf32> -> vector<2x32xf32>
    %c0_3 = arith.constant 0 : index
    %c0_4 = arith.constant 0 : index
    %3 = vector.load %arg3[%c0_3, %c0_4] : memref<1x32xf32, #tpu.memory_space<vmem>>, vector<1x32xf32>
    %4 = vector.broadcast %3 : vector<1x32xf32> to vector<2x32xf32>
    %5 = arith.addf %2, %4 : vector<2x32xf32>
    %c0_5 = arith.constant 0 : index
    %c0_6 = arith.constant 0 : index
    %6 = vector.load %arg4[%c0_5, %c0_6] : memref<2x32xf32, #tpu.memory_space<vmem>>, vector<2x32xf32>
    tpu.vector_store %arg4[%c0_5, %c0_6], %5 {strides = array<i32>} : memref<2x32xf32, #tpu.memory_space<vmem>>, vector<2x32xf32>,
    return
  }
  func.func @transform_0(%arg0: i32) -> (i32, i32) {
    %c0_i32 = arith.constant 0 : i32
    %c0_i32_0 = arith.constant 0 : i32
    %c0_i32_1 = arith.constant 0 : i32
    return %c0_i32, %c0_i32_0 : i32, i32
  }
  func.func @transform_1(%arg0: i32) -> (i32, i32) {
    %c0_i32 = arith.constant 0 : i32
    %c0_i32_0 = arith.constant 0 : i32
    %c0_i32_1 = arith.constant 0 : i32
    return %c0_i32, %c0_i32_0 : i32, i32
  }
  func.func @transform_2(%arg0: i32) -> (i32, i32) {
    %c0_i32 = arith.constant 0 : i32
    %c0_i32_0 = arith.constant 0 : i32
    %c0_i32_1 = arith.constant 0 : i32
    return %c0_i32, %c0_i32_0 : i32, i32
  }
  func.func @transform_3(%arg0: i32) -> (i32, i32) {
    %c0_i32 = arith.constant 0 : i32
    %c0_i32_0 = arith.constant 0 : i32
    %c0_i32_1 = arith.constant 0 : i32
    return %c0_i32, %c0_i32_0 : i32, i32
  }
}

module attributes {stable_mosaic.version = 11 : i64} {
  func.func @_encoder_kernel(%arg0: i32, %arg1: i32, %arg2: memref<1x8x32xf32, #tpu.memory_space<vmem>>, %arg3: memref<1x1x8xf32, #tpu.memory_space<vmem>>, %arg4: memref<1x1x32xf32, #tpu.memory_space<vmem>>, %arg5: memref<1x1x32xf32, #tpu.memory_space<vmem>>, %arg6: memref<1x32x96xbf16, #tpu.memory_space<vmem>>, %arg7: memref<1x1x96xf32, #tpu.memory_space<vmem>>, %arg8: memref<1x32x32xbf16, #tpu.memory_space<vmem>>, %arg9: memref<1x1x32xf32, #tpu.memory_space<vmem>>, %arg10: memref<1x1x32xf32, #tpu.memory_space<vmem>>, %arg11: memref<1x1x32xf32, #tpu.memory_space<vmem>>, %arg12: memref<1x32x128xbf16, #tpu.memory_space<vmem>>, %arg13: memref<1x1x128xf32, #tpu.memory_space<vmem>>, %arg14: memref<1x128x32xbf16, #tpu.memory_space<vmem>>, %arg15: memref<1x1x32xf32, #tpu.memory_space<vmem>>, %arg16: memref<1x1x32xf32, #tpu.memory_space<vmem>>, %arg17: memref<1x1x32xf32, #tpu.memory_space<vmem>>, %arg18: memref<1x8x32xf32, #tpu.memory_space<vmem>>) attributes {dimension_semantics = [#tpu.dimension_semantics<parallel>, #tpu.dimension_semantics<arbitrary>], iteration_bounds = array<i64: 2, 2>, scalar_prefetch = 0 : i64, scratch_operands = 0 : i64, tpu.core_type = #tpu.core_type<tc>, window_params = [{transform_indices = @transform_0, window_bounds = array<i64: 1, 8, 32>}, {transform_indices = @transform_1, window_bounds = array<i64: 1, 1, 8>}, {transform_indices = @transform_2, window_bounds = array<i64: 1, 1, 32>}, {transform_indices = @transform_3, window_bounds = array<i64: 1, 1, 32>}, {transform_indices = @transform_4, window_bounds = array<i64: 1, 32, 96>}, {transform_indices = @transform_5, window_bounds = array<i64: 1, 1, 96>}, {transform_indices = @transform_6, window_bounds = array<i64: 1, 32, 32>}, {transform_indices = @transform_7, window_bounds = array<i64: 1, 1, 32>}, {transform_indices = @transform_8, window_bounds = array<i64: 1, 1, 32>}, {transform_indices = @transform_9, window_bounds = array<i64: 1, 1, 32>}, {transform_indices = @transform_10, window_bounds = array<i64: 1, 32, 128>}, {transform_indices = @transform_11, window_bounds = array<i64: 1, 1, 128>}, {transform_indices = @transform_12, window_bounds = array<i64: 1, 128, 32>}, {transform_indices = @transform_13, window_bounds = array<i64: 1, 1, 32>}, {pipeline_mode = #tpu.pipeline_mode<synchronous>, transform_indices = @transform_14, window_bounds = array<i64: 1, 1, 32>}, {pipeline_mode = #tpu.pipeline_mode<synchronous>, transform_indices = @transform_15, window_bounds = array<i64: 1, 1, 32>}, {transform_indices = @transform_16, window_bounds = array<i64: 1, 8, 32>}]} {
    %c0_i32 = arith.constant 0 : i32
    %0 = arith.cmpi eq, %arg1, %c0_i32 : i32
    %1 = arith.extui %0 : i1 to i32
    %c0_i32_0 = arith.constant 0 : i32
    %2 = arith.cmpi ne, %1, %c0_i32_0 : i32
    scf.if %2 {
      %c0_83 = arith.constant 0 : index
      %c0_84 = arith.constant 0 : index
      %c0_85 = arith.constant 0 : index
      %201 = vector.load %arg2[%c0_83, %c0_84, %c0_85] : memref<1x8x32xf32, #tpu.memory_space<vmem>>, vector<1x8x32xf32>
      %202 = vector.shape_cast %201 : vector<1x8x32xf32> to vector<8x32xf32>
      %c0_86 = arith.constant 0 : index
      %c0_87 = arith.constant 0 : index
      %c0_88 = arith.constant 0 : index
      %203 = vector.load %arg18[%c0_86, %c0_87, %c0_88] : memref<1x8x32xf32, #tpu.memory_space<vmem>>, vector<1x8x32xf32>
      %204 = vector.shape_cast %203 : vector<1x8x32xf32> to vector<8x32xf32>
      %205 = vector.shape_cast %202 : vector<8x32xf32> to vector<1x8x32xf32>
      tpu.vector_store %arg18[%c0_86, %c0_87, %c0_88], %205 {strides = array<i32>} : memref<1x8x32xf32, #tpu.memory_space<vmem>>, vector<1x8x32xf32>,
    } else {
    }
    %c0 = arith.constant 0 : index
    %c0_1 = arith.constant 0 : index
    %c0_2 = arith.constant 0 : index
    %3 = vector.load %arg18[%c0, %c0_1, %c0_2] : memref<1x8x32xf32, #tpu.memory_space<vmem>>, vector<1x8x32xf32>
    %4 = vector.shape_cast %3 : vector<1x8x32xf32> to vector<8x32xf32>
    %c0_3 = arith.constant 0 : index
    %c0_4 = arith.constant 0 : index
    %c0_5 = arith.constant 0 : index
    %5 = vector.load %arg3[%c0_3, %c0_4, %c0_5] : memref<1x1x8xf32, #tpu.memory_space<vmem>>, vector<1x1x8xf32>
    %6 = vector.shape_cast %5 : vector<1x1x8xf32> to vector<1x8xf32>
    %c0_6 = arith.constant 0 : index
    %c0_7 = arith.constant 0 : index
    %c0_8 = arith.constant 0 : index
    %7 = vector.load %arg4[%c0_6, %c0_7, %c0_8] : memref<1x1x32xf32, #tpu.memory_space<vmem>>, vector<1x1x32xf32>
    %8 = vector.shape_cast %7 : vector<1x1x32xf32> to vector<1x32xf32>
    %c0_9 = arith.constant 0 : index
    %c0_10 = arith.constant 0 : index
    %c0_11 = arith.constant 0 : index
    %9 = vector.load %arg5[%c0_9, %c0_10, %c0_11] : memref<1x1x32xf32, #tpu.memory_space<vmem>>, vector<1x1x32xf32>
    %10 = vector.shape_cast %9 : vector<1x1x32xf32> to vector<1x32xf32>
    %cst = arith.constant dense<0.000000e+00> : vector<8xf32>
    %11 = vector.multi_reduction <add>, %4, %cst [1] : vector<8x32xf32> to vector<8xf32>
    %12 = vector.shape_cast %11 : vector<8xf32> to vector<8x1xf32>
    %cst_12 = arith.constant 3.200000e+01 : f32
    %13 = vector.broadcast %cst_12 : f32 to vector<8x1xf32>
    %14 = arith.divf %12, %13 : vector<8x1xf32>
    %15 = vector.broadcast %14 : vector<8x1xf32> to vector<8x32xf32>
    %16 = arith.subf %4, %15 : vector<8x32xf32>
    %17 = arith.mulf %16, %16 : vector<8x32xf32>
    %cst_13 = arith.constant dense<0.000000e+00> : vector<8xf32>
    %18 = vector.multi_reduction <add>, %17, %cst_13 [1] : vector<8x32xf32> to vector<8xf32>
    %19 = vector.shape_cast %18 : vector<8xf32> to vector<8x1xf32>
    %cst_14 = arith.constant 3.200000e+01 : f32
    %20 = vector.broadcast %cst_14 : f32 to vector<8x1xf32>
    %21 = arith.divf %19, %20 : vector<8x1xf32>
    %cst_15 = arith.constant 9.99999997E-7 : f32
    %22 = vector.broadcast %cst_15 : f32 to vector<8x1xf32>
    %23 = arith.addf %21, %22 : vector<8x1xf32>
    %24 = math.rsqrt %23 : vector<8x1xf32>
    %25 = vector.broadcast %24 : vector<8x1xf32> to vector<8x32xf32>
    %26 = arith.mulf %16, %25 : vector<8x32xf32>
    %27 = vector.broadcast %8 : vector<1x32xf32> to vector<8x32xf32>
    %28 = arith.mulf %26, %27 : vector<8x32xf32>
    %29 = vector.broadcast %10 : vector<1x32xf32> to vector<8x32xf32>
    %30 = arith.addf %28, %29 : vector<8x32xf32>
    %31 = arith.truncf %30 : vector<8x32xf32> to vector<8x32xbf16>
    %c0_16 = arith.constant 0 : index
    %c0_17 = arith.constant 0 : index
    %c0_18 = arith.constant 0 : index
    %32 = vector.load %arg6[%c0_16, %c0_17, %c0_18] : memref<1x32x96xbf16, #tpu.memory_space<vmem>>, vector<1x32x96xbf16>
    %33 = vector.shape_cast %32 : vector<1x32x96xbf16> to vector<32x96xbf16>
    %cst_19 = arith.constant dense<0.000000e+00> : vector<8x96xf32>
    %34 = tpu.matmul %31, %33, %cst_19 {dimension_numbers = #tpu.dot_dimension_numbers<[1], [0], [0], [1], [0, 0, 1, 1], [], []>} : vector<8x32xbf16>, vector<32x96xbf16>, vector<8x96xf32> -> vector<8x96xf32>
    %c0_20 = arith.constant 0 : index
    %c0_21 = arith.constant 0 : index
    %c0_22 = arith.constant 0 : index
    %35 = vector.load %arg7[%c0_20, %c0_21, %c0_22] : memref<1x1x96xf32, #tpu.memory_space<vmem>>, vector<1x1x96xf32>
    %36 = vector.shape_cast %35 : vector<1x1x96xf32> to vector<1x96xf32>
    %37 = vector.broadcast %36 : vector<1x96xf32> to vector<8x96xf32>
    %38 = arith.addf %34, %37 : vector<8x96xf32>
    %39 = vector.extract_strided_slice %38 {offsets = [0, 0], sizes = [8, 8], strides = [1, 1]} : vector<8x96xf32> to vector<8x8xf32>
    %40 = arith.truncf %39 : vector<8x8xf32> to vector<8x8xbf16>
    %41 = vector.extract_strided_slice %38 {offsets = [0, 32], sizes = [8, 8], strides = [1, 1]} : vector<8x96xf32> to vector<8x8xf32>
    %42 = arith.truncf %41 : vector<8x8xf32> to vector<8x8xbf16>
    %43 = vector.extract_strided_slice %38 {offsets = [0, 64], sizes = [8, 8], strides = [1, 1]} : vector<8x96xf32> to vector<8x8xf32>
    %44 = arith.truncf %43 : vector<8x8xf32> to vector<8x8xbf16>
    %cst_23 = arith.constant dense<0.000000e+00> : vector<8x8xf32>
    %45 = tpu.matmul %40, %42, %cst_23 {dimension_numbers = #tpu.dot_dimension_numbers<[1], [1], [0], [0], [0, 0, 1, 0], [], []>} : vector<8x8xbf16>, vector<8x8xbf16>, vector<8x8xf32> -> vector<8x8xf32>
    %cst_24 = arith.constant 0.353553385 : f32
    %46 = vector.broadcast %cst_24 : f32 to vector<8x8xf32>
    %47 = arith.mulf %45, %46 : vector<8x8xf32>
    %48 = vector.broadcast %6 : vector<1x8xf32> to vector<8x8xf32>
    %49 = arith.addf %47, %48 : vector<8x8xf32>
    %cst_25 = arith.constant dense<0xFF800000> : vector<8xf32>
    %50 = vector.multi_reduction <maximumf>, %49, %cst_25 [1] : vector<8x8xf32> to vector<8xf32>
    %51 = vector.shape_cast %50 : vector<8xf32> to vector<8x1xf32>
    %52 = vector.broadcast %51 : vector<8x1xf32> to vector<8x8xf32>
    %53 = arith.subf %49, %52 : vector<8x8xf32>
    %54 = math.exp %53 : vector<8x8xf32>
    %cst_26 = arith.constant dense<0.000000e+00> : vector<8xf32>
    %55 = vector.multi_reduction <add>, %54, %cst_26 [1] : vector<8x8xf32> to vector<8xf32>
    %56 = vector.shape_cast %55 : vector<8xf32> to vector<8x1xf32>
    %57 = tpu.reciprocal %56 {approx = true} : vector<8x1xf32> -> vector<8x1xf32>
    %58 = vector.broadcast %57 : vector<8x1xf32> to vector<8x8xf32>
    %59 = arith.mulf %54, %58 : vector<8x8xf32>
    %60 = arith.truncf %59 : vector<8x8xf32> to vector<8x8xbf16>
    %cst_27 = arith.constant dense<0.000000e+00> : vector<8x8xf32>
    %61 = tpu.matmul %60, %44, %cst_27 {dimension_numbers = #tpu.dot_dimension_numbers<[1], [0], [0], [1], [0, 0, 1, 1], [], []>} : vector<8x8xbf16>, vector<8x8xbf16>, vector<8x8xf32> -> vector<8x8xf32>
    %62 = vector.extract_strided_slice %38 {offsets = [0, 8], sizes = [8, 8], strides = [1, 1]} : vector<8x96xf32> to vector<8x8xf32>
    %63 = arith.truncf %62 : vector<8x8xf32> to vector<8x8xbf16>
    %64 = vector.extract_strided_slice %38 {offsets = [0, 40], sizes = [8, 8], strides = [1, 1]} : vector<8x96xf32> to vector<8x8xf32>
    %65 = arith.truncf %64 : vector<8x8xf32> to vector<8x8xbf16>
    %66 = vector.extract_strided_slice %38 {offsets = [0, 72], sizes = [8, 8], strides = [1, 1]} : vector<8x96xf32> to vector<8x8xf32>
    %67 = arith.truncf %66 : vector<8x8xf32> to vector<8x8xbf16>
    %cst_28 = arith.constant dense<0.000000e+00> : vector<8x8xf32>
    %68 = tpu.matmul %63, %65, %cst_28 {dimension_numbers = #tpu.dot_dimension_numbers<[1], [1], [0], [0], [0, 0, 1, 0], [], []>} : vector<8x8xbf16>, vector<8x8xbf16>, vector<8x8xf32> -> vector<8x8xf32>
    %cst_29 = arith.constant 0.353553385 : f32
    %69 = vector.broadcast %cst_29 : f32 to vector<8x8xf32>
    %70 = arith.mulf %68, %69 : vector<8x8xf32>
    %71 = vector.broadcast %6 : vector<1x8xf32> to vector<8x8xf32>
    %72 = arith.addf %70, %71 : vector<8x8xf32>
    %cst_30 = arith.constant dense<0xFF800000> : vector<8xf32>
    %73 = vector.multi_reduction <maximumf>, %72, %cst_30 [1] : vector<8x8xf32> to vector<8xf32>
    %74 = vector.shape_cast %73 : vector<8xf32> to vector<8x1xf32>
    %75 = vector.broadcast %74 : vector<8x1xf32> to vector<8x8xf32>
    %76 = arith.subf %72, %75 : vector<8x8xf32>
    %77 = math.exp %76 : vector<8x8xf32>
    %cst_31 = arith.constant dense<0.000000e+00> : vector<8xf32>
    %78 = vector.multi_reduction <add>, %77, %cst_31 [1] : vector<8x8xf32> to vector<8xf32>
    %79 = vector.shape_cast %78 : vector<8xf32> to vector<8x1xf32>
    %80 = tpu.reciprocal %79 {approx = true} : vector<8x1xf32> -> vector<8x1xf32>
    %81 = vector.broadcast %80 : vector<8x1xf32> to vector<8x8xf32>
    %82 = arith.mulf %77, %81 : vector<8x8xf32>
    %83 = arith.truncf %82 : vector<8x8xf32> to vector<8x8xbf16>
    %cst_32 = arith.constant dense<0.000000e+00> : vector<8x8xf32>
    %84 = tpu.matmul %83, %67, %cst_32 {dimension_numbers = #tpu.dot_dimension_numbers<[1], [0], [0], [1], [0, 0, 1, 1], [], []>} : vector<8x8xbf16>, vector<8x8xbf16>, vector<8x8xf32> -> vector<8x8xf32>
    %85 = vector.extract_strided_slice %38 {offsets = [0, 16], sizes = [8, 8], strides = [1, 1]} : vector<8x96xf32> to vector<8x8xf32>
    %86 = arith.truncf %85 : vector<8x8xf32> to vector<8x8xbf16>
    %87 = vector.extract_strided_slice %38 {offsets = [0, 48], sizes = [8, 8], strides = [1, 1]} : vector<8x96xf32> to vector<8x8xf32>
    %88 = arith.truncf %87 : vector<8x8xf32> to vector<8x8xbf16>
    %89 = vector.extract_strided_slice %38 {offsets = [0, 80], sizes = [8, 8], strides = [1, 1]} : vector<8x96xf32> to vector<8x8xf32>
    %90 = arith.truncf %89 : vector<8x8xf32> to vector<8x8xbf16>
    %cst_33 = arith.constant dense<0.000000e+00> : vector<8x8xf32>
    %91 = tpu.matmul %86, %88, %cst_33 {dimension_numbers = #tpu.dot_dimension_numbers<[1], [1], [0], [0], [0, 0, 1, 0], [], []>} : vector<8x8xbf16>, vector<8x8xbf16>, vector<8x8xf32> -> vector<8x8xf32>
    %cst_34 = arith.constant 0.353553385 : f32
    %92 = vector.broadcast %cst_34 : f32 to vector<8x8xf32>
    %93 = arith.mulf %91, %92 : vector<8x8xf32>
    %94 = vector.broadcast %6 : vector<1x8xf32> to vector<8x8xf32>
    %95 = arith.addf %93, %94 : vector<8x8xf32>
    %cst_35 = arith.constant dense<0xFF800000> : vector<8xf32>
    %96 = vector.multi_reduction <maximumf>, %95, %cst_35 [1] : vector<8x8xf32> to vector<8xf32>
    %97 = vector.shape_cast %96 : vector<8xf32> to vector<8x1xf32>
    %98 = vector.broadcast %97 : vector<8x1xf32> to vector<8x8xf32>
    %99 = arith.subf %95, %98 : vector<8x8xf32>
    %100 = math.exp %99 : vector<8x8xf32>
    %cst_36 = arith.constant dense<0.000000e+00> : vector<8xf32>
    %101 = vector.multi_reduction <add>, %100, %cst_36 [1] : vector<8x8xf32> to vector<8xf32>
    %102 = vector.shape_cast %101 : vector<8xf32> to vector<8x1xf32>
    %103 = tpu.reciprocal %102 {approx = true} : vector<8x1xf32> -> vector<8x1xf32>
    %104 = vector.broadcast %103 : vector<8x1xf32> to vector<8x8xf32>
    %105 = arith.mulf %100, %104 : vector<8x8xf32>
    %106 = arith.truncf %105 : vector<8x8xf32> to vector<8x8xbf16>
    %cst_37 = arith.constant dense<0.000000e+00> : vector<8x8xf32>
    %107 = tpu.matmul %106, %90, %cst_37 {dimension_numbers = #tpu.dot_dimension_numbers<[1], [0], [0], [1], [0, 0, 1, 1], [], []>} : vector<8x8xbf16>, vector<8x8xbf16>, vector<8x8xf32> -> vector<8x8xf32>
    %108 = vector.extract_strided_slice %38 {offsets = [0, 24], sizes = [8, 8], strides = [1, 1]} : vector<8x96xf32> to vector<8x8xf32>
    %109 = arith.truncf %108 : vector<8x8xf32> to vector<8x8xbf16>
    %110 = vector.extract_strided_slice %38 {offsets = [0, 56], sizes = [8, 8], strides = [1, 1]} : vector<8x96xf32> to vector<8x8xf32>
    %111 = arith.truncf %110 : vector<8x8xf32> to vector<8x8xbf16>
    %112 = vector.extract_strided_slice %38 {offsets = [0, 88], sizes = [8, 8], strides = [1, 1]} : vector<8x96xf32> to vector<8x8xf32>
    %113 = arith.truncf %112 : vector<8x8xf32> to vector<8x8xbf16>
    %cst_38 = arith.constant dense<0.000000e+00> : vector<8x8xf32>
    %114 = tpu.matmul %109, %111, %cst_38 {dimension_numbers = #tpu.dot_dimension_numbers<[1], [1], [0], [0], [0, 0, 1, 0], [], []>} : vector<8x8xbf16>, vector<8x8xbf16>, vector<8x8xf32> -> vector<8x8xf32>
    %cst_39 = arith.constant 0.353553385 : f32
    %115 = vector.broadcast %cst_39 : f32 to vector<8x8xf32>
    %116 = arith.mulf %114, %115 : vector<8x8xf32>
    %117 = vector.broadcast %6 : vector<1x8xf32> to vector<8x8xf32>
    %118 = arith.addf %116, %117 : vector<8x8xf32>
    %cst_40 = arith.constant dense<0xFF800000> : vector<8xf32>
    %119 = vector.multi_reduction <maximumf>, %118, %cst_40 [1] : vector<8x8xf32> to vector<8xf32>
    %120 = vector.shape_cast %119 : vector<8xf32> to vector<8x1xf32>
    %121 = vector.broadcast %120 : vector<8x1xf32> to vector<8x8xf32>
    %122 = arith.subf %118, %121 : vector<8x8xf32>
    %123 = math.exp %122 : vector<8x8xf32>
    %cst_41 = arith.constant dense<0.000000e+00> : vector<8xf32>
    %124 = vector.multi_reduction <add>, %123, %cst_41 [1] : vector<8x8xf32> to vector<8xf32>
    %125 = vector.shape_cast %124 : vector<8xf32> to vector<8x1xf32>
    %126 = tpu.reciprocal %125 {approx = true} : vector<8x1xf32> -> vector<8x1xf32>
    %127 = vector.broadcast %126 : vector<8x1xf32> to vector<8x8xf32>
    %128 = arith.mulf %123, %127 : vector<8x8xf32>
    %129 = arith.truncf %128 : vector<8x8xf32> to vector<8x8xbf16>
    %cst_42 = arith.constant dense<0.000000e+00> : vector<8x8xf32>
    %130 = tpu.matmul %129, %113, %cst_42 {dimension_numbers = #tpu.dot_dimension_numbers<[1], [0], [0], [1], [0, 0, 1, 1], [], []>} : vector<8x8xbf16>, vector<8x8xbf16>, vector<8x8xf32> -> vector<8x8xf32>
    %131 = tpu.concatenate %61, %84, %107, %130 in 1 : vector<8x8xf32>, vector<8x8xf32>, vector<8x8xf32>, vector<8x8xf32> -> vector<8x32xf32>
    %132 = arith.truncf %131 : vector<8x32xf32> to vector<8x32xbf16>
    %c0_43 = arith.constant 0 : index
    %c0_44 = arith.constant 0 : index
    %c0_45 = arith.constant 0 : index
    %133 = vector.load %arg8[%c0_43, %c0_44, %c0_45] : memref<1x32x32xbf16, #tpu.memory_space<vmem>>, vector<1x32x32xbf16>
    %134 = vector.shape_cast %133 : vector<1x32x32xbf16> to vector<32x32xbf16>
    %cst_46 = arith.constant dense<0.000000e+00> : vector<8x32xf32>
    %135 = tpu.matmul %132, %134, %cst_46 {dimension_numbers = #tpu.dot_dimension_numbers<[1], [0], [0], [1], [0, 0, 1, 1], [], []>} : vector<8x32xbf16>, vector<32x32xbf16>, vector<8x32xf32> -> vector<8x32xf32>
    %c0_47 = arith.constant 0 : index
    %c0_48 = arith.constant 0 : index
    %c0_49 = arith.constant 0 : index
    %136 = vector.load %arg9[%c0_47, %c0_48, %c0_49] : memref<1x1x32xf32, #tpu.memory_space<vmem>>, vector<1x1x32xf32>
    %137 = vector.shape_cast %136 : vector<1x1x32xf32> to vector<1x32xf32>
    %138 = vector.broadcast %137 : vector<1x32xf32> to vector<8x32xf32>
    %139 = arith.addf %135, %138 : vector<8x32xf32>
    %140 = arith.addf %4, %139 : vector<8x32xf32>
    %c0_50 = arith.constant 0 : index
    %c0_51 = arith.constant 0 : index
    %c0_52 = arith.constant 0 : index
    %141 = vector.load %arg10[%c0_50, %c0_51, %c0_52] : memref<1x1x32xf32, #tpu.memory_space<vmem>>, vector<1x1x32xf32>
    %142 = vector.shape_cast %141 : vector<1x1x32xf32> to vector<1x32xf32>
    %c0_53 = arith.constant 0 : index
    %c0_54 = arith.constant 0 : index
    %c0_55 = arith.constant 0 : index
    %143 = vector.load %arg11[%c0_53, %c0_54, %c0_55] : memref<1x1x32xf32, #tpu.memory_space<vmem>>, vector<1x1x32xf32>
    %144 = vector.shape_cast %143 : vector<1x1x32xf32> to vector<1x32xf32>
    %cst_56 = arith.constant dense<0.000000e+00> : vector<8xf32>
    %145 = vector.multi_reduction <add>, %140, %cst_56 [1] : vector<8x32xf32> to vector<8xf32>
    %146 = vector.shape_cast %145 : vector<8xf32> to vector<8x1xf32>
    %cst_57 = arith.constant 3.200000e+01 : f32
    %147 = vector.broadcast %cst_57 : f32 to vector<8x1xf32>
    %148 = arith.divf %146, %147 : vector<8x1xf32>
    %149 = vector.broadcast %148 : vector<8x1xf32> to vector<8x32xf32>
    %150 = arith.subf %140, %149 : vector<8x32xf32>
    %151 = arith.mulf %150, %150 : vector<8x32xf32>
    %cst_58 = arith.constant dense<0.000000e+00> : vector<8xf32>
    %152 = vector.multi_reduction <add>, %151, %cst_58 [1] : vector<8x32xf32> to vector<8xf32>
    %153 = vector.shape_cast %152 : vector<8xf32> to vector<8x1xf32>
    %cst_59 = arith.constant 3.200000e+01 : f32
    %154 = vector.broadcast %cst_59 : f32 to vector<8x1xf32>
    %155 = arith.divf %153, %154 : vector<8x1xf32>
    %cst_60 = arith.constant 9.99999997E-7 : f32
    %156 = vector.broadcast %cst_60 : f32 to vector<8x1xf32>
    %157 = arith.addf %155, %156 : vector<8x1xf32>
    %158 = math.rsqrt %157 : vector<8x1xf32>
    %159 = vector.broadcast %158 : vector<8x1xf32> to vector<8x32xf32>
    %160 = arith.mulf %150, %159 : vector<8x32xf32>
    %161 = vector.broadcast %142 : vector<1x32xf32> to vector<8x32xf32>
    %162 = arith.mulf %160, %161 : vector<8x32xf32>
    %163 = vector.broadcast %144 : vector<1x32xf32> to vector<8x32xf32>
    %164 = arith.addf %162, %163 : vector<8x32xf32>
    %165 = arith.truncf %164 : vector<8x32xf32> to vector<8x32xbf16>
    %c0_61 = arith.constant 0 : index
    %c0_62 = arith.constant 0 : index
    %c0_63 = arith.constant 0 : index
    %166 = vector.load %arg12[%c0_61, %c0_62, %c0_63] : memref<1x32x128xbf16, #tpu.memory_space<vmem>>, vector<1x32x128xbf16>
    %167 = vector.shape_cast %166 : vector<1x32x128xbf16> to vector<32x128xbf16>
    %cst_64 = arith.constant dense<0.000000e+00> : vector<8x128xf32>
    %168 = tpu.matmul %165, %167, %cst_64 {dimension_numbers = #tpu.dot_dimension_numbers<[1], [0], [0], [1], [0, 0, 1, 1], [], []>} : vector<8x32xbf16>, vector<32x128xbf16>, vector<8x128xf32> -> vector<8x128xf32>
    %c0_65 = arith.constant 0 : index
    %c0_66 = arith.constant 0 : index
    %c0_67 = arith.constant 0 : index
    %169 = vector.load %arg13[%c0_65, %c0_66, %c0_67] : memref<1x1x128xf32, #tpu.memory_space<vmem>>, vector<1x1x128xf32>
    %170 = vector.shape_cast %169 : vector<1x1x128xf32> to vector<1x128xf32>
    %171 = vector.broadcast %170 : vector<1x128xf32> to vector<8x128xf32>
    %172 = arith.addf %168, %171 : vector<8x128xf32>
    %173 = arith.mulf %172, %172 : vector<8x128xf32>
    %174 = arith.mulf %172, %173 : vector<8x128xf32>
    %cst_68 = arith.constant 4.471500e-02 : f32
    %175 = vector.broadcast %cst_68 : f32 to vector<8x128xf32>
    %176 = arith.mulf %175, %174 : vector<8x128xf32>
    %177 = arith.addf %172, %176 : vector<8x128xf32>
    %cst_69 = arith.constant 0.797884583 : f32
    %178 = vector.broadcast %cst_69 : f32 to vector<8x128xf32>
    %179 = arith.mulf %178, %177 : vector<8x128xf32>
    %180 = math.tanh %179 : vector<8x128xf32>
    %cst_70 = arith.constant 1.000000e+00 : f32
    %181 = vector.broadcast %cst_70 : f32 to vector<8x128xf32>
    %182 = arith.addf %181, %180 : vector<8x128xf32>
    %cst_71 = arith.constant 5.000000e-01 : f32
    %183 = vector.broadcast %cst_71 : f32 to vector<8x128xf32>
    %184 = arith.mulf %183, %182 : vector<8x128xf32>
    %185 = arith.mulf %172, %184 : vector<8x128xf32>
    %186 = arith.truncf %185 : vector<8x128xf32> to vector<8x128xbf16>
    %c0_72 = arith.constant 0 : index
    %c0_73 = arith.constant 0 : index
    %c0_74 = arith.constant 0 : index
    %187 = vector.load %arg14[%c0_72, %c0_73, %c0_74] : memref<1x128x32xbf16, #tpu.memory_space<vmem>>, vector<1x128x32xbf16>
    %188 = vector.shape_cast %187 : vector<1x128x32xbf16> to vector<128x32xbf16>
    %cst_75 = arith.constant dense<0.000000e+00> : vector<8x32xf32>
    %189 = tpu.matmul %186, %188, %cst_75 {dimension_numbers = #tpu.dot_dimension_numbers<[1], [0], [0], [1], [0, 0, 1, 1], [], []>} : vector<8x128xbf16>, vector<128x32xbf16>, vector<8x32xf32> -> vector<8x32xf32>
    %c0_76 = arith.constant 0 : index
    %c0_77 = arith.constant 0 : index
    %c0_78 = arith.constant 0 : index
    %190 = vector.load %arg15[%c0_76, %c0_77, %c0_78] : memref<1x1x32xf32, #tpu.memory_space<vmem>>, vector<1x1x32xf32>
    %191 = vector.shape_cast %190 : vector<1x1x32xf32> to vector<1x32xf32>
    %192 = vector.broadcast %191 : vector<1x32xf32> to vector<8x32xf32>
    %193 = arith.addf %189, %192 : vector<8x32xf32>
    %194 = arith.addf %140, %193 : vector<8x32xf32>
    %c0_79 = arith.constant 0 : index
    %c0_80 = arith.constant 0 : index
    %c0_81 = arith.constant 0 : index
    %195 = vector.load %arg18[%c0_79, %c0_80, %c0_81] : memref<1x8x32xf32, #tpu.memory_space<vmem>>, vector<1x8x32xf32>
    %196 = vector.shape_cast %195 : vector<1x8x32xf32> to vector<8x32xf32>
    %197 = vector.shape_cast %194 : vector<8x32xf32> to vector<1x8x32xf32>
    tpu.vector_store %arg18[%c0_79, %c0_80, %c0_81], %197 {strides = array<i32>} : memref<1x8x32xf32, #tpu.memory_space<vmem>>, vector<1x8x32xf32>,
    %c1_i32 = arith.constant 1 : i32
    %198 = arith.cmpi eq, %arg1, %c1_i32 : i32
    %199 = arith.extui %198 : i1 to i32
    %c0_i32_82 = arith.constant 0 : i32
    %200 = arith.cmpi ne, %199, %c0_i32_82 : i32
    scf.if %200 {
      %c0_83 = arith.constant 0 : index
      %c0_84 = arith.constant 0 : index
      %c0_85 = arith.constant 0 : index
      %201 = vector.load %arg18[%c0_83, %c0_84, %c0_85] : memref<1x8x32xf32, #tpu.memory_space<vmem>>, vector<1x8x32xf32>
      %202 = vector.shape_cast %201 : vector<1x8x32xf32> to vector<8x32xf32>
      %c0_86 = arith.constant 0 : index
      %c0_87 = arith.constant 0 : index
      %c0_88 = arith.constant 0 : index
      %203 = vector.load %arg16[%c0_86, %c0_87, %c0_88] : memref<1x1x32xf32, #tpu.memory_space<vmem>>, vector<1x1x32xf32>
      %204 = vector.shape_cast %203 : vector<1x1x32xf32> to vector<1x32xf32>
      %c0_89 = arith.constant 0 : index
      %c0_90 = arith.constant 0 : index
      %c0_91 = arith.constant 0 : index
      %205 = vector.load %arg17[%c0_89, %c0_90, %c0_91] : memref<1x1x32xf32, #tpu.memory_space<vmem>>, vector<1x1x32xf32>
      %206 = vector.shape_cast %205 : vector<1x1x32xf32> to vector<1x32xf32>
      %cst_92 = arith.constant dense<0.000000e+00> : vector<8xf32>
      %207 = vector.multi_reduction <add>, %202, %cst_92 [1] : vector<8x32xf32> to vector<8xf32>
      %208 = vector.shape_cast %207 : vector<8xf32> to vector<8x1xf32>
      %cst_93 = arith.constant 3.200000e+01 : f32
      %209 = vector.broadcast %cst_93 : f32 to vector<8x1xf32>
      %210 = arith.divf %208, %209 : vector<8x1xf32>
      %211 = vector.broadcast %210 : vector<8x1xf32> to vector<8x32xf32>
      %212 = arith.subf %202, %211 : vector<8x32xf32>
      %213 = arith.mulf %212, %212 : vector<8x32xf32>
      %cst_94 = arith.constant dense<0.000000e+00> : vector<8xf32>
      %214 = vector.multi_reduction <add>, %213, %cst_94 [1] : vector<8x32xf32> to vector<8xf32>
      %215 = vector.shape_cast %214 : vector<8xf32> to vector<8x1xf32>
      %cst_95 = arith.constant 3.200000e+01 : f32
      %216 = vector.broadcast %cst_95 : f32 to vector<8x1xf32>
      %217 = arith.divf %215, %216 : vector<8x1xf32>
      %cst_96 = arith.constant 9.99999997E-7 : f32
      %218 = vector.broadcast %cst_96 : f32 to vector<8x1xf32>
      %219 = arith.addf %217, %218 : vector<8x1xf32>
      %220 = math.rsqrt %219 : vector<8x1xf32>
      %221 = vector.broadcast %220 : vector<8x1xf32> to vector<8x32xf32>
      %222 = arith.mulf %212, %221 : vector<8x32xf32>
      %223 = vector.broadcast %204 : vector<1x32xf32> to vector<8x32xf32>
      %224 = arith.mulf %222, %223 : vector<8x32xf32>
      %225 = vector.broadcast %206 : vector<1x32xf32> to vector<8x32xf32>
      %226 = arith.addf %224, %225 : vector<8x32xf32>
      %c0_97 = arith.constant 0 : index
      %c0_98 = arith.constant 0 : index
      %c0_99 = arith.constant 0 : index
      %227 = vector.load %arg18[%c0_97, %c0_98, %c0_99] : memref<1x8x32xf32, #tpu.memory_space<vmem>>, vector<1x8x32xf32>
      %228 = vector.shape_cast %227 : vector<1x8x32xf32> to vector<8x32xf32>
      %229 = vector.shape_cast %226 : vector<8x32xf32> to vector<1x8x32xf32>
      tpu.vector_store %arg18[%c0_97, %c0_98, %c0_99], %229 {strides = array<i32>} : memref<1x8x32xf32, #tpu.memory_space<vmem>>, vector<1x8x32xf32>,
    } else {
    }
    return
  }
  func.func @transform_0(%arg0: i32, %arg1: i32) -> (i32, i32, i32) {
    %c0_i32 = arith.constant 0 : i32
    %c0_i32_0 = arith.constant 0 : i32
    %c0_i32_1 = arith.constant 0 : i32
    return %arg0, %c0_i32, %c0_i32_0 : i32, i32, i32
  }
  func.func @transform_1(%arg0: i32, %arg1: i32) -> (i32, i32, i32) {
    %c0_i32 = arith.constant 0 : i32
    %c0_i32_0 = arith.constant 0 : i32
    %c0_i32_1 = arith.constant 0 : i32
    return %arg0, %c0_i32, %c0_i32_0 : i32, i32, i32
  }
  func.func @transform_2(%arg0: i32, %arg1: i32) -> (i32, i32, i32) {
    %c0_i32 = arith.constant 0 : i32
    %c0_i32_0 = arith.constant 0 : i32
    %c0_i32_1 = arith.constant 0 : i32
    return %arg1, %c0_i32, %c0_i32_0 : i32, i32, i32
  }
  func.func @transform_3(%arg0: i32, %arg1: i32) -> (i32, i32, i32) {
    %c0_i32 = arith.constant 0 : i32
    %c0_i32_0 = arith.constant 0 : i32
    %c0_i32_1 = arith.constant 0 : i32
    return %arg1, %c0_i32, %c0_i32_0 : i32, i32, i32
  }
  func.func @transform_4(%arg0: i32, %arg1: i32) -> (i32, i32, i32) {
    %c0_i32 = arith.constant 0 : i32
    %c0_i32_0 = arith.constant 0 : i32
    %c0_i32_1 = arith.constant 0 : i32
    return %arg1, %c0_i32, %c0_i32_0 : i32, i32, i32
  }
  func.func @transform_5(%arg0: i32, %arg1: i32) -> (i32, i32, i32) {
    %c0_i32 = arith.constant 0 : i32
    %c0_i32_0 = arith.constant 0 : i32
    %c0_i32_1 = arith.constant 0 : i32
    return %arg1, %c0_i32, %c0_i32_0 : i32, i32, i32
  }
  func.func @transform_6(%arg0: i32, %arg1: i32) -> (i32, i32, i32) {
    %c0_i32 = arith.constant 0 : i32
    %c0_i32_0 = arith.constant 0 : i32
    %c0_i32_1 = arith.constant 0 : i32
    return %arg1, %c0_i32, %c0_i32_0 : i32, i32, i32
  }
  func.func @transform_7(%arg0: i32, %arg1: i32) -> (i32, i32, i32) {
    %c0_i32 = arith.constant 0 : i32
    %c0_i32_0 = arith.constant 0 : i32
    %c0_i32_1 = arith.constant 0 : i32
    return %arg1, %c0_i32, %c0_i32_0 : i32, i32, i32
  }
  func.func @transform_8(%arg0: i32, %arg1: i32) -> (i32, i32, i32) {
    %c0_i32 = arith.constant 0 : i32
    %c0_i32_0 = arith.constant 0 : i32
    %c0_i32_1 = arith.constant 0 : i32
    return %arg1, %c0_i32, %c0_i32_0 : i32, i32, i32
  }
  func.func @transform_9(%arg0: i32, %arg1: i32) -> (i32, i32, i32) {
    %c0_i32 = arith.constant 0 : i32
    %c0_i32_0 = arith.constant 0 : i32
    %c0_i32_1 = arith.constant 0 : i32
    return %arg1, %c0_i32, %c0_i32_0 : i32, i32, i32
  }
  func.func @transform_10(%arg0: i32, %arg1: i32) -> (i32, i32, i32) {
    %c0_i32 = arith.constant 0 : i32
    %c0_i32_0 = arith.constant 0 : i32
    %c0_i32_1 = arith.constant 0 : i32
    return %arg1, %c0_i32, %c0_i32_0 : i32, i32, i32
  }
  func.func @transform_11(%arg0: i32, %arg1: i32) -> (i32, i32, i32) {
    %c0_i32 = arith.constant 0 : i32
    %c0_i32_0 = arith.constant 0 : i32
    %c0_i32_1 = arith.constant 0 : i32
    return %arg1, %c0_i32, %c0_i32_0 : i32, i32, i32
  }
  func.func @transform_12(%arg0: i32, %arg1: i32) -> (i32, i32, i32) {
    %c0_i32 = arith.constant 0 : i32
    %c0_i32_0 = arith.constant 0 : i32
    %c0_i32_1 = arith.constant 0 : i32
    return %arg1, %c0_i32, %c0_i32_0 : i32, i32, i32
  }
  func.func @transform_13(%arg0: i32, %arg1: i32) -> (i32, i32, i32) {
    %c0_i32 = arith.constant 0 : i32
    %c0_i32_0 = arith.constant 0 : i32
    %c0_i32_1 = arith.constant 0 : i32
    return %arg1, %c0_i32, %c0_i32_0 : i32, i32, i32
  }
  func.func @transform_14(%arg0: i32, %arg1: i32) -> (i32, i32, i32) {
    %c0_i32 = arith.constant 0 : i32
    %c0_i32_0 = arith.constant 0 : i32
    %c0_i32_1 = arith.constant 0 : i32
    %c0_i32_2 = arith.constant 0 : i32
    return %c0_i32, %c0_i32_0, %c0_i32_1 : i32, i32, i32
  }
  func.func @transform_15(%arg0: i32, %arg1: i32) -> (i32, i32, i32) {
    %c0_i32 = arith.constant 0 : i32
    %c0_i32_0 = arith.constant 0 : i32
    %c0_i32_1 = arith.constant 0 : i32
    %c0_i32_2 = arith.constant 0 : i32
    return %c0_i32, %c0_i32_0, %c0_i32_1 : i32, i32, i32
  }
  func.func @transform_16(%arg0: i32, %arg1: i32) -> (i32, i32, i32) {
    %c0_i32 = arith.constant 0 : i32
    %c0_i32_0 = arith.constant 0 : i32
    %c0_i32_1 = arith.constant 0 : i32
    return %arg0, %c0_i32, %c0_i32_0 : i32, i32, i32
  }
}

module attributes {stable_mosaic.version = 11 : i64} {
  func.func @_matmul_bias_kernel(%arg0: i32, %arg1: memref<32x32xf32, #tpu.memory_space<vmem>>, %arg2: memref<32x32xf32, #tpu.memory_space<vmem>>, %arg3: memref<1x32xf32, #tpu.memory_space<vmem>>, %arg4: memref<32x32xf32, #tpu.memory_space<vmem>>) attributes {dimension_semantics = [#tpu.dimension_semantics<arbitrary>], iteration_bounds = array<i64: 1>, scalar_prefetch = 0 : i64, scratch_operands = 0 : i64, tpu.core_type = #tpu.core_type<tc>, window_params = [{pipeline_mode = #tpu.pipeline_mode<synchronous>, transform_indices = @transform_0, window_bounds = array<i64: 32, 32>}, {pipeline_mode = #tpu.pipeline_mode<synchronous>, transform_indices = @transform_1, window_bounds = array<i64: 32, 32>}, {pipeline_mode = #tpu.pipeline_mode<synchronous>, transform_indices = @transform_2, window_bounds = array<i64: 1, 32>}, {pipeline_mode = #tpu.pipeline_mode<synchronous>, transform_indices = @transform_3, window_bounds = array<i64: 32, 32>}]} {
    %c0 = arith.constant 0 : index
    %c0_0 = arith.constant 0 : index
    %0 = vector.load %arg1[%c0, %c0_0] : memref<32x32xf32, #tpu.memory_space<vmem>>, vector<32x32xf32>
    %c0_1 = arith.constant 0 : index
    %c0_2 = arith.constant 0 : index
    %1 = vector.load %arg2[%c0_1, %c0_2] : memref<32x32xf32, #tpu.memory_space<vmem>>, vector<32x32xf32>
    %cst = arith.constant dense<0.000000e+00> : vector<32x32xf32>
    %2 = tpu.matmul %0, %1, %cst {dimension_numbers = #tpu.dot_dimension_numbers<[1], [0], [0], [1], [0, 0, 1, 1], [], []>} : vector<32x32xf32>, vector<32x32xf32>, vector<32x32xf32> -> vector<32x32xf32>
    %c0_3 = arith.constant 0 : index
    %c0_4 = arith.constant 0 : index
    %3 = vector.load %arg3[%c0_3, %c0_4] : memref<1x32xf32, #tpu.memory_space<vmem>>, vector<1x32xf32>
    %4 = vector.broadcast %3 : vector<1x32xf32> to vector<32x32xf32>
    %5 = arith.addf %2, %4 : vector<32x32xf32>
    %c0_5 = arith.constant 0 : index
    %c0_6 = arith.constant 0 : index
    %6 = vector.load %arg4[%c0_5, %c0_6] : memref<32x32xf32, #tpu.memory_space<vmem>>, vector<32x32xf32>
    tpu.vector_store %arg4[%c0_5, %c0_6], %5 {strides = array<i32>} : memref<32x32xf32, #tpu.memory_space<vmem>>, vector<32x32xf32>,
    return
  }
  func.func @transform_0(%arg0: i32) -> (i32, i32) {
    %c0_i32 = arith.constant 0 : i32
    %c0_i32_0 = arith.constant 0 : i32
    %c0_i32_1 = arith.constant 0 : i32
    return %c0_i32, %c0_i32_0 : i32, i32
  }
  func.func @transform_1(%arg0: i32) -> (i32, i32) {
    %c0_i32 = arith.constant 0 : i32
    %c0_i32_0 = arith.constant 0 : i32
    %c0_i32_1 = arith.constant 0 : i32
    return %c0_i32, %c0_i32_0 : i32, i32
  }
  func.func @transform_2(%arg0: i32) -> (i32, i32) {
    %c0_i32 = arith.constant 0 : i32
    %c0_i32_0 = arith.constant 0 : i32
    %c0_i32_1 = arith.constant 0 : i32
    return %c0_i32, %c0_i32_0 : i32, i32
  }
  func.func @transform_3(%arg0: i32) -> (i32, i32) {
    %c0_i32 = arith.constant 0 : i32
    %c0_i32_0 = arith.constant 0 : i32
    %c0_i32_1 = arith.constant 0 : i32
    return %c0_i32, %c0_i32_0 : i32, i32
  }
}

module attributes {stable_mosaic.version = 11 : i64} {
  func.func @_encoder_kernel(%arg0: i32, %arg1: i32, %arg2: memref<1x16x32xf32, #tpu.memory_space<vmem>>, %arg3: memref<1x1x16xf32, #tpu.memory_space<vmem>>, %arg4: memref<1x1x32xf32, #tpu.memory_space<vmem>>, %arg5: memref<1x1x32xf32, #tpu.memory_space<vmem>>, %arg6: memref<1x32x96xbf16, #tpu.memory_space<vmem>>, %arg7: memref<1x1x96xf32, #tpu.memory_space<vmem>>, %arg8: memref<1x32x32xbf16, #tpu.memory_space<vmem>>, %arg9: memref<1x1x32xf32, #tpu.memory_space<vmem>>, %arg10: memref<1x1x32xf32, #tpu.memory_space<vmem>>, %arg11: memref<1x1x32xf32, #tpu.memory_space<vmem>>, %arg12: memref<1x32x128xbf16, #tpu.memory_space<vmem>>, %arg13: memref<1x1x128xf32, #tpu.memory_space<vmem>>, %arg14: memref<1x128x32xbf16, #tpu.memory_space<vmem>>, %arg15: memref<1x1x32xf32, #tpu.memory_space<vmem>>, %arg16: memref<1x1x32xf32, #tpu.memory_space<vmem>>, %arg17: memref<1x1x32xf32, #tpu.memory_space<vmem>>, %arg18: memref<1x16x32xf32, #tpu.memory_space<vmem>>) attributes {dimension_semantics = [#tpu.dimension_semantics<parallel>, #tpu.dimension_semantics<arbitrary>], iteration_bounds = array<i64: 2, 2>, scalar_prefetch = 0 : i64, scratch_operands = 0 : i64, tpu.core_type = #tpu.core_type<tc>, window_params = [{transform_indices = @transform_0, window_bounds = array<i64: 1, 16, 32>}, {transform_indices = @transform_1, window_bounds = array<i64: 1, 1, 16>}, {transform_indices = @transform_2, window_bounds = array<i64: 1, 1, 32>}, {transform_indices = @transform_3, window_bounds = array<i64: 1, 1, 32>}, {transform_indices = @transform_4, window_bounds = array<i64: 1, 32, 96>}, {transform_indices = @transform_5, window_bounds = array<i64: 1, 1, 96>}, {transform_indices = @transform_6, window_bounds = array<i64: 1, 32, 32>}, {transform_indices = @transform_7, window_bounds = array<i64: 1, 1, 32>}, {transform_indices = @transform_8, window_bounds = array<i64: 1, 1, 32>}, {transform_indices = @transform_9, window_bounds = array<i64: 1, 1, 32>}, {transform_indices = @transform_10, window_bounds = array<i64: 1, 32, 128>}, {transform_indices = @transform_11, window_bounds = array<i64: 1, 1, 128>}, {transform_indices = @transform_12, window_bounds = array<i64: 1, 128, 32>}, {transform_indices = @transform_13, window_bounds = array<i64: 1, 1, 32>}, {pipeline_mode = #tpu.pipeline_mode<synchronous>, transform_indices = @transform_14, window_bounds = array<i64: 1, 1, 32>}, {pipeline_mode = #tpu.pipeline_mode<synchronous>, transform_indices = @transform_15, window_bounds = array<i64: 1, 1, 32>}, {transform_indices = @transform_16, window_bounds = array<i64: 1, 16, 32>}]} {
    %c0_i32 = arith.constant 0 : i32
    %0 = arith.cmpi eq, %arg1, %c0_i32 : i32
    %1 = arith.extui %0 : i1 to i32
    %c0_i32_0 = arith.constant 0 : i32
    %2 = arith.cmpi ne, %1, %c0_i32_0 : i32
    scf.if %2 {
      %c0_83 = arith.constant 0 : index
      %c0_84 = arith.constant 0 : index
      %c0_85 = arith.constant 0 : index
      %201 = vector.load %arg2[%c0_83, %c0_84, %c0_85] : memref<1x16x32xf32, #tpu.memory_space<vmem>>, vector<1x16x32xf32>
      %202 = vector.shape_cast %201 : vector<1x16x32xf32> to vector<16x32xf32>
      %c0_86 = arith.constant 0 : index
      %c0_87 = arith.constant 0 : index
      %c0_88 = arith.constant 0 : index
      %203 = vector.load %arg18[%c0_86, %c0_87, %c0_88] : memref<1x16x32xf32, #tpu.memory_space<vmem>>, vector<1x16x32xf32>
      %204 = vector.shape_cast %203 : vector<1x16x32xf32> to vector<16x32xf32>
      %205 = vector.shape_cast %202 : vector<16x32xf32> to vector<1x16x32xf32>
      tpu.vector_store %arg18[%c0_86, %c0_87, %c0_88], %205 {strides = array<i32>} : memref<1x16x32xf32, #tpu.memory_space<vmem>>, vector<1x16x32xf32>,
    } else {
    }
    %c0 = arith.constant 0 : index
    %c0_1 = arith.constant 0 : index
    %c0_2 = arith.constant 0 : index
    %3 = vector.load %arg18[%c0, %c0_1, %c0_2] : memref<1x16x32xf32, #tpu.memory_space<vmem>>, vector<1x16x32xf32>
    %4 = vector.shape_cast %3 : vector<1x16x32xf32> to vector<16x32xf32>
    %c0_3 = arith.constant 0 : index
    %c0_4 = arith.constant 0 : index
    %c0_5 = arith.constant 0 : index
    %5 = vector.load %arg3[%c0_3, %c0_4, %c0_5] : memref<1x1x16xf32, #tpu.memory_space<vmem>>, vector<1x1x16xf32>
    %6 = vector.shape_cast %5 : vector<1x1x16xf32> to vector<1x16xf32>
    %c0_6 = arith.constant 0 : index
    %c0_7 = arith.constant 0 : index
    %c0_8 = arith.constant 0 : index
    %7 = vector.load %arg4[%c0_6, %c0_7, %c0_8] : memref<1x1x32xf32, #tpu.memory_space<vmem>>, vector<1x1x32xf32>
    %8 = vector.shape_cast %7 : vector<1x1x32xf32> to vector<1x32xf32>
    %c0_9 = arith.constant 0 : index
    %c0_10 = arith.constant 0 : index
    %c0_11 = arith.constant 0 : index
    %9 = vector.load %arg5[%c0_9, %c0_10, %c0_11] : memref<1x1x32xf32, #tpu.memory_space<vmem>>, vector<1x1x32xf32>
    %10 = vector.shape_cast %9 : vector<1x1x32xf32> to vector<1x32xf32>
    %cst = arith.constant dense<0.000000e+00> : vector<16xf32>
    %11 = vector.multi_reduction <add>, %4, %cst [1] : vector<16x32xf32> to vector<16xf32>
    %12 = vector.shape_cast %11 : vector<16xf32> to vector<16x1xf32>
    %cst_12 = arith.constant 3.200000e+01 : f32
    %13 = vector.broadcast %cst_12 : f32 to vector<16x1xf32>
    %14 = arith.divf %12, %13 : vector<16x1xf32>
    %15 = vector.broadcast %14 : vector<16x1xf32> to vector<16x32xf32>
    %16 = arith.subf %4, %15 : vector<16x32xf32>
    %17 = arith.mulf %16, %16 : vector<16x32xf32>
    %cst_13 = arith.constant dense<0.000000e+00> : vector<16xf32>
    %18 = vector.multi_reduction <add>, %17, %cst_13 [1] : vector<16x32xf32> to vector<16xf32>
    %19 = vector.shape_cast %18 : vector<16xf32> to vector<16x1xf32>
    %cst_14 = arith.constant 3.200000e+01 : f32
    %20 = vector.broadcast %cst_14 : f32 to vector<16x1xf32>
    %21 = arith.divf %19, %20 : vector<16x1xf32>
    %cst_15 = arith.constant 9.99999997E-7 : f32
    %22 = vector.broadcast %cst_15 : f32 to vector<16x1xf32>
    %23 = arith.addf %21, %22 : vector<16x1xf32>
    %24 = math.rsqrt %23 : vector<16x1xf32>
    %25 = vector.broadcast %24 : vector<16x1xf32> to vector<16x32xf32>
    %26 = arith.mulf %16, %25 : vector<16x32xf32>
    %27 = vector.broadcast %8 : vector<1x32xf32> to vector<16x32xf32>
    %28 = arith.mulf %26, %27 : vector<16x32xf32>
    %29 = vector.broadcast %10 : vector<1x32xf32> to vector<16x32xf32>
    %30 = arith.addf %28, %29 : vector<16x32xf32>
    %31 = arith.truncf %30 : vector<16x32xf32> to vector<16x32xbf16>
    %c0_16 = arith.constant 0 : index
    %c0_17 = arith.constant 0 : index
    %c0_18 = arith.constant 0 : index
    %32 = vector.load %arg6[%c0_16, %c0_17, %c0_18] : memref<1x32x96xbf16, #tpu.memory_space<vmem>>, vector<1x32x96xbf16>
    %33 = vector.shape_cast %32 : vector<1x32x96xbf16> to vector<32x96xbf16>
    %cst_19 = arith.constant dense<0.000000e+00> : vector<16x96xf32>
    %34 = tpu.matmul %31, %33, %cst_19 {dimension_numbers = #tpu.dot_dimension_numbers<[1], [0], [0], [1], [0, 0, 1, 1], [], []>} : vector<16x32xbf16>, vector<32x96xbf16>, vector<16x96xf32> -> vector<16x96xf32>
    %c0_20 = arith.constant 0 : index
    %c0_21 = arith.constant 0 : index
    %c0_22 = arith.constant 0 : index
    %35 = vector.load %arg7[%c0_20, %c0_21, %c0_22] : memref<1x1x96xf32, #tpu.memory_space<vmem>>, vector<1x1x96xf32>
    %36 = vector.shape_cast %35 : vector<1x1x96xf32> to vector<1x96xf32>
    %37 = vector.broadcast %36 : vector<1x96xf32> to vector<16x96xf32>
    %38 = arith.addf %34, %37 : vector<16x96xf32>
    %39 = vector.extract_strided_slice %38 {offsets = [0, 0], sizes = [16, 8], strides = [1, 1]} : vector<16x96xf32> to vector<16x8xf32>
    %40 = arith.truncf %39 : vector<16x8xf32> to vector<16x8xbf16>
    %41 = vector.extract_strided_slice %38 {offsets = [0, 32], sizes = [16, 8], strides = [1, 1]} : vector<16x96xf32> to vector<16x8xf32>
    %42 = arith.truncf %41 : vector<16x8xf32> to vector<16x8xbf16>
    %43 = vector.extract_strided_slice %38 {offsets = [0, 64], sizes = [16, 8], strides = [1, 1]} : vector<16x96xf32> to vector<16x8xf32>
    %44 = arith.truncf %43 : vector<16x8xf32> to vector<16x8xbf16>
    %cst_23 = arith.constant dense<0.000000e+00> : vector<16x16xf32>
    %45 = tpu.matmul %40, %42, %cst_23 {dimension_numbers = #tpu.dot_dimension_numbers<[1], [1], [0], [0], [0, 0, 1, 0], [], []>} : vector<16x8xbf16>, vector<16x8xbf16>, vector<16x16xf32> -> vector<16x16xf32>
    %cst_24 = arith.constant 0.353553385 : f32
    %46 = vector.broadcast %cst_24 : f32 to vector<16x16xf32>
    %47 = arith.mulf %45, %46 : vector<16x16xf32>
    %48 = vector.broadcast %6 : vector<1x16xf32> to vector<16x16xf32>
    %49 = arith.addf %47, %48 : vector<16x16xf32>
    %cst_25 = arith.constant dense<0xFF800000> : vector<16xf32>
    %50 = vector.multi_reduction <maximumf>, %49, %cst_25 [1] : vector<16x16xf32> to vector<16xf32>
    %51 = vector.shape_cast %50 : vector<16xf32> to vector<16x1xf32>
    %52 = vector.broadcast %51 : vector<16x1xf32> to vector<16x16xf32>
    %53 = arith.subf %49, %52 : vector<16x16xf32>
    %54 = math.exp %53 : vector<16x16xf32>
    %cst_26 = arith.constant dense<0.000000e+00> : vector<16xf32>
    %55 = vector.multi_reduction <add>, %54, %cst_26 [1] : vector<16x16xf32> to vector<16xf32>
    %56 = vector.shape_cast %55 : vector<16xf32> to vector<16x1xf32>
    %57 = tpu.reciprocal %56 {approx = true} : vector<16x1xf32> -> vector<16x1xf32>
    %58 = vector.broadcast %57 : vector<16x1xf32> to vector<16x16xf32>
    %59 = arith.mulf %54, %58 : vector<16x16xf32>
    %60 = arith.truncf %59 : vector<16x16xf32> to vector<16x16xbf16>
    %cst_27 = arith.constant dense<0.000000e+00> : vector<16x8xf32>
    %61 = tpu.matmul %60, %44, %cst_27 {dimension_numbers = #tpu.dot_dimension_numbers<[1], [0], [0], [1], [0, 0, 1, 1], [], []>} : vector<16x16xbf16>, vector<16x8xbf16>, vector<16x8xf32> -> vector<16x8xf32>
    %62 = vector.extract_strided_slice %38 {offsets = [0, 8], sizes = [16, 8], strides = [1, 1]} : vector<16x96xf32> to vector<16x8xf32>
    %63 = arith.truncf %62 : vector<16x8xf32> to vector<16x8xbf16>
    %64 = vector.extract_strided_slice %38 {offsets = [0, 40], sizes = [16, 8], strides = [1, 1]} : vector<16x96xf32> to vector<16x8xf32>
    %65 = arith.truncf %64 : vector<16x8xf32> to vector<16x8xbf16>
    %66 = vector.extract_strided_slice %38 {offsets = [0, 72], sizes = [16, 8], strides = [1, 1]} : vector<16x96xf32> to vector<16x8xf32>
    %67 = arith.truncf %66 : vector<16x8xf32> to vector<16x8xbf16>
    %cst_28 = arith.constant dense<0.000000e+00> : vector<16x16xf32>
    %68 = tpu.matmul %63, %65, %cst_28 {dimension_numbers = #tpu.dot_dimension_numbers<[1], [1], [0], [0], [0, 0, 1, 0], [], []>} : vector<16x8xbf16>, vector<16x8xbf16>, vector<16x16xf32> -> vector<16x16xf32>
    %cst_29 = arith.constant 0.353553385 : f32
    %69 = vector.broadcast %cst_29 : f32 to vector<16x16xf32>
    %70 = arith.mulf %68, %69 : vector<16x16xf32>
    %71 = vector.broadcast %6 : vector<1x16xf32> to vector<16x16xf32>
    %72 = arith.addf %70, %71 : vector<16x16xf32>
    %cst_30 = arith.constant dense<0xFF800000> : vector<16xf32>
    %73 = vector.multi_reduction <maximumf>, %72, %cst_30 [1] : vector<16x16xf32> to vector<16xf32>
    %74 = vector.shape_cast %73 : vector<16xf32> to vector<16x1xf32>
    %75 = vector.broadcast %74 : vector<16x1xf32> to vector<16x16xf32>
    %76 = arith.subf %72, %75 : vector<16x16xf32>
    %77 = math.exp %76 : vector<16x16xf32>
    %cst_31 = arith.constant dense<0.000000e+00> : vector<16xf32>
    %78 = vector.multi_reduction <add>, %77, %cst_31 [1] : vector<16x16xf32> to vector<16xf32>
    %79 = vector.shape_cast %78 : vector<16xf32> to vector<16x1xf32>
    %80 = tpu.reciprocal %79 {approx = true} : vector<16x1xf32> -> vector<16x1xf32>
    %81 = vector.broadcast %80 : vector<16x1xf32> to vector<16x16xf32>
    %82 = arith.mulf %77, %81 : vector<16x16xf32>
    %83 = arith.truncf %82 : vector<16x16xf32> to vector<16x16xbf16>
    %cst_32 = arith.constant dense<0.000000e+00> : vector<16x8xf32>
    %84 = tpu.matmul %83, %67, %cst_32 {dimension_numbers = #tpu.dot_dimension_numbers<[1], [0], [0], [1], [0, 0, 1, 1], [], []>} : vector<16x16xbf16>, vector<16x8xbf16>, vector<16x8xf32> -> vector<16x8xf32>
    %85 = vector.extract_strided_slice %38 {offsets = [0, 16], sizes = [16, 8], strides = [1, 1]} : vector<16x96xf32> to vector<16x8xf32>
    %86 = arith.truncf %85 : vector<16x8xf32> to vector<16x8xbf16>
    %87 = vector.extract_strided_slice %38 {offsets = [0, 48], sizes = [16, 8], strides = [1, 1]} : vector<16x96xf32> to vector<16x8xf32>
    %88 = arith.truncf %87 : vector<16x8xf32> to vector<16x8xbf16>
    %89 = vector.extract_strided_slice %38 {offsets = [0, 80], sizes = [16, 8], strides = [1, 1]} : vector<16x96xf32> to vector<16x8xf32>
    %90 = arith.truncf %89 : vector<16x8xf32> to vector<16x8xbf16>
    %cst_33 = arith.constant dense<0.000000e+00> : vector<16x16xf32>
    %91 = tpu.matmul %86, %88, %cst_33 {dimension_numbers = #tpu.dot_dimension_numbers<[1], [1], [0], [0], [0, 0, 1, 0], [], []>} : vector<16x8xbf16>, vector<16x8xbf16>, vector<16x16xf32> -> vector<16x16xf32>
    %cst_34 = arith.constant 0.353553385 : f32
    %92 = vector.broadcast %cst_34 : f32 to vector<16x16xf32>
    %93 = arith.mulf %91, %92 : vector<16x16xf32>
    %94 = vector.broadcast %6 : vector<1x16xf32> to vector<16x16xf32>
    %95 = arith.addf %93, %94 : vector<16x16xf32>
    %cst_35 = arith.constant dense<0xFF800000> : vector<16xf32>
    %96 = vector.multi_reduction <maximumf>, %95, %cst_35 [1] : vector<16x16xf32> to vector<16xf32>
    %97 = vector.shape_cast %96 : vector<16xf32> to vector<16x1xf32>
    %98 = vector.broadcast %97 : vector<16x1xf32> to vector<16x16xf32>
    %99 = arith.subf %95, %98 : vector<16x16xf32>
    %100 = math.exp %99 : vector<16x16xf32>
    %cst_36 = arith.constant dense<0.000000e+00> : vector<16xf32>
    %101 = vector.multi_reduction <add>, %100, %cst_36 [1] : vector<16x16xf32> to vector<16xf32>
    %102 = vector.shape_cast %101 : vector<16xf32> to vector<16x1xf32>
    %103 = tpu.reciprocal %102 {approx = true} : vector<16x1xf32> -> vector<16x1xf32>
    %104 = vector.broadcast %103 : vector<16x1xf32> to vector<16x16xf32>
    %105 = arith.mulf %100, %104 : vector<16x16xf32>
    %106 = arith.truncf %105 : vector<16x16xf32> to vector<16x16xbf16>
    %cst_37 = arith.constant dense<0.000000e+00> : vector<16x8xf32>
    %107 = tpu.matmul %106, %90, %cst_37 {dimension_numbers = #tpu.dot_dimension_numbers<[1], [0], [0], [1], [0, 0, 1, 1], [], []>} : vector<16x16xbf16>, vector<16x8xbf16>, vector<16x8xf32> -> vector<16x8xf32>
    %108 = vector.extract_strided_slice %38 {offsets = [0, 24], sizes = [16, 8], strides = [1, 1]} : vector<16x96xf32> to vector<16x8xf32>
    %109 = arith.truncf %108 : vector<16x8xf32> to vector<16x8xbf16>
    %110 = vector.extract_strided_slice %38 {offsets = [0, 56], sizes = [16, 8], strides = [1, 1]} : vector<16x96xf32> to vector<16x8xf32>
    %111 = arith.truncf %110 : vector<16x8xf32> to vector<16x8xbf16>
    %112 = vector.extract_strided_slice %38 {offsets = [0, 88], sizes = [16, 8], strides = [1, 1]} : vector<16x96xf32> to vector<16x8xf32>
    %113 = arith.truncf %112 : vector<16x8xf32> to vector<16x8xbf16>
    %cst_38 = arith.constant dense<0.000000e+00> : vector<16x16xf32>
    %114 = tpu.matmul %109, %111, %cst_38 {dimension_numbers = #tpu.dot_dimension_numbers<[1], [1], [0], [0], [0, 0, 1, 0], [], []>} : vector<16x8xbf16>, vector<16x8xbf16>, vector<16x16xf32> -> vector<16x16xf32>
    %cst_39 = arith.constant 0.353553385 : f32
    %115 = vector.broadcast %cst_39 : f32 to vector<16x16xf32>
    %116 = arith.mulf %114, %115 : vector<16x16xf32>
    %117 = vector.broadcast %6 : vector<1x16xf32> to vector<16x16xf32>
    %118 = arith.addf %116, %117 : vector<16x16xf32>
    %cst_40 = arith.constant dense<0xFF800000> : vector<16xf32>
    %119 = vector.multi_reduction <maximumf>, %118, %cst_40 [1] : vector<16x16xf32> to vector<16xf32>
    %120 = vector.shape_cast %119 : vector<16xf32> to vector<16x1xf32>
    %121 = vector.broadcast %120 : vector<16x1xf32> to vector<16x16xf32>
    %122 = arith.subf %118, %121 : vector<16x16xf32>
    %123 = math.exp %122 : vector<16x16xf32>
    %cst_41 = arith.constant dense<0.000000e+00> : vector<16xf32>
    %124 = vector.multi_reduction <add>, %123, %cst_41 [1] : vector<16x16xf32> to vector<16xf32>
    %125 = vector.shape_cast %124 : vector<16xf32> to vector<16x1xf32>
    %126 = tpu.reciprocal %125 {approx = true} : vector<16x1xf32> -> vector<16x1xf32>
    %127 = vector.broadcast %126 : vector<16x1xf32> to vector<16x16xf32>
    %128 = arith.mulf %123, %127 : vector<16x16xf32>
    %129 = arith.truncf %128 : vector<16x16xf32> to vector<16x16xbf16>
    %cst_42 = arith.constant dense<0.000000e+00> : vector<16x8xf32>
    %130 = tpu.matmul %129, %113, %cst_42 {dimension_numbers = #tpu.dot_dimension_numbers<[1], [0], [0], [1], [0, 0, 1, 1], [], []>} : vector<16x16xbf16>, vector<16x8xbf16>, vector<16x8xf32> -> vector<16x8xf32>
    %131 = tpu.concatenate %61, %84, %107, %130 in 1 : vector<16x8xf32>, vector<16x8xf32>, vector<16x8xf32>, vector<16x8xf32> -> vector<16x32xf32>
    %132 = arith.truncf %131 : vector<16x32xf32> to vector<16x32xbf16>
    %c0_43 = arith.constant 0 : index
    %c0_44 = arith.constant 0 : index
    %c0_45 = arith.constant 0 : index
    %133 = vector.load %arg8[%c0_43, %c0_44, %c0_45] : memref<1x32x32xbf16, #tpu.memory_space<vmem>>, vector<1x32x32xbf16>
    %134 = vector.shape_cast %133 : vector<1x32x32xbf16> to vector<32x32xbf16>
    %cst_46 = arith.constant dense<0.000000e+00> : vector<16x32xf32>
    %135 = tpu.matmul %132, %134, %cst_46 {dimension_numbers = #tpu.dot_dimension_numbers<[1], [0], [0], [1], [0, 0, 1, 1], [], []>} : vector<16x32xbf16>, vector<32x32xbf16>, vector<16x32xf32> -> vector<16x32xf32>
    %c0_47 = arith.constant 0 : index
    %c0_48 = arith.constant 0 : index
    %c0_49 = arith.constant 0 : index
    %136 = vector.load %arg9[%c0_47, %c0_48, %c0_49] : memref<1x1x32xf32, #tpu.memory_space<vmem>>, vector<1x1x32xf32>
    %137 = vector.shape_cast %136 : vector<1x1x32xf32> to vector<1x32xf32>
    %138 = vector.broadcast %137 : vector<1x32xf32> to vector<16x32xf32>
    %139 = arith.addf %135, %138 : vector<16x32xf32>
    %140 = arith.addf %4, %139 : vector<16x32xf32>
    %c0_50 = arith.constant 0 : index
    %c0_51 = arith.constant 0 : index
    %c0_52 = arith.constant 0 : index
    %141 = vector.load %arg10[%c0_50, %c0_51, %c0_52] : memref<1x1x32xf32, #tpu.memory_space<vmem>>, vector<1x1x32xf32>
    %142 = vector.shape_cast %141 : vector<1x1x32xf32> to vector<1x32xf32>
    %c0_53 = arith.constant 0 : index
    %c0_54 = arith.constant 0 : index
    %c0_55 = arith.constant 0 : index
    %143 = vector.load %arg11[%c0_53, %c0_54, %c0_55] : memref<1x1x32xf32, #tpu.memory_space<vmem>>, vector<1x1x32xf32>
    %144 = vector.shape_cast %143 : vector<1x1x32xf32> to vector<1x32xf32>
    %cst_56 = arith.constant dense<0.000000e+00> : vector<16xf32>
    %145 = vector.multi_reduction <add>, %140, %cst_56 [1] : vector<16x32xf32> to vector<16xf32>
    %146 = vector.shape_cast %145 : vector<16xf32> to vector<16x1xf32>
    %cst_57 = arith.constant 3.200000e+01 : f32
    %147 = vector.broadcast %cst_57 : f32 to vector<16x1xf32>
    %148 = arith.divf %146, %147 : vector<16x1xf32>
    %149 = vector.broadcast %148 : vector<16x1xf32> to vector<16x32xf32>
    %150 = arith.subf %140, %149 : vector<16x32xf32>
    %151 = arith.mulf %150, %150 : vector<16x32xf32>
    %cst_58 = arith.constant dense<0.000000e+00> : vector<16xf32>
    %152 = vector.multi_reduction <add>, %151, %cst_58 [1] : vector<16x32xf32> to vector<16xf32>
    %153 = vector.shape_cast %152 : vector<16xf32> to vector<16x1xf32>
    %cst_59 = arith.constant 3.200000e+01 : f32
    %154 = vector.broadcast %cst_59 : f32 to vector<16x1xf32>
    %155 = arith.divf %153, %154 : vector<16x1xf32>
    %cst_60 = arith.constant 9.99999997E-7 : f32
    %156 = vector.broadcast %cst_60 : f32 to vector<16x1xf32>
    %157 = arith.addf %155, %156 : vector<16x1xf32>
    %158 = math.rsqrt %157 : vector<16x1xf32>
    %159 = vector.broadcast %158 : vector<16x1xf32> to vector<16x32xf32>
    %160 = arith.mulf %150, %159 : vector<16x32xf32>
    %161 = vector.broadcast %142 : vector<1x32xf32> to vector<16x32xf32>
    %162 = arith.mulf %160, %161 : vector<16x32xf32>
    %163 = vector.broadcast %144 : vector<1x32xf32> to vector<16x32xf32>
    %164 = arith.addf %162, %163 : vector<16x32xf32>
    %165 = arith.truncf %164 : vector<16x32xf32> to vector<16x32xbf16>
    %c0_61 = arith.constant 0 : index
    %c0_62 = arith.constant 0 : index
    %c0_63 = arith.constant 0 : index
    %166 = vector.load %arg12[%c0_61, %c0_62, %c0_63] : memref<1x32x128xbf16, #tpu.memory_space<vmem>>, vector<1x32x128xbf16>
    %167 = vector.shape_cast %166 : vector<1x32x128xbf16> to vector<32x128xbf16>
    %cst_64 = arith.constant dense<0.000000e+00> : vector<16x128xf32>
    %168 = tpu.matmul %165, %167, %cst_64 {dimension_numbers = #tpu.dot_dimension_numbers<[1], [0], [0], [1], [0, 0, 1, 1], [], []>} : vector<16x32xbf16>, vector<32x128xbf16>, vector<16x128xf32> -> vector<16x128xf32>
    %c0_65 = arith.constant 0 : index
    %c0_66 = arith.constant 0 : index
    %c0_67 = arith.constant 0 : index
    %169 = vector.load %arg13[%c0_65, %c0_66, %c0_67] : memref<1x1x128xf32, #tpu.memory_space<vmem>>, vector<1x1x128xf32>
    %170 = vector.shape_cast %169 : vector<1x1x128xf32> to vector<1x128xf32>
    %171 = vector.broadcast %170 : vector<1x128xf32> to vector<16x128xf32>
    %172 = arith.addf %168, %171 : vector<16x128xf32>
    %173 = arith.mulf %172, %172 : vector<16x128xf32>
    %174 = arith.mulf %172, %173 : vector<16x128xf32>
    %cst_68 = arith.constant 4.471500e-02 : f32
    %175 = vector.broadcast %cst_68 : f32 to vector<16x128xf32>
    %176 = arith.mulf %175, %174 : vector<16x128xf32>
    %177 = arith.addf %172, %176 : vector<16x128xf32>
    %cst_69 = arith.constant 0.797884583 : f32
    %178 = vector.broadcast %cst_69 : f32 to vector<16x128xf32>
    %179 = arith.mulf %178, %177 : vector<16x128xf32>
    %180 = math.tanh %179 : vector<16x128xf32>
    %cst_70 = arith.constant 1.000000e+00 : f32
    %181 = vector.broadcast %cst_70 : f32 to vector<16x128xf32>
    %182 = arith.addf %181, %180 : vector<16x128xf32>
    %cst_71 = arith.constant 5.000000e-01 : f32
    %183 = vector.broadcast %cst_71 : f32 to vector<16x128xf32>
    %184 = arith.mulf %183, %182 : vector<16x128xf32>
    %185 = arith.mulf %172, %184 : vector<16x128xf32>
    %186 = arith.truncf %185 : vector<16x128xf32> to vector<16x128xbf16>
    %c0_72 = arith.constant 0 : index
    %c0_73 = arith.constant 0 : index
    %c0_74 = arith.constant 0 : index
    %187 = vector.load %arg14[%c0_72, %c0_73, %c0_74] : memref<1x128x32xbf16, #tpu.memory_space<vmem>>, vector<1x128x32xbf16>
    %188 = vector.shape_cast %187 : vector<1x128x32xbf16> to vector<128x32xbf16>
    %cst_75 = arith.constant dense<0.000000e+00> : vector<16x32xf32>
    %189 = tpu.matmul %186, %188, %cst_75 {dimension_numbers = #tpu.dot_dimension_numbers<[1], [0], [0], [1], [0, 0, 1, 1], [], []>} : vector<16x128xbf16>, vector<128x32xbf16>, vector<16x32xf32> -> vector<16x32xf32>
    %c0_76 = arith.constant 0 : index
    %c0_77 = arith.constant 0 : index
    %c0_78 = arith.constant 0 : index
    %190 = vector.load %arg15[%c0_76, %c0_77, %c0_78] : memref<1x1x32xf32, #tpu.memory_space<vmem>>, vector<1x1x32xf32>
    %191 = vector.shape_cast %190 : vector<1x1x32xf32> to vector<1x32xf32>
    %192 = vector.broadcast %191 : vector<1x32xf32> to vector<16x32xf32>
    %193 = arith.addf %189, %192 : vector<16x32xf32>
    %194 = arith.addf %140, %193 : vector<16x32xf32>
    %c0_79 = arith.constant 0 : index
    %c0_80 = arith.constant 0 : index
    %c0_81 = arith.constant 0 : index
    %195 = vector.load %arg18[%c0_79, %c0_80, %c0_81] : memref<1x16x32xf32, #tpu.memory_space<vmem>>, vector<1x16x32xf32>
    %196 = vector.shape_cast %195 : vector<1x16x32xf32> to vector<16x32xf32>
    %197 = vector.shape_cast %194 : vector<16x32xf32> to vector<1x16x32xf32>
    tpu.vector_store %arg18[%c0_79, %c0_80, %c0_81], %197 {strides = array<i32>} : memref<1x16x32xf32, #tpu.memory_space<vmem>>, vector<1x16x32xf32>,
    %c1_i32 = arith.constant 1 : i32
    %198 = arith.cmpi eq, %arg1, %c1_i32 : i32
    %199 = arith.extui %198 : i1 to i32
    %c0_i32_82 = arith.constant 0 : i32
    %200 = arith.cmpi ne, %199, %c0_i32_82 : i32
    scf.if %200 {
      %c0_83 = arith.constant 0 : index
      %c0_84 = arith.constant 0 : index
      %c0_85 = arith.constant 0 : index
      %201 = vector.load %arg18[%c0_83, %c0_84, %c0_85] : memref<1x16x32xf32, #tpu.memory_space<vmem>>, vector<1x16x32xf32>
      %202 = vector.shape_cast %201 : vector<1x16x32xf32> to vector<16x32xf32>
      %c0_86 = arith.constant 0 : index
      %c0_87 = arith.constant 0 : index
      %c0_88 = arith.constant 0 : index
      %203 = vector.load %arg16[%c0_86, %c0_87, %c0_88] : memref<1x1x32xf32, #tpu.memory_space<vmem>>, vector<1x1x32xf32>
      %204 = vector.shape_cast %203 : vector<1x1x32xf32> to vector<1x32xf32>
      %c0_89 = arith.constant 0 : index
      %c0_90 = arith.constant 0 : index
      %c0_91 = arith.constant 0 : index
      %205 = vector.load %arg17[%c0_89, %c0_90, %c0_91] : memref<1x1x32xf32, #tpu.memory_space<vmem>>, vector<1x1x32xf32>
      %206 = vector.shape_cast %205 : vector<1x1x32xf32> to vector<1x32xf32>
      %cst_92 = arith.constant dense<0.000000e+00> : vector<16xf32>
      %207 = vector.multi_reduction <add>, %202, %cst_92 [1] : vector<16x32xf32> to vector<16xf32>
      %208 = vector.shape_cast %207 : vector<16xf32> to vector<16x1xf32>
      %cst_93 = arith.constant 3.200000e+01 : f32
      %209 = vector.broadcast %cst_93 : f32 to vector<16x1xf32>
      %210 = arith.divf %208, %209 : vector<16x1xf32>
      %211 = vector.broadcast %210 : vector<16x1xf32> to vector<16x32xf32>
      %212 = arith.subf %202, %211 : vector<16x32xf32>
      %213 = arith.mulf %212, %212 : vector<16x32xf32>
      %cst_94 = arith.constant dense<0.000000e+00> : vector<16xf32>
      %214 = vector.multi_reduction <add>, %213, %cst_94 [1] : vector<16x32xf32> to vector<16xf32>
      %215 = vector.shape_cast %214 : vector<16xf32> to vector<16x1xf32>
      %cst_95 = arith.constant 3.200000e+01 : f32
      %216 = vector.broadcast %cst_95 : f32 to vector<16x1xf32>
      %217 = arith.divf %215, %216 : vector<16x1xf32>
      %cst_96 = arith.constant 9.99999997E-7 : f32
      %218 = vector.broadcast %cst_96 : f32 to vector<16x1xf32>
      %219 = arith.addf %217, %218 : vector<16x1xf32>
      %220 = math.rsqrt %219 : vector<16x1xf32>
      %221 = vector.broadcast %220 : vector<16x1xf32> to vector<16x32xf32>
      %222 = arith.mulf %212, %221 : vector<16x32xf32>
      %223 = vector.broadcast %204 : vector<1x32xf32> to vector<16x32xf32>
      %224 = arith.mulf %222, %223 : vector<16x32xf32>
      %225 = vector.broadcast %206 : vector<1x32xf32> to vector<16x32xf32>
      %226 = arith.addf %224, %225 : vector<16x32xf32>
      %c0_97 = arith.constant 0 : index
      %c0_98 = arith.constant 0 : index
      %c0_99 = arith.constant 0 : index
      %227 = vector.load %arg18[%c0_97, %c0_98, %c0_99] : memref<1x16x32xf32, #tpu.memory_space<vmem>>, vector<1x16x32xf32>
      %228 = vector.shape_cast %227 : vector<1x16x32xf32> to vector<16x32xf32>
      %229 = vector.shape_cast %226 : vector<16x32xf32> to vector<1x16x32xf32>
      tpu.vector_store %arg18[%c0_97, %c0_98, %c0_99], %229 {strides = array<i32>} : memref<1x16x32xf32, #tpu.memory_space<vmem>>, vector<1x16x32xf32>,
    } else {
    }
    return
  }
  func.func @transform_0(%arg0: i32, %arg1: i32) -> (i32, i32, i32) {
    %c0_i32 = arith.constant 0 : i32
    %c0_i32_0 = arith.constant 0 : i32
    %c0_i32_1 = arith.constant 0 : i32
    return %arg0, %c0_i32, %c0_i32_0 : i32, i32, i32
  }
  func.func @transform_1(%arg0: i32, %arg1: i32) -> (i32, i32, i32) {
    %c0_i32 = arith.constant 0 : i32
    %c0_i32_0 = arith.constant 0 : i32
    %c0_i32_1 = arith.constant 0 : i32
    return %arg0, %c0_i32, %c0_i32_0 : i32, i32, i32
  }
  func.func @transform_2(%arg0: i32, %arg1: i32) -> (i32, i32, i32) {
    %c0_i32 = arith.constant 0 : i32
    %c0_i32_0 = arith.constant 0 : i32
    %c0_i32_1 = arith.constant 0 : i32
    return %arg1, %c0_i32, %c0_i32_0 : i32, i32, i32
  }
  func.func @transform_3(%arg0: i32, %arg1: i32) -> (i32, i32, i32) {
    %c0_i32 = arith.constant 0 : i32
    %c0_i32_0 = arith.constant 0 : i32
    %c0_i32_1 = arith.constant 0 : i32
    return %arg1, %c0_i32, %c0_i32_0 : i32, i32, i32
  }
  func.func @transform_4(%arg0: i32, %arg1: i32) -> (i32, i32, i32) {
    %c0_i32 = arith.constant 0 : i32
    %c0_i32_0 = arith.constant 0 : i32
    %c0_i32_1 = arith.constant 0 : i32
    return %arg1, %c0_i32, %c0_i32_0 : i32, i32, i32
  }
  func.func @transform_5(%arg0: i32, %arg1: i32) -> (i32, i32, i32) {
    %c0_i32 = arith.constant 0 : i32
    %c0_i32_0 = arith.constant 0 : i32
    %c0_i32_1 = arith.constant 0 : i32
    return %arg1, %c0_i32, %c0_i32_0 : i32, i32, i32
  }
  func.func @transform_6(%arg0: i32, %arg1: i32) -> (i32, i32, i32) {
    %c0_i32 = arith.constant 0 : i32
    %c0_i32_0 = arith.constant 0 : i32
    %c0_i32_1 = arith.constant 0 : i32
    return %arg1, %c0_i32, %c0_i32_0 : i32, i32, i32
  }
  func.func @transform_7(%arg0: i32, %arg1: i32) -> (i32, i32, i32) {
    %c0_i32 = arith.constant 0 : i32
    %c0_i32_0 = arith.constant 0 : i32
    %c0_i32_1 = arith.constant 0 : i32
    return %arg1, %c0_i32, %c0_i32_0 : i32, i32, i32
  }
  func.func @transform_8(%arg0: i32, %arg1: i32) -> (i32, i32, i32) {
    %c0_i32 = arith.constant 0 : i32
    %c0_i32_0 = arith.constant 0 : i32
    %c0_i32_1 = arith.constant 0 : i32
    return %arg1, %c0_i32, %c0_i32_0 : i32, i32, i32
  }
  func.func @transform_9(%arg0: i32, %arg1: i32) -> (i32, i32, i32) {
    %c0_i32 = arith.constant 0 : i32
    %c0_i32_0 = arith.constant 0 : i32
    %c0_i32_1 = arith.constant 0 : i32
    return %arg1, %c0_i32, %c0_i32_0 : i32, i32, i32
  }
  func.func @transform_10(%arg0: i32, %arg1: i32) -> (i32, i32, i32) {
    %c0_i32 = arith.constant 0 : i32
    %c0_i32_0 = arith.constant 0 : i32
    %c0_i32_1 = arith.constant 0 : i32
    return %arg1, %c0_i32, %c0_i32_0 : i32, i32, i32
  }
  func.func @transform_11(%arg0: i32, %arg1: i32) -> (i32, i32, i32) {
    %c0_i32 = arith.constant 0 : i32
    %c0_i32_0 = arith.constant 0 : i32
    %c0_i32_1 = arith.constant 0 : i32
    return %arg1, %c0_i32, %c0_i32_0 : i32, i32, i32
  }
  func.func @transform_12(%arg0: i32, %arg1: i32) -> (i32, i32, i32) {
    %c0_i32 = arith.constant 0 : i32
    %c0_i32_0 = arith.constant 0 : i32
    %c0_i32_1 = arith.constant 0 : i32
    return %arg1, %c0_i32, %c0_i32_0 : i32, i32, i32
  }
  func.func @transform_13(%arg0: i32, %arg1: i32) -> (i32, i32, i32) {
    %c0_i32 = arith.constant 0 : i32
    %c0_i32_0 = arith.constant 0 : i32
    %c0_i32_1 = arith.constant 0 : i32
    return %arg1, %c0_i32, %c0_i32_0 : i32, i32, i32
  }
  func.func @transform_14(%arg0: i32, %arg1: i32) -> (i32, i32, i32) {
    %c0_i32 = arith.constant 0 : i32
    %c0_i32_0 = arith.constant 0 : i32
    %c0_i32_1 = arith.constant 0 : i32
    %c0_i32_2 = arith.constant 0 : i32
    return %c0_i32, %c0_i32_0, %c0_i32_1 : i32, i32, i32
  }
  func.func @transform_15(%arg0: i32, %arg1: i32) -> (i32, i32, i32) {
    %c0_i32 = arith.constant 0 : i32
    %c0_i32_0 = arith.constant 0 : i32
    %c0_i32_1 = arith.constant 0 : i32
    %c0_i32_2 = arith.constant 0 : i32
    return %c0_i32, %c0_i32_0, %c0_i32_1 : i32, i32, i32
  }
  func.func @transform_16(%arg0: i32, %arg1: i32) -> (i32, i32, i32) {
    %c0_i32 = arith.constant 0 : i32
    %c0_i32_0 = arith.constant 0 : i32
    %c0_i32_1 = arith.constant 0 : i32
    return %arg0, %c0_i32, %c0_i32_0 : i32, i32, i32
  }
}

module attributes {stable_mosaic.version = 11 : i64} {
  func.func @_encoder_kernel(%arg0: i32, %arg1: i32, %arg2: memref<1x24x32xf32, #tpu.memory_space<vmem>>, %arg3: memref<1x1x24xf32, #tpu.memory_space<vmem>>, %arg4: memref<1x1x32xf32, #tpu.memory_space<vmem>>, %arg5: memref<1x1x32xf32, #tpu.memory_space<vmem>>, %arg6: memref<1x32x96xbf16, #tpu.memory_space<vmem>>, %arg7: memref<1x1x96xf32, #tpu.memory_space<vmem>>, %arg8: memref<1x32x32xbf16, #tpu.memory_space<vmem>>, %arg9: memref<1x1x32xf32, #tpu.memory_space<vmem>>, %arg10: memref<1x1x32xf32, #tpu.memory_space<vmem>>, %arg11: memref<1x1x32xf32, #tpu.memory_space<vmem>>, %arg12: memref<1x32x128xbf16, #tpu.memory_space<vmem>>, %arg13: memref<1x1x128xf32, #tpu.memory_space<vmem>>, %arg14: memref<1x128x32xbf16, #tpu.memory_space<vmem>>, %arg15: memref<1x1x32xf32, #tpu.memory_space<vmem>>, %arg16: memref<1x1x32xf32, #tpu.memory_space<vmem>>, %arg17: memref<1x1x32xf32, #tpu.memory_space<vmem>>, %arg18: memref<1x24x32xf32, #tpu.memory_space<vmem>>) attributes {dimension_semantics = [#tpu.dimension_semantics<parallel>, #tpu.dimension_semantics<arbitrary>], iteration_bounds = array<i64: 2, 2>, scalar_prefetch = 0 : i64, scratch_operands = 0 : i64, tpu.core_type = #tpu.core_type<tc>, window_params = [{transform_indices = @transform_0, window_bounds = array<i64: 1, 24, 32>}, {transform_indices = @transform_1, window_bounds = array<i64: 1, 1, 24>}, {transform_indices = @transform_2, window_bounds = array<i64: 1, 1, 32>}, {transform_indices = @transform_3, window_bounds = array<i64: 1, 1, 32>}, {transform_indices = @transform_4, window_bounds = array<i64: 1, 32, 96>}, {transform_indices = @transform_5, window_bounds = array<i64: 1, 1, 96>}, {transform_indices = @transform_6, window_bounds = array<i64: 1, 32, 32>}, {transform_indices = @transform_7, window_bounds = array<i64: 1, 1, 32>}, {transform_indices = @transform_8, window_bounds = array<i64: 1, 1, 32>}, {transform_indices = @transform_9, window_bounds = array<i64: 1, 1, 32>}, {transform_indices = @transform_10, window_bounds = array<i64: 1, 32, 128>}, {transform_indices = @transform_11, window_bounds = array<i64: 1, 1, 128>}, {transform_indices = @transform_12, window_bounds = array<i64: 1, 128, 32>}, {transform_indices = @transform_13, window_bounds = array<i64: 1, 1, 32>}, {pipeline_mode = #tpu.pipeline_mode<synchronous>, transform_indices = @transform_14, window_bounds = array<i64: 1, 1, 32>}, {pipeline_mode = #tpu.pipeline_mode<synchronous>, transform_indices = @transform_15, window_bounds = array<i64: 1, 1, 32>}, {transform_indices = @transform_16, window_bounds = array<i64: 1, 24, 32>}]} {
    %c0_i32 = arith.constant 0 : i32
    %0 = arith.cmpi eq, %arg1, %c0_i32 : i32
    %1 = arith.extui %0 : i1 to i32
    %c0_i32_0 = arith.constant 0 : i32
    %2 = arith.cmpi ne, %1, %c0_i32_0 : i32
    scf.if %2 {
      %c0_83 = arith.constant 0 : index
      %c0_84 = arith.constant 0 : index
      %c0_85 = arith.constant 0 : index
      %201 = vector.load %arg2[%c0_83, %c0_84, %c0_85] : memref<1x24x32xf32, #tpu.memory_space<vmem>>, vector<1x24x32xf32>
      %202 = vector.shape_cast %201 : vector<1x24x32xf32> to vector<24x32xf32>
      %c0_86 = arith.constant 0 : index
      %c0_87 = arith.constant 0 : index
      %c0_88 = arith.constant 0 : index
      %203 = vector.load %arg18[%c0_86, %c0_87, %c0_88] : memref<1x24x32xf32, #tpu.memory_space<vmem>>, vector<1x24x32xf32>
      %204 = vector.shape_cast %203 : vector<1x24x32xf32> to vector<24x32xf32>
      %205 = vector.shape_cast %202 : vector<24x32xf32> to vector<1x24x32xf32>
      tpu.vector_store %arg18[%c0_86, %c0_87, %c0_88], %205 {strides = array<i32>} : memref<1x24x32xf32, #tpu.memory_space<vmem>>, vector<1x24x32xf32>,
    } else {
    }
    %c0 = arith.constant 0 : index
    %c0_1 = arith.constant 0 : index
    %c0_2 = arith.constant 0 : index
    %3 = vector.load %arg18[%c0, %c0_1, %c0_2] : memref<1x24x32xf32, #tpu.memory_space<vmem>>, vector<1x24x32xf32>
    %4 = vector.shape_cast %3 : vector<1x24x32xf32> to vector<24x32xf32>
    %c0_3 = arith.constant 0 : index
    %c0_4 = arith.constant 0 : index
    %c0_5 = arith.constant 0 : index
    %5 = vector.load %arg3[%c0_3, %c0_4, %c0_5] : memref<1x1x24xf32, #tpu.memory_space<vmem>>, vector<1x1x24xf32>
    %6 = vector.shape_cast %5 : vector<1x1x24xf32> to vector<1x24xf32>
    %c0_6 = arith.constant 0 : index
    %c0_7 = arith.constant 0 : index
    %c0_8 = arith.constant 0 : index
    %7 = vector.load %arg4[%c0_6, %c0_7, %c0_8] : memref<1x1x32xf32, #tpu.memory_space<vmem>>, vector<1x1x32xf32>
    %8 = vector.shape_cast %7 : vector<1x1x32xf32> to vector<1x32xf32>
    %c0_9 = arith.constant 0 : index
    %c0_10 = arith.constant 0 : index
    %c0_11 = arith.constant 0 : index
    %9 = vector.load %arg5[%c0_9, %c0_10, %c0_11] : memref<1x1x32xf32, #tpu.memory_space<vmem>>, vector<1x1x32xf32>
    %10 = vector.shape_cast %9 : vector<1x1x32xf32> to vector<1x32xf32>
    %cst = arith.constant dense<0.000000e+00> : vector<24xf32>
    %11 = vector.multi_reduction <add>, %4, %cst [1] : vector<24x32xf32> to vector<24xf32>
    %12 = vector.shape_cast %11 : vector<24xf32> to vector<24x1xf32>
    %cst_12 = arith.constant 3.200000e+01 : f32
    %13 = vector.broadcast %cst_12 : f32 to vector<24x1xf32>
    %14 = arith.divf %12, %13 : vector<24x1xf32>
    %15 = vector.broadcast %14 : vector<24x1xf32> to vector<24x32xf32>
    %16 = arith.subf %4, %15 : vector<24x32xf32>
    %17 = arith.mulf %16, %16 : vector<24x32xf32>
    %cst_13 = arith.constant dense<0.000000e+00> : vector<24xf32>
    %18 = vector.multi_reduction <add>, %17, %cst_13 [1] : vector<24x32xf32> to vector<24xf32>
    %19 = vector.shape_cast %18 : vector<24xf32> to vector<24x1xf32>
    %cst_14 = arith.constant 3.200000e+01 : f32
    %20 = vector.broadcast %cst_14 : f32 to vector<24x1xf32>
    %21 = arith.divf %19, %20 : vector<24x1xf32>
    %cst_15 = arith.constant 9.99999997E-7 : f32
    %22 = vector.broadcast %cst_15 : f32 to vector<24x1xf32>
    %23 = arith.addf %21, %22 : vector<24x1xf32>
    %24 = math.rsqrt %23 : vector<24x1xf32>
    %25 = vector.broadcast %24 : vector<24x1xf32> to vector<24x32xf32>
    %26 = arith.mulf %16, %25 : vector<24x32xf32>
    %27 = vector.broadcast %8 : vector<1x32xf32> to vector<24x32xf32>
    %28 = arith.mulf %26, %27 : vector<24x32xf32>
    %29 = vector.broadcast %10 : vector<1x32xf32> to vector<24x32xf32>
    %30 = arith.addf %28, %29 : vector<24x32xf32>
    %31 = arith.truncf %30 : vector<24x32xf32> to vector<24x32xbf16>
    %c0_16 = arith.constant 0 : index
    %c0_17 = arith.constant 0 : index
    %c0_18 = arith.constant 0 : index
    %32 = vector.load %arg6[%c0_16, %c0_17, %c0_18] : memref<1x32x96xbf16, #tpu.memory_space<vmem>>, vector<1x32x96xbf16>
    %33 = vector.shape_cast %32 : vector<1x32x96xbf16> to vector<32x96xbf16>
    %cst_19 = arith.constant dense<0.000000e+00> : vector<24x96xf32>
    %34 = tpu.matmul %31, %33, %cst_19 {dimension_numbers = #tpu.dot_dimension_numbers<[1], [0], [0], [1], [0, 0, 1, 1], [], []>} : vector<24x32xbf16>, vector<32x96xbf16>, vector<24x96xf32> -> vector<24x96xf32>
    %c0_20 = arith.constant 0 : index
    %c0_21 = arith.constant 0 : index
    %c0_22 = arith.constant 0 : index
    %35 = vector.load %arg7[%c0_20, %c0_21, %c0_22] : memref<1x1x96xf32, #tpu.memory_space<vmem>>, vector<1x1x96xf32>
    %36 = vector.shape_cast %35 : vector<1x1x96xf32> to vector<1x96xf32>
    %37 = vector.broadcast %36 : vector<1x96xf32> to vector<24x96xf32>
    %38 = arith.addf %34, %37 : vector<24x96xf32>
    %39 = vector.extract_strided_slice %38 {offsets = [0, 0], sizes = [24, 8], strides = [1, 1]} : vector<24x96xf32> to vector<24x8xf32>
    %40 = arith.truncf %39 : vector<24x8xf32> to vector<24x8xbf16>
    %41 = vector.extract_strided_slice %38 {offsets = [0, 32], sizes = [24, 8], strides = [1, 1]} : vector<24x96xf32> to vector<24x8xf32>
    %42 = arith.truncf %41 : vector<24x8xf32> to vector<24x8xbf16>
    %43 = vector.extract_strided_slice %38 {offsets = [0, 64], sizes = [24, 8], strides = [1, 1]} : vector<24x96xf32> to vector<24x8xf32>
    %44 = arith.truncf %43 : vector<24x8xf32> to vector<24x8xbf16>
    %cst_23 = arith.constant dense<0.000000e+00> : vector<24x24xf32>
    %45 = tpu.matmul %40, %42, %cst_23 {dimension_numbers = #tpu.dot_dimension_numbers<[1], [1], [0], [0], [0, 0, 1, 0], [], []>} : vector<24x8xbf16>, vector<24x8xbf16>, vector<24x24xf32> -> vector<24x24xf32>
    %cst_24 = arith.constant 0.353553385 : f32
    %46 = vector.broadcast %cst_24 : f32 to vector<24x24xf32>
    %47 = arith.mulf %45, %46 : vector<24x24xf32>
    %48 = vector.broadcast %6 : vector<1x24xf32> to vector<24x24xf32>
    %49 = arith.addf %47, %48 : vector<24x24xf32>
    %cst_25 = arith.constant dense<0xFF800000> : vector<24xf32>
    %50 = vector.multi_reduction <maximumf>, %49, %cst_25 [1] : vector<24x24xf32> to vector<24xf32>
    %51 = vector.shape_cast %50 : vector<24xf32> to vector<24x1xf32>
    %52 = vector.broadcast %51 : vector<24x1xf32> to vector<24x24xf32>
    %53 = arith.subf %49, %52 : vector<24x24xf32>
    %54 = math.exp %53 : vector<24x24xf32>
    %cst_26 = arith.constant dense<0.000000e+00> : vector<24xf32>
    %55 = vector.multi_reduction <add>, %54, %cst_26 [1] : vector<24x24xf32> to vector<24xf32>
    %56 = vector.shape_cast %55 : vector<24xf32> to vector<24x1xf32>
    %57 = tpu.reciprocal %56 {approx = true} : vector<24x1xf32> -> vector<24x1xf32>
    %58 = vector.broadcast %57 : vector<24x1xf32> to vector<24x24xf32>
    %59 = arith.mulf %54, %58 : vector<24x24xf32>
    %60 = arith.truncf %59 : vector<24x24xf32> to vector<24x24xbf16>
    %cst_27 = arith.constant dense<0.000000e+00> : vector<24x8xf32>
    %61 = tpu.matmul %60, %44, %cst_27 {dimension_numbers = #tpu.dot_dimension_numbers<[1], [0], [0], [1], [0, 0, 1, 1], [], []>} : vector<24x24xbf16>, vector<24x8xbf16>, vector<24x8xf32> -> vector<24x8xf32>
    %62 = vector.extract_strided_slice %38 {offsets = [0, 8], sizes = [24, 8], strides = [1, 1]} : vector<24x96xf32> to vector<24x8xf32>
    %63 = arith.truncf %62 : vector<24x8xf32> to vector<24x8xbf16>
    %64 = vector.extract_strided_slice %38 {offsets = [0, 40], sizes = [24, 8], strides = [1, 1]} : vector<24x96xf32> to vector<24x8xf32>
    %65 = arith.truncf %64 : vector<24x8xf32> to vector<24x8xbf16>
    %66 = vector.extract_strided_slice %38 {offsets = [0, 72], sizes = [24, 8], strides = [1, 1]} : vector<24x96xf32> to vector<24x8xf32>
    %67 = arith.truncf %66 : vector<24x8xf32> to vector<24x8xbf16>
    %cst_28 = arith.constant dense<0.000000e+00> : vector<24x24xf32>
    %68 = tpu.matmul %63, %65, %cst_28 {dimension_numbers = #tpu.dot_dimension_numbers<[1], [1], [0], [0], [0, 0, 1, 0], [], []>} : vector<24x8xbf16>, vector<24x8xbf16>, vector<24x24xf32> -> vector<24x24xf32>
    %cst_29 = arith.constant 0.353553385 : f32
    %69 = vector.broadcast %cst_29 : f32 to vector<24x24xf32>
    %70 = arith.mulf %68, %69 : vector<24x24xf32>
    %71 = vector.broadcast %6 : vector<1x24xf32> to vector<24x24xf32>
    %72 = arith.addf %70, %71 : vector<24x24xf32>
    %cst_30 = arith.constant dense<0xFF800000> : vector<24xf32>
    %73 = vector.multi_reduction <maximumf>, %72, %cst_30 [1] : vector<24x24xf32> to vector<24xf32>
    %74 = vector.shape_cast %73 : vector<24xf32> to vector<24x1xf32>
    %75 = vector.broadcast %74 : vector<24x1xf32> to vector<24x24xf32>
    %76 = arith.subf %72, %75 : vector<24x24xf32>
    %77 = math.exp %76 : vector<24x24xf32>
    %cst_31 = arith.constant dense<0.000000e+00> : vector<24xf32>
    %78 = vector.multi_reduction <add>, %77, %cst_31 [1] : vector<24x24xf32> to vector<24xf32>
    %79 = vector.shape_cast %78 : vector<24xf32> to vector<24x1xf32>
    %80 = tpu.reciprocal %79 {approx = true} : vector<24x1xf32> -> vector<24x1xf32>
    %81 = vector.broadcast %80 : vector<24x1xf32> to vector<24x24xf32>
    %82 = arith.mulf %77, %81 : vector<24x24xf32>
    %83 = arith.truncf %82 : vector<24x24xf32> to vector<24x24xbf16>
    %cst_32 = arith.constant dense<0.000000e+00> : vector<24x8xf32>
    %84 = tpu.matmul %83, %67, %cst_32 {dimension_numbers = #tpu.dot_dimension_numbers<[1], [0], [0], [1], [0, 0, 1, 1], [], []>} : vector<24x24xbf16>, vector<24x8xbf16>, vector<24x8xf32> -> vector<24x8xf32>
    %85 = vector.extract_strided_slice %38 {offsets = [0, 16], sizes = [24, 8], strides = [1, 1]} : vector<24x96xf32> to vector<24x8xf32>
    %86 = arith.truncf %85 : vector<24x8xf32> to vector<24x8xbf16>
    %87 = vector.extract_strided_slice %38 {offsets = [0, 48], sizes = [24, 8], strides = [1, 1]} : vector<24x96xf32> to vector<24x8xf32>
    %88 = arith.truncf %87 : vector<24x8xf32> to vector<24x8xbf16>
    %89 = vector.extract_strided_slice %38 {offsets = [0, 80], sizes = [24, 8], strides = [1, 1]} : vector<24x96xf32> to vector<24x8xf32>
    %90 = arith.truncf %89 : vector<24x8xf32> to vector<24x8xbf16>
    %cst_33 = arith.constant dense<0.000000e+00> : vector<24x24xf32>
    %91 = tpu.matmul %86, %88, %cst_33 {dimension_numbers = #tpu.dot_dimension_numbers<[1], [1], [0], [0], [0, 0, 1, 0], [], []>} : vector<24x8xbf16>, vector<24x8xbf16>, vector<24x24xf32> -> vector<24x24xf32>
    %cst_34 = arith.constant 0.353553385 : f32
    %92 = vector.broadcast %cst_34 : f32 to vector<24x24xf32>
    %93 = arith.mulf %91, %92 : vector<24x24xf32>
    %94 = vector.broadcast %6 : vector<1x24xf32> to vector<24x24xf32>
    %95 = arith.addf %93, %94 : vector<24x24xf32>
    %cst_35 = arith.constant dense<0xFF800000> : vector<24xf32>
    %96 = vector.multi_reduction <maximumf>, %95, %cst_35 [1] : vector<24x24xf32> to vector<24xf32>
    %97 = vector.shape_cast %96 : vector<24xf32> to vector<24x1xf32>
    %98 = vector.broadcast %97 : vector<24x1xf32> to vector<24x24xf32>
    %99 = arith.subf %95, %98 : vector<24x24xf32>
    %100 = math.exp %99 : vector<24x24xf32>
    %cst_36 = arith.constant dense<0.000000e+00> : vector<24xf32>
    %101 = vector.multi_reduction <add>, %100, %cst_36 [1] : vector<24x24xf32> to vector<24xf32>
    %102 = vector.shape_cast %101 : vector<24xf32> to vector<24x1xf32>
    %103 = tpu.reciprocal %102 {approx = true} : vector<24x1xf32> -> vector<24x1xf32>
    %104 = vector.broadcast %103 : vector<24x1xf32> to vector<24x24xf32>
    %105 = arith.mulf %100, %104 : vector<24x24xf32>
    %106 = arith.truncf %105 : vector<24x24xf32> to vector<24x24xbf16>
    %cst_37 = arith.constant dense<0.000000e+00> : vector<24x8xf32>
    %107 = tpu.matmul %106, %90, %cst_37 {dimension_numbers = #tpu.dot_dimension_numbers<[1], [0], [0], [1], [0, 0, 1, 1], [], []>} : vector<24x24xbf16>, vector<24x8xbf16>, vector<24x8xf32> -> vector<24x8xf32>
    %108 = vector.extract_strided_slice %38 {offsets = [0, 24], sizes = [24, 8], strides = [1, 1]} : vector<24x96xf32> to vector<24x8xf32>
    %109 = arith.truncf %108 : vector<24x8xf32> to vector<24x8xbf16>
    %110 = vector.extract_strided_slice %38 {offsets = [0, 56], sizes = [24, 8], strides = [1, 1]} : vector<24x96xf32> to vector<24x8xf32>
    %111 = arith.truncf %110 : vector<24x8xf32> to vector<24x8xbf16>
    %112 = vector.extract_strided_slice %38 {offsets = [0, 88], sizes = [24, 8], strides = [1, 1]} : vector<24x96xf32> to vector<24x8xf32>
    %113 = arith.truncf %112 : vector<24x8xf32> to vector<24x8xbf16>
    %cst_38 = arith.constant dense<0.000000e+00> : vector<24x24xf32>
    %114 = tpu.matmul %109, %111, %cst_38 {dimension_numbers = #tpu.dot_dimension_numbers<[1], [1], [0], [0], [0, 0, 1, 0], [], []>} : vector<24x8xbf16>, vector<24x8xbf16>, vector<24x24xf32> -> vector<24x24xf32>
    %cst_39 = arith.constant 0.353553385 : f32
    %115 = vector.broadcast %cst_39 : f32 to vector<24x24xf32>
    %116 = arith.mulf %114, %115 : vector<24x24xf32>
    %117 = vector.broadcast %6 : vector<1x24xf32> to vector<24x24xf32>
    %118 = arith.addf %116, %117 : vector<24x24xf32>
    %cst_40 = arith.constant dense<0xFF800000> : vector<24xf32>
    %119 = vector.multi_reduction <maximumf>, %118, %cst_40 [1] : vector<24x24xf32> to vector<24xf32>
    %120 = vector.shape_cast %119 : vector<24xf32> to vector<24x1xf32>
    %121 = vector.broadcast %120 : vector<24x1xf32> to vector<24x24xf32>
    %122 = arith.subf %118, %121 : vector<24x24xf32>
    %123 = math.exp %122 : vector<24x24xf32>
    %cst_41 = arith.constant dense<0.000000e+00> : vector<24xf32>
    %124 = vector.multi_reduction <add>, %123, %cst_41 [1] : vector<24x24xf32> to vector<24xf32>
    %125 = vector.shape_cast %124 : vector<24xf32> to vector<24x1xf32>
    %126 = tpu.reciprocal %125 {approx = true} : vector<24x1xf32> -> vector<24x1xf32>
    %127 = vector.broadcast %126 : vector<24x1xf32> to vector<24x24xf32>
    %128 = arith.mulf %123, %127 : vector<24x24xf32>
    %129 = arith.truncf %128 : vector<24x24xf32> to vector<24x24xbf16>
    %cst_42 = arith.constant dense<0.000000e+00> : vector<24x8xf32>
    %130 = tpu.matmul %129, %113, %cst_42 {dimension_numbers = #tpu.dot_dimension_numbers<[1], [0], [0], [1], [0, 0, 1, 1], [], []>} : vector<24x24xbf16>, vector<24x8xbf16>, vector<24x8xf32> -> vector<24x8xf32>
    %131 = tpu.concatenate %61, %84, %107, %130 in 1 : vector<24x8xf32>, vector<24x8xf32>, vector<24x8xf32>, vector<24x8xf32> -> vector<24x32xf32>
    %132 = arith.truncf %131 : vector<24x32xf32> to vector<24x32xbf16>
    %c0_43 = arith.constant 0 : index
    %c0_44 = arith.constant 0 : index
    %c0_45 = arith.constant 0 : index
    %133 = vector.load %arg8[%c0_43, %c0_44, %c0_45] : memref<1x32x32xbf16, #tpu.memory_space<vmem>>, vector<1x32x32xbf16>
    %134 = vector.shape_cast %133 : vector<1x32x32xbf16> to vector<32x32xbf16>
    %cst_46 = arith.constant dense<0.000000e+00> : vector<24x32xf32>
    %135 = tpu.matmul %132, %134, %cst_46 {dimension_numbers = #tpu.dot_dimension_numbers<[1], [0], [0], [1], [0, 0, 1, 1], [], []>} : vector<24x32xbf16>, vector<32x32xbf16>, vector<24x32xf32> -> vector<24x32xf32>
    %c0_47 = arith.constant 0 : index
    %c0_48 = arith.constant 0 : index
    %c0_49 = arith.constant 0 : index
    %136 = vector.load %arg9[%c0_47, %c0_48, %c0_49] : memref<1x1x32xf32, #tpu.memory_space<vmem>>, vector<1x1x32xf32>
    %137 = vector.shape_cast %136 : vector<1x1x32xf32> to vector<1x32xf32>
    %138 = vector.broadcast %137 : vector<1x32xf32> to vector<24x32xf32>
    %139 = arith.addf %135, %138 : vector<24x32xf32>
    %140 = arith.addf %4, %139 : vector<24x32xf32>
    %c0_50 = arith.constant 0 : index
    %c0_51 = arith.constant 0 : index
    %c0_52 = arith.constant 0 : index
    %141 = vector.load %arg10[%c0_50, %c0_51, %c0_52] : memref<1x1x32xf32, #tpu.memory_space<vmem>>, vector<1x1x32xf32>
    %142 = vector.shape_cast %141 : vector<1x1x32xf32> to vector<1x32xf32>
    %c0_53 = arith.constant 0 : index
    %c0_54 = arith.constant 0 : index
    %c0_55 = arith.constant 0 : index
    %143 = vector.load %arg11[%c0_53, %c0_54, %c0_55] : memref<1x1x32xf32, #tpu.memory_space<vmem>>, vector<1x1x32xf32>
    %144 = vector.shape_cast %143 : vector<1x1x32xf32> to vector<1x32xf32>
    %cst_56 = arith.constant dense<0.000000e+00> : vector<24xf32>
    %145 = vector.multi_reduction <add>, %140, %cst_56 [1] : vector<24x32xf32> to vector<24xf32>
    %146 = vector.shape_cast %145 : vector<24xf32> to vector<24x1xf32>
    %cst_57 = arith.constant 3.200000e+01 : f32
    %147 = vector.broadcast %cst_57 : f32 to vector<24x1xf32>
    %148 = arith.divf %146, %147 : vector<24x1xf32>
    %149 = vector.broadcast %148 : vector<24x1xf32> to vector<24x32xf32>
    %150 = arith.subf %140, %149 : vector<24x32xf32>
    %151 = arith.mulf %150, %150 : vector<24x32xf32>
    %cst_58 = arith.constant dense<0.000000e+00> : vector<24xf32>
    %152 = vector.multi_reduction <add>, %151, %cst_58 [1] : vector<24x32xf32> to vector<24xf32>
    %153 = vector.shape_cast %152 : vector<24xf32> to vector<24x1xf32>
    %cst_59 = arith.constant 3.200000e+01 : f32
    %154 = vector.broadcast %cst_59 : f32 to vector<24x1xf32>
    %155 = arith.divf %153, %154 : vector<24x1xf32>
    %cst_60 = arith.constant 9.99999997E-7 : f32
    %156 = vector.broadcast %cst_60 : f32 to vector<24x1xf32>
    %157 = arith.addf %155, %156 : vector<24x1xf32>
    %158 = math.rsqrt %157 : vector<24x1xf32>
    %159 = vector.broadcast %158 : vector<24x1xf32> to vector<24x32xf32>
    %160 = arith.mulf %150, %159 : vector<24x32xf32>
    %161 = vector.broadcast %142 : vector<1x32xf32> to vector<24x32xf32>
    %162 = arith.mulf %160, %161 : vector<24x32xf32>
    %163 = vector.broadcast %144 : vector<1x32xf32> to vector<24x32xf32>
    %164 = arith.addf %162, %163 : vector<24x32xf32>
    %165 = arith.truncf %164 : vector<24x32xf32> to vector<24x32xbf16>
    %c0_61 = arith.constant 0 : index
    %c0_62 = arith.constant 0 : index
    %c0_63 = arith.constant 0 : index
    %166 = vector.load %arg12[%c0_61, %c0_62, %c0_63] : memref<1x32x128xbf16, #tpu.memory_space<vmem>>, vector<1x32x128xbf16>
    %167 = vector.shape_cast %166 : vector<1x32x128xbf16> to vector<32x128xbf16>
    %cst_64 = arith.constant dense<0.000000e+00> : vector<24x128xf32>
    %168 = tpu.matmul %165, %167, %cst_64 {dimension_numbers = #tpu.dot_dimension_numbers<[1], [0], [0], [1], [0, 0, 1, 1], [], []>} : vector<24x32xbf16>, vector<32x128xbf16>, vector<24x128xf32> -> vector<24x128xf32>
    %c0_65 = arith.constant 0 : index
    %c0_66 = arith.constant 0 : index
    %c0_67 = arith.constant 0 : index
    %169 = vector.load %arg13[%c0_65, %c0_66, %c0_67] : memref<1x1x128xf32, #tpu.memory_space<vmem>>, vector<1x1x128xf32>
    %170 = vector.shape_cast %169 : vector<1x1x128xf32> to vector<1x128xf32>
    %171 = vector.broadcast %170 : vector<1x128xf32> to vector<24x128xf32>
    %172 = arith.addf %168, %171 : vector<24x128xf32>
    %173 = arith.mulf %172, %172 : vector<24x128xf32>
    %174 = arith.mulf %172, %173 : vector<24x128xf32>
    %cst_68 = arith.constant 4.471500e-02 : f32
    %175 = vector.broadcast %cst_68 : f32 to vector<24x128xf32>
    %176 = arith.mulf %175, %174 : vector<24x128xf32>
    %177 = arith.addf %172, %176 : vector<24x128xf32>
    %cst_69 = arith.constant 0.797884583 : f32
    %178 = vector.broadcast %cst_69 : f32 to vector<24x128xf32>
    %179 = arith.mulf %178, %177 : vector<24x128xf32>
    %180 = math.tanh %179 : vector<24x128xf32>
    %cst_70 = arith.constant 1.000000e+00 : f32
    %181 = vector.broadcast %cst_70 : f32 to vector<24x128xf32>
    %182 = arith.addf %181, %180 : vector<24x128xf32>
    %cst_71 = arith.constant 5.000000e-01 : f32
    %183 = vector.broadcast %cst_71 : f32 to vector<24x128xf32>
    %184 = arith.mulf %183, %182 : vector<24x128xf32>
    %185 = arith.mulf %172, %184 : vector<24x128xf32>
    %186 = arith.truncf %185 : vector<24x128xf32> to vector<24x128xbf16>
    %c0_72 = arith.constant 0 : index
    %c0_73 = arith.constant 0 : index
    %c0_74 = arith.constant 0 : index
    %187 = vector.load %arg14[%c0_72, %c0_73, %c0_74] : memref<1x128x32xbf16, #tpu.memory_space<vmem>>, vector<1x128x32xbf16>
    %188 = vector.shape_cast %187 : vector<1x128x32xbf16> to vector<128x32xbf16>
    %cst_75 = arith.constant dense<0.000000e+00> : vector<24x32xf32>
    %189 = tpu.matmul %186, %188, %cst_75 {dimension_numbers = #tpu.dot_dimension_numbers<[1], [0], [0], [1], [0, 0, 1, 1], [], []>} : vector<24x128xbf16>, vector<128x32xbf16>, vector<24x32xf32> -> vector<24x32xf32>
    %c0_76 = arith.constant 0 : index
    %c0_77 = arith.constant 0 : index
    %c0_78 = arith.constant 0 : index
    %190 = vector.load %arg15[%c0_76, %c0_77, %c0_78] : memref<1x1x32xf32, #tpu.memory_space<vmem>>, vector<1x1x32xf32>
    %191 = vector.shape_cast %190 : vector<1x1x32xf32> to vector<1x32xf32>
    %192 = vector.broadcast %191 : vector<1x32xf32> to vector<24x32xf32>
    %193 = arith.addf %189, %192 : vector<24x32xf32>
    %194 = arith.addf %140, %193 : vector<24x32xf32>
    %c0_79 = arith.constant 0 : index
    %c0_80 = arith.constant 0 : index
    %c0_81 = arith.constant 0 : index
    %195 = vector.load %arg18[%c0_79, %c0_80, %c0_81] : memref<1x24x32xf32, #tpu.memory_space<vmem>>, vector<1x24x32xf32>
    %196 = vector.shape_cast %195 : vector<1x24x32xf32> to vector<24x32xf32>
    %197 = vector.shape_cast %194 : vector<24x32xf32> to vector<1x24x32xf32>
    tpu.vector_store %arg18[%c0_79, %c0_80, %c0_81], %197 {strides = array<i32>} : memref<1x24x32xf32, #tpu.memory_space<vmem>>, vector<1x24x32xf32>,
    %c1_i32 = arith.constant 1 : i32
    %198 = arith.cmpi eq, %arg1, %c1_i32 : i32
    %199 = arith.extui %198 : i1 to i32
    %c0_i32_82 = arith.constant 0 : i32
    %200 = arith.cmpi ne, %199, %c0_i32_82 : i32
    scf.if %200 {
      %c0_83 = arith.constant 0 : index
      %c0_84 = arith.constant 0 : index
      %c0_85 = arith.constant 0 : index
      %201 = vector.load %arg18[%c0_83, %c0_84, %c0_85] : memref<1x24x32xf32, #tpu.memory_space<vmem>>, vector<1x24x32xf32>
      %202 = vector.shape_cast %201 : vector<1x24x32xf32> to vector<24x32xf32>
      %c0_86 = arith.constant 0 : index
      %c0_87 = arith.constant 0 : index
      %c0_88 = arith.constant 0 : index
      %203 = vector.load %arg16[%c0_86, %c0_87, %c0_88] : memref<1x1x32xf32, #tpu.memory_space<vmem>>, vector<1x1x32xf32>
      %204 = vector.shape_cast %203 : vector<1x1x32xf32> to vector<1x32xf32>
      %c0_89 = arith.constant 0 : index
      %c0_90 = arith.constant 0 : index
      %c0_91 = arith.constant 0 : index
      %205 = vector.load %arg17[%c0_89, %c0_90, %c0_91] : memref<1x1x32xf32, #tpu.memory_space<vmem>>, vector<1x1x32xf32>
      %206 = vector.shape_cast %205 : vector<1x1x32xf32> to vector<1x32xf32>
      %cst_92 = arith.constant dense<0.000000e+00> : vector<24xf32>
      %207 = vector.multi_reduction <add>, %202, %cst_92 [1] : vector<24x32xf32> to vector<24xf32>
      %208 = vector.shape_cast %207 : vector<24xf32> to vector<24x1xf32>
      %cst_93 = arith.constant 3.200000e+01 : f32
      %209 = vector.broadcast %cst_93 : f32 to vector<24x1xf32>
      %210 = arith.divf %208, %209 : vector<24x1xf32>
      %211 = vector.broadcast %210 : vector<24x1xf32> to vector<24x32xf32>
      %212 = arith.subf %202, %211 : vector<24x32xf32>
      %213 = arith.mulf %212, %212 : vector<24x32xf32>
      %cst_94 = arith.constant dense<0.000000e+00> : vector<24xf32>
      %214 = vector.multi_reduction <add>, %213, %cst_94 [1] : vector<24x32xf32> to vector<24xf32>
      %215 = vector.shape_cast %214 : vector<24xf32> to vector<24x1xf32>
      %cst_95 = arith.constant 3.200000e+01 : f32
      %216 = vector.broadcast %cst_95 : f32 to vector<24x1xf32>
      %217 = arith.divf %215, %216 : vector<24x1xf32>
      %cst_96 = arith.constant 9.99999997E-7 : f32
      %218 = vector.broadcast %cst_96 : f32 to vector<24x1xf32>
      %219 = arith.addf %217, %218 : vector<24x1xf32>
      %220 = math.rsqrt %219 : vector<24x1xf32>
      %221 = vector.broadcast %220 : vector<24x1xf32> to vector<24x32xf32>
      %222 = arith.mulf %212, %221 : vector<24x32xf32>
      %223 = vector.broadcast %204 : vector<1x32xf32> to vector<24x32xf32>
      %224 = arith.mulf %222, %223 : vector<24x32xf32>
      %225 = vector.broadcast %206 : vector<1x32xf32> to vector<24x32xf32>
      %226 = arith.addf %224, %225 : vector<24x32xf32>
      %c0_97 = arith.constant 0 : index
      %c0_98 = arith.constant 0 : index
      %c0_99 = arith.constant 0 : index
      %227 = vector.load %arg18[%c0_97, %c0_98, %c0_99] : memref<1x24x32xf32, #tpu.memory_space<vmem>>, vector<1x24x32xf32>
      %228 = vector.shape_cast %227 : vector<1x24x32xf32> to vector<24x32xf32>
      %229 = vector.shape_cast %226 : vector<24x32xf32> to vector<1x24x32xf32>
      tpu.vector_store %arg18[%c0_97, %c0_98, %c0_99], %229 {strides = array<i32>} : memref<1x24x32xf32, #tpu.memory_space<vmem>>, vector<1x24x32xf32>,
    } else {
    }
    return
  }
  func.func @transform_0(%arg0: i32, %arg1: i32) -> (i32, i32, i32) {
    %c0_i32 = arith.constant 0 : i32
    %c0_i32_0 = arith.constant 0 : i32
    %c0_i32_1 = arith.constant 0 : i32
    return %arg0, %c0_i32, %c0_i32_0 : i32, i32, i32
  }
  func.func @transform_1(%arg0: i32, %arg1: i32) -> (i32, i32, i32) {
    %c0_i32 = arith.constant 0 : i32
    %c0_i32_0 = arith.constant 0 : i32
    %c0_i32_1 = arith.constant 0 : i32
    return %arg0, %c0_i32, %c0_i32_0 : i32, i32, i32
  }
  func.func @transform_2(%arg0: i32, %arg1: i32) -> (i32, i32, i32) {
    %c0_i32 = arith.constant 0 : i32
    %c0_i32_0 = arith.constant 0 : i32
    %c0_i32_1 = arith.constant 0 : i32
    return %arg1, %c0_i32, %c0_i32_0 : i32, i32, i32
  }
  func.func @transform_3(%arg0: i32, %arg1: i32) -> (i32, i32, i32) {
    %c0_i32 = arith.constant 0 : i32
    %c0_i32_0 = arith.constant 0 : i32
    %c0_i32_1 = arith.constant 0 : i32
    return %arg1, %c0_i32, %c0_i32_0 : i32, i32, i32
  }
  func.func @transform_4(%arg0: i32, %arg1: i32) -> (i32, i32, i32) {
    %c0_i32 = arith.constant 0 : i32
    %c0_i32_0 = arith.constant 0 : i32
    %c0_i32_1 = arith.constant 0 : i32
    return %arg1, %c0_i32, %c0_i32_0 : i32, i32, i32
  }
  func.func @transform_5(%arg0: i32, %arg1: i32) -> (i32, i32, i32) {
    %c0_i32 = arith.constant 0 : i32
    %c0_i32_0 = arith.constant 0 : i32
    %c0_i32_1 = arith.constant 0 : i32
    return %arg1, %c0_i32, %c0_i32_0 : i32, i32, i32
  }
  func.func @transform_6(%arg0: i32, %arg1: i32) -> (i32, i32, i32) {
    %c0_i32 = arith.constant 0 : i32
    %c0_i32_0 = arith.constant 0 : i32
    %c0_i32_1 = arith.constant 0 : i32
    return %arg1, %c0_i32, %c0_i32_0 : i32, i32, i32
  }
  func.func @transform_7(%arg0: i32, %arg1: i32) -> (i32, i32, i32) {
    %c0_i32 = arith.constant 0 : i32
    %c0_i32_0 = arith.constant 0 : i32
    %c0_i32_1 = arith.constant 0 : i32
    return %arg1, %c0_i32, %c0_i32_0 : i32, i32, i32
  }
  func.func @transform_8(%arg0: i32, %arg1: i32) -> (i32, i32, i32) {
    %c0_i32 = arith.constant 0 : i32
    %c0_i32_0 = arith.constant 0 : i32
    %c0_i32_1 = arith.constant 0 : i32
    return %arg1, %c0_i32, %c0_i32_0 : i32, i32, i32
  }
  func.func @transform_9(%arg0: i32, %arg1: i32) -> (i32, i32, i32) {
    %c0_i32 = arith.constant 0 : i32
    %c0_i32_0 = arith.constant 0 : i32
    %c0_i32_1 = arith.constant 0 : i32
    return %arg1, %c0_i32, %c0_i32_0 : i32, i32, i32
  }
  func.func @transform_10(%arg0: i32, %arg1: i32) -> (i32, i32, i32) {
    %c0_i32 = arith.constant 0 : i32
    %c0_i32_0 = arith.constant 0 : i32
    %c0_i32_1 = arith.constant 0 : i32
    return %arg1, %c0_i32, %c0_i32_0 : i32, i32, i32
  }
  func.func @transform_11(%arg0: i32, %arg1: i32) -> (i32, i32, i32) {
    %c0_i32 = arith.constant 0 : i32
    %c0_i32_0 = arith.constant 0 : i32
    %c0_i32_1 = arith.constant 0 : i32
    return %arg1, %c0_i32, %c0_i32_0 : i32, i32, i32
  }
  func.func @transform_12(%arg0: i32, %arg1: i32) -> (i32, i32, i32) {
    %c0_i32 = arith.constant 0 : i32
    %c0_i32_0 = arith.constant 0 : i32
    %c0_i32_1 = arith.constant 0 : i32
    return %arg1, %c0_i32, %c0_i32_0 : i32, i32, i32
  }
  func.func @transform_13(%arg0: i32, %arg1: i32) -> (i32, i32, i32) {
    %c0_i32 = arith.constant 0 : i32
    %c0_i32_0 = arith.constant 0 : i32
    %c0_i32_1 = arith.constant 0 : i32
    return %arg1, %c0_i32, %c0_i32_0 : i32, i32, i32
  }
  func.func @transform_14(%arg0: i32, %arg1: i32) -> (i32, i32, i32) {
    %c0_i32 = arith.constant 0 : i32
    %c0_i32_0 = arith.constant 0 : i32
    %c0_i32_1 = arith.constant 0 : i32
    %c0_i32_2 = arith.constant 0 : i32
    return %c0_i32, %c0_i32_0, %c0_i32_1 : i32, i32, i32
  }
  func.func @transform_15(%arg0: i32, %arg1: i32) -> (i32, i32, i32) {
    %c0_i32 = arith.constant 0 : i32
    %c0_i32_0 = arith.constant 0 : i32
    %c0_i32_1 = arith.constant 0 : i32
    %c0_i32_2 = arith.constant 0 : i32
    return %c0_i32, %c0_i32_0, %c0_i32_1 : i32, i32, i32
  }
  func.func @transform_16(%arg0: i32, %arg1: i32) -> (i32, i32, i32) {
    %c0_i32 = arith.constant 0 : i32
    %c0_i32_0 = arith.constant 0 : i32
    %c0_i32_1 = arith.constant 0 : i32
    return %arg0, %c0_i32, %c0_i32_0 : i32, i32, i32
  }
}

module attributes {stable_mosaic.version = 11 : i64} {
  func.func @_matmul_bias_kernel(%arg0: i32, %arg1: memref<2x32xf32, #tpu.memory_space<vmem>>, %arg2: memref<32x6xf32, #tpu.memory_space<vmem>>, %arg3: memref<1x6xf32, #tpu.memory_space<vmem>>, %arg4: memref<2x6xf32, #tpu.memory_space<vmem>>) attributes {dimension_semantics = [#tpu.dimension_semantics<arbitrary>], iteration_bounds = array<i64: 1>, scalar_prefetch = 0 : i64, scratch_operands = 0 : i64, tpu.core_type = #tpu.core_type<tc>, window_params = [{pipeline_mode = #tpu.pipeline_mode<synchronous>, transform_indices = @transform_0, window_bounds = array<i64: 2, 32>}, {pipeline_mode = #tpu.pipeline_mode<synchronous>, transform_indices = @transform_1, window_bounds = array<i64: 32, 6>}, {pipeline_mode = #tpu.pipeline_mode<synchronous>, transform_indices = @transform_2, window_bounds = array<i64: 1, 6>}, {pipeline_mode = #tpu.pipeline_mode<synchronous>, transform_indices = @transform_3, window_bounds = array<i64: 2, 6>}]} {
    %c0 = arith.constant 0 : index
    %c0_0 = arith.constant 0 : index
    %0 = vector.load %arg1[%c0, %c0_0] : memref<2x32xf32, #tpu.memory_space<vmem>>, vector<2x32xf32>
    %c0_1 = arith.constant 0 : index
    %c0_2 = arith.constant 0 : index
    %1 = vector.load %arg2[%c0_1, %c0_2] : memref<32x6xf32, #tpu.memory_space<vmem>>, vector<32x6xf32>
    %cst = arith.constant dense<0.000000e+00> : vector<2x6xf32>
    %2 = tpu.matmul %0, %1, %cst {dimension_numbers = #tpu.dot_dimension_numbers<[1], [0], [0], [1], [0, 0, 1, 1], [], []>} : vector<2x32xf32>, vector<32x6xf32>, vector<2x6xf32> -> vector<2x6xf32>
    %c0_3 = arith.constant 0 : index
    %c0_4 = arith.constant 0 : index
    %3 = vector.load %arg3[%c0_3, %c0_4] : memref<1x6xf32, #tpu.memory_space<vmem>>, vector<1x6xf32>
    %4 = vector.broadcast %3 : vector<1x6xf32> to vector<2x6xf32>
    %5 = arith.addf %2, %4 : vector<2x6xf32>
    %c0_5 = arith.constant 0 : index
    %c0_6 = arith.constant 0 : index
    %6 = vector.load %arg4[%c0_5, %c0_6] : memref<2x6xf32, #tpu.memory_space<vmem>>, vector<2x6xf32>
    tpu.vector_store %arg4[%c0_5, %c0_6], %5 {strides = array<i32>} : memref<2x6xf32, #tpu.memory_space<vmem>>, vector<2x6xf32>,
    return
  }
  func.func @transform_0(%arg0: i32) -> (i32, i32) {
    %c0_i32 = arith.constant 0 : i32
    %c0_i32_0 = arith.constant 0 : i32
    %c0_i32_1 = arith.constant 0 : i32
    return %c0_i32, %c0_i32_0 : i32, i32
  }
  func.func @transform_1(%arg0: i32) -> (i32, i32) {
    %c0_i32 = arith.constant 0 : i32
    %c0_i32_0 = arith.constant 0 : i32
    %c0_i32_1 = arith.constant 0 : i32
    return %c0_i32, %c0_i32_0 : i32, i32
  }
  func.func @transform_2(%arg0: i32) -> (i32, i32) {
    %c0_i32 = arith.constant 0 : i32
    %c0_i32_0 = arith.constant 0 : i32
    %c0_i32_1 = arith.constant 0 : i32
    return %c0_i32, %c0_i32_0 : i32, i32
  }
  func.func @transform_3(%arg0: i32) -> (i32, i32) {
    %c0_i32 = arith.constant 0 : i32
    %c0_i32_0 = arith.constant 0 : i32
    %c0_i32_1 = arith.constant 0 : i32
    return %c0_i32, %c0_i32_0 : i32, i32
  }
}

</mosaic_0001>

<llo_original>
// kernel: m3fm_forward.15
$region0: #{m3fm_forward.15}
  #allocation0 [shape = 'u32[]', space=smem, size = 0x4, offset = 0x4, fixed_abs, tag = 'smem constant byte address 0x4 - core index']
  #allocation1 [shape = 'u32[72,128]{1,0:T(1,128)}', space=vmem, size = 0x9000, scoped, tag = 'internal scratch']
  %s0 = inlined_call_operand.vmem [shape: f32[2,32], index: 0, kind: input, shape index: {}]
  %s1 = inlined_call_operand.vmem [shape: f32[32,32], index: 1, kind: input, shape index: {}]
  %s2 = inlined_call_operand.vmem [shape: f32[1,32], index: 2, kind: input, shape index: {}]
  %s3 = inlined_call_operand.vmem [shape: f32[2,32], index: 3, kind: output, shape index: {}]
  %s4 = sld [smem:[#allocation0]]
  $region22: #{m3fm_forward.15} parent=0
    _
  %s6 = ssub.s32 1, %s4
  %s7 = scalar_select 0, %s6, %s4
  // Predicated region
  $region2: #{m3fm_forward.15} parent=0 // pred_check
    _
  $region3: #{m3fm_forward.15} parent=0 // pred_check_branch
    %9 = sbr.rel (0) target = $region5
  $region4: #{m3fm_forward.15} parent=0 // pred_region
    _
  $region5: #{m3fm_forward.15} parent=0 // pred_fallthru
    _
  // Predicated region
  $region6: #{m3fm_forward.15} parent=0 // pred_check
    _
  $region7: #{m3fm_forward.15} parent=0 // pred_check_branch
    %11 = sbr.rel (0) target = $region9
  $region8: #{m3fm_forward.15} parent=0 // pred_region
    _
  $region9: #{m3fm_forward.15} parent=0 // pred_fallthru
    _
  // Predicated region
  $region10: #{m3fm_forward.15} parent=0 // pred_check
    _
  $region11: #{m3fm_forward.15} parent=0 // pred_check_branch
    %13 = sbr.rel (0) target = $region13
  $region12: #{m3fm_forward.15} parent=0 // pred_region
    _
  $region13: #{m3fm_forward.15} parent=0 // pred_fallthru
    _
  %v14 = vld [vmem:[%s0] sm:$0x3]
  %v15 = vld [vmem:[%s1] sm:$0xff]
  %v16 = vld [vmem:[%s1 + $0x8] sm:$0xff]
  %v17 = vld [vmem:[%s1 + $0x10] sm:$0xff]
  %v18 = vld [vmem:[%s1 + $0x18] sm:$0xff]
  %v19 = vld [vmem:[%s2] sm:$0x1]
  %v21 = vperm.slane %v19, 0
  %vm23 = vcmask 261120
  %v25 = vsel %vm23, %v14, 0
  %27 = vmatpush.msra.mxu0 0.0
  %28 = vmatpush.msra.mxu0 0.0
  %29 = vmatpush.msra.mxu0 0.0
  %30 = vmatpush.msra.mxu0 0.0
  %31 = vmatpush.msra.mxu0 0.0
  %32 = vmatpush.msra.mxu0 0.0
  %33 = vmatpush.msra.mxu0 0.0
  %34 = vmatpush.msra.mxu0 0.0
  %35 = vmatpush.msra.mxu0 0.0
  %36 = vmatpush.msra.mxu0 0.0
  %37 = vmatpush.msra.mxu0 0.0
  %38 = vmatpush.msra.mxu0 0.0
  %39 = vmatpush.msra.mxu0 %v18
  %40 = vmatpush.msra.mxu0 %v17
  %41 = vmatpush.msra.mxu0 %v16
  %42 = vmatpush.msra.mxu0 %v15
  %43 = vmatmul.f32.gmra.mxu0 %v25
  %v44 = vpop.f32.mrf.mxu0
  %v45 = vadd.f32 %v21, %v44
  %46 = vdwg.mxu0
  %vm47 = vcmask 254976
  %48 = vst.msk [vmem:[%s3] sm:$0x3] %vm47, %v45
  // Predicated region
  $region14: #{m3fm_forward.15} parent=0 // pred_check
    _
  $region15: #{m3fm_forward.15} parent=0 // pred_check_branch
    %50 = sbr.rel (0) target = $region17
  $region16: #{m3fm_forward.15} parent=0 // pred_region
    _
  $region17: #{m3fm_forward.15} parent=0 // pred_fallthru
    _
  // Predicated region
  $region18: #{m3fm_forward.15} parent=0 // pred_check
    _
  $region19: #{m3fm_forward.15} parent=0 // pred_check_branch
    %52 = sbr.rel (0) target = $region21
  $region20: #{m3fm_forward.15} parent=0 // pred_region
    _
  $region21: #{m3fm_forward.15} parent=0 // pred_fallthru
    _

// kernel: m3fm_forward.13
$region0: #{m3fm_forward.13}
  #allocation0 [shape = 'u32[]', space=smem, size = 0x4, offset = 0x4, fixed_abs, tag = 'smem constant byte address 0x4 - core index']
  #allocation1 [shape = 'u32[72,128]{1,0:T(1,128)}', space=vmem, size = 0x9000, scoped, tag = 'internal scratch']
  %s0 = inlined_call_operand.vmem [shape: f32[16,32], index: 0, kind: input, shape index: {}]
  %s1 = inlined_call_operand.vmem [shape: f32[32,32], index: 1, kind: input, shape index: {}]
  %s2 = inlined_call_operand.vmem [shape: f32[1,32], index: 2, kind: input, shape index: {}]
  %s3 = inlined_call_operand.vmem [shape: f32[16,32], index: 3, kind: output, shape index: {}]
  %s4 = sld [smem:[#allocation0]]
  $region22: #{m3fm_forward.13} parent=0
    _
  %s6 = ssub.s32 1, %s4
  %s7 = scalar_select 0, %s6, %s4
  // Predicated region
  $region2: #{m3fm_forward.13} parent=0 // pred_check
    _
  $region3: #{m3fm_forward.13} parent=0 // pred_check_branch
    %9 = sbr.rel (0) target = $region5
  $region4: #{m3fm_forward.13} parent=0 // pred_region
    _
  $region5: #{m3fm_forward.13} parent=0 // pred_fallthru
    _
  // Predicated region
  $region6: #{m3fm_forward.13} parent=0 // pred_check
    _
  $region7: #{m3fm_forward.13} parent=0 // pred_check_branch
    %11 = sbr.rel (0) target = $region9
  $region8: #{m3fm_forward.13} parent=0 // pred_region
    _
  $region9: #{m3fm_forward.13} parent=0 // pred_fallthru
    _
  // Predicated region
  $region10: #{m3fm_forward.13} parent=0 // pred_check
    _
  $region11: #{m3fm_forward.13} parent=0 // pred_check_branch
    %13 = sbr.rel (0) target = $region13
  $region12: #{m3fm_forward.13} parent=0 // pred_region
    _
  $region13: #{m3fm_forward.13} parent=0 // pred_fallthru
    _
  %v14 = vld [vmem:[%s0] sm:$0xff]
  %v15 = vld [vmem:[%s0 + $0x8] sm:$0xff]
  %v16 = vld [vmem:[%s1] sm:$0xff]
  %v17 = vld [vmem:[%s1 + $0x8] sm:$0xff]
  %v18 = vld [vmem:[%s1 + $0x10] sm:$0xff]
  %v19 = vld [vmem:[%s1 + $0x18] sm:$0xff]
  %v20 = vld [vmem:[%s2] sm:$0x1]
  %v22 = vperm.slane %v20, 0
  %vm24 = vcmask 261120
  %v26 = vsel %vm24, %v14, 0
  %v29 = vsel %vm24, %v15, 0
  %31 = vmatpush.msra.mxu0 0.0
  %32 = vmatpush.msra.mxu0 0.0
  %33 = vmatpush.msra.mxu0 0.0
  %34 = vmatpush.msra.mxu0 0.0
  %35 = vmatpush.msra.mxu0 0.0
  %36 = vmatpush.msra.mxu0 0.0
  %37 = vmatpush.msra.mxu0 0.0
  %38 = vmatpush.msra.mxu0 0.0
  %39 = vmatpush.msra.mxu0 0.0
  %40 = vmatpush.msra.mxu0 0.0
  %41 = vmatpush.msra.mxu0 0.0
  %42 = vmatpush.msra.mxu0 0.0
  %43 = vmatpush.msra.mxu0 %v19
  %44 = vmatpush.msra.mxu0 %v18
  %45 = vmatpush.msra.mxu0 %v17
  %46 = vmatpush.msra.mxu0 %v16
  %47 = vmatmul.f32.gmra.mxu0 %v26
  %v48 = vpop.f32.mrf.mxu0
  %v49 = vadd.f32 %v22, %v48
  %50 = vmatmul.f32.gmra.mxu0 %v29
  %v51 = vpop.f32.mrf.mxu0
  %v52 = vadd.f32 %v22, %v51
  %53 = vdwg.mxu0
  %54 = vst.msk [vmem:[%s3] sm:$0xff] %vm24, %v49
  %55 = vst.msk [vmem:[%s3 + $0x8] sm:$0xff] %vm24, %v52
  // Predicated region
  $region14: #{m3fm_forward.13} parent=0 // pred_check
    _
  $region15: #{m3fm_forward.13} parent=0 // pred_check_branch
    %57 = sbr.rel (0) target = $region17
  $region16: #{m3fm_forward.13} parent=0 // pred_region
    _
  $region17: #{m3fm_forward.13} parent=0 // pred_fallthru
    _
  // Predicated region
  $region18: #{m3fm_forward.13} parent=0 // pred_check
    _
  $region19: #{m3fm_forward.13} parent=0 // pred_check_branch
    %59 = sbr.rel (0) target = $region21
  $region20: #{m3fm_forward.13} parent=0 // pred_region
    _
  $region21: #{m3fm_forward.13} parent=0 // pred_fallthru
    _

// kernel: m3fm_forward.12
$region0: #{m3fm_forward.12}
  #allocation0 [shape = 'u32[]', space=smem, size = 0x4, offset = 0x4, fixed_abs, tag = 'smem constant byte address 0x4 - core index']
  #allocation1 [shape = 'u32[72,128]{1,0:T(1,128)}', space=vmem, size = 0x9000, scoped, tag = 'internal scratch']
  %s0 = inlined_call_operand.vmem [shape: f32[2,8,32], index: 0, kind: input, shape index: {}]
  %s1 = inlined_call_operand.vmem [shape: f32[2,1,8], index: 1, kind: input, shape index: {}]
  %s2 = inlined_call_operand.vmem [shape: f32[2,1,32], index: 2, kind: input, shape index: {}]
  %s3 = inlined_call_operand.vmem [shape: f32[2,1,32], index: 3, kind: input, shape index: {}]
  %s4 = inlined_call_operand.vmem [shape: bf16[2,32,96], index: 4, kind: input, shape index: {}]
  %s5 = inlined_call_operand.vmem [shape: f32[2,1,96], index: 5, kind: input, shape index: {}]
  %s6 = inlined_call_operand.vmem [shape: bf16[2,32,32], index: 6, kind: input, shape index: {}]
  %s7 = inlined_call_operand.vmem [shape: f32[2,1,32], index: 7, kind: input, shape index: {}]
  %s8 = inlined_call_operand.vmem [shape: f32[2,1,32], index: 8, kind: input, shape index: {}]
  %s9 = inlined_call_operand.vmem [shape: f32[2,1,32], index: 9, kind: input, shape index: {}]
  %s10 = inlined_call_operand.vmem [shape: bf16[2,32,128], index: 10, kind: input, shape index: {}]
  %s11 = inlined_call_operand.vmem [shape: f32[2,1,128], index: 11, kind: input, shape index: {}]
  %s12 = inlined_call_operand.vmem [shape: bf16[2,128,32], index: 12, kind: input, shape index: {}]
  %s13 = inlined_call_operand.vmem [shape: f32[2,1,32], index: 13, kind: input, shape index: {}]
  %s14 = inlined_call_operand.vmem [shape: f32[1,1,32], index: 14, kind: input, shape index: {}]
  %s15 = inlined_call_operand.vmem [shape: f32[1,1,32], index: 15, kind: input, shape index: {}]
  %s16 = inlined_call_operand.vmem [shape: f32[2,8,32], index: 16, kind: output, shape index: {}]
  %s17 = sld [smem:[#allocation0]]
  $region105: #{m3fm_forward.12} parent=0
    _
  %s19 = ssub.s32 1, %s17
  %s20 = scalar_select 0, %s19, %s17
  loop: start=0, step=1, limit=6
  $region2: #{m3fm_forward.12} parent=0 // loop_pre_header
    _
  $region3: #{m3fm_forward.12} parent=0 // loop_header
    %s22 = sphi 0, %s26
    %p23 = scmp.ge.s32.totalorder %s22, 6
    %s29 = sphi 0, %s41
    %s30 = sphi 0, %s37
    %s31 = sphi 0, %s29
    %s32 = sphi 0, %s30
    %s33 = sphi 0, %s31
    %s34 = sphi 0, %s32
    %s44 = sphi 0, %s46
    %s47 = sphi 0, %s44
    %s48 = sphi 0, %s47
    %s64 = sphi 0, %s48
    %s70 = sphi 0, %s72
    %s73 = sphi 0, %s70
    %s74 = sphi 0, %s73
    %s90 = sphi 0, %s74
    %s96 = sphi 0, %s98
    %s99 = sphi 0, %s96
    %s100 = sphi 0, %s99
    %s116 = sphi 0, %s100
    %s122 = sphi 0, %s124
    %s125 = sphi 0, %s122
    %s126 = sphi 0, %s125
    %s142 = sphi 0, %s126
    %s148 = sphi 0, %s150
    %s151 = sphi 0, %s148
    %s152 = sphi 0, %s151
    %s168 = sphi 0, %s152
    %s174 = sphi 0, %s176
    %s177 = sphi 0, %s174
    %s178 = sphi 0, %s177
    %s194 = sphi 0, %s178
    %s200 = sphi 0, %s202
    %s203 = sphi 0, %s200
    %s204 = sphi 0, %s203
    %s220 = sphi 0, %s204
    %s226 = sphi 0, %s228
    %s229 = sphi 0, %s226
    %s230 = sphi 0, %s229
    %s246 = sphi 0, %s230
    %s252 = sphi 0, %s254
    %s255 = sphi 0, %s252
    %s256 = sphi 0, %s255
    %s272 = sphi 0, %s256
    %s278 = sphi 0, %s280
    %s281 = sphi 0, %s278
    %s282 = sphi 0, %s281
    %s298 = sphi 0, %s282
    %s304 = sphi 0, %s306
    %s307 = sphi 0, %s304
    %s308 = sphi 0, %s307
    %s324 = sphi 0, %s308
    %s330 = sphi 0, %s332
    %s333 = sphi 0, %s330
    %s334 = sphi 0, %s333
    %s350 = sphi 0, %s334
    %s356 = sphi 0, %s358
    %s359 = sphi 0, %s356
    %s360 = sphi 0, %s359
    %s376 = sphi 0, %s360
    %s382 = sphi 0, %s384
    %s385 = sphi 0, %s382
    %s386 = sphi 0, %s385
    %s402 = sphi 0, %s386
    %s406 = sphi 0, %s406
    %s408 = sphi 0, %s406
    %s409 = sphi 0, %s408
    %s423 = sphi 0, %s409
    %s427 = sphi 0, %s427
    %s429 = sphi 0, %s427
    %s430 = sphi 0, %s429
    %s444 = sphi 0, %s430
    %s450 = sphi 0, %s452
    %s453 = sphi 0, %s450
    %s454 = sphi 0, %s453
    %s470 = sphi 0, %s454
  $region4: #{m3fm_forward.12} parent=0 // loop_header_branch
    %25 = sbr.rel (%p23) target = $region8
  $region5: #{m3fm_forward.12} parent=0 // loop_body
    %s27 = ssub.s32 %s22, 1
    %s28 = ssub.s32 %s22, 2
    %s35 = sadd.s32 1, %s30
    %p36 = scmp.ge.s32.totalorder %s35, 2
    %s37 = scalar_select %p36, 0, %s35
    %s38 = sadd.s32 1, %s29
    %s39 = scalar_select %p36, %s38, %s29
    %p40 = scmp.ge.s32.totalorder %s39, 2
    %s41 = scalar_select %p40, 0, %s39
    %s42 = ssub.s32 %s29, %s41
    %p43 = scmp.eq.s32.totalorder %s42, 0
    %s45 = sadd.s32 %s44, 1
    %s46 = scalar_select %p43, %s44, %s45
    %p49 = pneg %p43
    %p50 = scmp.eq.s32.totalorder %s22, 3
    %p51 = por %p49, %p50
    %p52 = scmp.ne.s32.totalorder %s44, %s47
    %p53 = scmp.eq.s32.totalorder %s22, 0
    %p54 = por %p52, %p53
    %p55 = scmp.ne.s32.totalorder %s44, %s47
    %p56 = scmp.eq.s32.totalorder %s27, 3
    %p57 = por %p55, %p56
    %p58 = scmp.ne.s32.totalorder %s47, %s48
    %p59 = scmp.eq.s32.totalorder %s27, 0
    %p60 = por %p58, %p59
    %p61 = scmp.ne.s32.totalorder %s47, %s48
    %p62 = scmp.eq.s32.totalorder %s28, 3
    %p63 = por %p61, %p62
    %p65 = scmp.ne.s32.totalorder %s48, %s64
    %p66 = scmp.eq.s32.totalorder %s28, 0
    %p67 = por %p65, %p66
    %s68 = ssub.s32 %s29, %s41
    %p69 = scmp.eq.s32.totalorder %s68, 0
    %s71 = sadd.s32 %s70, 1
    %s72 = scalar_select %p69, %s70, %s71
    %p75 = pneg %p69
    %p76 = scmp.eq.s32.totalorder %s22, 3
    %p77 = por %p75, %p76
    %p78 = scmp.ne.s32.totalorder %s70, %s73
    %p79 = scmp.eq.s32.totalorder %s22, 0
    %p80 = por %p78, %p79
    %p81 = scmp.ne.s32.totalorder %s70, %s73
    %p82 = scmp.eq.s32.totalorder %s27, 3
    %p83 = por %p81, %p82
    %p84 = scmp.ne.s32.totalorder %s73, %s74
    %p85 = scmp.eq.s32.totalorder %s27, 0
    %p86 = por %p84, %p85
    %p87 = scmp.ne.s32.totalorder %s73, %s74
    %p88 = scmp.eq.s32.totalorder %s28, 3
    %p89 = por %p87, %p88
    %p91 = scmp.ne.s32.totalorder %s74, %s90
    %p92 = scmp.eq.s32.totalorder %s28, 0
    %p93 = por %p91, %p92
    %s94 = ssub.s32 %s30, %s37
    %p95 = scmp.eq.s32.totalorder %s94, 0
    %s97 = sadd.s32 %s96, 1
    %s98 = scalar_select %p95, %s96, %s97
    %p101 = pneg %p95
    %p102 = scmp.eq.s32.totalorder %s22, 3
    %p103 = por %p101, %p102
    %p104 = scmp.ne.s32.totalorder %s96, %s99
    %p105 = scmp.eq.s32.totalorder %s22, 0
    %p106 = por %p104, %p105
    %p107 = scmp.ne.s32.totalorder %s96, %s99
    %p108 = scmp.eq.s32.totalorder %s27, 3
    %p109 = por %p107, %p108
    %p110 = scmp.ne.s32.totalorder %s99, %s100
    %p111 = scmp.eq.s32.totalorder %s27, 0
    %p112 = por %p110, %p111
    %p113 = scmp.ne.s32.totalorder %s99, %s100
    %p114 = scmp.eq.s32.totalorder %s28, 3
    %p115 = por %p113, %p114
    %p117 = scmp.ne.s32.totalorder %s100, %s116
    %p118 = scmp.eq.s32.totalorder %s28, 0
    %p119 = por %p117, %p118
    %s120 = ssub.s32 %s30, %s37
    %p121 = scmp.eq.s32.totalorder %s120, 0
    %s123 = sadd.s32 %s122, 1
    %s124 = scalar_select %p121, %s122, %s123
    %p127 = pneg %p121
    %p128 = scmp.eq.s32.totalorder %s22, 3
    %p129 = por %p127, %p128
    %p130 = scmp.ne.s32.totalorder %s122, %s125
    %p131 = scmp.eq.s32.totalorder %s22, 0
    %p132 = por %p130, %p131
    %p133 = scmp.ne.s32.totalorder %s122, %s125
    %p134 = scmp.eq.s32.totalorder %s27, 3
    %p135 = por %p133, %p134
    %p136 = scmp.ne.s32.totalorder %s125, %s126
    %p137 = scmp.eq.s32.totalorder %s27, 0
    %p138 = por %p136, %p137
    %p139 = scmp.ne.s32.totalorder %s125, %s126
    %p140 = scmp.eq.s32.totalorder %s28, 3
    %p141 = por %p139, %p140
    %p143 = scmp.ne.s32.totalorder %s126, %s142
    %p144 = scmp.eq.s32.totalorder %s28, 0
    %p145 = por %p143, %p144
    %s146 = ssub.s32 %s30, %s37
    %p147 = scmp.eq.s32.totalorder %s146, 0
    %s149 = sadd.s32 %s148, 1
    %s150 = scalar_select %p147, %s148, %s149
    %p153 = pneg %p147
    %p154 = scmp.eq.s32.totalorder %s22, 3
    %p155 = por %p153, %p154
    %p156 = scmp.ne.s32.totalorder %s148, %s151
    %p157 = scmp.eq.s32.totalorder %s22, 0
    %p158 = por %p156, %p157
    %p159 = scmp.ne.s32.totalorder %s148, %s151
    %p160 = scmp.eq.s32.totalorder %s27, 3
    %p161 = por %p159, %p160
    %p162 = scmp.ne.s32.totalorder %s151, %s152
    %p163 = scmp.eq.s32.totalorder %s27, 0
    %p164 = por %p162, %p163
    %p165 = scmp.ne.s32.totalorder %s151, %s152
    %p166 = scmp.eq.s32.totalorder %s28, 3
    %p167 = por %p165, %p166
    %p169 = scmp.ne.s32.totalorder %s152, %s168
    %p170 = scmp.eq.s32.totalorder %s28, 0
    %p171 = por %p169, %p170
    %s172 = ssub.s32 %s30, %s37
    %p173 = scmp.eq.s32.totalorder %s172, 0
    %s175 = sadd.s32 %s174, 1
    %s176 = scalar_select %p173, %s174, %s175
    %p179 = pneg %p173
    %p180 = scmp.eq.s32.totalorder %s22, 3
    %p181 = por %p179, %p180
    %p182 = scmp.ne.s32.totalorder %s174, %s177
    %p183 = scmp.eq.s32.totalorder %s22, 0
    %p184 = por %p182, %p183
    %p185 = scmp.ne.s32.totalorder %s174, %s177
    %p186 = scmp.eq.s32.totalorder %s27, 3
    %p187 = por %p185, %p186
    %p188 = scmp.ne.s32.totalorder %s177, %s178
    %p189 = scmp.eq.s32.totalorder %s27, 0
    %p190 = por %p188, %p189
    %p191 = scmp.ne.s32.totalorder %s177, %s178
    %p192 = scmp.eq.s32.totalorder %s28, 3
    %p193 = por %p191, %p192
    %p195 = scmp.ne.s32.totalorder %s178, %s194
    %p196 = scmp.eq.s32.totalorder %s28, 0
    %p197 = por %p195, %p196
    %s198 = ssub.s32 %s30, %s37
    %p199 = scmp.eq.s32.totalorder %s198, 0
    %s201 = sadd.s32 %s200, 1
    %s202 = scalar_select %p199, %s200, %s201
    %p205 = pneg %p199
    %p206 = scmp.eq.s32.totalorder %s22, 3
    %p207 = por %p205, %p206
    %p208 = scmp.ne.s32.totalorder %s200, %s203
    %p209 = scmp.eq.s32.totalorder %s22, 0
    %p210 = por %p208, %p209
    %p211 = scmp.ne.s32.totalorder %s200, %s203
    %p212 = scmp.eq.s32.totalorder %s27, 3
    %p213 = por %p211, %p212
    %p214 = scmp.ne.s32.totalorder %s203, %s204
    %p215 = scmp.eq.s32.totalorder %s27, 0
    %p216 = por %p214, %p215
    %p217 = scmp.ne.s32.totalorder %s203, %s204
    %p218 = scmp.eq.s32.totalorder %s28, 3
    %p219 = por %p217, %p218
    %p221 = scmp.ne.s32.totalorder %s204, %s220
    %p222 = scmp.eq.s32.totalorder %s28, 0
    %p223 = por %p221, %p222
    %s224 = ssub.s32 %s30, %s37
    %p225 = scmp.eq.s32.totalorder %s224, 0
    %s227 = sadd.s32 %s226, 1
    %s228 = scalar_select %p225, %s226, %s227
    %p231 = pneg %p225
    %p232 = scmp.eq.s32.totalorder %s22, 3
    %p233 = por %p231, %p232
    %p234 = scmp.ne.s32.totalorder %s226, %s229
    %p235 = scmp.eq.s32.totalorder %s22, 0
    %p236 = por %p234, %p235
    %p237 = scmp.ne.s32.totalorder %s226, %s229
    %p238 = scmp.eq.s32.totalorder %s27, 3
    %p239 = por %p237, %p238
    %p240 = scmp.ne.s32.totalorder %s229, %s230
    %p241 = scmp.eq.s32.totalorder %s27, 0
    %p242 = por %p240, %p241
    %p243 = scmp.ne.s32.totalorder %s229, %s230
    %p244 = scmp.eq.s32.totalorder %s28, 3
    %p245 = por %p243, %p244
    %p247 = scmp.ne.s32.totalorder %s230, %s246
    %p248 = scmp.eq.s32.totalorder %s28, 0
    %p249 = por %p247, %p248
    %s250 = ssub.s32 %s30, %s37
    %p251 = scmp.eq.s32.totalorder %s250, 0
    %s253 = sadd.s32 %s252, 1
    %s254 = scalar_select %p251, %s252, %s253
    %p257 = pneg %p251
    %p258 = scmp.eq.s32.totalorder %s22, 3
    %p259 = por %p257, %p258
    %p260 = scmp.ne.s32.totalorder %s252, %s255
    %p261 = scmp.eq.s32.totalorder %s22, 0
    %p262 = por %p260, %p261
    %p263 = scmp.ne.s32.totalorder %s252, %s255
    %p264 = scmp.eq.s32.totalorder %s27, 3
    %p265 = por %p263, %p264
    %p266 = scmp.ne.s32.totalorder %s255, %s256
    %p267 = scmp.eq.s32.totalorder %s27, 0
    %p268 = por %p266, %p267
    %p269 = scmp.ne.s32.totalorder %s255, %s256
    %p270 = scmp.eq.s32.totalorder %s28, 3
    %p271 = por %p269, %p270
    %p273 = scmp.ne.s32.totalorder %s256, %s272
    %p274 = scmp.eq.s32.totalorder %s28, 0
    %p275 = por %p273, %p274
    %s276 = ssub.s32 %s30, %s37
    %p277 = scmp.eq.s32.totalorder %s276, 0
    %s279 = sadd.s32 %s278, 1
    %s280 = scalar_select %p277, %s278, %s279
    %p283 = pneg %p277
    %p284 = scmp.eq.s32.totalorder %s22, 3
    %p285 = por %p283, %p284
    %p286 = scmp.ne.s32.totalorder %s278, %s281
    %p287 = scmp.eq.s32.totalorder %s22, 0
    %p288 = por %p286, %p287
    %p289 = scmp.ne.s32.totalorder %s278, %s281
    %p290 = scmp.eq.s32.totalorder %s27, 3
    %p291 = por %p289, %p290
    %p292 = scmp.ne.s32.totalorder %s281, %s282
    %p293 = scmp.eq.s32.totalorder %s27, 0
    %p294 = por %p292, %p293
    %p295 = scmp.ne.s32.totalorder %s281, %s282
    %p296 = scmp.eq.s32.totalorder %s28, 3
    %p297 = por %p295, %p296
    %p299 = scmp.ne.s32.totalorder %s282, %s298
    %p300 = scmp.eq.s32.totalorder %s28, 0
    %p301 = por %p299, %p300
    %s302 = ssub.s32 %s30, %s37
    %p303 = scmp.eq.s32.totalorder %s302, 0
    %s305 = sadd.s32 %s304, 1
    %s306 = scalar_select %p303, %s304, %s305
    %p309 = pneg %p303
    %p310 = scmp.eq.s32.totalorder %s22, 3
    %p311 = por %p309, %p310
    %p312 = scmp.ne.s32.totalorder %s304, %s307
    %p313 = scmp.eq.s32.totalorder %s22, 0
    %p314 = por %p312, %p313
    %p315 = scmp.ne.s32.totalorder %s304, %s307
    %p316 = scmp.eq.s32.totalorder %s27, 3
    %p317 = por %p315, %p316
    %p318 = scmp.ne.s32.totalorder %s307, %s308
    %p319 = scmp.eq.s32.totalorder %s27, 0
    %p320 = por %p318, %p319
    %p321 = scmp.ne.s32.totalorder %s307, %s308
    %p322 = scmp.eq.s32.totalorder %s28, 3
    %p323 = por %p321, %p322
    %p325 = scmp.ne.s32.totalorder %s308, %s324
    %p326 = scmp.eq.s32.totalorder %s28, 0
    %p327 = por %p325, %p326
    %s328 = ssub.s32 %s30, %s37
    %p329 = scmp.eq.s32.totalorder %s328, 0
    %s331 = sadd.s32 %s330, 1
    %s332 = scalar_select %p329, %s330, %s331
    %p335 = pneg %p329
    %p336 = scmp.eq.s32.totalorder %s22, 3
    %p337 = por %p335, %p336
    %p338 = scmp.ne.s32.totalorder %s330, %s333
    %p339 = scmp.eq.s32.totalorder %s22, 0
    %p340 = por %p338, %p339
    %p341 = scmp.ne.s32.totalorder %s330, %s333
    %p342 = scmp.eq.s32.totalorder %s27, 3
    %p343 = por %p341, %p342
    %p344 = scmp.ne.s32.totalorder %s333, %s334
    %p345 = scmp.eq.s32.totalorder %s27, 0
    %p346 = por %p344, %p345
    %p347 = scmp.ne.s32.totalorder %s333, %s334
    %p348 = scmp.eq.s32.totalorder %s28, 3
    %p349 = por %p347, %p348
    %p351 = scmp.ne.s32.totalorder %s334, %s350
    %p352 = scmp.eq.s32.totalorder %s28, 0
    %p353 = por %p351, %p352
    %s354 = ssub.s32 %s30, %s37
    %p355 = scmp.eq.s32.totalorder %s354, 0
    %s357 = sadd.s32 %s356, 1
    %s358 = scalar_select %p355, %s356, %s357
    %p361 = pneg %p355
    %p362 = scmp.eq.s32.totalorder %s22, 3
    %p363 = por %p361, %p362
    %p364 = scmp.ne.s32.totalorder %s356, %s359
    %p365 = scmp.eq.s32.totalorder %s22, 0
    %p366 = por %p364, %p365
    %p367 = scmp.ne.s32.totalorder %s356, %s359
    %p368 = scmp.eq.s32.totalorder %s27, 3
    %p369 = por %p367, %p368
    %p370 = scmp.ne.s32.totalorder %s359, %s360
    %p371 = scmp.eq.s32.totalorder %s27, 0
    %p372 = por %p370, %p371
    %p373 = scmp.ne.s32.totalorder %s359, %s360
    %p374 = scmp.eq.s32.totalorder %s28, 3
    %p375 = por %p373, %p374
    %p377 = scmp.ne.s32.totalorder %s360, %s376
    %p378 = scmp.eq.s32.totalorder %s28, 0
    %p379 = por %p377, %p378
    %s380 = ssub.s32 %s30, %s37
    %p381 = scmp.eq.s32.totalorder %s380, 0
    %s383 = sadd.s32 %s382, 1
    %s384 = scalar_select %p381, %s382, %s383
    %p387 = pneg %p381
    %p388 = scmp.eq.s32.totalorder %s22, 3
    %p389 = por %p387, %p388
    %p390 = scmp.ne.s32.totalorder %s382, %s385
    %p391 = scmp.eq.s32.totalorder %s22, 0
    %p392 = por %p390, %p391
    %p393 = scmp.ne.s32.totalorder %s382, %s385
    %p394 = scmp.eq.s32.totalorder %s27, 3
    %p395 = por %p393, %p394
    %p396 = scmp.ne.s32.totalorder %s385, %s386
    %p397 = scmp.eq.s32.totalorder %s27, 0
    %p398 = por %p396, %p397
    %p399 = scmp.ne.s32.totalorder %s385, %s386
    %p400 = scmp.eq.s32.totalorder %s28, 3
    %p401 = por %p399, %p400
    %p403 = scmp.ne.s32.totalorder %s386, %s402
    %p404 = scmp.eq.s32.totalorder %s28, 0
    %p405 = por %p403, %p404
    %s407 = sadd.s32 %s406, 1
    %p410 = scmp.eq.s32.totalorder %s22, 3
    %p411 = scmp.ne.s32.totalorder %s406, %s408
    %p412 = scmp.eq.s32.totalorder %s22, 0
    %p413 = por %p411, %p412
    %p414 = scmp.ne.s32.totalorder %s406, %s408
    %p415 = scmp.eq.s32.totalorder %s27, 3
    %p416 = por %p414, %p415
    %p417 = scmp.ne.s32.totalorder %s408, %s409
    %p418 = scmp.eq.s32.totalorder %s27, 0
    %p419 = por %p417, %p418
    %p420 = scmp.ne.s32.totalorder %s408, %s409
    %p421 = scmp.eq.s32.totalorder %s28, 3
    %p422 = por %p420, %p421
    %p424 = scmp.ne.s32.totalorder %s409, %s423
    %p425 = scmp.eq.s32.totalorder %s28, 0
    %p426 = por %p424, %p425
    %s428 = sadd.s32 %s427, 1
    %p431 = scmp.eq.s32.totalorder %s22, 3
    %p432 = scmp.ne.s32.totalorder %s427, %s429
    %p433 = scmp.eq.s32.totalorder %s22, 0
    %p434 = por %p432, %p433
    %p435 = scmp.ne.s32.totalorder %s427, %s429
    %p436 = scmp.eq.s32.totalorder %s27, 3
    %p437 = por %p435, %p436
    %p438 = scmp.ne.s32.totalorder %s429, %s430
    %p439 = scmp.eq.s32.totalorder %s27, 0
    %p440 = por %p438, %p439
    %p441 = scmp.ne.s32.totalorder %s429, %s430
    %p442 = scmp.eq.s32.totalorder %s28, 3
    %p443 = por %p441, %p442
    %p445 = scmp.ne.s32.totalorder %s430, %s444
    %p446 = scmp.eq.s32.totalorder %s28, 0
    %p447 = por %p445, %p446
    %s448 = ssub.s32 %s29, %s41
    %p449 = scmp.eq.s32.totalorder %s448, 0
    %s451 = sadd.s32 %s450, 1
    %s452 = scalar_select %p449, %s450, %s451
    %p455 = pneg %p449
    %p456 = scmp.eq.s32.totalorder %s22, 3
    %p457 = por %p455, %p456
    %p458 = scmp.ne.s32.totalorder %s450, %s453
    %p459 = scmp.eq.s32.totalorder %s22, 0
    %p460 = por %p458, %p459
    %p461 = scmp.ne.s32.totalorder %s450, %s453
    %p462 = scmp.eq.s32.totalorder %s27, 3
    %p463 = por %p461, %p462
    %p464 = scmp.ne.s32.totalorder %s453, %s454
    %p465 = scmp.eq.s32.totalorder %s27, 0
    %p466 = por %p464, %p465
    %p467 = scmp.ne.s32.totalorder %s453, %s454
    %p468 = scmp.eq.s32.totalorder %s28, 3
    %p469 = por %p467, %p468
    %p471 = scmp.ne.s32.totalorder %s454, %s470
    %p472 = scmp.eq.s32.totalorder %s28, 0
    %p473 = por %p471, %p472
    %p474 = scmp.le.s32.totalorder 1, %s22
    %p475 = scmp.lt.s32.totalorder %s22, 5
    %p476 = pnand %p474, %p475
    %p477 = pneg %p476
    // Predicated region
    $region9: #{m3fm_forward.12} parent=5 // pred_check
      _
    $region10: #{m3fm_forward.12} parent=5 // pred_check_branch
      %479 = sbr.rel (%p476) target = $region12
    $region11: #{m3fm_forward.12} parent=5 // pred_region
      %s480 = ssub.s32 %s22, 1
      // Predicated region
      $region13: #{m3fm_forward.12} parent=11 // pred_check
        %p481 = pneg %p419
      $region14: #{m3fm_forward.12} parent=11 // pred_check_branch
        %483 = sbr.rel (%p481) target = $region16
      $region15: #{m3fm_forward.12} parent=11 // pred_region
        _
      $region16: #{m3fm_forward.12} parent=11 // pred_fallthru
        _
      // Predicated region
      $region17: #{m3fm_forward.12} parent=11 // pred_check
        %p484 = pneg %p440
      $region18: #{m3fm_forward.12} parent=11 // pred_check_branch
        %486 = sbr.rel (%p484) target = $region20
      $region19: #{m3fm_forward.12} parent=11 // pred_region
        _
      $region20: #{m3fm_forward.12} parent=11 // pred_fallthru
        _
    $region12: #{m3fm_forward.12} parent=5 // pred_fallthru
      _
    %p487 = scmp.lt.s32.totalorder %s22, 4
    // Predicated region
    $region21: #{m3fm_forward.12} parent=5 // pred_check
      %p488 = pneg %p487
    $region22: #{m3fm_forward.12} parent=5 // pred_check_branch
      %490 = sbr.rel (%p488) target = $region24
    $region23: #{m3fm_forward.12} parent=5 // pred_region
      // Predicated region
      $region25: #{m3fm_forward.12} parent=23 // pred_check
        %p491 = pneg %p54
      $region26: #{m3fm_forward.12} parent=23 // pred_check_branch
        %493 = sbr.rel (%p491) target = $region28
      $region27: #{m3fm_forward.12} parent=23 // pred_region
        %p494 = scmp.lt.s32.totalorder %s29, 1
        %s495 = scalar_select %p494, %s29, 1
        %s496 = smul.addr %s495, 8
        %s497 = scalar_lea.vmem %s0, %s496
      $region28: #{m3fm_forward.12} parent=23 // pred_fallthru
        _
      // Predicated region
      $region29: #{m3fm_forward.12} parent=23 // pred_check
        %p498 = pneg %p80
      $region30: #{m3fm_forward.12} parent=23 // pred_check_branch
        %500 = sbr.rel (%p498) target = $region32
      $region31: #{m3fm_forward.12} parent=23 // pred_region
        %p501 = scmp.lt.s32.totalorder %s29, 1
        %s502 = scalar_select %p501, %s29, 1
        %s503 = scalar_lea.vmem %s1, %s502
      $region32: #{m3fm_forward.12} parent=23 // pred_fallthru
        _
      // Predicated region
      $region33: #{m3fm_forward.12} parent=23 // pred_check
        %p504 = pneg %p106
      $region34: #{m3fm_forward.12} parent=23 // pred_check_branch
        %506 = sbr.rel (%p504) target = $region36
      $region35: #{m3fm_forward.12} parent=23 // pred_region
        %p507 = scmp.lt.s32.totalorder %s30, 1
        %s508 = scalar_select %p507, %s30, 1
        %s509 = scalar_lea.vmem %s2, %s508
      $region36: #{m3fm_forward.12} parent=23 // pred_fallthru
        _
      // Predicated region
      $region37: #{m3fm_forward.12} parent=23 // pred_check
        %p510 = pneg %p132
      $region38: #{m3fm_forward.12} parent=23 // pred_check_branch
        %512 = sbr.rel (%p510) target = $region40
      $region39: #{m3fm_forward.12} parent=23 // pred_region
        %p513 = scmp.lt.s32.totalorder %s30, 1
        %s514 = scalar_select %p513, %s30, 1
        %s515 = scalar_lea.vmem %s3, %s514
      $region40: #{m3fm_forward.12} parent=23 // pred_fallthru
        _
      // Predicated region
      $region41: #{m3fm_forward.12} parent=23 // pred_check
        %p516 = pneg %p158
      $region42: #{m3fm_forward.12} parent=23 // pred_check_branch
        %518 = sbr.rel (%p516) target = $region44
      $region43: #{m3fm_forward.12} parent=23 // pred_region
        %p519 = scmp.lt.s32.totalorder %s30, 1
        %s520 = scalar_select %p519, %s30, 1
        %s521 = smul.addr %s520, 4
        %s522 = smul.addr %s521, 4
        %s523 = scalar_lea.vmem %s4, %s522
      $region44: #{m3fm_forward.12} parent=23 // pred_fallthru
        _
      // Predicated region
      $region45: #{m3fm_forward.12} parent=23 // pred_check
        %p524 = pneg %p184
      $region46: #{m3fm_forward.12} parent=23 // pred_check_branch
        %526 = sbr.rel (%p524) target = $region48
      $region47: #{m3fm_forward.12} parent=23 // pred_region
        %p527 = scmp.lt.s32.totalorder %s30, 1
        %s528 = scalar_select %p527, %s30, 1
        %s529 = scalar_lea.vmem %s5, %s528
      $region48: #{m3fm_forward.12} parent=23 // pred_fallthru
        _
      // Predicated region
      $region49: #{m3fm_forward.12} parent=23 // pred_check
        %p530 = pneg %p210
      $region50: #{m3fm_forward.12} parent=23 // pred_check_branch
        %532 = sbr.rel (%p530) target = $region52
      $region51: #{m3fm_forward.12} parent=23 // pred_region
        %p533 = scmp.lt.s32.totalorder %s30, 1
        %s534 = scalar_select %p533, %s30, 1
        %s535 = smul.addr %s534, 4
        %s536 = smul.addr %s535, 4
        %s537 = scalar_lea.vmem %s6, %s536
      $region52: #{m3fm_forward.12} parent=23 // pred_fallthru
        _
      // Predicated region
      $region53: #{m3fm_forward.12} parent=23 // pred_check
        %p538 = pneg %p236
      $region54: #{m3fm_forward.12} parent=23 // pred_check_branch
        %540 = sbr.rel (%p538) target = $region56
      $region55: #{m3fm_forward.12} parent=23 // pred_region
        %p541 = scmp.lt.s32.totalorder %s30, 1
        %s542 = scalar_select %p541, %s30, 1
        %s543 = scalar_lea.vmem %s7, %s542
      $region56: #{m3fm_forward.12} parent=23 // pred_fallthru
        _
      // Predicated region
      $region57: #{m3fm_forward.12} parent=23 // pred_check
        %p544 = pneg %p262
      $region58: #{m3fm_forward.12} parent=23 // pred_check_branch
        %546 = sbr.rel (%p544) target = $region60
      $region59: #{m3fm_forward.12} parent=23 // pred_region
        %p547 = scmp.lt.s32.totalorder %s30, 1
        %s548 = scalar_select %p547, %s30, 1
        %s549 = scalar_lea.vmem %s8, %s548
      $region60: #{m3fm_forward.12} parent=23 // pred_fallthru
        _
      // Predicated region
      $region61: #{m3fm_forward.12} parent=23 // pred_check
        %p550 = pneg %p288
      $region62: #{m3fm_forward.12} parent=23 // pred_check_branch
        %552 = sbr.rel (%p550) target = $region64
      $region63: #{m3fm_forward.12} parent=23 // pred_region
        %p553 = scmp.lt.s32.totalorder %s30, 1
        %s554 = scalar_select %p553, %s30, 1
        %s555 = scalar_lea.vmem %s9, %s554
      $region64: #{m3fm_forward.12} parent=23 // pred_fallthru
        _
      // Predicated region
      $region65: #{m3fm_forward.12} parent=23 // pred_check
        %p556 = pneg %p314
      $region66: #{m3fm_forward.12} parent=23 // pred_check_branch
        %558 = sbr.rel (%p556) target = $region68
      $region67: #{m3fm_forward.12} parent=23 // pred_region
        %p559 = scmp.lt.s32.totalorder %s30, 1
        %s560 = scalar_select %p559, %s30, 1
        %s561 = smul.addr %s560, 4
        %s562 = smul.addr %s561, 4
        %s563 = scalar_lea.vmem %s10, %s562
      $region68: #{m3fm_forward.12} parent=23 // pred_fallthru
        _
      // Predicated region
      $region69: #{m3fm_forward.12} parent=23 // pred_check
        %p564 = pneg %p340
      $region70: #{m3fm_forward.12} parent=23 // pred_check_branch
        %566 = sbr.rel (%p564) target = $region72
      $region71: #{m3fm_forward.12} parent=23 // pred_region
        %p567 = scmp.lt.s32.totalorder %s30, 1
        %s568 = scalar_select %p567, %s30, 1
        %s569 = scalar_lea.vmem %s11, %s568
      $region72: #{m3fm_forward.12} parent=23 // pred_fallthru
        _
      // Predicated region
      $region73: #{m3fm_forward.12} parent=23 // pred_check
        %p570 = pneg %p366
      $region74: #{m3fm_forward.12} parent=23 // pred_check_branch
        %572 = sbr.rel (%p570) target = $region76
      $region75: #{m3fm_forward.12} parent=23 // pred_region
        %p573 = scmp.lt.s32.totalorder %s30, 1
        %s574 = scalar_select %p573, %s30, 1
        %s575 = smul.addr %s574, 16
        %s576 = smul.addr %s575, 4
        %s577 = scalar_lea.vmem %s12, %s576
      $region76: #{m3fm_forward.12} parent=23 // pred_fallthru
        _
      // Predicated region
      $region77: #{m3fm_forward.12} parent=23 // pred_check
        %p578 = pneg %p392
      $region78: #{m3fm_forward.12} parent=23 // pred_check_branch
        %580 = sbr.rel (%p578) target = $region80
      $region79: #{m3fm_forward.12} parent=23 // pred_region
        %p581 = scmp.lt.s32.totalorder %s30, 1
        %s582 = scalar_select %p581, %s30, 1
        %s583 = scalar_lea.vmem %s13, %s582
      $region80: #{m3fm_forward.12} parent=23 // pred_fallthru
        _
    $region24: #{m3fm_forward.12} parent=5 // pred_fallthru
      _
    %p584 = scmp.le.s32.totalorder 1, %s22
    %p585 = scmp.lt.s32.totalorder %s22, 5
    %p586 = pnand %p584, %p585
    %p587 = pneg %p586
    // Predicated region
    $region81: #{m3fm_forward.12} parent=5 // pred_check
      _
    $region82: #{m3fm_forward.12} parent=5 // pred_check_branch
      %589 = sbr.rel (%p586) target = $region84
    $region83: #{m3fm_forward.12} parent=5 // pred_region
      %s590 = ssub.s32 %s22, 1
      %p591 = scmp.lt.s32.totalorder %s31, 1
      %s592 = scalar_select %p591, %s31, 1
      %s593 = smul.addr %s592, 8
      %s594 = scalar_lea.vmem %s0, %s593
      %p595 = pneg %p60
      %p596 = pneg %p57
      %p597 = scmp.lt.s32.totalorder %s31, 1
      %s598 = scalar_select %p597, %s31, 1
      %s599 = scalar_lea.vmem %s1, %s598
      %p600 = pneg %p86
      %p601 = pneg %p83
      %p602 = scmp.lt.s32.totalorder %s32, 1
      %s603 = scalar_select %p602, %s32, 1
      %s604 = scalar_lea.vmem %s2, %s603
      %p605 = pneg %p112
      %p606 = pneg %p109
      %p607 = scmp.lt.s32.totalorder %s32, 1
      %s608 = scalar_select %p607, %s32, 1
      %s609 = scalar_lea.vmem %s3, %s608
      %p610 = pneg %p138
      %p611 = pneg %p135
      %p612 = scmp.lt.s32.totalorder %s32, 1
      %s613 = scalar_select %p612, %s32, 1
      %s614 = smul.addr %s613, 4
      %s615 = smul.addr %s614, 4
      %s616 = scalar_lea.vmem %s4, %s615
      %p617 = pneg %p164
      %p618 = pneg %p161
      %p619 = scmp.lt.s32.totalorder %s32, 1
      %s620 = scalar_select %p619, %s32, 1
      %s621 = scalar_lea.vmem %s5, %s620
      %p622 = pneg %p190
      %p623 = pneg %p187
      %p624 = scmp.lt.s32.totalorder %s32, 1
      %s625 = scalar_select %p624, %s32, 1
      %s626 = smul.addr %s625, 4
      %s627 = smul.addr %s626, 4
      %s628 = scalar_lea.vmem %s6, %s627
      %p629 = pneg %p216
      %p630 = pneg %p213
      %p631 = scmp.lt.s32.totalorder %s32, 1
      %s632 = scalar_select %p631, %s32, 1
      %s633 = scalar_lea.vmem %s7, %s632
      %p634 = pneg %p242
      %p635 = pneg %p239
      %p636 = scmp.lt.s32.totalorder %s32, 1
      %s637 = scalar_select %p636, %s32, 1
      %s638 = scalar_lea.vmem %s8, %s637
      %p639 = pneg %p268
      %p640 = pneg %p265
      %p641 = scmp.lt.s32.totalorder %s32, 1
      %s642 = scalar_select %p641, %s32, 1
      %s643 = scalar_lea.vmem %s9, %s642
      %p644 = pneg %p294
      %p645 = pneg %p291
      %p646 = scmp.lt.s32.totalorder %s32, 1
      %s647 = scalar_select %p646, %s32, 1
      %s648 = smul.addr %s647, 4
      %s649 = smul.addr %s648, 4
      %s650 = scalar_lea.vmem %s10, %s649
      %p651 = pneg %p320
      %p652 = pneg %p317
      %p653 = scmp.lt.s32.totalorder %s32, 1
      %s654 = scalar_select %p653, %s32, 1
      %s655 = scalar_lea.vmem %s11, %s654
      %p656 = pneg %p346
      %p657 = pneg %p343
      %p658 = scmp.lt.s32.totalorder %s32, 1
      %s659 = scalar_select %p658, %s32, 1
      %s660 = smul.addr %s659, 16
      %s661 = smul.addr %s660, 4
      %s662 = scalar_lea.vmem %s12, %s661
      %p663 = pneg %p372
      %p664 = pneg %p369
      %p665 = scmp.lt.s32.totalorder %s32, 1
      %s666 = scalar_select %p665, %s32, 1
      %s667 = scalar_lea.vmem %s13, %s666
      %p668 = pneg %p398
      %p669 = pneg %p395
      %p670 = pneg %p419
      %p671 = pneg %p416
      %p672 = pneg %p440
      %p673 = pneg %p437
      %p674 = pneg %p466
      %p675 = pneg %p463
      %p676 = scmp.lt.s32.totalorder %s31, 1
      %s677 = scalar_select %p676, %s31, 1
      %s678 = smul.addr %s677, 8
      %s679 = scalar_lea.vmem %s16, %s678
      %p680 = scmp.lt.s32.totalorder %s31, 1
      %s681 = scalar_select %p680, %s31, 1
      %s682 = smul.addr %s681, 8
      %s683 = scalar_lea.vmem %s0, %s682
      %p684 = scmp.lt.s32.totalorder %s31, 1
      %s685 = scalar_select %p684, %s31, 1
      %s686 = scalar_lea.vmem %s1, %s685
      %p687 = scmp.lt.s32.totalorder %s32, 1
      %s688 = scalar_select %p687, %s32, 1
      %s689 = scalar_lea.vmem %s2, %s688
      %p690 = scmp.lt.s32.totalorder %s32, 1
      %s691 = scalar_select %p690, %s32, 1
      %s692 = scalar_lea.vmem %s3, %s691
      %p693 = scmp.lt.s32.totalorder %s32, 1
      %s694 = scalar_select %p693, %s32, 1
      %s695 = smul.addr %s694, 4
      %s696 = smul.addr %s695, 4
      %s697 = scalar_lea.vmem %s4, %s696
      %p698 = scmp.lt.s32.totalorder %s32, 1
      %s699 = scalar_select %p698, %s32, 1
      %s700 = scalar_lea.vmem %s5, %s699
      %p701 = scmp.lt.s32.totalorder %s32, 1
      %s702 = scalar_select %p701, %s32, 1
      %s703 = smul.addr %s702, 4
      %s704 = smul.addr %s703, 4
      %s705 = scalar_lea.vmem %s6, %s704
      %p706 = scmp.lt.s32.totalorder %s32, 1
      %s707 = scalar_select %p706, %s32, 1
      %s708 = scalar_lea.vmem %s7, %s707
      %p709 = scmp.lt.s32.totalorder %s32, 1
      %s710 = scalar_select %p709, %s32, 1
      %s711 = scalar_lea.vmem %s8, %s710
      %p712 = scmp.lt.s32.totalorder %s32, 1
      %s713 = scalar_select %p712, %s32, 1
      %s714 = scalar_lea.vmem %s9, %s713
      %p715 = scmp.lt.s32.totalorder %s32, 1
      %s716 = scalar_select %p715, %s32, 1
      %s717 = smul.addr %s716, 4
      %s718 = smul.addr %s717, 4
      %s719 = scalar_lea.vmem %s10, %s718
      %p720 = scmp.lt.s32.totalorder %s32, 1
      %s721 = scalar_select %p720, %s32, 1
      %s722 = scalar_lea.vmem %s11, %s721
      %p723 = scmp.lt.s32.totalorder %s32, 1
      %s724 = scalar_select %p723, %s32, 1
      %s725 = smul.addr %s724, 16
      %s726 = smul.addr %s725, 4
      %s727 = scalar_lea.vmem %s12, %s726
      %p728 = scmp.lt.s32.totalorder %s32, 1
      %s729 = scalar_select %p728, %s32, 1
      %s730 = scalar_lea.vmem %s13, %s729
      %p731 = scmp.lt.s32.totalorder %s31, 1
      %s732 = scalar_select %p731, %s31, 1
      %s733 = smul.addr %s732, 8
      %s734 = scalar_lea.vmem %s16, %s733
      %p736 = scmp.eq.s32.totalorder %s32, 0
      // Predicated region
      $region85: #{m3fm_forward.12} parent=83 // pred_check
        %p737 = pneg %p736
      $region86: #{m3fm_forward.12} parent=83 // pred_check_branch
        %739 = sbr.rel (%p737) target = $region88
      $region87: #{m3fm_forward.12} parent=83 // pred_region
        %v740 = vld [vmem:[%s683] sm:$0xff]
        %vm741 = vcmask 261120
        %742 = vst.msk [vmem:[%s734] sm:$0xff] %vm741, %v740
      $region88: #{m3fm_forward.12} parent=83 // pred_fallthru
        _
      %v743 = vld [vmem:[%s734] sm:$0xff]
      %v744 = vld [vmem:[%s686] sm:$0x1]
      %v745 = vld [vmem:[%s689] sm:$0x1]
      %v746 = vld [vmem:[%s692] sm:$0x1]
      %vm747 = vcmask 261120
      %v748 = vsel %vm747, %v743, 0.0
      %749 = vadd.xlane.f32.xlu0 %v748
      %v750 = vpop.xlane.xlu0 %749
      %v751 = vrcp.pop 32.0
      %v752 = vmul.f32 32.0, %v751
      %v753 = vsub.f32 1.0, %v752
      %v754 = vmul.f32 %v751, %v753
      %v755 = vadd.f32 %v751, %v754
      %vm756 = vweird.f32 %v751
      %v757 = vsel %vm756, %v751, %v755
      %v758 = vmul.f32 %v750, %v757
      %v759 = vsub.f32 %v743, %v758
      %v760 = vmul.f32 %v759, %v759
      %v761 = vsel %vm747, %v760, 0.0
      %762 = vadd.xlane.f32.xlu0 %v761
      %v763 = vpop.xlane.xlu0 %762
      %v764 = vmul.f32 %v763, %v757
      %v765 = vadd.f32 %v764, 1e-06
      %v766 = vrsqrt.pop %v765
      %v767 = vmul.f32 %v766, %v765
      %v768 = vmul.f32 %v767, %v766
      %v769 = vmul.f32 0.5, %v768
      %v770 = vsub.f32 1.5, %v769
      %v771 = vmul.f32 %v766, %v770
      %vm772 = vweird.f32 %v765
      %vm773 = vweird.f32 %v766
      %vm774 = vmor %vm772, %vm773
      %v775 = vsel %vm774, %v766, %v771
      %v776 = vmul.f32 %v759, %v775
      %v778 = vperm.slane %v745, 0
      %v780 = vmul.f32 %v776, %v778
      %v782 = vperm.slane %v746, 0
      %v784 = vadd.f32 %v780, %v782
      %v785 = vpack.c.bf16 %v784, %v784
      %v786 = vld [vmem:[%s697] sm:$0xf]
      %v787 = vld [vmem:[%s697 + $0x4] sm:$0xf]
      %v788 = vld [vmem:[%s697 + $0x8] sm:$0xf]
      %v789 = vld [vmem:[%s697 + $0xc] sm:$0xf]
      %v790 = vld [vmem:[%s700] sm:$0x1]
      %v792 = vperm.slane %v790, 0
      %v798 = vunpack.c.l.b16 %v786
      %v799 = vunpack.c.l.b16 %v787
      %v800 = vunpack.c.l.b16 %v788
      %v801 = vunpack.c.l.b16 %v789
      %v802 = vpack.c.b16 %v799, %v798
      %v803 = vpack.c.b16 %v801, %v800
      %v807 = vsel %vm747, %v785, 0
      %809 = vmatpush.bf16.msra.mxu0 0
      %810 = vmatpush.bf16.msra.mxu0 0
      %811 = vmatpush.bf16.msra.mxu0 0
      %812 = vmatpush.bf16.msra.mxu0 0
      %813 = vmatpush.bf16.msra.mxu0 0
      %814 = vmatpush.bf16.msra.mxu0 0
      %815 = vmatpush.bf16.msra.mxu0 %v803
      %816 = vmatpush.bf16.msra.mxu0 %v802
      %817 = vmatmul.bf16.gmra.mxu0 %v807
      %v818 = vpop.f32.mrf.mxu0
      %v819 = vadd.f32 %v792, %v818
      %v820 = vpop.f32.mrf.mxu0
      %821 = vdwg.mxu0
      %v822 = vpack.c.bf16 %v819, %v819
      %824 = vrot.lane.b32.xlu0 %v822, 96
      %v825 = vpop.permute.xlu0 %824
      %vm826 = vcmask 64512
      %v828 = vsel %vm826, %v822, 0
      %v831 = vsel %vm826, %v825, 0
      %833 = vmatpush.bf16.xpose.msra.mxu0 0
      %834 = vmatpush.bf16.xpose.msra.mxu0 0
      %835 = vmatpush.bf16.xpose.msra.mxu0 0
      %836 = vmatpush.bf16.xpose.msra.mxu0 0
      %837 = vmatpush.bf16.xpose.msra.mxu0 0
      %838 = vmatpush.bf16.xpose.msra.mxu0 0
      %839 = vmatpush.bf16.xpose.msra.mxu0 0
      %840 = vmatpush.bf16.xpose.msra.mxu0 %v831
      %841 = vmatmul.bf16.gmra.mxu0 %v828
      %v842 = vpop.f32.mrf.mxu0
      %v843 = vadd.f32 0.0, %v842
      %v844 = vpop.f32.mrf.mxu0
      %845 = vdwg.mxu0
      %v846 = vmul.f32 %v843, 0.35355338
      %v848 = vperm.slane %v744, 0
      %v850 = vadd.f32 %v846, %v848
      %v851 = vsel %vm826, %v850, -inf
      %852 = vmax.xlane.f32.xlu0 %v851
      %v853 = vpop.xlane.xlu0 %852
      %v854 = vsub.f32 %v850, %v853
      %v855 = vmul.f32 %v854, 1.442695
      %v856 = vpow.pop %v855
      %v857 = vsel %vm826, %v856, 0.0
      %858 = vadd.xlane.f32.xlu0 %v857
      %v859 = vpop.xlane.xlu0 %858
      %v860 = vrcp.pop %v859
      %v861 = vmul.f32 %v856, %v860
      %v862 = vpack.c.bf16 %v861, %v861
      %863 = vrot.lane.b32.xlu0 %v822, 64
      %v864 = vpop.permute.xlu0 %863
      %v866 = vsel %vm826, %v862, 0
      %vm868 = vcmask 1043456
      %v870 = vsel %vm868, %v864, 0
      %872 = vmatpush.bf16.msra.mxu0 0
      %873 = vmatpush.bf16.msra.mxu0 0
      %874 = vmatpush.bf16.msra.mxu0 0
      %875 = vmatpush.bf16.msra.mxu0 0
      %876 = vmatpush.bf16.msra.mxu0 0
      %877 = vmatpush.bf16.msra.mxu0 0
      %878 = vmatpush.bf16.msra.mxu0 0
      %879 = vmatpush.bf16.msra.mxu0 %v870
      %880 = vmatmul.bf16.gmra.mxu0 %v866
      %v881 = vpop.f32.mrf.mxu0
      %v882 = vadd.f32 0.0, %v881
      %v883 = vpop.f32.mrf.mxu0
      %884 = vdwg.mxu0
      %885 = vrot.lane.b32.xlu0 %v822, 120
      %v886 = vpop.permute.xlu0 %885
      %887 = vrot.lane.b32.xlu0 %v822, 88
      %v888 = vpop.permute.xlu0 %887
      %v890 = vsel %vm826, %v886, 0
      %v893 = vsel %vm826, %v888, 0
      %895 = vmatpush.bf16.xpose.msra.mxu0 0
      %896 = vmatpush.bf16.xpose.msra.mxu0 0
      %897 = vmatpush.bf16.xpose.msra.mxu0 0
      %898 = vmatpush.bf16.xpose.msra.mxu0 0
      %899 = vmatpush.bf16.xpose.msra.mxu0 0
      %900 = vmatpush.bf16.xpose.msra.mxu0 0
      %901 = vmatpush.bf16.xpose.msra.mxu0 0
      %902 = vmatpush.bf16.xpose.msra.mxu0 %v893
      %903 = vmatmul.bf16.gmra.mxu0 %v890
      %v904 = vpop.f32.mrf.mxu0
      %v905 = vadd.f32 0.0, %v904
      %v906 = vpop.f32.mrf.mxu0
      %907 = vdwg.mxu0
      %v908 = vmul.f32 %v905, 0.35355338
      %v909 = vadd.f32 %v908, %v848
      %v910 = vsel %vm826, %v909, -inf
      %911 = vmax.xlane.f32.xlu0 %v910
      %v912 = vpop.xlane.xlu0 %911
      %v913 = vsub.f32 %v909, %v912
      %v914 = vmul.f32 %v913, 1.442695
      %v915 = vpow.pop %v914
      %v916 = vsel %vm826, %v915, 0.0
      %917 = vadd.xlane.f32.xlu0 %v916
      %v918 = vpop.xlane.xlu0 %917
      %v919 = vrcp.pop %v918
      %v920 = vmul.f32 %v915, %v919
      %v921 = vpack.c.bf16 %v920, %v920
      %922 = vrot.lane.b32.xlu0 %v822, 56
      %v923 = vpop.permute.xlu0 %922
      %v925 = vsel %vm826, %v921, 0
      %v928 = vsel %vm868, %v923, 0
      %930 = vmatpush.bf16.msra.mxu0 0
      %931 = vmatpush.bf16.msra.mxu0 0
      %932 = vmatpush.bf16.msra.mxu0 0
      %933 = vmatpush.bf16.msra.mxu0 0
      %934 = vmatpush.bf16.msra.mxu0 0
      %935 = vmatpush.bf16.msra.mxu0 0
      %936 = vmatpush.bf16.msra.mxu0 0
      %937 = vmatpush.bf16.msra.mxu0 %v928
      %938 = vmatmul.bf16.gmra.mxu0 %v925
      %v939 = vpop.f32.mrf.mxu0
      %v940 = vadd.f32 0.0, %v939
      %v941 = vpop.f32.mrf.mxu0
      %942 = vdwg.mxu0
      %943 = vrot.lane.b32.xlu0 %v822, 112
      %v944 = vpop.permute.xlu0 %943
      %945 = vrot.lane.b32.xlu0 %v822, 80
      %v946 = vpop.permute.xlu0 %945
      %v948 = vsel %vm826, %v944, 0
      %v951 = vsel %vm826, %v946, 0
      %953 = vmatpush.bf16.xpose.msra.mxu0 0
      %954 = vmatpush.bf16.xpose.msra.mxu0 0
      %955 = vmatpush.bf16.xpose.msra.mxu0 0
      %956 = vmatpush.bf16.xpose.msra.mxu0 0
      %957 = vmatpush.bf16.xpose.msra.mxu0 0
      %958 = vmatpush.bf16.xpose.msra.mxu0 0
      %959 = vmatpush.bf16.xpose.msra.mxu0 0
      %960 = vmatpush.bf16.xpose.msra.mxu0 %v951
      %961 = vmatmul.bf16.gmra.mxu0 %v948
      %v962 = vpop.f32.mrf.mxu0
      %v963 = vadd.f32 0.0, %v962
      %v964 = vpop.f32.mrf.mxu0
      %965 = vdwg.mxu0
      %v966 = vmul.f32 %v963, 0.35355338
      %v967 = vadd.f32 %v966, %v848
      %v968 = vsel %vm826, %v967, -inf
      %969 = vmax.xlane.f32.xlu0 %v968
      %v970 = vpop.xlane.xlu0 %969
      %v971 = vsub.f32 %v967, %v970
      %v972 = vmul.f32 %v971, 1.442695
      %v973 = vpow.pop %v972
      %v974 = vsel %vm826, %v973, 0.0
      %975 = vadd.xlane.f32.xlu0 %v974
      %v976 = vpop.xlane.xlu0 %975
      %v977 = vrcp.pop %v976
      %v978 = vmul.f32 %v973, %v977
      %v979 = vpack.c.bf16 %v978, %v978
      %980 = vrot.lane.b32.xlu0 %v822, 48
      %v981 = vpop.permute.xlu0 %980
      %v983 = vsel %vm826, %v979, 0
      %v986 = vsel %vm868, %v981, 0
      %988 = vmatpush.bf16.msra.mxu0 0
      %989 = vmatpush.bf16.msra.mxu0 0
      %990 = vmatpush.bf16.msra.mxu0 0
      %991 = vmatpush.bf16.msra.mxu0 0
      %992 = vmatpush.bf16.msra.mxu0 0
      %993 = vmatpush.bf16.msra.mxu0 0
      %994 = vmatpush.bf16.msra.mxu0 0
      %995 = vmatpush.bf16.msra.mxu0 %v986
      %996 = vmatmul.bf16.gmra.mxu0 %v983
      %v997 = vpop.f32.mrf.mxu0
      %v998 = vadd.f32 0.0, %v997
      %v999 = vpop.f32.mrf.mxu0
      %1000 = vdwg.mxu0
      %1001 = vrot.lane.b32.xlu0 %v822, 104
      %v1002 = vpop.permute.xlu0 %1001
      %1003 = vrot.lane.b32.xlu0 %v822, 72
      %v1004 = vpop.permute.xlu0 %1003
      %v1006 = vsel %vm826, %v1002, 0
      %v1009 = vsel %vm826, %v1004, 0
      %1011 = vmatpush.bf16.xpose.msra.mxu0 0
      %1012 = vmatpush.bf16.xpose.msra.mxu0 0
      %1013 = vmatpush.bf16.xpose.msra.mxu0 0
      %1014 = vmatpush.bf16.xpose.msra.mxu0 0
      %1015 = vmatpush.bf16.xpose.msra.mxu0 0
      %1016 = vmatpush.bf16.xpose.msra.mxu0 0
      %1017 = vmatpush.bf16.xpose.msra.mxu0 0
      %1018 = vmatpush.bf16.xpose.msra.mxu0 %v1009
      %1019 = vmatmul.bf16.gmra.mxu0 %v1006
      %v1020 = vpop.f32.mrf.mxu0
      %v1021 = vadd.f32 0.0, %v1020
      %v1022 = vpop.f32.mrf.mxu0
      %1023 = vdwg.mxu0
      %v1024 = vmul.f32 %v1021, 0.35355338
      %v1025 = vadd.f32 %v1024, %v848
      %v1026 = vsel %vm826, %v1025, -inf
      %1027 = vmax.xlane.f32.xlu0 %v1026
      %v1028 = vpop.xlane.xlu0 %1027
      %v1029 = vsub.f32 %v1025, %v1028
      %v1030 = vmul.f32 %v1029, 1.442695
      %v1031 = vpow.pop %v1030
      %v1032 = vsel %vm826, %v1031, 0.0
      %1033 = vadd.xlane.f32.xlu0 %v1032
      %v1034 = vpop.xlane.xlu0 %1033
      %v1035 = vrcp.pop %v1034
      %v1036 = vmul.f32 %v1031, %v1035
      %v1037 = vpack.c.bf16 %v1036, %v1036
      %1038 = vrot.lane.b32.xlu0 %v822, 40
      %v1039 = vpop.permute.xlu0 %1038
      %v1041 = vsel %vm826, %v1037, 0
      %v1044 = vsel %vm868, %v1039, 0
      %1046 = vmatpush.bf16.msra.mxu0 0
      %1047 = vmatpush.bf16.msra.mxu0 0
      %1048 = vmatpush.bf16.msra.mxu0 0
      %1049 = vmatpush.bf16.msra.mxu0 0
      %1050 = vmatpush.bf16.msra.mxu0 0
      %1051 = vmatpush.bf16.msra.mxu0 0
      %1052 = vmatpush.bf16.msra.mxu0 0
      %1053 = vmatpush.bf16.msra.mxu0 %v1044
      %1054 = vmatmul.bf16.gmra.mxu0 %v1041
      %v1055 = vpop.f32.mrf.mxu0
      %v1056 = vadd.f32 0.0, %v1055
      %v1057 = vpop.f32.mrf.mxu0
      %1058 = vdwg.mxu0
      %1060 = vrot.lane.b32.xlu0 %v940, 8
      %v1061 = vpop.permute.xlu0 %1060
      %1064 = vrot.lane.b32.xlu0 %v998, 16
      %v1065 = vpop.permute.xlu0 %1064
      %1068 = vrot.lane.b32.xlu0 %v1056, 24
      %v1069 = vpop.permute.xlu0 %1068
      %v1071 = vsel %vm826, %v882, %v1061
      %vm1072 = vcmask 130048
      %v1073 = vsel %vm1072, %v1071, %v1065
      %vm1074 = vcmask 195584
      %v1075 = vsel %vm1074, %v1073, %v1069
      %v1076 = vpack.c.bf16 %v1075, %v1075
      %v1077 = vld [vmem:[%s705] sm:$0xf]
      %v1078 = vld [vmem:[%s705 + $0x4] sm:$0xf]
      %v1079 = vld [vmem:[%s705 + $0x8] sm:$0xf]
      %v1080 = vld [vmem:[%s705 + $0xc] sm:$0xf]
      %v1081 = vld [vmem:[%s708] sm:$0x1]
      %v1083 = vperm.slane %v1081, 0
      %v1089 = vunpack.c.l.b16 %v1077
      %v1090 = vunpack.c.l.b16 %v1078
      %v1091 = vunpack.c.l.b16 %v1079
      %v1092 = vunpack.c.l.b16 %v1080
      %v1093 = vpack.c.b16 %v1090, %v1089
      %v1094 = vpack.c.b16 %v1092, %v1091
      %v1098 = vsel %vm747, %v1076, 0
      %1100 = vmatpush.bf16.msra.mxu0 0
      %1101 = vmatpush.bf16.msra.mxu0 0
      %1102 = vmatpush.bf16.msra.mxu0 0
      %1103 = vmatpush.bf16.msra.mxu0 0
      %1104 = vmatpush.bf16.msra.mxu0 0
      %1105 = vmatpush.bf16.msra.mxu0 0
      %1106 = vmatpush.bf16.msra.mxu0 %v1094
      %1107 = vmatpush.bf16.msra.mxu0 %v1093
      %1108 = vmatmul.bf16.gmra.mxu0 %v1098
      %v1109 = vpop.f32.mrf.mxu0
      %v1110 = vadd.f32 %v1083, %v1109
      %v1111 = vpop.f32.mrf.mxu0
      %1112 = vdwg.mxu0
      %v1113 = vadd.f32 %v743, %v1110
      %v1114 = vld [vmem:[%s711] sm:$0x1]
      %v1115 = vld [vmem:[%s714] sm:$0x1]
      %v1116 = vsel %vm747, %v1113, 0.0
      %1117 = vadd.xlane.f32.xlu0 %v1116
      %v1118 = vpop.xlane.xlu0 %1117
      %v1119 = vmul.f32 %v1118, %v757
      %v1120 = vsub.f32 %v1113, %v1119
      %v1121 = vmul.f32 %v1120, %v1120
      %v1122 = vsel %vm747, %v1121, 0.0
      %1123 = vadd.xlane.f32.xlu0 %v1122
      %v1124 = vpop.xlane.xlu0 %1123
      %v1125 = vmul.f32 %v1124, %v757
      %v1126 = vadd.f32 %v1125, 1e-06
      %v1127 = vrsqrt.pop %v1126
      %v1128 = vmul.f32 %v1127, %v1126
      %v1129 = vmul.f32 %v1128, %v1127
      %v1130 = vmul.f32 0.5, %v1129
      %v1131 = vsub.f32 1.5, %v1130
      %v1132 = vmul.f32 %v1127, %v1131
      %vm1133 = vweird.f32 %v1126
      %vm1134 = vweird.f32 %v1127
      %vm1135 = vmor %vm1133, %vm1134
      %v1136 = vsel %vm1135, %v1127, %v1132
      %v1137 = vmul.f32 %v1120, %v1136
      %v1139 = vperm.slane %v1114, 0
      %v1141 = vmul.f32 %v1137, %v1139
      %v1143 = vperm.slane %v1115, 0
      %v1145 = vadd.f32 %v1141, %v1143
      %v1146 = vpack.c.bf16 %v1145, %v1145
      %v1147 = vld [vmem:[%s719] sm:$0xf]
      %v1148 = vld [vmem:[%s719 + $0x4] sm:$0xf]
      %v1149 = vld [vmem:[%s719 + $0x8] sm:$0xf]
      %v1150 = vld [vmem:[%s719 + $0xc] sm:$0xf]
      %v1151 = vld [vmem:[%s722] sm:$0x1]
      %v1153 = vperm.slane %v1151, 0
      %v1159 = vunpack.c.l.b16 %v1147
      %v1160 = vunpack.c.l.b16 %v1148
      %v1161 = vunpack.c.l.b16 %v1149
      %v1162 = vunpack.c.l.b16 %v1150
      %v1163 = vpack.c.b16 %v1160, %v1159
      %v1164 = vpack.c.b16 %v1162, %v1161
      %v1168 = vsel %vm747, %v1146, 0
      %1170 = vmatpush.bf16.msra.mxu0 0
      %1171 = vmatpush.bf16.msra.mxu0 0
      %1172 = vmatpush.bf16.msra.mxu0 0
      %1173 = vmatpush.bf16.msra.mxu0 0
      %1174 = vmatpush.bf16.msra.mxu0 0
      %1175 = vmatpush.bf16.msra.mxu0 0
      %1176 = vmatpush.bf16.msra.mxu0 %v1164
      %1177 = vmatpush.bf16.msra.mxu0 %v1163
      %1178 = vmatmul.bf16.gmra.mxu0 %v1168
      %v1179 = vpop.f32.mrf.mxu0
      %v1180 = vadd.f32 %v1153, %v1179
      %v1181 = vpop.f32.mrf.mxu0
      %1182 = vdwg.mxu0
      %v1183 = vmul.f32 %v1180, %v1180
      %v1184 = vmul.f32 %v1180, %v1183
      %v1185 = vmul.f32 %v1184, 0.044715
      %v1186 = vadd.f32 %v1180, %v1185
      %v1187 = vmul.f32 %v1186, 0.7978846
      %v1188 = vtanh.pop %v1187
      %v1189 = vadd.f32 %v1188, 1.0
      %v1190 = vmul.f32 %v1189, 0.5
      %v1191 = vmul.f32 %v1180, %v1190
      %v1192 = vpack.c.bf16 %v1191, %v1191
      %v1193 = vld [vmem:[%s727] sm:$0xf]
      %v1194 = vld [vmem:[%s727 + $0x4] sm:$0xf]
      %v1195 = vld [vmem:[%s727 + $0x8] sm:$0xf]
      %v1196 = vld [vmem:[%s727 + $0xc] sm:$0xf]
      %v1197 = vld [vmem:[%s727 + $0x10] sm:$0xf]
      %v1198 = vld [vmem:[%s727 + $0x14] sm:$0xf]
      %v1199 = vld [vmem:[%s727 + $0x18] sm:$0xf]
      %v1200 = vld [vmem:[%s727 + $0x1c] sm:$0xf]
      %v1201 = vld [vmem:[%s727 + $0x20] sm:$0xf]
      %v1202 = vld [vmem:[%s727 + $0x24] sm:$0xf]
      %v1203 = vld [vmem:[%s727 + $0x28] sm:$0xf]
      %v1204 = vld [vmem:[%s727 + $0x2c] sm:$0xf]
      %v1205 = vld [vmem:[%s727 + $0x30] sm:$0xf]
      %v1206 = vld [vmem:[%s727 + $0x34] sm:$0xf]
      %v1207 = vld [vmem:[%s727 + $0x38] sm:$0xf]
      %v1208 = vld [vmem:[%s727 + $0x3c] sm:$0xf]
      %v1209 = vld [vmem:[%s730] sm:$0x1]
      %v1211 = vperm.slane %v1209, 0
      %v1229 = vunpack.c.l.b16 %v1193
      %v1230 = vunpack.c.l.b16 %v1194
      %v1231 = vunpack.c.l.b16 %v1195
      %v1232 = vunpack.c.l.b16 %v1196
      %v1233 = vunpack.c.l.b16 %v1197
      %v1234 = vunpack.c.l.b16 %v1198
      %v1235 = vunpack.c.l.b16 %v1199
      %v1236 = vunpack.c.l.b16 %v1200
      %v1237 = vunpack.c.l.b16 %v1201
      %v1238 = vunpack.c.l.b16 %v1202
      %v1239 = vunpack.c.l.b16 %v1203
      %v1240 = vunpack.c.l.b16 %v1204
      %v1241 = vunpack.c.l.b16 %v1205
      %v1242 = vunpack.c.l.b16 %v1206
      %v1243 = vunpack.c.l.b16 %v1207
      %v1244 = vunpack.c.l.b16 %v1208
      %v1245 = vpack.c.b16 %v1230, %v1229
      %v1246 = vpack.c.b16 %v1232, %v1231
      %v1247 = vpack.c.b16 %v1234, %v1233
      %v1248 = vpack.c.b16 %v1236, %v1235
      %v1249 = vpack.c.b16 %v1238, %v1237
      %v1250 = vpack.c.b16 %v1240, %v1239
      %v1251 = vpack.c.b16 %v1242, %v1241
      %v1252 = vpack.c.b16 %v1244, %v1243
      %1261 = vmatpush.bf16.msra.mxu0 %v1252
      %1262 = vmatpush.bf16.msra.mxu0 %v1251
      %1263 = vmatpush.bf16.msra.mxu0 %v1250
      %1264 = vmatpush.bf16.msra.mxu0 %v1249
      %1265 = vmatpush.bf16.msra.mxu0 %v1248
      %1266 = vmatpush.bf16.msra.mxu0 %v1247
      %1267 = vmatpush.bf16.msra.mxu0 %v1246
      %1268 = vmatpush.bf16.msra.mxu0 %v1245
      %1269 = vmatmul.bf16.gmra.mxu0 %v1192
      %v1270 = vpop.f32.mrf.mxu0
      %v1271 = vadd.f32 %v1211, %v1270
      %v1272 = vpop.f32.mrf.mxu0
      %1273 = vdwg.mxu0
      %v1274 = vadd.f32 %v1113, %v1271
      %1275 = vst.msk [vmem:[%s734] sm:$0xff] %vm747, %v1274
      %p1276 = scmp.eq.s32.totalorder %s32, 1
      // Predicated region
      $region89: #{m3fm_forward.12} parent=83 // pred_check
        %p1277 = pneg %p1276
      $region90: #{m3fm_forward.12} parent=83 // pred_check_branch
        %1279 = sbr.rel (%p1277) target = $region92
      $region91: #{m3fm_forward.12} parent=83 // pred_region
        %v1280 = vld [vmem:[%s734] sm:$0xff]
        %v1281 = vld [vmem:[%s14] sm:$0x1]
        %v1282 = vld [vmem:[%s15] sm:$0x1]
        %v1283 = vsel %vm747, %v1280, 0.0
        %1284 = vadd.xlane.f32.xlu0 %v1283
        %v1285 = vpop.xlane.xlu0 %1284
        %v1286 = vmul.f32 %v1285, %v757
        %v1287 = vsub.f32 %v1280, %v1286
        %v1288 = vmul.f32 %v1287, %v1287
        %v1289 = vsel %vm747, %v1288, 0.0
        %1290 = vadd.xlane.f32.xlu0 %v1289
        %v1291 = vpop.xlane.xlu0 %1290
        %v1292 = vmul.f32 %v1291, %v757
        %v1293 = vadd.f32 %v1292, 1e-06
        %v1294 = vrsqrt.pop %v1293
        %v1295 = vmul.f32 %v1294, %v1293
        %v1296 = vmul.f32 %v1295, %v1294
        %v1297 = vmul.f32 0.5, %v1296
        %v1298 = vsub.f32 1.5, %v1297
        %v1299 = vmul.f32 %v1294, %v1298
        %vm1300 = vweird.f32 %v1293
        %vm1301 = vweird.f32 %v1294
        %vm1302 = vmor %vm1300, %vm1301
        %v1303 = vsel %vm1302, %v1294, %v1299
        %v1304 = vmul.f32 %v1287, %v1303
        %v1306 = vperm.slane %v1281, 0
        %v1308 = vmul.f32 %v1304, %v1306
        %v1310 = vperm.slane %v1282, 0
        %v1312 = vadd.f32 %v1308, %v1310
        %1313 = vst.msk [vmem:[%s734] sm:$0xff] %vm747, %v1312
      $region92: #{m3fm_forward.12} parent=83 // pred_fallthru
        _
      %p1314 = scmp.lt.s32.totalorder %s31, 1
      %s1315 = scalar_select %p1314, %s31, 1
      %s1316 = smul.addr %s1315, 8
      %s1317 = scalar_lea.vmem %s16, %s1316
      // Predicated region
      $region93: #{m3fm_forward.12} parent=83 // pred_check
        %p1318 = pneg %p463
      $region94: #{m3fm_forward.12} parent=83 // pred_check_branch
        %1320 = sbr.rel (%p1318) target = $region96
      $region95: #{m3fm_forward.12} parent=83 // pred_region
        _
      $region96: #{m3fm_forward.12} parent=83 // pred_fallthru
        _
    $region84: #{m3fm_forward.12} parent=5 // pred_fallthru
      _
    %p1321 = scmp.le.s32.totalorder 2, %s22
    // Predicated region
    $region97: #{m3fm_forward.12} parent=5 // pred_check
      %p1322 = pneg %p1321
    $region98: #{m3fm_forward.12} parent=5 // pred_check_branch
      %1324 = sbr.rel (%p1322) target = $region100
    $region99: #{m3fm_forward.12} parent=5 // pred_region
      %s1325 = ssub.s32 %s22, 2
      // Predicated region
      $region101: #{m3fm_forward.12} parent=99 // pred_check
        %p1326 = pneg %p469
      $region102: #{m3fm_forward.12} parent=99 // pred_check_branch
        %1328 = sbr.rel (%p1326) target = $region104
      $region103: #{m3fm_forward.12} parent=99 // pred_region
        %p1329 = scmp.lt.s32.totalorder %s33, 1
        %s1330 = scalar_select %p1329, %s33, 1
        %s1331 = smul.addr %s1330, 8
        %s1332 = scalar_lea.vmem %s16, %s1331
      $region104: #{m3fm_forward.12} parent=99 // pred_fallthru
        _
    $region100: #{m3fm_forward.12} parent=5 // pred_fallthru
      _
  $region6: #{m3fm_forward.12} parent=0 // loop_footer
    %s26 = sadd.s32 1, %s22
  $region7: #{m3fm_forward.12} parent=0 // loop_footer_branch
    %21 = sbr.rel target = $region3
  $region8: #{m3fm_forward.12} parent=0 // loop_exit
    _

// kernel: m3fm_forward.11
$region0: #{m3fm_forward.11}
  #allocation0 [shape = 'u32[]', space=smem, size = 0x4, offset = 0x4, fixed_abs, tag = 'smem constant byte address 0x4 - core index']
  #allocation1 [shape = 'u32[72,128]{1,0:T(1,128)}', space=vmem, size = 0x9000, scoped, tag = 'internal scratch']
  %s0 = inlined_call_operand.vmem [shape: f32[32,32], index: 0, kind: input, shape index: {}]
  %s1 = inlined_call_operand.vmem [shape: f32[32,32], index: 1, kind: input, shape index: {}]
  %s2 = inlined_call_operand.vmem [shape: f32[1,32], index: 2, kind: input, shape index: {}]
  %s3 = inlined_call_operand.vmem [shape: f32[32,32], index: 3, kind: output, shape index: {}]
  %s4 = sld [smem:[#allocation0]]
  $region22: #{m3fm_forward.11} parent=0
    _
  %s6 = ssub.s32 1, %s4
  %s7 = scalar_select 0, %s6, %s4
  // Predicated region
  $region2: #{m3fm_forward.11} parent=0 // pred_check
    _
  $region3: #{m3fm_forward.11} parent=0 // pred_check_branch
    %9 = sbr.rel (0) target = $region5
  $region4: #{m3fm_forward.11} parent=0 // pred_region
    _
  $region5: #{m3fm_forward.11} parent=0 // pred_fallthru
    _
  // Predicated region
  $region6: #{m3fm_forward.11} parent=0 // pred_check
    _
  $region7: #{m3fm_forward.11} parent=0 // pred_check_branch
    %11 = sbr.rel (0) target = $region9
  $region8: #{m3fm_forward.11} parent=0 // pred_region
    _
  $region9: #{m3fm_forward.11} parent=0 // pred_fallthru
    _
  // Predicated region
  $region10: #{m3fm_forward.11} parent=0 // pred_check
    _
  $region11: #{m3fm_forward.11} parent=0 // pred_check_branch
    %13 = sbr.rel (0) target = $region13
  $region12: #{m3fm_forward.11} parent=0 // pred_region
    _
  $region13: #{m3fm_forward.11} parent=0 // pred_fallthru
    _
  %v14 = vld [vmem:[%s0] sm:$0xff]
  %v15 = vld [vmem:[%s0 + $0x8] sm:$0xff]
  %v16 = vld [vmem:[%s0 + $0x10] sm:$0xff]
  %v17 = vld [vmem:[%s0 + $0x18] sm:$0xff]
  %v18 = vld [vmem:[%s1] sm:$0xff]
  %v19 = vld [vmem:[%s1 + $0x8] sm:$0xff]
  %v20 = vld [vmem:[%s1 + $0x10] sm:$0xff]
  %v21 = vld [vmem:[%s1 + $0x18] sm:$0xff]
  %v22 = vld [vmem:[%s2] sm:$0x1]
  %v24 = vperm.slane %v22, 0
  %vm26 = vcmask 261120
  %v28 = vsel %vm26, %v14, 0
  %v31 = vsel %vm26, %v15, 0
  %v34 = vsel %vm26, %v16, 0
  %v37 = vsel %vm26, %v17, 0
  %39 = vmatpush.msra.mxu0 0.0
  %40 = vmatpush.msra.mxu0 0.0
  %41 = vmatpush.msra.mxu0 0.0
  %42 = vmatpush.msra.mxu0 0.0
  %43 = vmatpush.msra.mxu0 0.0
  %44 = vmatpush.msra.mxu0 0.0
  %45 = vmatpush.msra.mxu0 0.0
  %46 = vmatpush.msra.mxu0 0.0
  %47 = vmatpush.msra.mxu0 0.0
  %48 = vmatpush.msra.mxu0 0.0
  %49 = vmatpush.msra.mxu0 0.0
  %50 = vmatpush.msra.mxu0 0.0
  %51 = vmatpush.msra.mxu0 %v21
  %52 = vmatpush.msra.mxu0 %v20
  %53 = vmatpush.msra.mxu0 %v19
  %54 = vmatpush.msra.mxu0 %v18
  %55 = vmatmul.f32.gmra.mxu0 %v28
  %v56 = vpop.f32.mrf.mxu0
  %v57 = vadd.f32 %v24, %v56
  %58 = vmatmul.f32.gmra.mxu0 %v31
  %v59 = vpop.f32.mrf.mxu0
  %v60 = vadd.f32 %v24, %v59
  %61 = vmatmul.f32.gmra.mxu0 %v34
  %v62 = vpop.f32.mrf.mxu0
  %v63 = vadd.f32 %v24, %v62
  %64 = vmatmul.f32.gmra.mxu0 %v37
  %v65 = vpop.f32.mrf.mxu0
  %v66 = vadd.f32 %v24, %v65
  %67 = vdwg.mxu0
  %68 = vst.msk [vmem:[%s3] sm:$0xff] %vm26, %v57
  %69 = vst.msk [vmem:[%s3 + $0x8] sm:$0xff] %vm26, %v60
  %70 = vst.msk [vmem:[%s3 + $0x10] sm:$0xff] %vm26, %v63
  %71 = vst.msk [vmem:[%s3 + $0x18] sm:$0xff] %vm26, %v66
  // Predicated region
  $region14: #{m3fm_forward.11} parent=0 // pred_check
    _
  $region15: #{m3fm_forward.11} parent=0 // pred_check_branch
    %73 = sbr.rel (0) target = $region17
  $region16: #{m3fm_forward.11} parent=0 // pred_region
    _
  $region17: #{m3fm_forward.11} parent=0 // pred_fallthru
    _
  // Predicated region
  $region18: #{m3fm_forward.11} parent=0 // pred_check
    _
  $region19: #{m3fm_forward.11} parent=0 // pred_check_branch
    %75 = sbr.rel (0) target = $region21
  $region20: #{m3fm_forward.11} parent=0 // pred_region
    _
  $region21: #{m3fm_forward.11} parent=0 // pred_fallthru
    _

// kernel: m3fm_forward.10
$region0: #{m3fm_forward.10}
  #allocation0 [shape = 'u32[]', space=smem, size = 0x4, offset = 0x4, fixed_abs, tag = 'smem constant byte address 0x4 - core index']
  #allocation1 [shape = 'u32[72,128]{1,0:T(1,128)}', space=vmem, size = 0x9000, scoped, tag = 'internal scratch']
  %s0 = inlined_call_operand.vmem [shape: f32[2,16,32], index: 0, kind: input, shape index: {}]
  %s1 = inlined_call_operand.vmem [shape: f32[2,1,16], index: 1, kind: input, shape index: {}]
  %s2 = inlined_call_operand.vmem [shape: f32[2,1,32], index: 2, kind: input, shape index: {}]
  %s3 = inlined_call_operand.vmem [shape: f32[2,1,32], index: 3, kind: input, shape index: {}]
  %s4 = inlined_call_operand.vmem [shape: bf16[2,32,96], index: 4, kind: input, shape index: {}]
  %s5 = inlined_call_operand.vmem [shape: f32[2,1,96], index: 5, kind: input, shape index: {}]
  %s6 = inlined_call_operand.vmem [shape: bf16[2,32,32], index: 6, kind: input, shape index: {}]
  %s7 = inlined_call_operand.vmem [shape: f32[2,1,32], index: 7, kind: input, shape index: {}]
  %s8 = inlined_call_operand.vmem [shape: f32[2,1,32], index: 8, kind: input, shape index: {}]
  %s9 = inlined_call_operand.vmem [shape: f32[2,1,32], index: 9, kind: input, shape index: {}]
  %s10 = inlined_call_operand.vmem [shape: bf16[2,32,128], index: 10, kind: input, shape index: {}]
  %s11 = inlined_call_operand.vmem [shape: f32[2,1,128], index: 11, kind: input, shape index: {}]
  %s12 = inlined_call_operand.vmem [shape: bf16[2,128,32], index: 12, kind: input, shape index: {}]
  %s13 = inlined_call_operand.vmem [shape: f32[2,1,32], index: 13, kind: input, shape index: {}]
  %s14 = inlined_call_operand.vmem [shape: f32[1,1,32], index: 14, kind: input, shape index: {}]
  %s15 = inlined_call_operand.vmem [shape: f32[1,1,32], index: 15, kind: input, shape index: {}]
  %s16 = inlined_call_operand.vmem [shape: f32[2,16,32], index: 16, kind: output, shape index: {}]
  %s17 = sld [smem:[#allocation0]]
  $region105: #{m3fm_forward.10} parent=0
    _
  %s19 = ssub.s32 1, %s17
  %s20 = scalar_select 0, %s19, %s17
  loop: start=0, step=1, limit=6
  $region2: #{m3fm_forward.10} parent=0 // loop_pre_header
    _
  $region3: #{m3fm_forward.10} parent=0 // loop_header
    %s22 = sphi 0, %s26
    %p23 = scmp.ge.s32.totalorder %s22, 6
    %s29 = sphi 0, %s41
    %s30 = sphi 0, %s37
    %s31 = sphi 0, %s29
    %s32 = sphi 0, %s30
    %s33 = sphi 0, %s31
    %s34 = sphi 0, %s32
    %s44 = sphi 0, %s46
    %s47 = sphi 0, %s44
    %s48 = sphi 0, %s47
    %s64 = sphi 0, %s48
    %s70 = sphi 0, %s72
    %s73 = sphi 0, %s70
    %s74 = sphi 0, %s73
    %s90 = sphi 0, %s74
    %s96 = sphi 0, %s98
    %s99 = sphi 0, %s96
    %s100 = sphi 0, %s99
    %s116 = sphi 0, %s100
    %s122 = sphi 0, %s124
    %s125 = sphi 0, %s122
    %s126 = sphi 0, %s125
    %s142 = sphi 0, %s126
    %s148 = sphi 0, %s150
    %s151 = sphi 0, %s148
    %s152 = sphi 0, %s151
    %s168 = sphi 0, %s152
    %s174 = sphi 0, %s176
    %s177 = sphi 0, %s174
    %s178 = sphi 0, %s177
    %s194 = sphi 0, %s178
    %s200 = sphi 0, %s202
    %s203 = sphi 0, %s200
    %s204 = sphi 0, %s203
    %s220 = sphi 0, %s204
    %s226 = sphi 0, %s228
    %s229 = sphi 0, %s226
    %s230 = sphi 0, %s229
    %s246 = sphi 0, %s230
    %s252 = sphi 0, %s254
    %s255 = sphi 0, %s252
    %s256 = sphi 0, %s255
    %s272 = sphi 0, %s256
    %s278 = sphi 0, %s280
    %s281 = sphi 0, %s278
    %s282 = sphi 0, %s281
    %s298 = sphi 0, %s282
    %s304 = sphi 0, %s306
    %s307 = sphi 0, %s304
    %s308 = sphi 0, %s307
    %s324 = sphi 0, %s308
    %s330 = sphi 0, %s332
    %s333 = sphi 0, %s330
    %s334 = sphi 0, %s333
    %s350 = sphi 0, %s334
    %s356 = sphi 0, %s358
    %s359 = sphi 0, %s356
    %s360 = sphi 0, %s359
    %s376 = sphi 0, %s360
    %s382 = sphi 0, %s384
    %s385 = sphi 0, %s382
    %s386 = sphi 0, %s385
    %s402 = sphi 0, %s386
    %s406 = sphi 0, %s406
    %s408 = sphi 0, %s406
    %s409 = sphi 0, %s408
    %s423 = sphi 0, %s409
    %s427 = sphi 0, %s427
    %s429 = sphi 0, %s427
    %s430 = sphi 0, %s429
    %s444 = sphi 0, %s430
    %s450 = sphi 0, %s452
    %s453 = sphi 0, %s450
    %s454 = sphi 0, %s453
    %s470 = sphi 0, %s454
  $region4: #{m3fm_forward.10} parent=0 // loop_header_branch
    %25 = sbr.rel (%p23) target = $region8
  $region5: #{m3fm_forward.10} parent=0 // loop_body
    %s27 = ssub.s32 %s22, 1
    %s28 = ssub.s32 %s22, 2
    %s35 = sadd.s32 1, %s30
    %p36 = scmp.ge.s32.totalorder %s35, 2
    %s37 = scalar_select %p36, 0, %s35
    %s38 = sadd.s32 1, %s29
    %s39 = scalar_select %p36, %s38, %s29
    %p40 = scmp.ge.s32.totalorder %s39, 2
    %s41 = scalar_select %p40, 0, %s39
    %s42 = ssub.s32 %s29, %s41
    %p43 = scmp.eq.s32.totalorder %s42, 0
    %s45 = sadd.s32 %s44, 1
    %s46 = scalar_select %p43, %s44, %s45
    %p49 = pneg %p43
    %p50 = scmp.eq.s32.totalorder %s22, 3
    %p51 = por %p49, %p50
    %p52 = scmp.ne.s32.totalorder %s44, %s47
    %p53 = scmp.eq.s32.totalorder %s22, 0
    %p54 = por %p52, %p53
    %p55 = scmp.ne.s32.totalorder %s44, %s47
    %p56 = scmp.eq.s32.totalorder %s27, 3
    %p57 = por %p55, %p56
    %p58 = scmp.ne.s32.totalorder %s47, %s48
    %p59 = scmp.eq.s32.totalorder %s27, 0
    %p60 = por %p58, %p59
    %p61 = scmp.ne.s32.totalorder %s47, %s48
    %p62 = scmp.eq.s32.totalorder %s28, 3
    %p63 = por %p61, %p62
    %p65 = scmp.ne.s32.totalorder %s48, %s64
    %p66 = scmp.eq.s32.totalorder %s28, 0
    %p67 = por %p65, %p66
    %s68 = ssub.s32 %s29, %s41
    %p69 = scmp.eq.s32.totalorder %s68, 0
    %s71 = sadd.s32 %s70, 1
    %s72 = scalar_select %p69, %s70, %s71
    %p75 = pneg %p69
    %p76 = scmp.eq.s32.totalorder %s22, 3
    %p77 = por %p75, %p76
    %p78 = scmp.ne.s32.totalorder %s70, %s73
    %p79 = scmp.eq.s32.totalorder %s22, 0
    %p80 = por %p78, %p79
    %p81 = scmp.ne.s32.totalorder %s70, %s73
    %p82 = scmp.eq.s32.totalorder %s27, 3
    %p83 = por %p81, %p82
    %p84 = scmp.ne.s32.totalorder %s73, %s74
    %p85 = scmp.eq.s32.totalorder %s27, 0
    %p86 = por %p84, %p85
    %p87 = scmp.ne.s32.totalorder %s73, %s74
    %p88 = scmp.eq.s32.totalorder %s28, 3
    %p89 = por %p87, %p88
    %p91 = scmp.ne.s32.totalorder %s74, %s90
    %p92 = scmp.eq.s32.totalorder %s28, 0
    %p93 = por %p91, %p92
    %s94 = ssub.s32 %s30, %s37
    %p95 = scmp.eq.s32.totalorder %s94, 0
    %s97 = sadd.s32 %s96, 1
    %s98 = scalar_select %p95, %s96, %s97
    %p101 = pneg %p95
    %p102 = scmp.eq.s32.totalorder %s22, 3
    %p103 = por %p101, %p102
    %p104 = scmp.ne.s32.totalorder %s96, %s99
    %p105 = scmp.eq.s32.totalorder %s22, 0
    %p106 = por %p104, %p105
    %p107 = scmp.ne.s32.totalorder %s96, %s99
    %p108 = scmp.eq.s32.totalorder %s27, 3
    %p109 = por %p107, %p108
    %p110 = scmp.ne.s32.totalorder %s99, %s100
    %p111 = scmp.eq.s32.totalorder %s27, 0
    %p112 = por %p110, %p111
    %p113 = scmp.ne.s32.totalorder %s99, %s100
    %p114 = scmp.eq.s32.totalorder %s28, 3
    %p115 = por %p113, %p114
    %p117 = scmp.ne.s32.totalorder %s100, %s116
    %p118 = scmp.eq.s32.totalorder %s28, 0
    %p119 = por %p117, %p118
    %s120 = ssub.s32 %s30, %s37
    %p121 = scmp.eq.s32.totalorder %s120, 0
    %s123 = sadd.s32 %s122, 1
    %s124 = scalar_select %p121, %s122, %s123
    %p127 = pneg %p121
    %p128 = scmp.eq.s32.totalorder %s22, 3
    %p129 = por %p127, %p128
    %p130 = scmp.ne.s32.totalorder %s122, %s125
    %p131 = scmp.eq.s32.totalorder %s22, 0
    %p132 = por %p130, %p131
    %p133 = scmp.ne.s32.totalorder %s122, %s125
    %p134 = scmp.eq.s32.totalorder %s27, 3
    %p135 = por %p133, %p134
    %p136 = scmp.ne.s32.totalorder %s125, %s126
    %p137 = scmp.eq.s32.totalorder %s27, 0
    %p138 = por %p136, %p137
    %p139 = scmp.ne.s32.totalorder %s125, %s126
    %p140 = scmp.eq.s32.totalorder %s28, 3
    %p141 = por %p139, %p140
    %p143 = scmp.ne.s32.totalorder %s126, %s142
    %p144 = scmp.eq.s32.totalorder %s28, 0
    %p145 = por %p143, %p144
    %s146 = ssub.s32 %s30, %s37
    %p147 = scmp.eq.s32.totalorder %s146, 0
    %s149 = sadd.s32 %s148, 1
    %s150 = scalar_select %p147, %s148, %s149
    %p153 = pneg %p147
    %p154 = scmp.eq.s32.totalorder %s22, 3
    %p155 = por %p153, %p154
    %p156 = scmp.ne.s32.totalorder %s148, %s151
    %p157 = scmp.eq.s32.totalorder %s22, 0
    %p158 = por %p156, %p157
    %p159 = scmp.ne.s32.totalorder %s148, %s151
    %p160 = scmp.eq.s32.totalorder %s27, 3
    %p161 = por %p159, %p160
    %p162 = scmp.ne.s32.totalorder %s151, %s152
    %p163 = scmp.eq.s32.totalorder %s27, 0
    %p164 = por %p162, %p163
    %p165 = scmp.ne.s32.totalorder %s151, %s152
    %p166 = scmp.eq.s32.totalorder %s28, 3
    %p167 = por %p165, %p166
    %p169 = scmp.ne.s32.totalorder %s152, %s168
    %p170 = scmp.eq.s32.totalorder %s28, 0
    %p171 = por %p169, %p170
    %s172 = ssub.s32 %s30, %s37
    %p173 = scmp.eq.s32.totalorder %s172, 0
    %s175 = sadd.s32 %s174, 1
    %s176 = scalar_select %p173, %s174, %s175
    %p179 = pneg %p173
    %p180 = scmp.eq.s32.totalorder %s22, 3
    %p181 = por %p179, %p180
    %p182 = scmp.ne.s32.totalorder %s174, %s177
    %p183 = scmp.eq.s32.totalorder %s22, 0
    %p184 = por %p182, %p183
    %p185 = scmp.ne.s32.totalorder %s174, %s177
    %p186 = scmp.eq.s32.totalorder %s27, 3
    %p187 = por %p185, %p186
    %p188 = scmp.ne.s32.totalorder %s177, %s178
    %p189 = scmp.eq.s32.totalorder %s27, 0
    %p190 = por %p188, %p189
    %p191 = scmp.ne.s32.totalorder %s177, %s178
    %p192 = scmp.eq.s32.totalorder %s28, 3
    %p193 = por %p191, %p192
    %p195 = scmp.ne.s32.totalorder %s178, %s194
    %p196 = scmp.eq.s32.totalorder %s28, 0
    %p197 = por %p195, %p196
    %s198 = ssub.s32 %s30, %s37
    %p199 = scmp.eq.s32.totalorder %s198, 0
    %s201 = sadd.s32 %s200, 1
    %s202 = scalar_select %p199, %s200, %s201
    %p205 = pneg %p199
    %p206 = scmp.eq.s32.totalorder %s22, 3
    %p207 = por %p205, %p206
    %p208 = scmp.ne.s32.totalorder %s200, %s203
    %p209 = scmp.eq.s32.totalorder %s22, 0
    %p210 = por %p208, %p209
    %p211 = scmp.ne.s32.totalorder %s200, %s203
    %p212 = scmp.eq.s32.totalorder %s27, 3
    %p213 = por %p211, %p212
    %p214 = scmp.ne.s32.totalorder %s203, %s204
    %p215 = scmp.eq.s32.totalorder %s27, 0
    %p216 = por %p214, %p215
    %p217 = scmp.ne.s32.totalorder %s203, %s204
    %p218 = scmp.eq.s32.totalorder %s28, 3
    %p219 = por %p217, %p218
    %p221 = scmp.ne.s32.totalorder %s204, %s220
    %p222 = scmp.eq.s32.totalorder %s28, 0
    %p223 = por %p221, %p222
    %s224 = ssub.s32 %s30, %s37
    %p225 = scmp.eq.s32.totalorder %s224, 0
    %s227 = sadd.s32 %s226, 1
    %s228 = scalar_select %p225, %s226, %s227
    %p231 = pneg %p225
    %p232 = scmp.eq.s32.totalorder %s22, 3
    %p233 = por %p231, %p232
    %p234 = scmp.ne.s32.totalorder %s226, %s229
    %p235 = scmp.eq.s32.totalorder %s22, 0
    %p236 = por %p234, %p235
    %p237 = scmp.ne.s32.totalorder %s226, %s229
    %p238 = scmp.eq.s32.totalorder %s27, 3
    %p239 = por %p237, %p238
    %p240 = scmp.ne.s32.totalorder %s229, %s230
    %p241 = scmp.eq.s32.totalorder %s27, 0
    %p242 = por %p240, %p241
    %p243 = scmp.ne.s32.totalorder %s229, %s230
    %p244 = scmp.eq.s32.totalorder %s28, 3
    %p245 = por %p243, %p244
    %p247 = scmp.ne.s32.totalorder %s230, %s246
    %p248 = scmp.eq.s32.totalorder %s28, 0
    %p249 = por %p247, %p248
    %s250 = ssub.s32 %s30, %s37
    %p251 = scmp.eq.s32.totalorder %s250, 0
    %s253 = sadd.s32 %s252, 1
    %s254 = scalar_select %p251, %s252, %s253
    %p257 = pneg %p251
    %p258 = scmp.eq.s32.totalorder %s22, 3
    %p259 = por %p257, %p258
    %p260 = scmp.ne.s32.totalorder %s252, %s255
    %p261 = scmp.eq.s32.totalorder %s22, 0
    %p262 = por %p260, %p261
    %p263 = scmp.ne.s32.totalorder %s252, %s255
    %p264 = scmp.eq.s32.totalorder %s27, 3
    %p265 = por %p263, %p264
    %p266 = scmp.ne.s32.totalorder %s255, %s256
    %p267 = scmp.eq.s32.totalorder %s27, 0
    %p268 = por %p266, %p267
    %p269 = scmp.ne.s32.totalorder %s255, %s256
    %p270 = scmp.eq.s32.totalorder %s28, 3
    %p271 = por %p269, %p270
    %p273 = scmp.ne.s32.totalorder %s256, %s272
    %p274 = scmp.eq.s32.totalorder %s28, 0
    %p275 = por %p273, %p274
    %s276 = ssub.s32 %s30, %s37
    %p277 = scmp.eq.s32.totalorder %s276, 0
    %s279 = sadd.s32 %s278, 1
    %s280 = scalar_select %p277, %s278, %s279
    %p283 = pneg %p277
    %p284 = scmp.eq.s32.totalorder %s22, 3
    %p285 = por %p283, %p284
    %p286 = scmp.ne.s32.totalorder %s278, %s281
    %p287 = scmp.eq.s32.totalorder %s22, 0
    %p288 = por %p286, %p287
    %p289 = scmp.ne.s32.totalorder %s278, %s281
    %p290 = scmp.eq.s32.totalorder %s27, 3
    %p291 = por %p289, %p290
    %p292 = scmp.ne.s32.totalorder %s281, %s282
    %p293 = scmp.eq.s32.totalorder %s27, 0
    %p294 = por %p292, %p293
    %p295 = scmp.ne.s32.totalorder %s281, %s282
    %p296 = scmp.eq.s32.totalorder %s28, 3
    %p297 = por %p295, %p296
    %p299 = scmp.ne.s32.totalorder %s282, %s298
    %p300 = scmp.eq.s32.totalorder %s28, 0
    %p301 = por %p299, %p300
    %s302 = ssub.s32 %s30, %s37
    %p303 = scmp.eq.s32.totalorder %s302, 0
    %s305 = sadd.s32 %s304, 1
    %s306 = scalar_select %p303, %s304, %s305
    %p309 = pneg %p303
    %p310 = scmp.eq.s32.totalorder %s22, 3
    %p311 = por %p309, %p310
    %p312 = scmp.ne.s32.totalorder %s304, %s307
    %p313 = scmp.eq.s32.totalorder %s22, 0
    %p314 = por %p312, %p313
    %p315 = scmp.ne.s32.totalorder %s304, %s307
    %p316 = scmp.eq.s32.totalorder %s27, 3
    %p317 = por %p315, %p316
    %p318 = scmp.ne.s32.totalorder %s307, %s308
    %p319 = scmp.eq.s32.totalorder %s27, 0
    %p320 = por %p318, %p319
    %p321 = scmp.ne.s32.totalorder %s307, %s308
    %p322 = scmp.eq.s32.totalorder %s28, 3
    %p323 = por %p321, %p322
    %p325 = scmp.ne.s32.totalorder %s308, %s324
    %p326 = scmp.eq.s32.totalorder %s28, 0
    %p327 = por %p325, %p326
    %s328 = ssub.s32 %s30, %s37
    %p329 = scmp.eq.s32.totalorder %s328, 0
    %s331 = sadd.s32 %s330, 1
    %s332 = scalar_select %p329, %s330, %s331
    %p335 = pneg %p329
    %p336 = scmp.eq.s32.totalorder %s22, 3
    %p337 = por %p335, %p336
    %p338 = scmp.ne.s32.totalorder %s330, %s333
    %p339 = scmp.eq.s32.totalorder %s22, 0
    %p340 = por %p338, %p339
    %p341 = scmp.ne.s32.totalorder %s330, %s333
    %p342 = scmp.eq.s32.totalorder %s27, 3
    %p343 = por %p341, %p342
    %p344 = scmp.ne.s32.totalorder %s333, %s334
    %p345 = scmp.eq.s32.totalorder %s27, 0
    %p346 = por %p344, %p345
    %p347 = scmp.ne.s32.totalorder %s333, %s334
    %p348 = scmp.eq.s32.totalorder %s28, 3
    %p349 = por %p347, %p348
    %p351 = scmp.ne.s32.totalorder %s334, %s350
    %p352 = scmp.eq.s32.totalorder %s28, 0
    %p353 = por %p351, %p352
    %s354 = ssub.s32 %s30, %s37
    %p355 = scmp.eq.s32.totalorder %s354, 0
    %s357 = sadd.s32 %s356, 1
    %s358 = scalar_select %p355, %s356, %s357
    %p361 = pneg %p355
    %p362 = scmp.eq.s32.totalorder %s22, 3
    %p363 = por %p361, %p362
    %p364 = scmp.ne.s32.totalorder %s356, %s359
    %p365 = scmp.eq.s32.totalorder %s22, 0
    %p366 = por %p364, %p365
    %p367 = scmp.ne.s32.totalorder %s356, %s359
    %p368 = scmp.eq.s32.totalorder %s27, 3
    %p369 = por %p367, %p368
    %p370 = scmp.ne.s32.totalorder %s359, %s360
    %p371 = scmp.eq.s32.totalorder %s27, 0
    %p372 = por %p370, %p371
    %p373 = scmp.ne.s32.totalorder %s359, %s360
    %p374 = scmp.eq.s32.totalorder %s28, 3
    %p375 = por %p373, %p374
    %p377 = scmp.ne.s32.totalorder %s360, %s376
    %p378 = scmp.eq.s32.totalorder %s28, 0
    %p379 = por %p377, %p378
    %s380 = ssub.s32 %s30, %s37
    %p381 = scmp.eq.s32.totalorder %s380, 0
    %s383 = sadd.s32 %s382, 1
    %s384 = scalar_select %p381, %s382, %s383
    %p387 = pneg %p381
    %p388 = scmp.eq.s32.totalorder %s22, 3
    %p389 = por %p387, %p388
    %p390 = scmp.ne.s32.totalorder %s382, %s385
    %p391 = scmp.eq.s32.totalorder %s22, 0
    %p392 = por %p390, %p391
    %p393 = scmp.ne.s32.totalorder %s382, %s385
    %p394 = scmp.eq.s32.totalorder %s27, 3
    %p395 = por %p393, %p394
    %p396 = scmp.ne.s32.totalorder %s385, %s386
    %p397 = scmp.eq.s32.totalorder %s27, 0
    %p398 = por %p396, %p397
    %p399 = scmp.ne.s32.totalorder %s385, %s386
    %p400 = scmp.eq.s32.totalorder %s28, 3
    %p401 = por %p399, %p400
    %p403 = scmp.ne.s32.totalorder %s386, %s402
    %p404 = scmp.eq.s32.totalorder %s28, 0
    %p405 = por %p403, %p404
    %s407 = sadd.s32 %s406, 1
    %p410 = scmp.eq.s32.totalorder %s22, 3
    %p411 = scmp.ne.s32.totalorder %s406, %s408
    %p412 = scmp.eq.s32.totalorder %s22, 0
    %p413 = por %p411, %p412
    %p414 = scmp.ne.s32.totalorder %s406, %s408
    %p415 = scmp.eq.s32.totalorder %s27, 3
    %p416 = por %p414, %p415
    %p417 = scmp.ne.s32.totalorder %s408, %s409
    %p418 = scmp.eq.s32.totalorder %s27, 0
    %p419 = por %p417, %p418
    %p420 = scmp.ne.s32.totalorder %s408, %s409
    %p421 = scmp.eq.s32.totalorder %s28, 3
    %p422 = por %p420, %p421
    %p424 = scmp.ne.s32.totalorder %s409, %s423
    %p425 = scmp.eq.s32.totalorder %s28, 0
    %p426 = por %p424, %p425
    %s428 = sadd.s32 %s427, 1
    %p431 = scmp.eq.s32.totalorder %s22, 3
    %p432 = scmp.ne.s32.totalorder %s427, %s429
    %p433 = scmp.eq.s32.totalorder %s22, 0
    %p434 = por %p432, %p433
    %p435 = scmp.ne.s32.totalorder %s427, %s429
    %p436 = scmp.eq.s32.totalorder %s27, 3
    %p437 = por %p435, %p436
    %p438 = scmp.ne.s32.totalorder %s429, %s430
    %p439 = scmp.eq.s32.totalorder %s27, 0
    %p440 = por %p438, %p439
    %p441 = scmp.ne.s32.totalorder %s429, %s430
    %p442 = scmp.eq.s32.totalorder %s28, 3
    %p443 = por %p441, %p442
    %p445 = scmp.ne.s32.totalorder %s430, %s444
    %p446 = scmp.eq.s32.totalorder %s28, 0
    %p447 = por %p445, %p446
    %s448 = ssub.s32 %s29, %s41
    %p449 = scmp.eq.s32.totalorder %s448, 0
    %s451 = sadd.s32 %s450, 1
    %s452 = scalar_select %p449, %s450, %s451
    %p455 = pneg %p449
    %p456 = scmp.eq.s32.totalorder %s22, 3
    %p457 = por %p455, %p456
    %p458 = scmp.ne.s32.totalorder %s450, %s453
    %p459 = scmp.eq.s32.totalorder %s22, 0
    %p460 = por %p458, %p459
    %p461 = scmp.ne.s32.totalorder %s450, %s453
    %p462 = scmp.eq.s32.totalorder %s27, 3
    %p463 = por %p461, %p462
    %p464 = scmp.ne.s32.totalorder %s453, %s454
    %p465 = scmp.eq.s32.totalorder %s27, 0
    %p466 = por %p464, %p465
    %p467 = scmp.ne.s32.totalorder %s453, %s454
    %p468 = scmp.eq.s32.totalorder %s28, 3
    %p469 = por %p467, %p468
    %p471 = scmp.ne.s32.totalorder %s454, %s470
    %p472 = scmp.eq.s32.totalorder %s28, 0
    %p473 = por %p471, %p472
    %p474 = scmp.le.s32.totalorder 1, %s22
    %p475 = scmp.lt.s32.totalorder %s22, 5
    %p476 = pnand %p474, %p475
    %p477 = pneg %p476
    // Predicated region
    $region9: #{m3fm_forward.10} parent=5 // pred_check
      _
    $region10: #{m3fm_forward.10} parent=5 // pred_check_branch
      %479 = sbr.rel (%p476) target = $region12
    $region11: #{m3fm_forward.10} parent=5 // pred_region
      %s480 = ssub.s32 %s22, 1
      // Predicated region
      $region13: #{m3fm_forward.10} parent=11 // pred_check
        %p481 = pneg %p419
      $region14: #{m3fm_forward.10} parent=11 // pred_check_branch
        %483 = sbr.rel (%p481) target = $region16
      $region15: #{m3fm_forward.10} parent=11 // pred_region
        _
      $region16: #{m3fm_forward.10} parent=11 // pred_fallthru
        _
      // Predicated region
      $region17: #{m3fm_forward.10} parent=11 // pred_check
        %p484 = pneg %p440
      $region18: #{m3fm_forward.10} parent=11 // pred_check_branch
        %486 = sbr.rel (%p484) target = $region20
      $region19: #{m3fm_forward.10} parent=11 // pred_region
        _
      $region20: #{m3fm_forward.10} parent=11 // pred_fallthru
        _
    $region12: #{m3fm_forward.10} parent=5 // pred_fallthru
      _
    %p487 = scmp.lt.s32.totalorder %s22, 4
    // Predicated region
    $region21: #{m3fm_forward.10} parent=5 // pred_check
      %p488 = pneg %p487
    $region22: #{m3fm_forward.10} parent=5 // pred_check_branch
      %490 = sbr.rel (%p488) target = $region24
    $region23: #{m3fm_forward.10} parent=5 // pred_region
      // Predicated region
      $region25: #{m3fm_forward.10} parent=23 // pred_check
        %p491 = pneg %p54
      $region26: #{m3fm_forward.10} parent=23 // pred_check_branch
        %493 = sbr.rel (%p491) target = $region28
      $region27: #{m3fm_forward.10} parent=23 // pred_region
        %p494 = scmp.lt.s32.totalorder %s29, 1
        %s495 = scalar_select %p494, %s29, 1
        %s496 = smul.addr %s495, 2
        %s497 = smul.addr %s496, 8
        %s498 = scalar_lea.vmem %s0, %s497
      $region28: #{m3fm_forward.10} parent=23 // pred_fallthru
        _
      // Predicated region
      $region29: #{m3fm_forward.10} parent=23 // pred_check
        %p499 = pneg %p80
      $region30: #{m3fm_forward.10} parent=23 // pred_check_branch
        %501 = sbr.rel (%p499) target = $region32
      $region31: #{m3fm_forward.10} parent=23 // pred_region
        %p502 = scmp.lt.s32.totalorder %s29, 1
        %s503 = scalar_select %p502, %s29, 1
        %s504 = scalar_lea.vmem %s1, %s503
      $region32: #{m3fm_forward.10} parent=23 // pred_fallthru
        _
      // Predicated region
      $region33: #{m3fm_forward.10} parent=23 // pred_check
        %p505 = pneg %p106
      $region34: #{m3fm_forward.10} parent=23 // pred_check_branch
        %507 = sbr.rel (%p505) target = $region36
      $region35: #{m3fm_forward.10} parent=23 // pred_region
        %p508 = scmp.lt.s32.totalorder %s30, 1
        %s509 = scalar_select %p508, %s30, 1
        %s510 = scalar_lea.vmem %s2, %s509
      $region36: #{m3fm_forward.10} parent=23 // pred_fallthru
        _
      // Predicated region
      $region37: #{m3fm_forward.10} parent=23 // pred_check
        %p511 = pneg %p132
      $region38: #{m3fm_forward.10} parent=23 // pred_check_branch
        %513 = sbr.rel (%p511) target = $region40
      $region39: #{m3fm_forward.10} parent=23 // pred_region
        %p514 = scmp.lt.s32.totalorder %s30, 1
        %s515 = scalar_select %p514, %s30, 1
        %s516 = scalar_lea.vmem %s3, %s515
      $region40: #{m3fm_forward.10} parent=23 // pred_fallthru
        _
      // Predicated region
      $region41: #{m3fm_forward.10} parent=23 // pred_check
        %p517 = pneg %p158
      $region42: #{m3fm_forward.10} parent=23 // pred_check_branch
        %519 = sbr.rel (%p517) target = $region44
      $region43: #{m3fm_forward.10} parent=23 // pred_region
        %p520 = scmp.lt.s32.totalorder %s30, 1
        %s521 = scalar_select %p520, %s30, 1
        %s522 = smul.addr %s521, 4
        %s523 = smul.addr %s522, 4
        %s524 = scalar_lea.vmem %s4, %s523
      $region44: #{m3fm_forward.10} parent=23 // pred_fallthru
        _
      // Predicated region
      $region45: #{m3fm_forward.10} parent=23 // pred_check
        %p525 = pneg %p184
      $region46: #{m3fm_forward.10} parent=23 // pred_check_branch
        %527 = sbr.rel (%p525) target = $region48
      $region47: #{m3fm_forward.10} parent=23 // pred_region
        %p528 = scmp.lt.s32.totalorder %s30, 1
        %s529 = scalar_select %p528, %s30, 1
        %s530 = scalar_lea.vmem %s5, %s529
      $region48: #{m3fm_forward.10} parent=23 // pred_fallthru
        _
      // Predicated region
      $region49: #{m3fm_forward.10} parent=23 // pred_check
        %p531 = pneg %p210
      $region50: #{m3fm_forward.10} parent=23 // pred_check_branch
        %533 = sbr.rel (%p531) target = $region52
      $region51: #{m3fm_forward.10} parent=23 // pred_region
        %p534 = scmp.lt.s32.totalorder %s30, 1
        %s535 = scalar_select %p534, %s30, 1
        %s536 = smul.addr %s535, 4
        %s537 = smul.addr %s536, 4
        %s538 = scalar_lea.vmem %s6, %s537
      $region52: #{m3fm_forward.10} parent=23 // pred_fallthru
        _
      // Predicated region
      $region53: #{m3fm_forward.10} parent=23 // pred_check
        %p539 = pneg %p236
      $region54: #{m3fm_forward.10} parent=23 // pred_check_branch
        %541 = sbr.rel (%p539) target = $region56
      $region55: #{m3fm_forward.10} parent=23 // pred_region
        %p542 = scmp.lt.s32.totalorder %s30, 1
        %s543 = scalar_select %p542, %s30, 1
        %s544 = scalar_lea.vmem %s7, %s543
      $region56: #{m3fm_forward.10} parent=23 // pred_fallthru
        _
      // Predicated region
      $region57: #{m3fm_forward.10} parent=23 // pred_check
        %p545 = pneg %p262
      $region58: #{m3fm_forward.10} parent=23 // pred_check_branch
        %547 = sbr.rel (%p545) target = $region60
      $region59: #{m3fm_forward.10} parent=23 // pred_region
        %p548 = scmp.lt.s32.totalorder %s30, 1
        %s549 = scalar_select %p548, %s30, 1
        %s550 = scalar_lea.vmem %s8, %s549
      $region60: #{m3fm_forward.10} parent=23 // pred_fallthru
        _
      // Predicated region
      $region61: #{m3fm_forward.10} parent=23 // pred_check
        %p551 = pneg %p288
      $region62: #{m3fm_forward.10} parent=23 // pred_check_branch
        %553 = sbr.rel (%p551) target = $region64
      $region63: #{m3fm_forward.10} parent=23 // pred_region
        %p554 = scmp.lt.s32.totalorder %s30, 1
        %s555 = scalar_select %p554, %s30, 1
        %s556 = scalar_lea.vmem %s9, %s555
      $region64: #{m3fm_forward.10} parent=23 // pred_fallthru
        _
      // Predicated region
      $region65: #{m3fm_forward.10} parent=23 // pred_check
        %p557 = pneg %p314
      $region66: #{m3fm_forward.10} parent=23 // pred_check_branch
        %559 = sbr.rel (%p557) target = $region68
      $region67: #{m3fm_forward.10} parent=23 // pred_region
        %p560 = scmp.lt.s32.totalorder %s30, 1
        %s561 = scalar_select %p560, %s30, 1
        %s562 = smul.addr %s561, 4
        %s563 = smul.addr %s562, 4
        %s564 = scalar_lea.vmem %s10, %s563
      $region68: #{m3fm_forward.10} parent=23 // pred_fallthru
        _
      // Predicated region
      $region69: #{m3fm_forward.10} parent=23 // pred_check
        %p565 = pneg %p340
      $region70: #{m3fm_forward.10} parent=23 // pred_check_branch
        %567 = sbr.rel (%p565) target = $region72
      $region71: #{m3fm_forward.10} parent=23 // pred_region
        %p568 = scmp.lt.s32.totalorder %s30, 1
        %s569 = scalar_select %p568, %s30, 1
        %s570 = scalar_lea.vmem %s11, %s569
      $region72: #{m3fm_forward.10} parent=23 // pred_fallthru
        _
      // Predicated region
      $region73: #{m3fm_forward.10} parent=23 // pred_check
        %p571 = pneg %p366
      $region74: #{m3fm_forward.10} parent=23 // pred_check_branch
        %573 = sbr.rel (%p571) target = $region76
      $region75: #{m3fm_forward.10} parent=23 // pred_region
        %p574 = scmp.lt.s32.totalorder %s30, 1
        %s575 = scalar_select %p574, %s30, 1
        %s576 = smul.addr %s575, 16
        %s577 = smul.addr %s576, 4
        %s578 = scalar_lea.vmem %s12, %s577
      $region76: #{m3fm_forward.10} parent=23 // pred_fallthru
        _
      // Predicated region
      $region77: #{m3fm_forward.10} parent=23 // pred_check
        %p579 = pneg %p392
      $region78: #{m3fm_forward.10} parent=23 // pred_check_branch
        %581 = sbr.rel (%p579) target = $region80
      $region79: #{m3fm_forward.10} parent=23 // pred_region
        %p582 = scmp.lt.s32.totalorder %s30, 1
        %s583 = scalar_select %p582, %s30, 1
        %s584 = scalar_lea.vmem %s13, %s583
      $region80: #{m3fm_forward.10} parent=23 // pred_fallthru
        _
    $region24: #{m3fm_forward.10} parent=5 // pred_fallthru
      _
    %p585 = scmp.le.s32.totalorder 1, %s22
    %p586 = scmp.lt.s32.totalorder %s22, 5
    %p587 = pnand %p585, %p586
    %p588 = pneg %p587
    // Predicated region
    $region81: #{m3fm_forward.10} parent=5 // pred_check
      _
    $region82: #{m3fm_forward.10} parent=5 // pred_check_branch
      %590 = sbr.rel (%p587) target = $region84
    $region83: #{m3fm_forward.10} parent=5 // pred_region
      %s591 = ssub.s32 %s22, 1
      %p592 = scmp.lt.s32.totalorder %s31, 1
      %s593 = scalar_select %p592, %s31, 1
      %s594 = smul.addr %s593, 2
      %s595 = smul.addr %s594, 8
      %s596 = scalar_lea.vmem %s0, %s595
      %p597 = pneg %p60
      %p598 = pneg %p57
      %p599 = scmp.lt.s32.totalorder %s31, 1
      %s600 = scalar_select %p599, %s31, 1
      %s601 = scalar_lea.vmem %s1, %s600
      %p602 = pneg %p86
      %p603 = pneg %p83
      %p604 = scmp.lt.s32.totalorder %s32, 1
      %s605 = scalar_select %p604, %s32, 1
      %s606 = scalar_lea.vmem %s2, %s605
      %p607 = pneg %p112
      %p608 = pneg %p109
      %p609 = scmp.lt.s32.totalorder %s32, 1
      %s610 = scalar_select %p609, %s32, 1
      %s611 = scalar_lea.vmem %s3, %s610
      %p612 = pneg %p138
      %p613 = pneg %p135
      %p614 = scmp.lt.s32.totalorder %s32, 1
      %s615 = scalar_select %p614, %s32, 1
      %s616 = smul.addr %s615, 4
      %s617 = smul.addr %s616, 4
      %s618 = scalar_lea.vmem %s4, %s617
      %p619 = pneg %p164
      %p620 = pneg %p161
      %p621 = scmp.lt.s32.totalorder %s32, 1
      %s622 = scalar_select %p621, %s32, 1
      %s623 = scalar_lea.vmem %s5, %s622
      %p624 = pneg %p190
      %p625 = pneg %p187
      %p626 = scmp.lt.s32.totalorder %s32, 1
      %s627 = scalar_select %p626, %s32, 1
      %s628 = smul.addr %s627, 4
      %s629 = smul.addr %s628, 4
      %s630 = scalar_lea.vmem %s6, %s629
      %p631 = pneg %p216
      %p632 = pneg %p213
      %p633 = scmp.lt.s32.totalorder %s32, 1
      %s634 = scalar_select %p633, %s32, 1
      %s635 = scalar_lea.vmem %s7, %s634
      %p636 = pneg %p242
      %p637 = pneg %p239
      %p638 = scmp.lt.s32.totalorder %s32, 1
      %s639 = scalar_select %p638, %s32, 1
      %s640 = scalar_lea.vmem %s8, %s639
      %p641 = pneg %p268
      %p642 = pneg %p265
      %p643 = scmp.lt.s32.totalorder %s32, 1
      %s644 = scalar_select %p643, %s32, 1
      %s645 = scalar_lea.vmem %s9, %s644
      %p646 = pneg %p294
      %p647 = pneg %p291
      %p648 = scmp.lt.s32.totalorder %s32, 1
      %s649 = scalar_select %p648, %s32, 1
      %s650 = smul.addr %s649, 4
      %s651 = smul.addr %s650, 4
      %s652 = scalar_lea.vmem %s10, %s651
      %p653 = pneg %p320
      %p654 = pneg %p317
      %p655 = scmp.lt.s32.totalorder %s32, 1
      %s656 = scalar_select %p655, %s32, 1
      %s657 = scalar_lea.vmem %s11, %s656
      %p658 = pneg %p346
      %p659 = pneg %p343
      %p660 = scmp.lt.s32.totalorder %s32, 1
      %s661 = scalar_select %p660, %s32, 1
      %s662 = smul.addr %s661, 16
      %s663 = smul.addr %s662, 4
      %s664 = scalar_lea.vmem %s12, %s663
      %p665 = pneg %p372
      %p666 = pneg %p369
      %p667 = scmp.lt.s32.totalorder %s32, 1
      %s668 = scalar_select %p667, %s32, 1
      %s669 = scalar_lea.vmem %s13, %s668
      %p670 = pneg %p398
      %p671 = pneg %p395
      %p672 = pneg %p419
      %p673 = pneg %p416
      %p674 = pneg %p440
      %p675 = pneg %p437
      %p676 = pneg %p466
      %p677 = pneg %p463
      %p678 = scmp.lt.s32.totalorder %s31, 1
      %s679 = scalar_select %p678, %s31, 1
      %s680 = smul.addr %s679, 2
      %s681 = smul.addr %s680, 8
      %s682 = scalar_lea.vmem %s16, %s681
      %p683 = scmp.lt.s32.totalorder %s31, 1
      %s684 = scalar_select %p683, %s31, 1
      %s685 = smul.addr %s684, 2
      %s686 = smul.addr %s685, 8
      %s687 = scalar_lea.vmem %s0, %s686
      %p688 = scmp.lt.s32.totalorder %s31, 1
      %s689 = scalar_select %p688, %s31, 1
      %s690 = scalar_lea.vmem %s1, %s689
      %p691 = scmp.lt.s32.totalorder %s32, 1
      %s692 = scalar_select %p691, %s32, 1
      %s693 = scalar_lea.vmem %s2, %s692
      %p694 = scmp.lt.s32.totalorder %s32, 1
      %s695 = scalar_select %p694, %s32, 1
      %s696 = scalar_lea.vmem %s3, %s695
      %p697 = scmp.lt.s32.totalorder %s32, 1
      %s698 = scalar_select %p697, %s32, 1
      %s699 = smul.addr %s698, 4
      %s700 = smul.addr %s699, 4
      %s701 = scalar_lea.vmem %s4, %s700
      %p702 = scmp.lt.s32.totalorder %s32, 1
      %s703 = scalar_select %p702, %s32, 1
      %s704 = scalar_lea.vmem %s5, %s703
      %p705 = scmp.lt.s32.totalorder %s32, 1
      %s706 = scalar_select %p705, %s32, 1
      %s707 = smul.addr %s706, 4
      %s708 = smul.addr %s707, 4
      %s709 = scalar_lea.vmem %s6, %s708
      %p710 = scmp.lt.s32.totalorder %s32, 1
      %s711 = scalar_select %p710, %s32, 1
      %s712 = scalar_lea.vmem %s7, %s711
      %p713 = scmp.lt.s32.totalorder %s32, 1
      %s714 = scalar_select %p713, %s32, 1
      %s715 = scalar_lea.vmem %s8, %s714
      %p716 = scmp.lt.s32.totalorder %s32, 1
      %s717 = scalar_select %p716, %s32, 1
      %s718 = scalar_lea.vmem %s9, %s717
      %p719 = scmp.lt.s32.totalorder %s32, 1
      %s720 = scalar_select %p719, %s32, 1
      %s721 = smul.addr %s720, 4
      %s722 = smul.addr %s721, 4
      %s723 = scalar_lea.vmem %s10, %s722
      %p724 = scmp.lt.s32.totalorder %s32, 1
      %s725 = scalar_select %p724, %s32, 1
      %s726 = scalar_lea.vmem %s11, %s725
      %p727 = scmp.lt.s32.totalorder %s32, 1
      %s728 = scalar_select %p727, %s32, 1
      %s729 = smul.addr %s728, 16
      %s730 = smul.addr %s729, 4
      %s731 = scalar_lea.vmem %s12, %s730
      %p732 = scmp.lt.s32.totalorder %s32, 1
      %s733 = scalar_select %p732, %s32, 1
      %s734 = scalar_lea.vmem %s13, %s733
      %p735 = scmp.lt.s32.totalorder %s31, 1
      %s736 = scalar_select %p735, %s31, 1
      %s737 = smul.addr %s736, 2
      %s738 = smul.addr %s737, 8
      %s739 = scalar_lea.vmem %s16, %s738
      %p741 = scmp.eq.s32.totalorder %s32, 0
      // Predicated region
      $region85: #{m3fm_forward.10} parent=83 // pred_check
        %p742 = pneg %p741
      $region86: #{m3fm_forward.10} parent=83 // pred_check_branch
        %744 = sbr.rel (%p742) target = $region88
      $region87: #{m3fm_forward.10} parent=83 // pred_region
        %v745 = vld [vmem:[%s687] sm:$0xff]
        %v746 = vld [vmem:[%s687 + $0x8] sm:$0xff]
        %vm747 = vcmask 261120
        %748 = vst.msk [vmem:[%s739] sm:$0xff] %vm747, %v745
        %749 = vst.msk [vmem:[%s739 + $0x8] sm:$0xff] %vm747, %v746
      $region88: #{m3fm_forward.10} parent=83 // pred_fallthru
        _
      %v750 = vld [vmem:[%s739] sm:$0xff]
      %v751 = vld [vmem:[%s739 + $0x8] sm:$0xff]
      %v752 = vld [vmem:[%s690] sm:$0x1]
      %v753 = vld [vmem:[%s693] sm:$0x1]
      %v754 = vld [vmem:[%s696] sm:$0x1]
      %vm755 = vcmask 261120
      %v756 = vsel %vm755, %v750, 0.0
      %757 = vadd.xlane.f32.xlu0 %v756
      %v758 = vpop.xlane.xlu0 %757
      %v759 = vsel %vm755, %v751, 0.0
      %760 = vadd.xlane.f32.xlu0 %v759
      %v761 = vpop.xlane.xlu0 %760
      %v762 = vrcp.pop 32.0
      %v763 = vmul.f32 32.0, %v762
      %v764 = vsub.f32 1.0, %v763
      %v765 = vmul.f32 %v762, %v764
      %v766 = vadd.f32 %v762, %v765
      %vm767 = vweird.f32 %v762
      %v768 = vsel %vm767, %v762, %v766
      %v769 = vmul.f32 %v758, %v768
      %v770 = vmul.f32 %v761, %v768
      %v771 = vsub.f32 %v750, %v769
      %v772 = vsub.f32 %v751, %v770
      %v773 = vmul.f32 %v771, %v771
      %v774 = vmul.f32 %v772, %v772
      %v775 = vsel %vm755, %v773, 0.0
      %776 = vadd.xlane.f32.xlu0 %v775
      %v777 = vpop.xlane.xlu0 %776
      %v778 = vsel %vm755, %v774, 0.0
      %779 = vadd.xlane.f32.xlu0 %v778
      %v780 = vpop.xlane.xlu0 %779
      %v781 = vmul.f32 %v777, %v768
      %v782 = vmul.f32 %v780, %v768
      %v783 = vadd.f32 %v781, 1e-06
      %v784 = vadd.f32 %v782, 1e-06
      %v785 = vrsqrt.pop %v783
      %v786 = vmul.f32 %v785, %v783
      %v787 = vmul.f32 %v786, %v785
      %v788 = vmul.f32 0.5, %v787
      %v789 = vsub.f32 1.5, %v788
      %v790 = vmul.f32 %v785, %v789
      %vm791 = vweird.f32 %v783
      %vm792 = vweird.f32 %v785
      %vm793 = vmor %vm791, %vm792
      %v794 = vsel %vm793, %v785, %v790
      %v795 = vrsqrt.pop %v784
      %v796 = vmul.f32 %v795, %v784
      %v797 = vmul.f32 %v796, %v795
      %v798 = vmul.f32 0.5, %v797
      %v799 = vsub.f32 1.5, %v798
      %v800 = vmul.f32 %v795, %v799
      %vm801 = vweird.f32 %v784
      %vm802 = vweird.f32 %v795
      %vm803 = vmor %vm801, %vm802
      %v804 = vsel %vm803, %v795, %v800
      %v805 = vmul.f32 %v771, %v794
      %v806 = vmul.f32 %v772, %v804
      %v808 = vperm.slane %v753, 0
      %v810 = vmul.f32 %v805, %v808
      %v811 = vmul.f32 %v806, %v808
      %v813 = vperm.slane %v754, 0
      %v815 = vadd.f32 %v810, %v813
      %v816 = vadd.f32 %v811, %v813
      %v817 = vpack.c.bf16 %v816, %v815
      %v818 = vld [vmem:[%s701] sm:$0xf]
      %v819 = vld [vmem:[%s701 + $0x4] sm:$0xf]
      %v820 = vld [vmem:[%s701 + $0x8] sm:$0xf]
      %v821 = vld [vmem:[%s701 + $0xc] sm:$0xf]
      %v822 = vld [vmem:[%s704] sm:$0x1]
      %v824 = vperm.slane %v822, 0
      %v830 = vunpack.c.l.b16 %v818
      %v831 = vunpack.c.l.b16 %v819
      %v832 = vunpack.c.l.b16 %v820
      %v833 = vunpack.c.l.b16 %v821
      %v834 = vpack.c.b16 %v831, %v830
      %v835 = vpack.c.b16 %v833, %v832
      %v839 = vsel %vm755, %v817, 0
      %841 = vmatpush.bf16.msra.mxu0 0
      %842 = vmatpush.bf16.msra.mxu0 0
      %843 = vmatpush.bf16.msra.mxu0 0
      %844 = vmatpush.bf16.msra.mxu0 0
      %845 = vmatpush.bf16.msra.mxu0 0
      %846 = vmatpush.bf16.msra.mxu0 0
      %847 = vmatpush.bf16.msra.mxu0 %v835
      %848 = vmatpush.bf16.msra.mxu0 %v834
      %849 = vmatmul.bf16.gmra.mxu0 %v839
      %v850 = vpop.f32.mrf.mxu0
      %v851 = vadd.f32 %v824, %v850
      %v852 = vpop.f32.mrf.mxu0
      %v853 = vadd.f32 %v824, %v852
      %854 = vdwg.mxu0
      %v855 = vpack.c.bf16 %v853, %v851
      %857 = vrot.lane.b32.xlu0 %v855, 96
      %v858 = vpop.permute.xlu0 %857
      %vm859 = vcmask 64512
      %v861 = vsel %vm859, %v855, 0
      %v864 = vsel %vm859, %v858, 0
      %866 = vmatpush.bf16.xpose.msra.mxu0 0
      %867 = vmatpush.bf16.xpose.msra.mxu0 0
      %868 = vmatpush.bf16.xpose.msra.mxu0 0
      %869 = vmatpush.bf16.xpose.msra.mxu0 0
      %870 = vmatpush.bf16.xpose.msra.mxu0 0
      %871 = vmatpush.bf16.xpose.msra.mxu0 0
      %872 = vmatpush.bf16.xpose.msra.mxu0 0
      %873 = vmatpush.bf16.xpose.msra.mxu0 %v864
      %874 = vmatmul.bf16.gmra.mxu0 %v861
      %v875 = vpop.f32.mrf.mxu0
      %v876 = vadd.f32 0.0, %v875
      %v877 = vpop.f32.mrf.mxu0
      %v878 = vadd.f32 0.0, %v877
      %879 = vdwg.mxu0
      %v880 = vmul.f32 %v876, 0.35355338
      %v881 = vmul.f32 %v878, 0.35355338
      %v883 = vperm.slane %v752, 0
      %v885 = vadd.f32 %v880, %v883
      %v886 = vadd.f32 %v881, %v883
      %vm887 = vcmask 130048
      %v888 = vsel %vm887, %v885, -inf
      %889 = vmax.xlane.f32.xlu0 %v888
      %v890 = vpop.xlane.xlu0 %889
      %v891 = vsel %vm887, %v886, -inf
      %892 = vmax.xlane.f32.xlu0 %v891
      %v893 = vpop.xlane.xlu0 %892
      %v894 = vsub.f32 %v885, %v890
      %v895 = vsub.f32 %v886, %v893
      %v896 = vmul.f32 %v894, 1.442695
      %v897 = vpow.pop %v896
      %v898 = vmul.f32 %v895, 1.442695
      %v899 = vpow.pop %v898
      %v900 = vsel %vm887, %v897, 0.0
      %901 = vadd.xlane.f32.xlu0 %v900
      %v902 = vpop.xlane.xlu0 %901
      %v903 = vsel %vm887, %v899, 0.0
      %904 = vadd.xlane.f32.xlu0 %v903
      %v905 = vpop.xlane.xlu0 %904
      %v906 = vrcp.pop %v902
      %v907 = vrcp.pop %v905
      %v908 = vmul.f32 %v897, %v906
      %v909 = vmul.f32 %v899, %v907
      %v910 = vpack.c.bf16 %v909, %v908
      %911 = vrot.lane.b32.xlu0 %v855, 64
      %v912 = vpop.permute.xlu0 %911
      %v915 = vsel %vm887, %v910, 0
      %917 = vmatpush.bf16.msra.mxu0 0
      %918 = vmatpush.bf16.msra.mxu0 0
      %919 = vmatpush.bf16.msra.mxu0 0
      %920 = vmatpush.bf16.msra.mxu0 0
      %921 = vmatpush.bf16.msra.mxu0 0
      %922 = vmatpush.bf16.msra.mxu0 0
      %923 = vmatpush.bf16.msra.mxu0 0
      %924 = vmatpush.bf16.msra.mxu0 %v912
      %925 = vmatmul.bf16.gmra.mxu0 %v915
      %v926 = vpop.f32.mrf.mxu0
      %v927 = vadd.f32 0.0, %v926
      %v928 = vpop.f32.mrf.mxu0
      %v929 = vadd.f32 0.0, %v928
      %930 = vdwg.mxu0
      %931 = vrot.lane.b32.xlu0 %v855, 120
      %v932 = vpop.permute.xlu0 %931
      %933 = vrot.lane.b32.xlu0 %v855, 88
      %v934 = vpop.permute.xlu0 %933
      %v936 = vsel %vm859, %v932, 0
      %v939 = vsel %vm859, %v934, 0
      %941 = vmatpush.bf16.xpose.msra.mxu0 0
      %942 = vmatpush.bf16.xpose.msra.mxu0 0
      %943 = vmatpush.bf16.xpose.msra.mxu0 0
      %944 = vmatpush.bf16.xpose.msra.mxu0 0
      %945 = vmatpush.bf16.xpose.msra.mxu0 0
      %946 = vmatpush.bf16.xpose.msra.mxu0 0
      %947 = vmatpush.bf16.xpose.msra.mxu0 0
      %948 = vmatpush.bf16.xpose.msra.mxu0 %v939
      %949 = vmatmul.bf16.gmra.mxu0 %v936
      %v950 = vpop.f32.mrf.mxu0
      %v951 = vadd.f32 0.0, %v950
      %v952 = vpop.f32.mrf.mxu0
      %v953 = vadd.f32 0.0, %v952
      %954 = vdwg.mxu0
      %v955 = vmul.f32 %v951, 0.35355338
      %v956 = vmul.f32 %v953, 0.35355338
      %v957 = vadd.f32 %v955, %v883
      %v958 = vadd.f32 %v956, %v883
      %v959 = vsel %vm887, %v957, -inf
      %960 = vmax.xlane.f32.xlu0 %v959
      %v961 = vpop.xlane.xlu0 %960
      %v962 = vsel %vm887, %v958, -inf
      %963 = vmax.xlane.f32.xlu0 %v962
      %v964 = vpop.xlane.xlu0 %963
      %v965 = vsub.f32 %v957, %v961
      %v966 = vsub.f32 %v958, %v964
      %v967 = vmul.f32 %v965, 1.442695
      %v968 = vpow.pop %v967
      %v969 = vmul.f32 %v966, 1.442695
      %v970 = vpow.pop %v969
      %v971 = vsel %vm887, %v968, 0.0
      %972 = vadd.xlane.f32.xlu0 %v971
      %v973 = vpop.xlane.xlu0 %972
      %v974 = vsel %vm887, %v970, 0.0
      %975 = vadd.xlane.f32.xlu0 %v974
      %v976 = vpop.xlane.xlu0 %975
      %v977 = vrcp.pop %v973
      %v978 = vrcp.pop %v976
      %v979 = vmul.f32 %v968, %v977
      %v980 = vmul.f32 %v970, %v978
      %v981 = vpack.c.bf16 %v980, %v979
      %982 = vrot.lane.b32.xlu0 %v855, 56
      %v983 = vpop.permute.xlu0 %982
      %v986 = vsel %vm887, %v981, 0
      %988 = vmatpush.bf16.msra.mxu0 0
      %989 = vmatpush.bf16.msra.mxu0 0
      %990 = vmatpush.bf16.msra.mxu0 0
      %991 = vmatpush.bf16.msra.mxu0 0
      %992 = vmatpush.bf16.msra.mxu0 0
      %993 = vmatpush.bf16.msra.mxu0 0
      %994 = vmatpush.bf16.msra.mxu0 0
      %995 = vmatpush.bf16.msra.mxu0 %v983
      %996 = vmatmul.bf16.gmra.mxu0 %v986
      %v997 = vpop.f32.mrf.mxu0
      %v998 = vadd.f32 0.0, %v997
      %v999 = vpop.f32.mrf.mxu0
      %v1000 = vadd.f32 0.0, %v999
      %1001 = vdwg.mxu0
      %1002 = vrot.lane.b32.xlu0 %v855, 112
      %v1003 = vpop.permute.xlu0 %1002
      %1004 = vrot.lane.b32.xlu0 %v855, 80
      %v1005 = vpop.permute.xlu0 %1004
      %v1007 = vsel %vm859, %v1003, 0
      %v1010 = vsel %vm859, %v1005, 0
      %1012 = vmatpush.bf16.xpose.msra.mxu0 0
      %1013 = vmatpush.bf16.xpose.msra.mxu0 0
      %1014 = vmatpush.bf16.xpose.msra.mxu0 0
      %1015 = vmatpush.bf16.xpose.msra.mxu0 0
      %1016 = vmatpush.bf16.xpose.msra.mxu0 0
      %1017 = vmatpush.bf16.xpose.msra.mxu0 0
      %1018 = vmatpush.bf16.xpose.msra.mxu0 0
      %1019 = vmatpush.bf16.xpose.msra.mxu0 %v1010
      %1020 = vmatmul.bf16.gmra.mxu0 %v1007
      %v1021 = vpop.f32.mrf.mxu0
      %v1022 = vadd.f32 0.0, %v1021
      %v1023 = vpop.f32.mrf.mxu0
      %v1024 = vadd.f32 0.0, %v1023
      %1025 = vdwg.mxu0
      %v1026 = vmul.f32 %v1022, 0.35355338
      %v1027 = vmul.f32 %v1024, 0.35355338
      %v1028 = vadd.f32 %v1026, %v883
      %v1029 = vadd.f32 %v1027, %v883
      %v1030 = vsel %vm887, %v1028, -inf
      %1031 = vmax.xlane.f32.xlu0 %v1030
      %v1032 = vpop.xlane.xlu0 %1031
      %v1033 = vsel %vm887, %v1029, -inf
      %1034 = vmax.xlane.f32.xlu0 %v1033
      %v1035 = vpop.xlane.xlu0 %1034
      %v1036 = vsub.f32 %v1028, %v1032
      %v1037 = vsub.f32 %v1029, %v1035
      %v1038 = vmul.f32 %v1036, 1.442695
      %v1039 = vpow.pop %v1038
      %v1040 = vmul.f32 %v1037, 1.442695
      %v1041 = vpow.pop %v1040
      %v1042 = vsel %vm887, %v1039, 0.0
      %1043 = vadd.xlane.f32.xlu0 %v1042
      %v1044 = vpop.xlane.xlu0 %1043
      %v1045 = vsel %vm887, %v1041, 0.0
      %1046 = vadd.xlane.f32.xlu0 %v1045
      %v1047 = vpop.xlane.xlu0 %1046
      %v1048 = vrcp.pop %v1044
      %v1049 = vrcp.pop %v1047
      %v1050 = vmul.f32 %v1039, %v1048
      %v1051 = vmul.f32 %v1041, %v1049
      %v1052 = vpack.c.bf16 %v1051, %v1050
      %1053 = vrot.lane.b32.xlu0 %v855, 48
      %v1054 = vpop.permute.xlu0 %1053
      %v1057 = vsel %vm887, %v1052, 0
      %1059 = vmatpush.bf16.msra.mxu0 0
      %1060 = vmatpush.bf16.msra.mxu0 0
      %1061 = vmatpush.bf16.msra.mxu0 0
      %1062 = vmatpush.bf16.msra.mxu0 0
      %1063 = vmatpush.bf16.msra.mxu0 0
      %1064 = vmatpush.bf16.msra.mxu0 0
      %1065 = vmatpush.bf16.msra.mxu0 0
      %1066 = vmatpush.bf16.msra.mxu0 %v1054
      %1067 = vmatmul.bf16.gmra.mxu0 %v1057
      %v1068 = vpop.f32.mrf.mxu0
      %v1069 = vadd.f32 0.0, %v1068
      %v1070 = vpop.f32.mrf.mxu0
      %v1071 = vadd.f32 0.0, %v1070
      %1072 = vdwg.mxu0
      %1073 = vrot.lane.b32.xlu0 %v855, 104
      %v1074 = vpop.permute.xlu0 %1073
      %1075 = vrot.lane.b32.xlu0 %v855, 72
      %v1076 = vpop.permute.xlu0 %1075
      %v1078 = vsel %vm859, %v1074, 0
      %v1081 = vsel %vm859, %v1076, 0
      %1083 = vmatpush.bf16.xpose.msra.mxu0 0
      %1084 = vmatpush.bf16.xpose.msra.mxu0 0
      %1085 = vmatpush.bf16.xpose.msra.mxu0 0
      %1086 = vmatpush.bf16.xpose.msra.mxu0 0
      %1087 = vmatpush.bf16.xpose.msra.mxu0 0
      %1088 = vmatpush.bf16.xpose.msra.mxu0 0
      %1089 = vmatpush.bf16.xpose.msra.mxu0 0
      %1090 = vmatpush.bf16.xpose.msra.mxu0 %v1081
      %1091 = vmatmul.bf16.gmra.mxu0 %v1078
      %v1092 = vpop.f32.mrf.mxu0
      %v1093 = vadd.f32 0.0, %v1092
      %v1094 = vpop.f32.mrf.mxu0
      %v1095 = vadd.f32 0.0, %v1094
      %1096 = vdwg.mxu0
      %v1097 = vmul.f32 %v1093, 0.35355338
      %v1098 = vmul.f32 %v1095, 0.35355338
      %v1099 = vadd.f32 %v1097, %v883
      %v1100 = vadd.f32 %v1098, %v883
      %v1101 = vsel %vm887, %v1099, -inf
      %1102 = vmax.xlane.f32.xlu0 %v1101
      %v1103 = vpop.xlane.xlu0 %1102
      %v1104 = vsel %vm887, %v1100, -inf
      %1105 = vmax.xlane.f32.xlu0 %v1104
      %v1106 = vpop.xlane.xlu0 %1105
      %v1107 = vsub.f32 %v1099, %v1103
      %v1108 = vsub.f32 %v1100, %v1106
      %v1109 = vmul.f32 %v1107, 1.442695
      %v1110 = vpow.pop %v1109
      %v1111 = vmul.f32 %v1108, 1.442695
      %v1112 = vpow.pop %v1111
      %v1113 = vsel %vm887, %v1110, 0.0
      %1114 = vadd.xlane.f32.xlu0 %v1113
      %v1115 = vpop.xlane.xlu0 %1114
      %v1116 = vsel %vm887, %v1112, 0.0
      %1117 = vadd.xlane.f32.xlu0 %v1116
      %v1118 = vpop.xlane.xlu0 %1117
      %v1119 = vrcp.pop %v1115
      %v1120 = vrcp.pop %v1118
      %v1121 = vmul.f32 %v1110, %v1119
      %v1122 = vmul.f32 %v1112, %v1120
      %v1123 = vpack.c.bf16 %v1122, %v1121
      %1124 = vrot.lane.b32.xlu0 %v855, 40
      %v1125 = vpop.permute.xlu0 %1124
      %v1128 = vsel %vm887, %v1123, 0
      %1130 = vmatpush.bf16.msra.mxu0 0
      %1131 = vmatpush.bf16.msra.mxu0 0
      %1132 = vmatpush.bf16.msra.mxu0 0
      %1133 = vmatpush.bf16.msra.mxu0 0
      %1134 = vmatpush.bf16.msra.mxu0 0
      %1135 = vmatpush.bf16.msra.mxu0 0
      %1136 = vmatpush.bf16.msra.mxu0 0
      %1137 = vmatpush.bf16.msra.mxu0 %v1125
      %1138 = vmatmul.bf16.gmra.mxu0 %v1128
      %v1139 = vpop.f32.mrf.mxu0
      %v1140 = vadd.f32 0.0, %v1139
      %v1141 = vpop.f32.mrf.mxu0
      %v1142 = vadd.f32 0.0, %v1141
      %1143 = vdwg.mxu0
      %1146 = vrot.lane.b32.xlu0 %v998, 8
      %v1147 = vpop.permute.xlu0 %1146
      %1148 = vrot.lane.b32.xlu0 %v1000, 8
      %v1149 = vpop.permute.xlu0 %1148
      %1154 = vrot.lane.b32.xlu0 %v1069, 16
      %v1155 = vpop.permute.xlu0 %1154
      %1156 = vrot.lane.b32.xlu0 %v1071, 16
      %v1157 = vpop.permute.xlu0 %1156
      %1162 = vrot.lane.b32.xlu0 %v1140, 24
      %v1163 = vpop.permute.xlu0 %1162
      %1164 = vrot.lane.b32.xlu0 %v1142, 24
      %v1165 = vpop.permute.xlu0 %1164
      %v1168 = vsel %vm859, %v927, %v1147
      %v1169 = vsel %vm859, %v929, %v1149
      %v1170 = vsel %vm887, %v1168, %v1155
      %v1171 = vsel %vm887, %v1169, %v1157
      %vm1172 = vcmask 195584
      %v1173 = vsel %vm1172, %v1170, %v1163
      %v1174 = vsel %vm1172, %v1171, %v1165
      %v1175 = vpack.c.bf16 %v1174, %v1173
      %v1176 = vld [vmem:[%s709] sm:$0xf]
      %v1177 = vld [vmem:[%s709 + $0x4] sm:$0xf]
      %v1178 = vld [vmem:[%s709 + $0x8] sm:$0xf]
      %v1179 = vld [vmem:[%s709 + $0xc] sm:$0xf]
      %v1180 = vld [vmem:[%s712] sm:$0x1]
      %v1182 = vperm.slane %v1180, 0
      %v1188 = vunpack.c.l.b16 %v1176
      %v1189 = vunpack.c.l.b16 %v1177
      %v1190 = vunpack.c.l.b16 %v1178
      %v1191 = vunpack.c.l.b16 %v1179
      %v1192 = vpack.c.b16 %v1189, %v1188
      %v1193 = vpack.c.b16 %v1191, %v1190
      %v1197 = vsel %vm755, %v1175, 0
      %1199 = vmatpush.bf16.msra.mxu0 0
      %1200 = vmatpush.bf16.msra.mxu0 0
      %1201 = vmatpush.bf16.msra.mxu0 0
      %1202 = vmatpush.bf16.msra.mxu0 0
      %1203 = vmatpush.bf16.msra.mxu0 0
      %1204 = vmatpush.bf16.msra.mxu0 0
      %1205 = vmatpush.bf16.msra.mxu0 %v1193
      %1206 = vmatpush.bf16.msra.mxu0 %v1192
      %1207 = vmatmul.bf16.gmra.mxu0 %v1197
      %v1208 = vpop.f32.mrf.mxu0
      %v1209 = vadd.f32 %v1182, %v1208
      %v1210 = vpop.f32.mrf.mxu0
      %v1211 = vadd.f32 %v1182, %v1210
      %1212 = vdwg.mxu0
      %v1213 = vadd.f32 %v750, %v1209
      %v1214 = vadd.f32 %v751, %v1211
      %v1215 = vld [vmem:[%s715] sm:$0x1]
      %v1216 = vld [vmem:[%s718] sm:$0x1]
      %v1217 = vsel %vm755, %v1213, 0.0
      %1218 = vadd.xlane.f32.xlu0 %v1217
      %v1219 = vpop.xlane.xlu0 %1218
      %v1220 = vsel %vm755, %v1214, 0.0
      %1221 = vadd.xlane.f32.xlu0 %v1220
      %v1222 = vpop.xlane.xlu0 %1221
      %v1223 = vmul.f32 %v1219, %v768
      %v1224 = vmul.f32 %v1222, %v768
      %v1225 = vsub.f32 %v1213, %v1223
      %v1226 = vsub.f32 %v1214, %v1224
      %v1227 = vmul.f32 %v1225, %v1225
      %v1228 = vmul.f32 %v1226, %v1226
      %v1229 = vsel %vm755, %v1227, 0.0
      %1230 = vadd.xlane.f32.xlu0 %v1229
      %v1231 = vpop.xlane.xlu0 %1230
      %v1232 = vsel %vm755, %v1228, 0.0
      %1233 = vadd.xlane.f32.xlu0 %v1232
      %v1234 = vpop.xlane.xlu0 %1233
      %v1235 = vmul.f32 %v1231, %v768
      %v1236 = vmul.f32 %v1234, %v768
      %v1237 = vadd.f32 %v1235, 1e-06
      %v1238 = vadd.f32 %v1236, 1e-06
      %v1239 = vrsqrt.pop %v1237
      %v1240 = vmul.f32 %v1239, %v1237
      %v1241 = vmul.f32 %v1240, %v1239
      %v1242 = vmul.f32 0.5, %v1241
      %v1243 = vsub.f32 1.5, %v1242
      %v1244 = vmul.f32 %v1239, %v1243
      %vm1245 = vweird.f32 %v1237
      %vm1246 = vweird.f32 %v1239
      %vm1247 = vmor %vm1245, %vm1246
      %v1248 = vsel %vm1247, %v1239, %v1244
      %v1249 = vrsqrt.pop %v1238
      %v1250 = vmul.f32 %v1249, %v1238
      %v1251 = vmul.f32 %v1250, %v1249
      %v1252 = vmul.f32 0.5, %v1251
      %v1253 = vsub.f32 1.5, %v1252
      %v1254 = vmul.f32 %v1249, %v1253
      %vm1255 = vweird.f32 %v1238
      %vm1256 = vweird.f32 %v1249
      %vm1257 = vmor %vm1255, %vm1256
      %v1258 = vsel %vm1257, %v1249, %v1254
      %v1259 = vmul.f32 %v1225, %v1248
      %v1260 = vmul.f32 %v1226, %v1258
      %v1262 = vperm.slane %v1215, 0
      %v1264 = vmul.f32 %v1259, %v1262
      %v1265 = vmul.f32 %v1260, %v1262
      %v1267 = vperm.slane %v1216, 0
      %v1269 = vadd.f32 %v1264, %v1267
      %v1270 = vadd.f32 %v1265, %v1267
      %v1271 = vpack.c.bf16 %v1270, %v1269
      %v1272 = vld [vmem:[%s723] sm:$0xf]
      %v1273 = vld [vmem:[%s723 + $0x4] sm:$0xf]
      %v1274 = vld [vmem:[%s723 + $0x8] sm:$0xf]
      %v1275 = vld [vmem:[%s723 + $0xc] sm:$0xf]
      %v1276 = vld [vmem:[%s726] sm:$0x1]
      %v1278 = vperm.slane %v1276, 0
      %v1284 = vunpack.c.l.b16 %v1272
      %v1285 = vunpack.c.l.b16 %v1273
      %v1286 = vunpack.c.l.b16 %v1274
      %v1287 = vunpack.c.l.b16 %v1275
      %v1288 = vpack.c.b16 %v1285, %v1284
      %v1289 = vpack.c.b16 %v1287, %v1286
      %v1293 = vsel %vm755, %v1271, 0
      %1295 = vmatpush.bf16.msra.mxu0 0
      %1296 = vmatpush.bf16.msra.mxu0 0
      %1297 = vmatpush.bf16.msra.mxu0 0
      %1298 = vmatpush.bf16.msra.mxu0 0
      %1299 = vmatpush.bf16.msra.mxu0 0
      %1300 = vmatpush.bf16.msra.mxu0 0
      %1301 = vmatpush.bf16.msra.mxu0 %v1289
      %1302 = vmatpush.bf16.msra.mxu0 %v1288
      %1303 = vmatmul.bf16.gmra.mxu0 %v1293
      %v1304 = vpop.f32.mrf.mxu0
      %v1305 = vadd.f32 %v1278, %v1304
      %v1306 = vpop.f32.mrf.mxu0
      %v1307 = vadd.f32 %v1278, %v1306
      %1308 = vdwg.mxu0
      %v1309 = vmul.f32 %v1305, %v1305
      %v1310 = vmul.f32 %v1307, %v1307
      %v1311 = vmul.f32 %v1305, %v1309
      %v1312 = vmul.f32 %v1307, %v1310
      %v1313 = vmul.f32 %v1311, 0.044715
      %v1314 = vmul.f32 %v1312, 0.044715
      %v1315 = vadd.f32 %v1305, %v1313
      %v1316 = vadd.f32 %v1307, %v1314
      %v1317 = vmul.f32 %v1315, 0.7978846
      %v1318 = vmul.f32 %v1316, 0.7978846
      %v1319 = vtanh.pop %v1317
      %v1320 = vtanh.pop %v1318
      %v1321 = vadd.f32 %v1319, 1.0
      %v1322 = vadd.f32 %v1320, 1.0
      %v1323 = vmul.f32 %v1321, 0.5
      %v1324 = vmul.f32 %v1322, 0.5
      %v1325 = vmul.f32 %v1305, %v1323
      %v1326 = vmul.f32 %v1307, %v1324
      %v1327 = vpack.c.bf16 %v1326, %v1325
      %v1328 = vld [vmem:[%s731] sm:$0xf]
      %v1329 = vld [vmem:[%s731 + $0x4] sm:$0xf]
      %v1330 = vld [vmem:[%s731 + $0x8] sm:$0xf]
      %v1331 = vld [vmem:[%s731 + $0xc] sm:$0xf]
      %v1332 = vld [vmem:[%s731 + $0x10] sm:$0xf]
      %v1333 = vld [vmem:[%s731 + $0x14] sm:$0xf]
      %v1334 = vld [vmem:[%s731 + $0x18] sm:$0xf]
      %v1335 = vld [vmem:[%s731 + $0x1c] sm:$0xf]
      %v1336 = vld [vmem:[%s731 + $0x20] sm:$0xf]
      %v1337 = vld [vmem:[%s731 + $0x24] sm:$0xf]
      %v1338 = vld [vmem:[%s731 + $0x28] sm:$0xf]
      %v1339 = vld [vmem:[%s731 + $0x2c] sm:$0xf]
      %v1340 = vld [vmem:[%s731 + $0x30] sm:$0xf]
      %v1341 = vld [vmem:[%s731 + $0x34] sm:$0xf]
      %v1342 = vld [vmem:[%s731 + $0x38] sm:$0xf]
      %v1343 = vld [vmem:[%s731 + $0x3c] sm:$0xf]
      %v1344 = vld [vmem:[%s734] sm:$0x1]
      %v1346 = vperm.slane %v1344, 0
      %v1364 = vunpack.c.l.b16 %v1328
      %v1365 = vunpack.c.l.b16 %v1329
      %v1366 = vunpack.c.l.b16 %v1330
      %v1367 = vunpack.c.l.b16 %v1331
      %v1368 = vunpack.c.l.b16 %v1332
      %v1369 = vunpack.c.l.b16 %v1333
      %v1370 = vunpack.c.l.b16 %v1334
      %v1371 = vunpack.c.l.b16 %v1335
      %v1372 = vunpack.c.l.b16 %v1336
      %v1373 = vunpack.c.l.b16 %v1337
      %v1374 = vunpack.c.l.b16 %v1338
      %v1375 = vunpack.c.l.b16 %v1339
      %v1376 = vunpack.c.l.b16 %v1340
      %v1377 = vunpack.c.l.b16 %v1341
      %v1378 = vunpack.c.l.b16 %v1342
      %v1379 = vunpack.c.l.b16 %v1343
      %v1380 = vpack.c.b16 %v1365, %v1364
      %v1381 = vpack.c.b16 %v1367, %v1366
      %v1382 = vpack.c.b16 %v1369, %v1368
      %v1383 = vpack.c.b16 %v1371, %v1370
      %v1384 = vpack.c.b16 %v1373, %v1372
      %v1385 = vpack.c.b16 %v1375, %v1374
      %v1386 = vpack.c.b16 %v1377, %v1376
      %v1387 = vpack.c.b16 %v1379, %v1378
      %1396 = vmatpush.bf16.msra.mxu0 %v1387
      %1397 = vmatpush.bf16.msra.mxu0 %v1386
      %1398 = vmatpush.bf16.msra.mxu0 %v1385
      %1399 = vmatpush.bf16.msra.mxu0 %v1384
      %1400 = vmatpush.bf16.msra.mxu0 %v1383
      %1401 = vmatpush.bf16.msra.mxu0 %v1382
      %1402 = vmatpush.bf16.msra.mxu0 %v1381
      %1403 = vmatpush.bf16.msra.mxu0 %v1380
      %1404 = vmatmul.bf16.gmra.mxu0 %v1327
      %v1405 = vpop.f32.mrf.mxu0
      %v1406 = vadd.f32 %v1346, %v1405
      %v1407 = vpop.f32.mrf.mxu0
      %v1408 = vadd.f32 %v1346, %v1407
      %1409 = vdwg.mxu0
      %v1410 = vadd.f32 %v1213, %v1406
      %v1411 = vadd.f32 %v1214, %v1408
      %1412 = vst.msk [vmem:[%s739] sm:$0xff] %vm755, %v1410
      %1413 = vst.msk [vmem:[%s739 + $0x8] sm:$0xff] %vm755, %v1411
      %p1414 = scmp.eq.s32.totalorder %s32, 1
      // Predicated region
      $region89: #{m3fm_forward.10} parent=83 // pred_check
        %p1415 = pneg %p1414
      $region90: #{m3fm_forward.10} parent=83 // pred_check_branch
        %1417 = sbr.rel (%p1415) target = $region92
      $region91: #{m3fm_forward.10} parent=83 // pred_region
        %v1418 = vld [vmem:[%s739] sm:$0xff]
        %v1419 = vld [vmem:[%s739 + $0x8] sm:$0xff]
        %v1420 = vld [vmem:[%s14] sm:$0x1]
        %v1421 = vld [vmem:[%s15] sm:$0x1]
        %v1422 = vsel %vm755, %v1418, 0.0
        %1423 = vadd.xlane.f32.xlu0 %v1422
        %v1424 = vpop.xlane.xlu0 %1423
        %v1425 = vsel %vm755, %v1419, 0.0
        %1426 = vadd.xlane.f32.xlu0 %v1425
        %v1427 = vpop.xlane.xlu0 %1426
        %v1428 = vmul.f32 %v1424, %v768
        %v1429 = vmul.f32 %v1427, %v768
        %v1430 = vsub.f32 %v1418, %v1428
        %v1431 = vsub.f32 %v1419, %v1429
        %v1432 = vmul.f32 %v1430, %v1430
        %v1433 = vmul.f32 %v1431, %v1431
        %v1434 = vsel %vm755, %v1432, 0.0
        %1435 = vadd.xlane.f32.xlu0 %v1434
        %v1436 = vpop.xlane.xlu0 %1435
        %v1437 = vsel %vm755, %v1433, 0.0
        %1438 = vadd.xlane.f32.xlu0 %v1437
        %v1439 = vpop.xlane.xlu0 %1438
        %v1440 = vmul.f32 %v1436, %v768
        %v1441 = vmul.f32 %v1439, %v768
        %v1442 = vadd.f32 %v1440, 1e-06
        %v1443 = vadd.f32 %v1441, 1e-06
        %v1444 = vrsqrt.pop %v1442
        %v1445 = vmul.f32 %v1444, %v1442
        %v1446 = vmul.f32 %v1445, %v1444
        %v1447 = vmul.f32 0.5, %v1446
        %v1448 = vsub.f32 1.5, %v1447
        %v1449 = vmul.f32 %v1444, %v1448
        %vm1450 = vweird.f32 %v1442
        %vm1451 = vweird.f32 %v1444
        %vm1452 = vmor %vm1450, %vm1451
        %v1453 = vsel %vm1452, %v1444, %v1449
        %v1454 = vrsqrt.pop %v1443
        %v1455 = vmul.f32 %v1454, %v1443
        %v1456 = vmul.f32 %v1455, %v1454
        %v1457 = vmul.f32 0.5, %v1456
        %v1458 = vsub.f32 1.5, %v1457
        %v1459 = vmul.f32 %v1454, %v1458
        %vm1460 = vweird.f32 %v1443
        %vm1461 = vweird.f32 %v1454
        %vm1462 = vmor %vm1460, %vm1461
        %v1463 = vsel %vm1462, %v1454, %v1459
        %v1464 = vmul.f32 %v1430, %v1453
        %v1465 = vmul.f32 %v1431, %v1463
        %v1467 = vperm.slane %v1420, 0
        %v1469 = vmul.f32 %v1464, %v1467
        %v1470 = vmul.f32 %v1465, %v1467
        %v1472 = vperm.slane %v1421, 0
        %v1474 = vadd.f32 %v1469, %v1472
        %v1475 = vadd.f32 %v1470, %v1472
        %1476 = vst.msk [vmem:[%s739] sm:$0xff] %vm755, %v1474
        %1477 = vst.msk [vmem:[%s739 + $0x8] sm:$0xff] %vm755, %v1475
      $region92: #{m3fm_forward.10} parent=83 // pred_fallthru
        _
      %p1478 = scmp.lt.s32.totalorder %s31, 1
      %s1479 = scalar_select %p1478, %s31, 1
      %s1480 = smul.addr %s1479, 2
      %s1481 = smul.addr %s1480, 8
      %s1482 = scalar_lea.vmem %s16, %s1481
      // Predicated region
      $region93: #{m3fm_forward.10} parent=83 // pred_check
        %p1483 = pneg %p463
      $region94: #{m3fm_forward.10} parent=83 // pred_check_branch
        %1485 = sbr.rel (%p1483) target = $region96
      $region95: #{m3fm_forward.10} parent=83 // pred_region
        _
      $region96: #{m3fm_forward.10} parent=83 // pred_fallthru
        _
    $region84: #{m3fm_forward.10} parent=5 // pred_fallthru
      _
    %p1486 = scmp.le.s32.totalorder 2, %s22
    // Predicated region
    $region97: #{m3fm_forward.10} parent=5 // pred_check
      %p1487 = pneg %p1486
    $region98: #{m3fm_forward.10} parent=5 // pred_check_branch
      %1489 = sbr.rel (%p1487) target = $region100
    $region99: #{m3fm_forward.10} parent=5 // pred_region
      %s1490 = ssub.s32 %s22, 2
      // Predicated region
      $region101: #{m3fm_forward.10} parent=99 // pred_check
        %p1491 = pneg %p469
      $region102: #{m3fm_forward.10} parent=99 // pred_check_branch
        %1493 = sbr.rel (%p1491) target = $region104
      $region103: #{m3fm_forward.10} parent=99 // pred_region
        %p1494 = scmp.lt.s32.totalorder %s33, 1
        %s1495 = scalar_select %p1494, %s33, 1
        %s1496 = smul.addr %s1495, 2
        %s1497 = smul.addr %s1496, 8
        %s1498 = scalar_lea.vmem %s16, %s1497
      $region104: #{m3fm_forward.10} parent=99 // pred_fallthru
        _
    $region100: #{m3fm_forward.10} parent=5 // pred_fallthru
      _
  $region6: #{m3fm_forward.10} parent=0 // loop_footer
    %s26 = sadd.s32 1, %s22
  $region7: #{m3fm_forward.10} parent=0 // loop_footer_branch
    %21 = sbr.rel target = $region3
  $region8: #{m3fm_forward.10} parent=0 // loop_exit
    _

// kernel: m3fm_forward.17
$region0: #{m3fm_forward.17}
  #allocation0 [shape = 'u32[]', space=smem, size = 0x4, offset = 0x4, fixed_abs, tag = 'smem constant byte address 0x4 - core index']
  #allocation1 [shape = 'u32[72,128]{1,0:T(1,128)}', space=vmem, size = 0x9000, scoped, tag = 'internal scratch']
  %s0 = inlined_call_operand.vmem [shape: f32[2,32], index: 0, kind: input, shape index: {}]
  %s1 = inlined_call_operand.vmem [shape: f32[32,6], index: 1, kind: input, shape index: {}]
  %s2 = inlined_call_operand.vmem [shape: f32[1,6], index: 2, kind: input, shape index: {}]
  %s3 = inlined_call_operand.hbm [shape: f32[2,6], index: 3, kind: output, shape index: {}]
  %s4 = sld [smem:[#allocation0]]
  $region22: #{m3fm_forward.17} parent=0
    _
  %s6 = ssub.s32 1, %s4
  %s7 = scalar_select 0, %s6, %s4
  $region1: #{m3fm_forward.17} parent=0
    #allocation2 [shape = 'u8[1024]{0}', space=vmem, size = 0x400, scoped, tag = 'output window, operand 0, single buffered']
    #allocation3 [shape = 's32[1]{0}', space=sflag, size = 0x4, scoped, tag = 'scoped memory for m3fm_forward.17']
    %8 = vsyncpa [#allocation3], 0
    // Predicated region
    $region2: #{m3fm_forward.17} parent=1 // pred_check
      _
    $region3: #{m3fm_forward.17} parent=1 // pred_check_branch
      %10 = sbr.rel (0) target = $region5
    $region4: #{m3fm_forward.17} parent=1 // pred_region
      _
    $region5: #{m3fm_forward.17} parent=1 // pred_fallthru
      _
    // Predicated region
    $region6: #{m3fm_forward.17} parent=1 // pred_check
      _
    $region7: #{m3fm_forward.17} parent=1 // pred_check_branch
      %12 = sbr.rel (0) target = $region9
    $region8: #{m3fm_forward.17} parent=1 // pred_region
      _
    $region9: #{m3fm_forward.17} parent=1 // pred_fallthru
      _
    // Predicated region
    $region10: #{m3fm_forward.17} parent=1 // pred_check
      _
    $region11: #{m3fm_forward.17} parent=1 // pred_check_branch
      %14 = sbr.rel (0) target = $region13
    $region12: #{m3fm_forward.17} parent=1 // pred_region
      _
    $region13: #{m3fm_forward.17} parent=1 // pred_fallthru
      _
    %v15 = vld [vmem:[%s0] sm:$0x3]
    %v16 = vld [vmem:[%s1] sm:$0xff]
    %v17 = vld [vmem:[%s1 + $0x8] sm:$0xff]
    %v18 = vld [vmem:[%s1 + $0x10] sm:$0xff]
    %v19 = vld [vmem:[%s1 + $0x18] sm:$0xff]
    %v20 = vld [vmem:[%s2] sm:$0x1]
    %v22 = vperm.slane %v20, 0
    %vm24 = vcmask 261120
    %v26 = vsel %vm24, %v15, 0
    %28 = vmatpush.msra.mxu0 0.0
    %29 = vmatpush.msra.mxu0 0.0
    %30 = vmatpush.msra.mxu0 0.0
    %31 = vmatpush.msra.mxu0 0.0
    %32 = vmatpush.msra.mxu0 0.0
    %33 = vmatpush.msra.mxu0 0.0
    %34 = vmatpush.msra.mxu0 0.0
    %35 = vmatpush.msra.mxu0 0.0
    %36 = vmatpush.msra.mxu0 0.0
    %37 = vmatpush.msra.mxu0 0.0
    %38 = vmatpush.msra.mxu0 0.0
    %39 = vmatpush.msra.mxu0 0.0
    %40 = vmatpush.msra.mxu0 %v19
    %41 = vmatpush.msra.mxu0 %v18
    %42 = vmatpush.msra.mxu0 %v17
    %43 = vmatpush.msra.mxu0 %v16
    %44 = vmatmul.f32.gmra.mxu0 %v26
    %v45 = vpop.f32.mrf.mxu0
    %v46 = vadd.f32 %v22, %v45
    %47 = vdwg.mxu0
    %vm48 = vcmask 41984
    %49 = vst.msk [vmem:[#allocation2] sm:$0x3] %vm48, %v46
    // Predicated region
    $region14: #{m3fm_forward.17} parent=1 // pred_check
      _
    $region15: #{m3fm_forward.17} parent=1 // pred_check_branch
      %51 = sbr.rel (0) target = $region17
    $region16: #{m3fm_forward.17} parent=1 // pred_region
      %53 = vsyncadd [#allocation3], 0
      %s55 = sshll.u32 [#allocation2], 4
      %s56 = int_to_ptr.vmem [resolvable:$true] %s55
      %s57 = sshll.u32 %s3, 4
      %s58 = int_to_ptr.hbm [resolvable:$true] %s57
      %60 = dma.vmem_to_hbm [thread:$0]  %s56, 32, %s58, [#allocation3]
    $region17: #{m3fm_forward.17} parent=1 // pred_fallthru
      _
    // Predicated region
    $region18: #{m3fm_forward.17} parent=1 // pred_check
      _
    $region19: #{m3fm_forward.17} parent=1 // pred_check_branch
      %62 = sbr.rel (0) target = $region21
    $region20: #{m3fm_forward.17} parent=1 // pred_region
      %64 = dma.done [#allocation3], 32
    $region21: #{m3fm_forward.17} parent=1 // pred_fallthru
      _
    %65 = vsyncpa [#allocation3], 1

// kernel: m3fm_forward.16
$region0: #{m3fm_forward.16}
  #allocation0 [shape = 'u32[]', space=smem, size = 0x4, offset = 0x4, fixed_abs, tag = 'smem constant byte address 0x4 - core index']
  #allocation1 [shape = 'u32[72,128]{1,0:T(1,128)}', space=vmem, size = 0x9000, scoped, tag = 'internal scratch']
  %s0 = inlined_call_operand.vmem [shape: f32[2,24,32], index: 0, kind: input, shape index: {}]
  %s1 = inlined_call_operand.vmem [shape: f32[2,1,24], index: 1, kind: input, shape index: {}]
  %s2 = inlined_call_operand.vmem [shape: f32[2,1,32], index: 2, kind: input, shape index: {}]
  %s3 = inlined_call_operand.vmem [shape: f32[2,1,32], index: 3, kind: input, shape index: {}]
  %s4 = inlined_call_operand.vmem [shape: bf16[2,32,96], index: 4, kind: input, shape index: {}]
  %s5 = inlined_call_operand.vmem [shape: f32[2,1,96], index: 5, kind: input, shape index: {}]
  %s6 = inlined_call_operand.vmem [shape: bf16[2,32,32], index: 6, kind: input, shape index: {}]
  %s7 = inlined_call_operand.vmem [shape: f32[2,1,32], index: 7, kind: input, shape index: {}]
  %s8 = inlined_call_operand.vmem [shape: f32[2,1,32], index: 8, kind: input, shape index: {}]
  %s9 = inlined_call_operand.vmem [shape: f32[2,1,32], index: 9, kind: input, shape index: {}]
  %s10 = inlined_call_operand.vmem [shape: bf16[2,32,128], index: 10, kind: input, shape index: {}]
  %s11 = inlined_call_operand.vmem [shape: f32[2,1,128], index: 11, kind: input, shape index: {}]
  %s12 = inlined_call_operand.vmem [shape: bf16[2,128,32], index: 12, kind: input, shape index: {}]
  %s13 = inlined_call_operand.vmem [shape: f32[2,1,32], index: 13, kind: input, shape index: {}]
  %s14 = inlined_call_operand.vmem [shape: f32[1,1,32], index: 14, kind: input, shape index: {}]
  %s15 = inlined_call_operand.vmem [shape: f32[1,1,32], index: 15, kind: input, shape index: {}]
  %s16 = inlined_call_operand.vmem [shape: f32[2,24,32], index: 16, kind: output, shape index: {}]
  %s17 = sld [smem:[#allocation0]]
  $region105: #{m3fm_forward.16} parent=0
    _
  %s19 = ssub.s32 1, %s17
  %s20 = scalar_select 0, %s19, %s17
  loop: start=0, step=1, limit=6
  $region2: #{m3fm_forward.16} parent=0 // loop_pre_header
    _
  $region3: #{m3fm_forward.16} parent=0 // loop_header
    %s22 = sphi 0, %s26
    %p23 = scmp.ge.s32.totalorder %s22, 6
    %s29 = sphi 0, %s41
    %s30 = sphi 0, %s37
    %s31 = sphi 0, %s29
    %s32 = sphi 0, %s30
    %s33 = sphi 0, %s31
    %s34 = sphi 0, %s32
    %s44 = sphi 0, %s46
    %s47 = sphi 0, %s44
    %s48 = sphi 0, %s47
    %s64 = sphi 0, %s48
    %s70 = sphi 0, %s72
    %s73 = sphi 0, %s70
    %s74 = sphi 0, %s73
    %s90 = sphi 0, %s74
    %s96 = sphi 0, %s98
    %s99 = sphi 0, %s96
    %s100 = sphi 0, %s99
    %s116 = sphi 0, %s100
    %s122 = sphi 0, %s124
    %s125 = sphi 0, %s122
    %s126 = sphi 0, %s125
    %s142 = sphi 0, %s126
    %s148 = sphi 0, %s150
    %s151 = sphi 0, %s148
    %s152 = sphi 0, %s151
    %s168 = sphi 0, %s152
    %s174 = sphi 0, %s176
    %s177 = sphi 0, %s174
    %s178 = sphi 0, %s177
    %s194 = sphi 0, %s178
    %s200 = sphi 0, %s202
    %s203 = sphi 0, %s200
    %s204 = sphi 0, %s203
    %s220 = sphi 0, %s204
    %s226 = sphi 0, %s228
    %s229 = sphi 0, %s226
    %s230 = sphi 0, %s229
    %s246 = sphi 0, %s230
    %s252 = sphi 0, %s254
    %s255 = sphi 0, %s252
    %s256 = sphi 0, %s255
    %s272 = sphi 0, %s256
    %s278 = sphi 0, %s280
    %s281 = sphi 0, %s278
    %s282 = sphi 0, %s281
    %s298 = sphi 0, %s282
    %s304 = sphi 0, %s306
    %s307 = sphi 0, %s304
    %s308 = sphi 0, %s307
    %s324 = sphi 0, %s308
    %s330 = sphi 0, %s332
    %s333 = sphi 0, %s330
    %s334 = sphi 0, %s333
    %s350 = sphi 0, %s334
    %s356 = sphi 0, %s358
    %s359 = sphi 0, %s356
    %s360 = sphi 0, %s359
    %s376 = sphi 0, %s360
    %s382 = sphi 0, %s384
    %s385 = sphi 0, %s382
    %s386 = sphi 0, %s385
    %s402 = sphi 0, %s386
    %s406 = sphi 0, %s406
    %s408 = sphi 0, %s406
    %s409 = sphi 0, %s408
    %s423 = sphi 0, %s409
    %s427 = sphi 0, %s427
    %s429 = sphi 0, %s427
    %s430 = sphi 0, %s429
    %s444 = sphi 0, %s430
    %s450 = sphi 0, %s452
    %s453 = sphi 0, %s450
    %s454 = sphi 0, %s453
    %s470 = sphi 0, %s454
  $region4: #{m3fm_forward.16} parent=0 // loop_header_branch
    %25 = sbr.rel (%p23) target = $region8
  $region5: #{m3fm_forward.16} parent=0 // loop_body
    %s27 = ssub.s32 %s22, 1
    %s28 = ssub.s32 %s22, 2
    %s35 = sadd.s32 1, %s30
    %p36 = scmp.ge.s32.totalorder %s35, 2
    %s37 = scalar_select %p36, 0, %s35
    %s38 = sadd.s32 1, %s29
    %s39 = scalar_select %p36, %s38, %s29
    %p40 = scmp.ge.s32.totalorder %s39, 2
    %s41 = scalar_select %p40, 0, %s39
    %s42 = ssub.s32 %s29, %s41
    %p43 = scmp.eq.s32.totalorder %s42, 0
    %s45 = sadd.s32 %s44, 1
    %s46 = scalar_select %p43, %s44, %s45
    %p49 = pneg %p43
    %p50 = scmp.eq.s32.totalorder %s22, 3
    %p51 = por %p49, %p50
    %p52 = scmp.ne.s32.totalorder %s44, %s47
    %p53 = scmp.eq.s32.totalorder %s22, 0
    %p54 = por %p52, %p53
    %p55 = scmp.ne.s32.totalorder %s44, %s47
    %p56 = scmp.eq.s32.totalorder %s27, 3
    %p57 = por %p55, %p56
    %p58 = scmp.ne.s32.totalorder %s47, %s48
    %p59 = scmp.eq.s32.totalorder %s27, 0
    %p60 = por %p58, %p59
    %p61 = scmp.ne.s32.totalorder %s47, %s48
    %p62 = scmp.eq.s32.totalorder %s28, 3
    %p63 = por %p61, %p62
    %p65 = scmp.ne.s32.totalorder %s48, %s64
    %p66 = scmp.eq.s32.totalorder %s28, 0
    %p67 = por %p65, %p66
    %s68 = ssub.s32 %s29, %s41
    %p69 = scmp.eq.s32.totalorder %s68, 0
    %s71 = sadd.s32 %s70, 1
    %s72 = scalar_select %p69, %s70, %s71
    %p75 = pneg %p69
    %p76 = scmp.eq.s32.totalorder %s22, 3
    %p77 = por %p75, %p76
    %p78 = scmp.ne.s32.totalorder %s70, %s73
    %p79 = scmp.eq.s32.totalorder %s22, 0
    %p80 = por %p78, %p79
    %p81 = scmp.ne.s32.totalorder %s70, %s73
    %p82 = scmp.eq.s32.totalorder %s27, 3
    %p83 = por %p81, %p82
    %p84 = scmp.ne.s32.totalorder %s73, %s74
    %p85 = scmp.eq.s32.totalorder %s27, 0
    %p86 = por %p84, %p85
    %p87 = scmp.ne.s32.totalorder %s73, %s74
    %p88 = scmp.eq.s32.totalorder %s28, 3
    %p89 = por %p87, %p88
    %p91 = scmp.ne.s32.totalorder %s74, %s90
    %p92 = scmp.eq.s32.totalorder %s28, 0
    %p93 = por %p91, %p92
    %s94 = ssub.s32 %s30, %s37
    %p95 = scmp.eq.s32.totalorder %s94, 0
    %s97 = sadd.s32 %s96, 1
    %s98 = scalar_select %p95, %s96, %s97
    %p101 = pneg %p95
    %p102 = scmp.eq.s32.totalorder %s22, 3
    %p103 = por %p101, %p102
    %p104 = scmp.ne.s32.totalorder %s96, %s99
    %p105 = scmp.eq.s32.totalorder %s22, 0
    %p106 = por %p104, %p105
    %p107 = scmp.ne.s32.totalorder %s96, %s99
    %p108 = scmp.eq.s32.totalorder %s27, 3
    %p109 = por %p107, %p108
    %p110 = scmp.ne.s32.totalorder %s99, %s100
    %p111 = scmp.eq.s32.totalorder %s27, 0
    %p112 = por %p110, %p111
    %p113 = scmp.ne.s32.totalorder %s99, %s100
    %p114 = scmp.eq.s32.totalorder %s28, 3
    %p115 = por %p113, %p114
    %p117 = scmp.ne.s32.totalorder %s100, %s116
    %p118 = scmp.eq.s32.totalorder %s28, 0
    %p119 = por %p117, %p118
    %s120 = ssub.s32 %s30, %s37
    %p121 = scmp.eq.s32.totalorder %s120, 0
    %s123 = sadd.s32 %s122, 1
    %s124 = scalar_select %p121, %s122, %s123
    %p127 = pneg %p121
    %p128 = scmp.eq.s32.totalorder %s22, 3
    %p129 = por %p127, %p128
    %p130 = scmp.ne.s32.totalorder %s122, %s125
    %p131 = scmp.eq.s32.totalorder %s22, 0
    %p132 = por %p130, %p131
    %p133 = scmp.ne.s32.totalorder %s122, %s125
    %p134 = scmp.eq.s32.totalorder %s27, 3
    %p135 = por %p133, %p134
    %p136 = scmp.ne.s32.totalorder %s125, %s126
    %p137 = scmp.eq.s32.totalorder %s27, 0
    %p138 = por %p136, %p137
    %p139 = scmp.ne.s32.totalorder %s125, %s126
    %p140 = scmp.eq.s32.totalorder %s28, 3
    %p141 = por %p139, %p140
    %p143 = scmp.ne.s32.totalorder %s126, %s142
    %p144 = scmp.eq.s32.totalorder %s28, 0
    %p145 = por %p143, %p144
    %s146 = ssub.s32 %s30, %s37
    %p147 = scmp.eq.s32.totalorder %s146, 0
    %s149 = sadd.s32 %s148, 1
    %s150 = scalar_select %p147, %s148, %s149
    %p153 = pneg %p147
    %p154 = scmp.eq.s32.totalorder %s22, 3
    %p155 = por %p153, %p154
    %p156 = scmp.ne.s32.totalorder %s148, %s151
    %p157 = scmp.eq.s32.totalorder %s22, 0
    %p158 = por %p156, %p157
    %p159 = scmp.ne.s32.totalorder %s148, %s151
    %p160 = scmp.eq.s32.totalorder %s27, 3
    %p161 = por %p159, %p160
    %p162 = scmp.ne.s32.totalorder %s151, %s152
    %p163 = scmp.eq.s32.totalorder %s27, 0
    %p164 = por %p162, %p163
    %p165 = scmp.ne.s32.totalorder %s151, %s152
    %p166 = scmp.eq.s32.totalorder %s28, 3
    %p167 = por %p165, %p166
    %p169 = scmp.ne.s32.totalorder %s152, %s168
    %p170 = scmp.eq.s32.totalorder %s28, 0
    %p171 = por %p169, %p170
    %s172 = ssub.s32 %s30, %s37
    %p173 = scmp.eq.s32.totalorder %s172, 0
    %s175 = sadd.s32 %s174, 1
    %s176 = scalar_select %p173, %s174, %s175
    %p179 = pneg %p173
    %p180 = scmp.eq.s32.totalorder %s22, 3
    %p181 = por %p179, %p180
    %p182 = scmp.ne.s32.totalorder %s174, %s177
    %p183 = scmp.eq.s32.totalorder %s22, 0
    %p184 = por %p182, %p183
    %p185 = scmp.ne.s32.totalorder %s174, %s177
    %p186 = scmp.eq.s32.totalorder %s27, 3
    %p187 = por %p185, %p186
    %p188 = scmp.ne.s32.totalorder %s177, %s178
    %p189 = scmp.eq.s32.totalorder %s27, 0
    %p190 = por %p188, %p189
    %p191 = scmp.ne.s32.totalorder %s177, %s178
    %p192 = scmp.eq.s32.totalorder %s28, 3
    %p193 = por %p191, %p192
    %p195 = scmp.ne.s32.totalorder %s178, %s194
    %p196 = scmp.eq.s32.totalorder %s28, 0
    %p197 = por %p195, %p196
    %s198 = ssub.s32 %s30, %s37
    %p199 = scmp.eq.s32.totalorder %s198, 0
    %s201 = sadd.s32 %s200, 1
    %s202 = scalar_select %p199, %s200, %s201
    %p205 = pneg %p199
    %p206 = scmp.eq.s32.totalorder %s22, 3
    %p207 = por %p205, %p206
    %p208 = scmp.ne.s32.totalorder %s200, %s203
    %p209 = scmp.eq.s32.totalorder %s22, 0
    %p210 = por %p208, %p209
    %p211 = scmp.ne.s32.totalorder %s200, %s203
    %p212 = scmp.eq.s32.totalorder %s27, 3
    %p213 = por %p211, %p212
    %p214 = scmp.ne.s32.totalorder %s203, %s204
    %p215 = scmp.eq.s32.totalorder %s27, 0
    %p216 = por %p214, %p215
    %p217 = scmp.ne.s32.totalorder %s203, %s204
    %p218 = scmp.eq.s32.totalorder %s28, 3
    %p219 = por %p217, %p218
    %p221 = scmp.ne.s32.totalorder %s204, %s220
    %p222 = scmp.eq.s32.totalorder %s28, 0
    %p223 = por %p221, %p222
    %s224 = ssub.s32 %s30, %s37
    %p225 = scmp.eq.s32.totalorder %s224, 0
    %s227 = sadd.s32 %s226, 1
    %s228 = scalar_select %p225, %s226, %s227
    %p231 = pneg %p225
    %p232 = scmp.eq.s32.totalorder %s22, 3
    %p233 = por %p231, %p232
    %p234 = scmp.ne.s32.totalorder %s226, %s229
    %p235 = scmp.eq.s32.totalorder %s22, 0
    %p236 = por %p234, %p235
    %p237 = scmp.ne.s32.totalorder %s226, %s229
    %p238 = scmp.eq.s32.totalorder %s27, 3
    %p239 = por %p237, %p238
    %p240 = scmp.ne.s32.totalorder %s229, %s230
    %p241 = scmp.eq.s32.totalorder %s27, 0
    %p242 = por %p240, %p241
    %p243 = scmp.ne.s32.totalorder %s229, %s230
    %p244 = scmp.eq.s32.totalorder %s28, 3
    %p245 = por %p243, %p244
    %p247 = scmp.ne.s32.totalorder %s230, %s246
    %p248 = scmp.eq.s32.totalorder %s28, 0
    %p249 = por %p247, %p248
    %s250 = ssub.s32 %s30, %s37
    %p251 = scmp.eq.s32.totalorder %s250, 0
    %s253 = sadd.s32 %s252, 1
    %s254 = scalar_select %p251, %s252, %s253
    %p257 = pneg %p251
    %p258 = scmp.eq.s32.totalorder %s22, 3
    %p259 = por %p257, %p258
    %p260 = scmp.ne.s32.totalorder %s252, %s255
    %p261 = scmp.eq.s32.totalorder %s22, 0
    %p262 = por %p260, %p261
    %p263 = scmp.ne.s32.totalorder %s252, %s255
    %p264 = scmp.eq.s32.totalorder %s27, 3
    %p265 = por %p263, %p264
    %p266 = scmp.ne.s32.totalorder %s255, %s256
    %p267 = scmp.eq.s32.totalorder %s27, 0
    %p268 = por %p266, %p267
    %p269 = scmp.ne.s32.totalorder %s255, %s256
    %p270 = scmp.eq.s32.totalorder %s28, 3
    %p271 = por %p269, %p270
    %p273 = scmp.ne.s32.totalorder %s256, %s272
    %p274 = scmp.eq.s32.totalorder %s28, 0
    %p275 = por %p273, %p274
    %s276 = ssub.s32 %s30, %s37
    %p277 = scmp.eq.s32.totalorder %s276, 0
    %s279 = sadd.s32 %s278, 1
    %s280 = scalar_select %p277, %s278, %s279
    %p283 = pneg %p277
    %p284 = scmp.eq.s32.totalorder %s22, 3
    %p285 = por %p283, %p284
    %p286 = scmp.ne.s32.totalorder %s278, %s281
    %p287 = scmp.eq.s32.totalorder %s22, 0
    %p288 = por %p286, %p287
    %p289 = scmp.ne.s32.totalorder %s278, %s281
    %p290 = scmp.eq.s32.totalorder %s27, 3
    %p291 = por %p289, %p290
    %p292 = scmp.ne.s32.totalorder %s281, %s282
    %p293 = scmp.eq.s32.totalorder %s27, 0
    %p294 = por %p292, %p293
    %p295 = scmp.ne.s32.totalorder %s281, %s282
    %p296 = scmp.eq.s32.totalorder %s28, 3
    %p297 = por %p295, %p296
    %p299 = scmp.ne.s32.totalorder %s282, %s298
    %p300 = scmp.eq.s32.totalorder %s28, 0
    %p301 = por %p299, %p300
    %s302 = ssub.s32 %s30, %s37
    %p303 = scmp.eq.s32.totalorder %s302, 0
    %s305 = sadd.s32 %s304, 1
    %s306 = scalar_select %p303, %s304, %s305
    %p309 = pneg %p303
    %p310 = scmp.eq.s32.totalorder %s22, 3
    %p311 = por %p309, %p310
    %p312 = scmp.ne.s32.totalorder %s304, %s307
    %p313 = scmp.eq.s32.totalorder %s22, 0
    %p314 = por %p312, %p313
    %p315 = scmp.ne.s32.totalorder %s304, %s307
    %p316 = scmp.eq.s32.totalorder %s27, 3
    %p317 = por %p315, %p316
    %p318 = scmp.ne.s32.totalorder %s307, %s308
    %p319 = scmp.eq.s32.totalorder %s27, 0
    %p320 = por %p318, %p319
    %p321 = scmp.ne.s32.totalorder %s307, %s308
    %p322 = scmp.eq.s32.totalorder %s28, 3
    %p323 = por %p321, %p322
    %p325 = scmp.ne.s32.totalorder %s308, %s324
    %p326 = scmp.eq.s32.totalorder %s28, 0
    %p327 = por %p325, %p326
    %s328 = ssub.s32 %s30, %s37
    %p329 = scmp.eq.s32.totalorder %s328, 0
    %s331 = sadd.s32 %s330, 1
    %s332 = scalar_select %p329, %s330, %s331
    %p335 = pneg %p329
    %p336 = scmp.eq.s32.totalorder %s22, 3
    %p337 = por %p335, %p336
    %p338 = scmp.ne.s32.totalorder %s330, %s333
    %p339 = scmp.eq.s32.totalorder %s22, 0
    %p340 = por %p338, %p339
    %p341 = scmp.ne.s32.totalorder %s330, %s333
    %p342 = scmp.eq.s32.totalorder %s27, 3
    %p343 = por %p341, %p342
    %p344 = scmp.ne.s32.totalorder %s333, %s334
    %p345 = scmp.eq.s32.totalorder %s27, 0
    %p346 = por %p344, %p345
    %p347 = scmp.ne.s32.totalorder %s333, %s334
    %p348 = scmp.eq.s32.totalorder %s28, 3
    %p349 = por %p347, %p348
    %p351 = scmp.ne.s32.totalorder %s334, %s350
    %p352 = scmp.eq.s32.totalorder %s28, 0
    %p353 = por %p351, %p352
    %s354 = ssub.s32 %s30, %s37
    %p355 = scmp.eq.s32.totalorder %s354, 0
    %s357 = sadd.s32 %s356, 1
    %s358 = scalar_select %p355, %s356, %s357
    %p361 = pneg %p355
    %p362 = scmp.eq.s32.totalorder %s22, 3
    %p363 = por %p361, %p362
    %p364 = scmp.ne.s32.totalorder %s356, %s359
    %p365 = scmp.eq.s32.totalorder %s22, 0
    %p366 = por %p364, %p365
    %p367 = scmp.ne.s32.totalorder %s356, %s359
    %p368 = scmp.eq.s32.totalorder %s27, 3
    %p369 = por %p367, %p368
    %p370 = scmp.ne.s32.totalorder %s359, %s360
    %p371 = scmp.eq.s32.totalorder %s27, 0
    %p372 = por %p370, %p371
    %p373 = scmp.ne.s32.totalorder %s359, %s360
    %p374 = scmp.eq.s32.totalorder %s28, 3
    %p375 = por %p373, %p374
    %p377 = scmp.ne.s32.totalorder %s360, %s376
    %p378 = scmp.eq.s32.totalorder %s28, 0
    %p379 = por %p377, %p378
    %s380 = ssub.s32 %s30, %s37
    %p381 = scmp.eq.s32.totalorder %s380, 0
    %s383 = sadd.s32 %s382, 1
    %s384 = scalar_select %p381, %s382, %s383
    %p387 = pneg %p381
    %p388 = scmp.eq.s32.totalorder %s22, 3
    %p389 = por %p387, %p388
    %p390 = scmp.ne.s32.totalorder %s382, %s385
    %p391 = scmp.eq.s32.totalorder %s22, 0
    %p392 = por %p390, %p391
    %p393 = scmp.ne.s32.totalorder %s382, %s385
    %p394 = scmp.eq.s32.totalorder %s27, 3
    %p395 = por %p393, %p394
    %p396 = scmp.ne.s32.totalorder %s385, %s386
    %p397 = scmp.eq.s32.totalorder %s27, 0
    %p398 = por %p396, %p397
    %p399 = scmp.ne.s32.totalorder %s385, %s386
    %p400 = scmp.eq.s32.totalorder %s28, 3
    %p401 = por %p399, %p400
    %p403 = scmp.ne.s32.totalorder %s386, %s402
    %p404 = scmp.eq.s32.totalorder %s28, 0
    %p405 = por %p403, %p404
    %s407 = sadd.s32 %s406, 1
    %p410 = scmp.eq.s32.totalorder %s22, 3
    %p411 = scmp.ne.s32.totalorder %s406, %s408
    %p412 = scmp.eq.s32.totalorder %s22, 0
    %p413 = por %p411, %p412
    %p414 = scmp.ne.s32.totalorder %s406, %s408
    %p415 = scmp.eq.s32.totalorder %s27, 3
    %p416 = por %p414, %p415
    %p417 = scmp.ne.s32.totalorder %s408, %s409
    %p418 = scmp.eq.s32.totalorder %s27, 0
    %p419 = por %p417, %p418
    %p420 = scmp.ne.s32.totalorder %s408, %s409
    %p421 = scmp.eq.s32.totalorder %s28, 3
    %p422 = por %p420, %p421
    %p424 = scmp.ne.s32.totalorder %s409, %s423
    %p425 = scmp.eq.s32.totalorder %s28, 0
    %p426 = por %p424, %p425
    %s428 = sadd.s32 %s427, 1
    %p431 = scmp.eq.s32.totalorder %s22, 3
    %p432 = scmp.ne.s32.totalorder %s427, %s429
    %p433 = scmp.eq.s32.totalorder %s22, 0
    %p434 = por %p432, %p433
    %p435 = scmp.ne.s32.totalorder %s427, %s429
    %p436 = scmp.eq.s32.totalorder %s27, 3
    %p437 = por %p435, %p436
    %p438 = scmp.ne.s32.totalorder %s429, %s430
    %p439 = scmp.eq.s32.totalorder %s27, 0
    %p440 = por %p438, %p439
    %p441 = scmp.ne.s32.totalorder %s429, %s430
    %p442 = scmp.eq.s32.totalorder %s28, 3
    %p443 = por %p441, %p442
    %p445 = scmp.ne.s32.totalorder %s430, %s444
    %p446 = scmp.eq.s32.totalorder %s28, 0
    %p447 = por %p445, %p446
    %s448 = ssub.s32 %s29, %s41
    %p449 = scmp.eq.s32.totalorder %s448, 0
    %s451 = sadd.s32 %s450, 1
    %s452 = scalar_select %p449, %s450, %s451
    %p455 = pneg %p449
    %p456 = scmp.eq.s32.totalorder %s22, 3
    %p457 = por %p455, %p456
    %p458 = scmp.ne.s32.totalorder %s450, %s453
    %p459 = scmp.eq.s32.totalorder %s22, 0
    %p460 = por %p458, %p459
    %p461 = scmp.ne.s32.totalorder %s450, %s453
    %p462 = scmp.eq.s32.totalorder %s27, 3
    %p463 = por %p461, %p462
    %p464 = scmp.ne.s32.totalorder %s453, %s454
    %p465 = scmp.eq.s32.totalorder %s27, 0
    %p466 = por %p464, %p465
    %p467 = scmp.ne.s32.totalorder %s453, %s454
    %p468 = scmp.eq.s32.totalorder %s28, 3
    %p469 = por %p467, %p468
    %p471 = scmp.ne.s32.totalorder %s454, %s470
    %p472 = scmp.eq.s32.totalorder %s28, 0
    %p473 = por %p471, %p472
    %p474 = scmp.le.s32.totalorder 1, %s22
    %p475 = scmp.lt.s32.totalorder %s22, 5
    %p476 = pnand %p474, %p475
    %p477 = pneg %p476
    // Predicated region
    $region9: #{m3fm_forward.16} parent=5 // pred_check
      _
    $region10: #{m3fm_forward.16} parent=5 // pred_check_branch
      %479 = sbr.rel (%p476) target = $region12
    $region11: #{m3fm_forward.16} parent=5 // pred_region
      %s480 = ssub.s32 %s22, 1
      // Predicated region
      $region13: #{m3fm_forward.16} parent=11 // pred_check
        %p481 = pneg %p419
      $region14: #{m3fm_forward.16} parent=11 // pred_check_branch
        %483 = sbr.rel (%p481) target = $region16
      $region15: #{m3fm_forward.16} parent=11 // pred_region
        _
      $region16: #{m3fm_forward.16} parent=11 // pred_fallthru
        _
      // Predicated region
      $region17: #{m3fm_forward.16} parent=11 // pred_check
        %p484 = pneg %p440
      $region18: #{m3fm_forward.16} parent=11 // pred_check_branch
        %486 = sbr.rel (%p484) target = $region20
      $region19: #{m3fm_forward.16} parent=11 // pred_region
        _
      $region20: #{m3fm_forward.16} parent=11 // pred_fallthru
        _
    $region12: #{m3fm_forward.16} parent=5 // pred_fallthru
      _
    %p487 = scmp.lt.s32.totalorder %s22, 4
    // Predicated region
    $region21: #{m3fm_forward.16} parent=5 // pred_check
      %p488 = pneg %p487
    $region22: #{m3fm_forward.16} parent=5 // pred_check_branch
      %490 = sbr.rel (%p488) target = $region24
    $region23: #{m3fm_forward.16} parent=5 // pred_region
      // Predicated region
      $region25: #{m3fm_forward.16} parent=23 // pred_check
        %p491 = pneg %p54
      $region26: #{m3fm_forward.16} parent=23 // pred_check_branch
        %493 = sbr.rel (%p491) target = $region28
      $region27: #{m3fm_forward.16} parent=23 // pred_region
        %p494 = scmp.lt.s32.totalorder %s29, 1
        %s495 = scalar_select %p494, %s29, 1
        %s496 = smul.addr %s495, 3
        %s497 = smul.addr %s496, 8
        %s498 = scalar_lea.vmem %s0, %s497
      $region28: #{m3fm_forward.16} parent=23 // pred_fallthru
        _
      // Predicated region
      $region29: #{m3fm_forward.16} parent=23 // pred_check
        %p499 = pneg %p80
      $region30: #{m3fm_forward.16} parent=23 // pred_check_branch
        %501 = sbr.rel (%p499) target = $region32
      $region31: #{m3fm_forward.16} parent=23 // pred_region
        %p502 = scmp.lt.s32.totalorder %s29, 1
        %s503 = scalar_select %p502, %s29, 1
        %s504 = scalar_lea.vmem %s1, %s503
      $region32: #{m3fm_forward.16} parent=23 // pred_fallthru
        _
      // Predicated region
      $region33: #{m3fm_forward.16} parent=23 // pred_check
        %p505 = pneg %p106
      $region34: #{m3fm_forward.16} parent=23 // pred_check_branch
        %507 = sbr.rel (%p505) target = $region36
      $region35: #{m3fm_forward.16} parent=23 // pred_region
        %p508 = scmp.lt.s32.totalorder %s30, 1
        %s509 = scalar_select %p508, %s30, 1
        %s510 = scalar_lea.vmem %s2, %s509
      $region36: #{m3fm_forward.16} parent=23 // pred_fallthru
        _
      // Predicated region
      $region37: #{m3fm_forward.16} parent=23 // pred_check
        %p511 = pneg %p132
      $region38: #{m3fm_forward.16} parent=23 // pred_check_branch
        %513 = sbr.rel (%p511) target = $region40
      $region39: #{m3fm_forward.16} parent=23 // pred_region
        %p514 = scmp.lt.s32.totalorder %s30, 1
        %s515 = scalar_select %p514, %s30, 1
        %s516 = scalar_lea.vmem %s3, %s515
      $region40: #{m3fm_forward.16} parent=23 // pred_fallthru
        _
      // Predicated region
      $region41: #{m3fm_forward.16} parent=23 // pred_check
        %p517 = pneg %p158
      $region42: #{m3fm_forward.16} parent=23 // pred_check_branch
        %519 = sbr.rel (%p517) target = $region44
      $region43: #{m3fm_forward.16} parent=23 // pred_region
        %p520 = scmp.lt.s32.totalorder %s30, 1
        %s521 = scalar_select %p520, %s30, 1
        %s522 = smul.addr %s521, 4
        %s523 = smul.addr %s522, 4
        %s524 = scalar_lea.vmem %s4, %s523
      $region44: #{m3fm_forward.16} parent=23 // pred_fallthru
        _
      // Predicated region
      $region45: #{m3fm_forward.16} parent=23 // pred_check
        %p525 = pneg %p184
      $region46: #{m3fm_forward.16} parent=23 // pred_check_branch
        %527 = sbr.rel (%p525) target = $region48
      $region47: #{m3fm_forward.16} parent=23 // pred_region
        %p528 = scmp.lt.s32.totalorder %s30, 1
        %s529 = scalar_select %p528, %s30, 1
        %s530 = scalar_lea.vmem %s5, %s529
      $region48: #{m3fm_forward.16} parent=23 // pred_fallthru
        _
      // Predicated region
      $region49: #{m3fm_forward.16} parent=23 // pred_check
        %p531 = pneg %p210
      $region50: #{m3fm_forward.16} parent=23 // pred_check_branch
        %533 = sbr.rel (%p531) target = $region52
      $region51: #{m3fm_forward.16} parent=23 // pred_region
        %p534 = scmp.lt.s32.totalorder %s30, 1
        %s535 = scalar_select %p534, %s30, 1
        %s536 = smul.addr %s535, 4
        %s537 = smul.addr %s536, 4
        %s538 = scalar_lea.vmem %s6, %s537
      $region52: #{m3fm_forward.16} parent=23 // pred_fallthru
        _
      // Predicated region
      $region53: #{m3fm_forward.16} parent=23 // pred_check
        %p539 = pneg %p236
      $region54: #{m3fm_forward.16} parent=23 // pred_check_branch
        %541 = sbr.rel (%p539) target = $region56
      $region55: #{m3fm_forward.16} parent=23 // pred_region
        %p542 = scmp.lt.s32.totalorder %s30, 1
        %s543 = scalar_select %p542, %s30, 1
        %s544 = scalar_lea.vmem %s7, %s543
      $region56: #{m3fm_forward.16} parent=23 // pred_fallthru
        _
      // Predicated region
      $region57: #{m3fm_forward.16} parent=23 // pred_check
        %p545 = pneg %p262
      $region58: #{m3fm_forward.16} parent=23 // pred_check_branch
        %547 = sbr.rel (%p545) target = $region60
      $region59: #{m3fm_forward.16} parent=23 // pred_region
        %p548 = scmp.lt.s32.totalorder %s30, 1
        %s549 = scalar_select %p548, %s30, 1
        %s550 = scalar_lea.vmem %s8, %s549
      $region60: #{m3fm_forward.16} parent=23 // pred_fallthru
        _
      // Predicated region
      $region61: #{m3fm_forward.16} parent=23 // pred_check
        %p551 = pneg %p288
      $region62: #{m3fm_forward.16} parent=23 // pred_check_branch
        %553 = sbr.rel (%p551) target = $region64
      $region63: #{m3fm_forward.16} parent=23 // pred_region
        %p554 = scmp.lt.s32.totalorder %s30, 1
        %s555 = scalar_select %p554, %s30, 1
        %s556 = scalar_lea.vmem %s9, %s555
      $region64: #{m3fm_forward.16} parent=23 // pred_fallthru
        _
      // Predicated region
      $region65: #{m3fm_forward.16} parent=23 // pred_check
        %p557 = pneg %p314
      $region66: #{m3fm_forward.16} parent=23 // pred_check_branch
        %559 = sbr.rel (%p557) target = $region68
      $region67: #{m3fm_forward.16} parent=23 // pred_region
        %p560 = scmp.lt.s32.totalorder %s30, 1
        %s561 = scalar_select %p560, %s30, 1
        %s562 = smul.addr %s561, 4
        %s563 = smul.addr %s562, 4
        %s564 = scalar_lea.vmem %s10, %s563
      $region68: #{m3fm_forward.16} parent=23 // pred_fallthru
        _
      // Predicated region
      $region69: #{m3fm_forward.16} parent=23 // pred_check
        %p565 = pneg %p340
      $region70: #{m3fm_forward.16} parent=23 // pred_check_branch
        %567 = sbr.rel (%p565) target = $region72
      $region71: #{m3fm_forward.16} parent=23 // pred_region
        %p568 = scmp.lt.s32.totalorder %s30, 1
        %s569 = scalar_select %p568, %s30, 1
        %s570 = scalar_lea.vmem %s11, %s569
      $region72: #{m3fm_forward.16} parent=23 // pred_fallthru
        _
      // Predicated region
      $region73: #{m3fm_forward.16} parent=23 // pred_check
        %p571 = pneg %p366
      $region74: #{m3fm_forward.16} parent=23 // pred_check_branch
        %573 = sbr.rel (%p571) target = $region76
      $region75: #{m3fm_forward.16} parent=23 // pred_region
        %p574 = scmp.lt.s32.totalorder %s30, 1
        %s575 = scalar_select %p574, %s30, 1
        %s576 = smul.addr %s575, 16
        %s577 = smul.addr %s576, 4
        %s578 = scalar_lea.vmem %s12, %s577
      $region76: #{m3fm_forward.16} parent=23 // pred_fallthru
        _
      // Predicated region
      $region77: #{m3fm_forward.16} parent=23 // pred_check
        %p579 = pneg %p392
      $region78: #{m3fm_forward.16} parent=23 // pred_check_branch
        %581 = sbr.rel (%p579) target = $region80
      $region79: #{m3fm_forward.16} parent=23 // pred_region
        %p582 = scmp.lt.s32.totalorder %s30, 1
        %s583 = scalar_select %p582, %s30, 1
        %s584 = scalar_lea.vmem %s13, %s583
      $region80: #{m3fm_forward.16} parent=23 // pred_fallthru
        _
    $region24: #{m3fm_forward.16} parent=5 // pred_fallthru
      _
    %p585 = scmp.le.s32.totalorder 1, %s22
    %p586 = scmp.lt.s32.totalorder %s22, 5
    %p587 = pnand %p585, %p586
    %p588 = pneg %p587
    // Predicated region
    $region81: #{m3fm_forward.16} parent=5 // pred_check
      _
    $region82: #{m3fm_forward.16} parent=5 // pred_check_branch
      %590 = sbr.rel (%p587) target = $region84
    $region83: #{m3fm_forward.16} parent=5 // pred_region
      %s591 = ssub.s32 %s22, 1
      %p592 = scmp.lt.s32.totalorder %s31, 1
      %s593 = scalar_select %p592, %s31, 1
      %s594 = smul.addr %s593, 3
      %s595 = smul.addr %s594, 8
      %s596 = scalar_lea.vmem %s0, %s595
      %p597 = pneg %p60
      %p598 = pneg %p57
      %p599 = scmp.lt.s32.totalorder %s31, 1
      %s600 = scalar_select %p599, %s31, 1
      %s601 = scalar_lea.vmem %s1, %s600
      %p602 = pneg %p86
      %p603 = pneg %p83
      %p604 = scmp.lt.s32.totalorder %s32, 1
      %s605 = scalar_select %p604, %s32, 1
      %s606 = scalar_lea.vmem %s2, %s605
      %p607 = pneg %p112
      %p608 = pneg %p109
      %p609 = scmp.lt.s32.totalorder %s32, 1
      %s610 = scalar_select %p609, %s32, 1
      %s611 = scalar_lea.vmem %s3, %s610
      %p612 = pneg %p138
      %p613 = pneg %p135
      %p614 = scmp.lt.s32.totalorder %s32, 1
      %s615 = scalar_select %p614, %s32, 1
      %s616 = smul.addr %s615, 4
      %s617 = smul.addr %s616, 4
      %s618 = scalar_lea.vmem %s4, %s617
      %p619 = pneg %p164
      %p620 = pneg %p161
      %p621 = scmp.lt.s32.totalorder %s32, 1
      %s622 = scalar_select %p621, %s32, 1
      %s623 = scalar_lea.vmem %s5, %s622
      %p624 = pneg %p190
      %p625 = pneg %p187
      %p626 = scmp.lt.s32.totalorder %s32, 1
      %s627 = scalar_select %p626, %s32, 1
      %s628 = smul.addr %s627, 4
      %s629 = smul.addr %s628, 4
      %s630 = scalar_lea.vmem %s6, %s629
      %p631 = pneg %p216
      %p632 = pneg %p213
      %p633 = scmp.lt.s32.totalorder %s32, 1
      %s634 = scalar_select %p633, %s32, 1
      %s635 = scalar_lea.vmem %s7, %s634
      %p636 = pneg %p242
      %p637 = pneg %p239
      %p638 = scmp.lt.s32.totalorder %s32, 1
      %s639 = scalar_select %p638, %s32, 1
      %s640 = scalar_lea.vmem %s8, %s639
      %p641 = pneg %p268
      %p642 = pneg %p265
      %p643 = scmp.lt.s32.totalorder %s32, 1
      %s644 = scalar_select %p643, %s32, 1
      %s645 = scalar_lea.vmem %s9, %s644
      %p646 = pneg %p294
      %p647 = pneg %p291
      %p648 = scmp.lt.s32.totalorder %s32, 1
      %s649 = scalar_select %p648, %s32, 1
      %s650 = smul.addr %s649, 4
      %s651 = smul.addr %s650, 4
      %s652 = scalar_lea.vmem %s10, %s651
      %p653 = pneg %p320
      %p654 = pneg %p317
      %p655 = scmp.lt.s32.totalorder %s32, 1
      %s656 = scalar_select %p655, %s32, 1
      %s657 = scalar_lea.vmem %s11, %s656
      %p658 = pneg %p346
      %p659 = pneg %p343
      %p660 = scmp.lt.s32.totalorder %s32, 1
      %s661 = scalar_select %p660, %s32, 1
      %s662 = smul.addr %s661, 16
      %s663 = smul.addr %s662, 4
      %s664 = scalar_lea.vmem %s12, %s663
      %p665 = pneg %p372
      %p666 = pneg %p369
      %p667 = scmp.lt.s32.totalorder %s32, 1
      %s668 = scalar_select %p667, %s32, 1
      %s669 = scalar_lea.vmem %s13, %s668
      %p670 = pneg %p398
      %p671 = pneg %p395
      %p672 = pneg %p419
      %p673 = pneg %p416
      %p674 = pneg %p440
      %p675 = pneg %p437
      %p676 = pneg %p466
      %p677 = pneg %p463
      %p678 = scmp.lt.s32.totalorder %s31, 1
      %s679 = scalar_select %p678, %s31, 1
      %s680 = smul.addr %s679, 3
      %s681 = smul.addr %s680, 8
      %s682 = scalar_lea.vmem %s16, %s681
      %p683 = scmp.lt.s32.totalorder %s31, 1
      %s684 = scalar_select %p683, %s31, 1
      %s685 = smul.addr %s684, 3
      %s686 = smul.addr %s685, 8
      %s687 = scalar_lea.vmem %s0, %s686
      %p688 = scmp.lt.s32.totalorder %s31, 1
      %s689 = scalar_select %p688, %s31, 1
      %s690 = scalar_lea.vmem %s1, %s689
      %p691 = scmp.lt.s32.totalorder %s32, 1
      %s692 = scalar_select %p691, %s32, 1
      %s693 = scalar_lea.vmem %s2, %s692
      %p694 = scmp.lt.s32.totalorder %s32, 1
      %s695 = scalar_select %p694, %s32, 1
      %s696 = scalar_lea.vmem %s3, %s695
      %p697 = scmp.lt.s32.totalorder %s32, 1
      %s698 = scalar_select %p697, %s32, 1
      %s699 = smul.addr %s698, 4
      %s700 = smul.addr %s699, 4
      %s701 = scalar_lea.vmem %s4, %s700
      %p702 = scmp.lt.s32.totalorder %s32, 1
      %s703 = scalar_select %p702, %s32, 1
      %s704 = scalar_lea.vmem %s5, %s703
      %p705 = scmp.lt.s32.totalorder %s32, 1
      %s706 = scalar_select %p705, %s32, 1
      %s707 = smul.addr %s706, 4
      %s708 = smul.addr %s707, 4
      %s709 = scalar_lea.vmem %s6, %s708
      %p710 = scmp.lt.s32.totalorder %s32, 1
      %s711 = scalar_select %p710, %s32, 1
      %s712 = scalar_lea.vmem %s7, %s711
      %p713 = scmp.lt.s32.totalorder %s32, 1
      %s714 = scalar_select %p713, %s32, 1
      %s715 = scalar_lea.vmem %s8, %s714
      %p716 = scmp.lt.s32.totalorder %s32, 1
      %s717 = scalar_select %p716, %s32, 1
      %s718 = scalar_lea.vmem %s9, %s717
      %p719 = scmp.lt.s32.totalorder %s32, 1
      %s720 = scalar_select %p719, %s32, 1
      %s721 = smul.addr %s720, 4
      %s722 = smul.addr %s721, 4
      %s723 = scalar_lea.vmem %s10, %s722
      %p724 = scmp.lt.s32.totalorder %s32, 1
      %s725 = scalar_select %p724, %s32, 1
      %s726 = scalar_lea.vmem %s11, %s725
      %p727 = scmp.lt.s32.totalorder %s32, 1
      %s728 = scalar_select %p727, %s32, 1
      %s729 = smul.addr %s728, 16
      %s730 = smul.addr %s729, 4
      %s731 = scalar_lea.vmem %s12, %s730
      %p732 = scmp.lt.s32.totalorder %s32, 1
      %s733 = scalar_select %p732, %s32, 1
      %s734 = scalar_lea.vmem %s13, %s733
      %p735 = scmp.lt.s32.totalorder %s31, 1
      %s736 = scalar_select %p735, %s31, 1
      %s737 = smul.addr %s736, 3
      %s738 = smul.addr %s737, 8
      %s739 = scalar_lea.vmem %s16, %s738
      %p741 = scmp.eq.s32.totalorder %s32, 0
      // Predicated region
      $region85: #{m3fm_forward.16} parent=83 // pred_check
        %p742 = pneg %p741
      $region86: #{m3fm_forward.16} parent=83 // pred_check_branch
        %744 = sbr.rel (%p742) target = $region88
      $region87: #{m3fm_forward.16} parent=83 // pred_region
        %v745 = vld [vmem:[%s687] sm:$0xff]
        %v746 = vld [vmem:[%s687 + $0x8] sm:$0xff]
        %v747 = vld [vmem:[%s687 + $0x10] sm:$0xff]
        %vm748 = vcmask 261120
        %749 = vst.msk [vmem:[%s739] sm:$0xff] %vm748, %v745
        %750 = vst.msk [vmem:[%s739 + $0x8] sm:$0xff] %vm748, %v746
        %751 = vst.msk [vmem:[%s739 + $0x10] sm:$0xff] %vm748, %v747
      $region88: #{m3fm_forward.16} parent=83 // pred_fallthru
        _
      %v752 = vld [vmem:[%s739] sm:$0xff]
      %v753 = vld [vmem:[%s739 + $0x8] sm:$0xff]
      %v754 = vld [vmem:[%s739 + $0x10] sm:$0xff]
      %v755 = vld [vmem:[%s690] sm:$0x1]
      %v756 = vld [vmem:[%s693] sm:$0x1]
      %v757 = vld [vmem:[%s696] sm:$0x1]
      %vm758 = vcmask 261120
      %v759 = vsel %vm758, %v752, 0.0
      %760 = vadd.xlane.f32.xlu0 %v759
      %v761 = vpop.xlane.xlu0 %760
      %v762 = vsel %vm758, %v753, 0.0
      %763 = vadd.xlane.f32.xlu0 %v762
      %v764 = vpop.xlane.xlu0 %763
      %v765 = vsel %vm758, %v754, 0.0
      %766 = vadd.xlane.f32.xlu0 %v765
      %v767 = vpop.xlane.xlu0 %766
      %v768 = vrcp.pop 32.0
      %v769 = vmul.f32 32.0, %v768
      %v770 = vsub.f32 1.0, %v769
      %v771 = vmul.f32 %v768, %v770
      %v772 = vadd.f32 %v768, %v771
      %vm773 = vweird.f32 %v768
      %v774 = vsel %vm773, %v768, %v772
      %v775 = vmul.f32 %v761, %v774
      %v776 = vmul.f32 %v764, %v774
      %v777 = vmul.f32 %v767, %v774
      %v778 = vsub.f32 %v752, %v775
      %v779 = vsub.f32 %v753, %v776
      %v780 = vsub.f32 %v754, %v777
      %v781 = vmul.f32 %v778, %v778
      %v782 = vmul.f32 %v779, %v779
      %v783 = vmul.f32 %v780, %v780
      %v784 = vsel %vm758, %v781, 0.0
      %785 = vadd.xlane.f32.xlu0 %v784
      %v786 = vpop.xlane.xlu0 %785
      %v787 = vsel %vm758, %v782, 0.0
      %788 = vadd.xlane.f32.xlu0 %v787
      %v789 = vpop.xlane.xlu0 %788
      %v790 = vsel %vm758, %v783, 0.0
      %791 = vadd.xlane.f32.xlu0 %v790
      %v792 = vpop.xlane.xlu0 %791
      %v793 = vmul.f32 %v786, %v774
      %v794 = vmul.f32 %v789, %v774
      %v795 = vmul.f32 %v792, %v774
      %v796 = vadd.f32 %v793, 1e-06
      %v797 = vadd.f32 %v794, 1e-06
      %v798 = vadd.f32 %v795, 1e-06
      %v799 = vrsqrt.pop %v796
      %v800 = vmul.f32 %v799, %v796
      %v801 = vmul.f32 %v800, %v799
      %v802 = vmul.f32 0.5, %v801
      %v803 = vsub.f32 1.5, %v802
      %v804 = vmul.f32 %v799, %v803
      %vm805 = vweird.f32 %v796
      %vm806 = vweird.f32 %v799
      %vm807 = vmor %vm805, %vm806
      %v808 = vsel %vm807, %v799, %v804
      %v809 = vrsqrt.pop %v797
      %v810 = vmul.f32 %v809, %v797
      %v811 = vmul.f32 %v810, %v809
      %v812 = vmul.f32 0.5, %v811
      %v813 = vsub.f32 1.5, %v812
      %v814 = vmul.f32 %v809, %v813
      %vm815 = vweird.f32 %v797
      %vm816 = vweird.f32 %v809
      %vm817 = vmor %vm815, %vm816
      %v818 = vsel %vm817, %v809, %v814
      %v819 = vrsqrt.pop %v798
      %v820 = vmul.f32 %v819, %v798
      %v821 = vmul.f32 %v820, %v819
      %v822 = vmul.f32 0.5, %v821
      %v823 = vsub.f32 1.5, %v822
      %v824 = vmul.f32 %v819, %v823
      %vm825 = vweird.f32 %v798
      %vm826 = vweird.f32 %v819
      %vm827 = vmor %vm825, %vm826
      %v828 = vsel %vm827, %v819, %v824
      %v829 = vmul.f32 %v778, %v808
      %v830 = vmul.f32 %v779, %v818
      %v831 = vmul.f32 %v780, %v828
      %v833 = vperm.slane %v756, 0
      %v835 = vmul.f32 %v829, %v833
      %v836 = vmul.f32 %v830, %v833
      %v837 = vmul.f32 %v831, %v833
      %v839 = vperm.slane %v757, 0
      %v841 = vadd.f32 %v835, %v839
      %v842 = vadd.f32 %v836, %v839
      %v843 = vadd.f32 %v837, %v839
      %v844 = vpack.c.bf16 %v842, %v841
      %v845 = vpack.c.bf16 %v843, %v843
      %v846 = vld [vmem:[%s701] sm:$0xf]
      %v847 = vld [vmem:[%s701 + $0x4] sm:$0xf]
      %v848 = vld [vmem:[%s701 + $0x8] sm:$0xf]
      %v849 = vld [vmem:[%s701 + $0xc] sm:$0xf]
      %v850 = vld [vmem:[%s704] sm:$0x1]
      %v852 = vperm.slane %v850, 0
      %v858 = vunpack.c.l.b16 %v846
      %v859 = vunpack.c.l.b16 %v847
      %v860 = vunpack.c.l.b16 %v848
      %v861 = vunpack.c.l.b16 %v849
      %v862 = vpack.c.b16 %v859, %v858
      %v863 = vpack.c.b16 %v861, %v860
      %v867 = vsel %vm758, %v844, 0
      %v870 = vsel %vm758, %v845, 0
      %872 = vmatpush.bf16.msra.mxu0 0
      %873 = vmatpush.bf16.msra.mxu0 0
      %874 = vmatpush.bf16.msra.mxu0 0
      %875 = vmatpush.bf16.msra.mxu0 0
      %876 = vmatpush.bf16.msra.mxu0 0
      %877 = vmatpush.bf16.msra.mxu0 0
      %878 = vmatpush.bf16.msra.mxu0 %v863
      %879 = vmatpush.bf16.msra.mxu0 %v862
      %880 = vmatmul.bf16.gmra.mxu0 %v867
      %v881 = vpop.f32.mrf.mxu0
      %v882 = vadd.f32 %v852, %v881
      %v883 = vpop.f32.mrf.mxu0
      %v884 = vadd.f32 %v852, %v883
      %885 = vmatmul.bf16.gmra.mxu0 %v870
      %v886 = vpop.f32.mrf.mxu0
      %v887 = vadd.f32 %v852, %v886
      %v888 = vpop.f32.mrf.mxu0
      %889 = vdwg.mxu0
      %v890 = vpack.c.bf16 %v884, %v882
      %v891 = vpack.c.bf16 %v887, %v887
      %894 = vrot.lane.b32.xlu0 %v890, 96
      %v895 = vpop.permute.xlu0 %894
      %896 = vrot.lane.b32.xlu0 %v891, 96
      %v897 = vpop.permute.xlu0 %896
      %vm898 = vcmask 64512
      %v900 = vsel %vm898, %v890, 0
      %v903 = vsel %vm898, %v891, 0
      %v906 = vsel %vm898, %v895, 0
      %v909 = vsel %vm898, %v897, 0
      %911 = vmatpush.bf16.xpose.msra.mxu0 0
      %912 = vmatpush.bf16.xpose.msra.mxu0 0
      %913 = vmatpush.bf16.xpose.msra.mxu0 0
      %914 = vmatpush.bf16.xpose.msra.mxu0 0
      %915 = vmatpush.bf16.xpose.msra.mxu0 0
      %916 = vmatpush.bf16.xpose.msra.mxu0 0
      %917 = vmatpush.bf16.xpose.msra.mxu0 %v909
      %918 = vmatpush.bf16.xpose.msra.mxu0 %v906
      %919 = vmatmul.bf16.gmra.mxu0 %v900
      %v920 = vpop.f32.mrf.mxu0
      %v921 = vadd.f32 0.0, %v920
      %v922 = vpop.f32.mrf.mxu0
      %v923 = vadd.f32 0.0, %v922
      %924 = vmatmul.bf16.gmra.mxu0 %v903
      %v925 = vpop.f32.mrf.mxu0
      %v926 = vadd.f32 0.0, %v925
      %v927 = vpop.f32.mrf.mxu0
      %928 = vdwg.mxu0
      %v929 = vmul.f32 %v921, 0.35355338
      %v930 = vmul.f32 %v923, 0.35355338
      %v931 = vmul.f32 %v926, 0.35355338
      %v933 = vperm.slane %v755, 0
      %v935 = vadd.f32 %v929, %v933
      %v936 = vadd.f32 %v930, %v933
      %v937 = vadd.f32 %v931, %v933
      %vm938 = vcmask 195584
      %v939 = vsel %vm938, %v935, -inf
      %940 = vmax.xlane.f32.xlu0 %v939
      %v941 = vpop.xlane.xlu0 %940
      %v942 = vsel %vm938, %v936, -inf
      %943 = vmax.xlane.f32.xlu0 %v942
      %v944 = vpop.xlane.xlu0 %943
      %v945 = vsel %vm938, %v937, -inf
      %946 = vmax.xlane.f32.xlu0 %v945
      %v947 = vpop.xlane.xlu0 %946
      %v948 = vsub.f32 %v935, %v941
      %v949 = vsub.f32 %v936, %v944
      %v950 = vsub.f32 %v937, %v947
      %v951 = vmul.f32 %v948, 1.442695
      %v952 = vpow.pop %v951
      %v953 = vmul.f32 %v949, 1.442695
      %v954 = vpow.pop %v953
      %v955 = vmul.f32 %v950, 1.442695
      %v956 = vpow.pop %v955
      %v957 = vsel %vm938, %v952, 0.0
      %958 = vadd.xlane.f32.xlu0 %v957
      %v959 = vpop.xlane.xlu0 %958
      %v960 = vsel %vm938, %v954, 0.0
      %961 = vadd.xlane.f32.xlu0 %v960
      %v962 = vpop.xlane.xlu0 %961
      %v963 = vsel %vm938, %v956, 0.0
      %964 = vadd.xlane.f32.xlu0 %v963
      %v965 = vpop.xlane.xlu0 %964
      %v966 = vrcp.pop %v959
      %v967 = vrcp.pop %v962
      %v968 = vrcp.pop %v965
      %v969 = vmul.f32 %v952, %v966
      %v970 = vmul.f32 %v954, %v967
      %v971 = vmul.f32 %v956, %v968
      %v972 = vpack.c.bf16 %v970, %v969
      %v973 = vpack.c.bf16 %v971, %v971
      %974 = vrot.lane.b32.xlu0 %v890, 64
      %v975 = vpop.permute.xlu0 %974
      %976 = vrot.lane.b32.xlu0 %v891, 64
      %v977 = vpop.permute.xlu0 %976
      %v980 = vsel %vm938, %v972, 0
      %v983 = vsel %vm938, %v973, 0
      %vm985 = vcmask 1043456
      %v987 = vsel %vm985, %v977, 0
      %989 = vmatpush.bf16.msra.mxu0 0
      %990 = vmatpush.bf16.msra.mxu0 0
      %991 = vmatpush.bf16.msra.mxu0 0
      %992 = vmatpush.bf16.msra.mxu0 0
      %993 = vmatpush.bf16.msra.mxu0 0
      %994 = vmatpush.bf16.msra.mxu0 0
      %995 = vmatpush.bf16.msra.mxu0 %v987
      %996 = vmatpush.bf16.msra.mxu0 %v975
      %997 = vmatmul.bf16.gmra.mxu0 %v980
      %v998 = vpop.f32.mrf.mxu0
      %v999 = vadd.f32 0.0, %v998
      %v1000 = vpop.f32.mrf.mxu0
      %v1001 = vadd.f32 0.0, %v1000
      %1002 = vmatmul.bf16.gmra.mxu0 %v983
      %v1003 = vpop.f32.mrf.mxu0
      %v1004 = vadd.f32 0.0, %v1003
      %v1005 = vpop.f32.mrf.mxu0
      %1006 = vdwg.mxu0
      %1007 = vrot.lane.b32.xlu0 %v890, 120
      %v1008 = vpop.permute.xlu0 %1007
      %1009 = vrot.lane.b32.xlu0 %v891, 120
      %v1010 = vpop.permute.xlu0 %1009
      %1011 = vrot.lane.b32.xlu0 %v890, 88
      %v1012 = vpop.permute.xlu0 %1011
      %1013 = vrot.lane.b32.xlu0 %v891, 88
      %v1014 = vpop.permute.xlu0 %1013
      %v1016 = vsel %vm898, %v1008, 0
      %v1019 = vsel %vm898, %v1010, 0
      %v1022 = vsel %vm898, %v1012, 0
      %v1025 = vsel %vm898, %v1014, 0
      %1027 = vmatpush.bf16.xpose.msra.mxu0 0
      %1028 = vmatpush.bf16.xpose.msra.mxu0 0
      %1029 = vmatpush.bf16.xpose.msra.mxu0 0
      %1030 = vmatpush.bf16.xpose.msra.mxu0 0
      %1031 = vmatpush.bf16.xpose.msra.mxu0 0
      %1032 = vmatpush.bf16.xpose.msra.mxu0 0
      %1033 = vmatpush.bf16.xpose.msra.mxu0 %v1025
      %1034 = vmatpush.bf16.xpose.msra.mxu0 %v1022
      %1035 = vmatmul.bf16.gmra.mxu0 %v1016
      %v1036 = vpop.f32.mrf.mxu0
      %v1037 = vadd.f32 0.0, %v1036
      %v1038 = vpop.f32.mrf.mxu0
      %v1039 = vadd.f32 0.0, %v1038
      %1040 = vmatmul.bf16.gmra.mxu0 %v1019
      %v1041 = vpop.f32.mrf.mxu0
      %v1042 = vadd.f32 0.0, %v1041
      %v1043 = vpop.f32.mrf.mxu0
      %1044 = vdwg.mxu0
      %v1045 = vmul.f32 %v1037, 0.35355338
      %v1046 = vmul.f32 %v1039, 0.35355338
      %v1047 = vmul.f32 %v1042, 0.35355338
      %v1048 = vadd.f32 %v1045, %v933
      %v1049 = vadd.f32 %v1046, %v933
      %v1050 = vadd.f32 %v1047, %v933
      %v1051 = vsel %vm938, %v1048, -inf
      %1052 = vmax.xlane.f32.xlu0 %v1051
      %v1053 = vpop.xlane.xlu0 %1052
      %v1054 = vsel %vm938, %v1049, -inf
      %1055 = vmax.xlane.f32.xlu0 %v1054
      %v1056 = vpop.xlane.xlu0 %1055
      %v1057 = vsel %vm938, %v1050, -inf
      %1058 = vmax.xlane.f32.xlu0 %v1057
      %v1059 = vpop.xlane.xlu0 %1058
      %v1060 = vsub.f32 %v1048, %v1053
      %v1061 = vsub.f32 %v1049, %v1056
      %v1062 = vsub.f32 %v1050, %v1059
      %v1063 = vmul.f32 %v1060, 1.442695
      %v1064 = vpow.pop %v1063
      %v1065 = vmul.f32 %v1061, 1.442695
      %v1066 = vpow.pop %v1065
      %v1067 = vmul.f32 %v1062, 1.442695
      %v1068 = vpow.pop %v1067
      %v1069 = vsel %vm938, %v1064, 0.0
      %1070 = vadd.xlane.f32.xlu0 %v1069
      %v1071 = vpop.xlane.xlu0 %1070
      %v1072 = vsel %vm938, %v1066, 0.0
      %1073 = vadd.xlane.f32.xlu0 %v1072
      %v1074 = vpop.xlane.xlu0 %1073
      %v1075 = vsel %vm938, %v1068, 0.0
      %1076 = vadd.xlane.f32.xlu0 %v1075
      %v1077 = vpop.xlane.xlu0 %1076
      %v1078 = vrcp.pop %v1071
      %v1079 = vrcp.pop %v1074
      %v1080 = vrcp.pop %v1077
      %v1081 = vmul.f32 %v1064, %v1078
      %v1082 = vmul.f32 %v1066, %v1079
      %v1083 = vmul.f32 %v1068, %v1080
      %v1084 = vpack.c.bf16 %v1082, %v1081
      %v1085 = vpack.c.bf16 %v1083, %v1083
      %1086 = vrot.lane.b32.xlu0 %v890, 56
      %v1087 = vpop.permute.xlu0 %1086
      %1088 = vrot.lane.b32.xlu0 %v891, 56
      %v1089 = vpop.permute.xlu0 %1088
      %v1092 = vsel %vm938, %v1084, 0
      %v1095 = vsel %vm938, %v1085, 0
      %v1098 = vsel %vm985, %v1089, 0
      %1100 = vmatpush.bf16.msra.mxu0 0
      %1101 = vmatpush.bf16.msra.mxu0 0
      %1102 = vmatpush.bf16.msra.mxu0 0
      %1103 = vmatpush.bf16.msra.mxu0 0
      %1104 = vmatpush.bf16.msra.mxu0 0
      %1105 = vmatpush.bf16.msra.mxu0 0
      %1106 = vmatpush.bf16.msra.mxu0 %v1098
      %1107 = vmatpush.bf16.msra.mxu0 %v1087
      %1108 = vmatmul.bf16.gmra.mxu0 %v1092
      %v1109 = vpop.f32.mrf.mxu0
      %v1110 = vadd.f32 0.0, %v1109
      %v1111 = vpop.f32.mrf.mxu0
      %v1112 = vadd.f32 0.0, %v1111
      %1113 = vmatmul.bf16.gmra.mxu0 %v1095
      %v1114 = vpop.f32.mrf.mxu0
      %v1115 = vadd.f32 0.0, %v1114
      %v1116 = vpop.f32.mrf.mxu0
      %1117 = vdwg.mxu0
      %1118 = vrot.lane.b32.xlu0 %v890, 112
      %v1119 = vpop.permute.xlu0 %1118
      %1120 = vrot.lane.b32.xlu0 %v891, 112
      %v1121 = vpop.permute.xlu0 %1120
      %1122 = vrot.lane.b32.xlu0 %v890, 80
      %v1123 = vpop.permute.xlu0 %1122
      %1124 = vrot.lane.b32.xlu0 %v891, 80
      %v1125 = vpop.permute.xlu0 %1124
      %v1127 = vsel %vm898, %v1119, 0
      %v1130 = vsel %vm898, %v1121, 0
      %v1133 = vsel %vm898, %v1123, 0
      %v1136 = vsel %vm898, %v1125, 0
      %1138 = vmatpush.bf16.xpose.msra.mxu0 0
      %1139 = vmatpush.bf16.xpose.msra.mxu0 0
      %1140 = vmatpush.bf16.xpose.msra.mxu0 0
      %1141 = vmatpush.bf16.xpose.msra.mxu0 0
      %1142 = vmatpush.bf16.xpose.msra.mxu0 0
      %1143 = vmatpush.bf16.xpose.msra.mxu0 0
      %1144 = vmatpush.bf16.xpose.msra.mxu0 %v1136
      %1145 = vmatpush.bf16.xpose.msra.mxu0 %v1133
      %1146 = vmatmul.bf16.gmra.mxu0 %v1127
      %v1147 = vpop.f32.mrf.mxu0
      %v1148 = vadd.f32 0.0, %v1147
      %v1149 = vpop.f32.mrf.mxu0
      %v1150 = vadd.f32 0.0, %v1149
      %1151 = vmatmul.bf16.gmra.mxu0 %v1130
      %v1152 = vpop.f32.mrf.mxu0
      %v1153 = vadd.f32 0.0, %v1152
      %v1154 = vpop.f32.mrf.mxu0
      %1155 = vdwg.mxu0
      %v1156 = vmul.f32 %v1148, 0.35355338
      %v1157 = vmul.f32 %v1150, 0.35355338
      %v1158 = vmul.f32 %v1153, 0.35355338
      %v1159 = vadd.f32 %v1156, %v933
      %v1160 = vadd.f32 %v1157, %v933
      %v1161 = vadd.f32 %v1158, %v933
      %v1162 = vsel %vm938, %v1159, -inf
      %1163 = vmax.xlane.f32.xlu0 %v1162
      %v1164 = vpop.xlane.xlu0 %1163
      %v1165 = vsel %vm938, %v1160, -inf
      %1166 = vmax.xlane.f32.xlu0 %v1165
      %v1167 = vpop.xlane.xlu0 %1166
      %v1168 = vsel %vm938, %v1161, -inf
      %1169 = vmax.xlane.f32.xlu0 %v1168
      %v1170 = vpop.xlane.xlu0 %1169
      %v1171 = vsub.f32 %v1159, %v1164
      %v1172 = vsub.f32 %v1160, %v1167
      %v1173 = vsub.f32 %v1161, %v1170
      %v1174 = vmul.f32 %v1171, 1.442695
      %v1175 = vpow.pop %v1174
      %v1176 = vmul.f32 %v1172, 1.442695
      %v1177 = vpow.pop %v1176
      %v1178 = vmul.f32 %v1173, 1.442695
      %v1179 = vpow.pop %v1178
      %v1180 = vsel %vm938, %v1175, 0.0
      %1181 = vadd.xlane.f32.xlu0 %v1180
      %v1182 = vpop.xlane.xlu0 %1181
      %v1183 = vsel %vm938, %v1177, 0.0
      %1184 = vadd.xlane.f32.xlu0 %v1183
      %v1185 = vpop.xlane.xlu0 %1184
      %v1186 = vsel %vm938, %v1179, 0.0
      %1187 = vadd.xlane.f32.xlu0 %v1186
      %v1188 = vpop.xlane.xlu0 %1187
      %v1189 = vrcp.pop %v1182
      %v1190 = vrcp.pop %v1185
      %v1191 = vrcp.pop %v1188
      %v1192 = vmul.f32 %v1175, %v1189
      %v1193 = vmul.f32 %v1177, %v1190
      %v1194 = vmul.f32 %v1179, %v1191
      %v1195 = vpack.c.bf16 %v1193, %v1192
      %v1196 = vpack.c.bf16 %v1194, %v1194
      %1197 = vrot.lane.b32.xlu0 %v890, 48
      %v1198 = vpop.permute.xlu0 %1197
      %1199 = vrot.lane.b32.xlu0 %v891, 48
      %v1200 = vpop.permute.xlu0 %1199
      %v1203 = vsel %vm938, %v1195, 0
      %v1206 = vsel %vm938, %v1196, 0
      %v1209 = vsel %vm985, %v1200, 0
      %1211 = vmatpush.bf16.msra.mxu0 0
      %1212 = vmatpush.bf16.msra.mxu0 0
      %1213 = vmatpush.bf16.msra.mxu0 0
      %1214 = vmatpush.bf16.msra.mxu0 0
      %1215 = vmatpush.bf16.msra.mxu0 0
      %1216 = vmatpush.bf16.msra.mxu0 0
      %1217 = vmatpush.bf16.msra.mxu0 %v1209
      %1218 = vmatpush.bf16.msra.mxu0 %v1198
      %1219 = vmatmul.bf16.gmra.mxu0 %v1203
      %v1220 = vpop.f32.mrf.mxu0
      %v1221 = vadd.f32 0.0, %v1220
      %v1222 = vpop.f32.mrf.mxu0
      %v1223 = vadd.f32 0.0, %v1222
      %1224 = vmatmul.bf16.gmra.mxu0 %v1206
      %v1225 = vpop.f32.mrf.mxu0
      %v1226 = vadd.f32 0.0, %v1225
      %v1227 = vpop.f32.mrf.mxu0
      %1228 = vdwg.mxu0
      %1229 = vrot.lane.b32.xlu0 %v890, 104
      %v1230 = vpop.permute.xlu0 %1229
      %1231 = vrot.lane.b32.xlu0 %v891, 104
      %v1232 = vpop.permute.xlu0 %1231
      %1233 = vrot.lane.b32.xlu0 %v890, 72
      %v1234 = vpop.permute.xlu0 %1233
      %1235 = vrot.lane.b32.xlu0 %v891, 72
      %v1236 = vpop.permute.xlu0 %1235
      %v1238 = vsel %vm898, %v1230, 0
      %v1241 = vsel %vm898, %v1232, 0
      %v1244 = vsel %vm898, %v1234, 0
      %v1247 = vsel %vm898, %v1236, 0
      %1249 = vmatpush.bf16.xpose.msra.mxu0 0
      %1250 = vmatpush.bf16.xpose.msra.mxu0 0
      %1251 = vmatpush.bf16.xpose.msra.mxu0 0
      %1252 = vmatpush.bf16.xpose.msra.mxu0 0
      %1253 = vmatpush.bf16.xpose.msra.mxu0 0
      %1254 = vmatpush.bf16.xpose.msra.mxu0 0
      %1255 = vmatpush.bf16.xpose.msra.mxu0 %v1247
      %1256 = vmatpush.bf16.xpose.msra.mxu0 %v1244
      %1257 = vmatmul.bf16.gmra.mxu0 %v1238
      %v1258 = vpop.f32.mrf.mxu0
      %v1259 = vadd.f32 0.0, %v1258
      %v1260 = vpop.f32.mrf.mxu0
      %v1261 = vadd.f32 0.0, %v1260
      %1262 = vmatmul.bf16.gmra.mxu0 %v1241
      %v1263 = vpop.f32.mrf.mxu0
      %v1264 = vadd.f32 0.0, %v1263
      %v1265 = vpop.f32.mrf.mxu0
      %1266 = vdwg.mxu0
      %v1267 = vmul.f32 %v1259, 0.35355338
      %v1268 = vmul.f32 %v1261, 0.35355338
      %v1269 = vmul.f32 %v1264, 0.35355338
      %v1270 = vadd.f32 %v1267, %v933
      %v1271 = vadd.f32 %v1268, %v933
      %v1272 = vadd.f32 %v1269, %v933
      %v1273 = vsel %vm938, %v1270, -inf
      %1274 = vmax.xlane.f32.xlu0 %v1273
      %v1275 = vpop.xlane.xlu0 %1274
      %v1276 = vsel %vm938, %v1271, -inf
      %1277 = vmax.xlane.f32.xlu0 %v1276
      %v1278 = vpop.xlane.xlu0 %1277
      %v1279 = vsel %vm938, %v1272, -inf
      %1280 = vmax.xlane.f32.xlu0 %v1279
      %v1281 = vpop.xlane.xlu0 %1280
      %v1282 = vsub.f32 %v1270, %v1275
      %v1283 = vsub.f32 %v1271, %v1278
      %v1284 = vsub.f32 %v1272, %v1281
      %v1285 = vmul.f32 %v1282, 1.442695
      %v1286 = vpow.pop %v1285
      %v1287 = vmul.f32 %v1283, 1.442695
      %v1288 = vpow.pop %v1287
      %v1289 = vmul.f32 %v1284, 1.442695
      %v1290 = vpow.pop %v1289
      %v1291 = vsel %vm938, %v1286, 0.0
      %1292 = vadd.xlane.f32.xlu0 %v1291
      %v1293 = vpop.xlane.xlu0 %1292
      %v1294 = vsel %vm938, %v1288, 0.0
      %1295 = vadd.xlane.f32.xlu0 %v1294
      %v1296 = vpop.xlane.xlu0 %1295
      %v1297 = vsel %vm938, %v1290, 0.0
      %1298 = vadd.xlane.f32.xlu0 %v1297
      %v1299 = vpop.xlane.xlu0 %1298
      %v1300 = vrcp.pop %v1293
      %v1301 = vrcp.pop %v1296
      %v1302 = vrcp.pop %v1299
      %v1303 = vmul.f32 %v1286, %v1300
      %v1304 = vmul.f32 %v1288, %v1301
      %v1305 = vmul.f32 %v1290, %v1302
      %v1306 = vpack.c.bf16 %v1304, %v1303
      %v1307 = vpack.c.bf16 %v1305, %v1305
      %1308 = vrot.lane.b32.xlu0 %v890, 40
      %v1309 = vpop.permute.xlu0 %1308
      %1310 = vrot.lane.b32.xlu0 %v891, 40
      %v1311 = vpop.permute.xlu0 %1310
      %v1314 = vsel %vm938, %v1306, 0
      %v1317 = vsel %vm938, %v1307, 0
      %v1320 = vsel %vm985, %v1311, 0
      %1322 = vmatpush.bf16.msra.mxu0 0
      %1323 = vmatpush.bf16.msra.mxu0 0
      %1324 = vmatpush.bf16.msra.mxu0 0
      %1325 = vmatpush.bf16.msra.mxu0 0
      %1326 = vmatpush.bf16.msra.mxu0 0
      %1327 = vmatpush.bf16.msra.mxu0 0
      %1328 = vmatpush.bf16.msra.mxu0 %v1320
      %1329 = vmatpush.bf16.msra.mxu0 %v1309
      %1330 = vmatmul.bf16.gmra.mxu0 %v1314
      %v1331 = vpop.f32.mrf.mxu0
      %v1332 = vadd.f32 0.0, %v1331
      %v1333 = vpop.f32.mrf.mxu0
      %v1334 = vadd.f32 0.0, %v1333
      %1335 = vmatmul.bf16.gmra.mxu0 %v1317
      %v1336 = vpop.f32.mrf.mxu0
      %v1337 = vadd.f32 0.0, %v1336
      %v1338 = vpop.f32.mrf.mxu0
      %1339 = vdwg.mxu0
      %1343 = vrot.lane.b32.xlu0 %v1110, 8
      %v1344 = vpop.permute.xlu0 %1343
      %1345 = vrot.lane.b32.xlu0 %v1112, 8
      %v1346 = vpop.permute.xlu0 %1345
      %1347 = vrot.lane.b32.xlu0 %v1115, 8
      %v1348 = vpop.permute.xlu0 %1347
      %1355 = vrot.lane.b32.xlu0 %v1221, 16
      %v1356 = vpop.permute.xlu0 %1355
      %1357 = vrot.lane.b32.xlu0 %v1223, 16
      %v1358 = vpop.permute.xlu0 %1357
      %1359 = vrot.lane.b32.xlu0 %v1226, 16
      %v1360 = vpop.permute.xlu0 %1359
      %1367 = vrot.lane.b32.xlu0 %v1332, 24
      %v1368 = vpop.permute.xlu0 %1367
      %1369 = vrot.lane.b32.xlu0 %v1334, 24
      %v1370 = vpop.permute.xlu0 %1369
      %1371 = vrot.lane.b32.xlu0 %v1337, 24
      %v1372 = vpop.permute.xlu0 %1371
      %v1376 = vsel %vm898, %v999, %v1344
      %v1377 = vsel %vm898, %v1001, %v1346
      %v1378 = vsel %vm898, %v1004, %v1348
      %vm1379 = vcmask 130048
      %v1380 = vsel %vm1379, %v1376, %v1356
      %v1381 = vsel %vm1379, %v1377, %v1358
      %v1382 = vsel %vm1379, %v1378, %v1360
      %v1383 = vsel %vm938, %v1380, %v1368
      %v1384 = vsel %vm938, %v1381, %v1370
      %v1385 = vsel %vm938, %v1382, %v1372
      %v1386 = vpack.c.bf16 %v1384, %v1383
      %v1387 = vpack.c.bf16 %v1385, %v1385
      %v1388 = vld [vmem:[%s709] sm:$0xf]
      %v1389 = vld [vmem:[%s709 + $0x4] sm:$0xf]
      %v1390 = vld [vmem:[%s709 + $0x8] sm:$0xf]
      %v1391 = vld [vmem:[%s709 + $0xc] sm:$0xf]
      %v1392 = vld [vmem:[%s712] sm:$0x1]
      %v1394 = vperm.slane %v1392, 0
      %v1400 = vunpack.c.l.b16 %v1388
      %v1401 = vunpack.c.l.b16 %v1389
      %v1402 = vunpack.c.l.b16 %v1390
      %v1403 = vunpack.c.l.b16 %v1391
      %v1404 = vpack.c.b16 %v1401, %v1400
      %v1405 = vpack.c.b16 %v1403, %v1402
      %v1409 = vsel %vm758, %v1386, 0
      %v1412 = vsel %vm758, %v1387, 0
      %1414 = vmatpush.bf16.msra.mxu0 0
      %1415 = vmatpush.bf16.msra.mxu0 0
      %1416 = vmatpush.bf16.msra.mxu0 0
      %1417 = vmatpush.bf16.msra.mxu0 0
      %1418 = vmatpush.bf16.msra.mxu0 0
      %1419 = vmatpush.bf16.msra.mxu0 0
      %1420 = vmatpush.bf16.msra.mxu0 %v1405
      %1421 = vmatpush.bf16.msra.mxu0 %v1404
      %1422 = vmatmul.bf16.gmra.mxu0 %v1409
      %v1423 = vpop.f32.mrf.mxu0
      %v1424 = vadd.f32 %v1394, %v1423
      %v1425 = vpop.f32.mrf.mxu0
      %v1426 = vadd.f32 %v1394, %v1425
      %1427 = vmatmul.bf16.gmra.mxu0 %v1412
      %v1428 = vpop.f32.mrf.mxu0
      %v1429 = vadd.f32 %v1394, %v1428
      %v1430 = vpop.f32.mrf.mxu0
      %1431 = vdwg.mxu0
      %v1432 = vadd.f32 %v752, %v1424
      %v1433 = vadd.f32 %v753, %v1426
      %v1434 = vadd.f32 %v754, %v1429
      %v1435 = vld [vmem:[%s715] sm:$0x1]
      %v1436 = vld [vmem:[%s718] sm:$0x1]
      %v1437 = vsel %vm758, %v1432, 0.0
      %1438 = vadd.xlane.f32.xlu0 %v1437
      %v1439 = vpop.xlane.xlu0 %1438
      %v1440 = vsel %vm758, %v1433, 0.0
      %1441 = vadd.xlane.f32.xlu0 %v1440
      %v1442 = vpop.xlane.xlu0 %1441
      %v1443 = vsel %vm758, %v1434, 0.0
      %1444 = vadd.xlane.f32.xlu0 %v1443
      %v1445 = vpop.xlane.xlu0 %1444
      %v1446 = vmul.f32 %v1439, %v774
      %v1447 = vmul.f32 %v1442, %v774
      %v1448 = vmul.f32 %v1445, %v774
      %v1449 = vsub.f32 %v1432, %v1446
      %v1450 = vsub.f32 %v1433, %v1447
      %v1451 = vsub.f32 %v1434, %v1448
      %v1452 = vmul.f32 %v1449, %v1449
      %v1453 = vmul.f32 %v1450, %v1450
      %v1454 = vmul.f32 %v1451, %v1451
      %v1455 = vsel %vm758, %v1452, 0.0
      %1456 = vadd.xlane.f32.xlu0 %v1455
      %v1457 = vpop.xlane.xlu0 %1456
      %v1458 = vsel %vm758, %v1453, 0.0
      %1459 = vadd.xlane.f32.xlu0 %v1458
      %v1460 = vpop.xlane.xlu0 %1459
      %v1461 = vsel %vm758, %v1454, 0.0
      %1462 = vadd.xlane.f32.xlu0 %v1461
      %v1463 = vpop.xlane.xlu0 %1462
      %v1464 = vmul.f32 %v1457, %v774
      %v1465 = vmul.f32 %v1460, %v774
      %v1466 = vmul.f32 %v1463, %v774
      %v1467 = vadd.f32 %v1464, 1e-06
      %v1468 = vadd.f32 %v1465, 1e-06
      %v1469 = vadd.f32 %v1466, 1e-06
      %v1470 = vrsqrt.pop %v1467
      %v1471 = vmul.f32 %v1470, %v1467
      %v1472 = vmul.f32 %v1471, %v1470
      %v1473 = vmul.f32 0.5, %v1472
      %v1474 = vsub.f32 1.5, %v1473
      %v1475 = vmul.f32 %v1470, %v1474
      %vm1476 = vweird.f32 %v1467
      %vm1477 = vweird.f32 %v1470
      %vm1478 = vmor %vm1476, %vm1477
      %v1479 = vsel %vm1478, %v1470, %v1475
      %v1480 = vrsqrt.pop %v1468
      %v1481 = vmul.f32 %v1480, %v1468
      %v1482 = vmul.f32 %v1481, %v1480
      %v1483 = vmul.f32 0.5, %v1482
      %v1484 = vsub.f32 1.5, %v1483
      %v1485 = vmul.f32 %v1480, %v1484
      %vm1486 = vweird.f32 %v1468
      %vm1487 = vweird.f32 %v1480
      %vm1488 = vmor %vm1486, %vm1487
      %v1489 = vsel %vm1488, %v1480, %v1485
      %v1490 = vrsqrt.pop %v1469
      %v1491 = vmul.f32 %v1490, %v1469
      %v1492 = vmul.f32 %v1491, %v1490
      %v1493 = vmul.f32 0.5, %v1492
      %v1494 = vsub.f32 1.5, %v1493
      %v1495 = vmul.f32 %v1490, %v1494
      %vm1496 = vweird.f32 %v1469
      %vm1497 = vweird.f32 %v1490
      %vm1498 = vmor %vm1496, %vm1497
      %v1499 = vsel %vm1498, %v1490, %v1495
      %v1500 = vmul.f32 %v1449, %v1479
      %v1501 = vmul.f32 %v1450, %v1489
      %v1502 = vmul.f32 %v1451, %v1499
      %v1504 = vperm.slane %v1435, 0
      %v1506 = vmul.f32 %v1500, %v1504
      %v1507 = vmul.f32 %v1501, %v1504
      %v1508 = vmul.f32 %v1502, %v1504
      %v1510 = vperm.slane %v1436, 0
      %v1512 = vadd.f32 %v1506, %v1510
      %v1513 = vadd.f32 %v1507, %v1510
      %v1514 = vadd.f32 %v1508, %v1510
      %v1515 = vpack.c.bf16 %v1513, %v1512
      %v1516 = vpack.c.bf16 %v1514, %v1514
      %v1517 = vld [vmem:[%s723] sm:$0xf]
      %v1518 = vld [vmem:[%s723 + $0x4] sm:$0xf]
      %v1519 = vld [vmem:[%s723 + $0x8] sm:$0xf]
      %v1520 = vld [vmem:[%s723 + $0xc] sm:$0xf]
      %v1521 = vld [vmem:[%s726] sm:$0x1]
      %v1523 = vperm.slane %v1521, 0
      %v1529 = vunpack.c.l.b16 %v1517
      %v1530 = vunpack.c.l.b16 %v1518
      %v1531 = vunpack.c.l.b16 %v1519
      %v1532 = vunpack.c.l.b16 %v1520
      %v1533 = vpack.c.b16 %v1530, %v1529
      %v1534 = vpack.c.b16 %v1532, %v1531
      %v1538 = vsel %vm758, %v1515, 0
      %v1541 = vsel %vm758, %v1516, 0
      %1543 = vmatpush.bf16.msra.mxu0 0
      %1544 = vmatpush.bf16.msra.mxu0 0
      %1545 = vmatpush.bf16.msra.mxu0 0
      %1546 = vmatpush.bf16.msra.mxu0 0
      %1547 = vmatpush.bf16.msra.mxu0 0
      %1548 = vmatpush.bf16.msra.mxu0 0
      %1549 = vmatpush.bf16.msra.mxu0 %v1534
      %1550 = vmatpush.bf16.msra.mxu0 %v1533
      %1551 = vmatmul.bf16.gmra.mxu0 %v1538
      %v1552 = vpop.f32.mrf.mxu0
      %v1553 = vadd.f32 %v1523, %v1552
      %v1554 = vpop.f32.mrf.mxu0
      %v1555 = vadd.f32 %v1523, %v1554
      %1556 = vmatmul.bf16.gmra.mxu0 %v1541
      %v1557 = vpop.f32.mrf.mxu0
      %v1558 = vadd.f32 %v1523, %v1557
      %v1559 = vpop.f32.mrf.mxu0
      %1560 = vdwg.mxu0
      %v1561 = vmul.f32 %v1553, %v1553
      %v1562 = vmul.f32 %v1555, %v1555
      %v1563 = vmul.f32 %v1558, %v1558
      %v1564 = vmul.f32 %v1553, %v1561
      %v1565 = vmul.f32 %v1555, %v1562
      %v1566 = vmul.f32 %v1558, %v1563
      %v1567 = vmul.f32 %v1564, 0.044715
      %v1568 = vmul.f32 %v1565, 0.044715
      %v1569 = vmul.f32 %v1566, 0.044715
      %v1570 = vadd.f32 %v1553, %v1567
      %v1571 = vadd.f32 %v1555, %v1568
      %v1572 = vadd.f32 %v1558, %v1569
      %v1573 = vmul.f32 %v1570, 0.7978846
      %v1574 = vmul.f32 %v1571, 0.7978846
      %v1575 = vmul.f32 %v1572, 0.7978846
      %v1576 = vtanh.pop %v1573
      %v1577 = vtanh.pop %v1574
      %v1578 = vtanh.pop %v1575
      %v1579 = vadd.f32 %v1576, 1.0
      %v1580 = vadd.f32 %v1577, 1.0
      %v1581 = vadd.f32 %v1578, 1.0
      %v1582 = vmul.f32 %v1579, 0.5
      %v1583 = vmul.f32 %v1580, 0.5
      %v1584 = vmul.f32 %v1581, 0.5
      %v1585 = vmul.f32 %v1553, %v1582
      %v1586 = vmul.f32 %v1555, %v1583
      %v1587 = vmul.f32 %v1558, %v1584
      %v1588 = vpack.c.bf16 %v1586, %v1585
      %v1589 = vpack.c.bf16 %v1587, %v1587
      %v1590 = vld [vmem:[%s731] sm:$0xf]
      %v1591 = vld [vmem:[%s731 + $0x4] sm:$0xf]
      %v1592 = vld [vmem:[%s731 + $0x8] sm:$0xf]
      %v1593 = vld [vmem:[%s731 + $0xc] sm:$0xf]
      %v1594 = vld [vmem:[%s731 + $0x10] sm:$0xf]
      %v1595 = vld [vmem:[%s731 + $0x14] sm:$0xf]
      %v1596 = vld [vmem:[%s731 + $0x18] sm:$0xf]
      %v1597 = vld [vmem:[%s731 + $0x1c] sm:$0xf]
      %v1598 = vld [vmem:[%s731 + $0x20] sm:$0xf]
      %v1599 = vld [vmem:[%s731 + $0x24] sm:$0xf]
      %v1600 = vld [vmem:[%s731 + $0x28] sm:$0xf]
      %v1601 = vld [vmem:[%s731 + $0x2c] sm:$0xf]
      %v1602 = vld [vmem:[%s731 + $0x30] sm:$0xf]
      %v1603 = vld [vmem:[%s731 + $0x34] sm:$0xf]
      %v1604 = vld [vmem:[%s731 + $0x38] sm:$0xf]
      %v1605 = vld [vmem:[%s731 + $0x3c] sm:$0xf]
      %v1606 = vld [vmem:[%s734] sm:$0x1]
      %v1608 = vperm.slane %v1606, 0
      %v1626 = vunpack.c.l.b16 %v1590
      %v1627 = vunpack.c.l.b16 %v1591
      %v1628 = vunpack.c.l.b16 %v1592
      %v1629 = vunpack.c.l.b16 %v1593
      %v1630 = vunpack.c.l.b16 %v1594
      %v1631 = vunpack.c.l.b16 %v1595
      %v1632 = vunpack.c.l.b16 %v1596
      %v1633 = vunpack.c.l.b16 %v1597
      %v1634 = vunpack.c.l.b16 %v1598
      %v1635 = vunpack.c.l.b16 %v1599
      %v1636 = vunpack.c.l.b16 %v1600
      %v1637 = vunpack.c.l.b16 %v1601
      %v1638 = vunpack.c.l.b16 %v1602
      %v1639 = vunpack.c.l.b16 %v1603
      %v1640 = vunpack.c.l.b16 %v1604
      %v1641 = vunpack.c.l.b16 %v1605
      %v1642 = vpack.c.b16 %v1627, %v1626
      %v1643 = vpack.c.b16 %v1629, %v1628
      %v1644 = vpack.c.b16 %v1631, %v1630
      %v1645 = vpack.c.b16 %v1633, %v1632
      %v1646 = vpack.c.b16 %v1635, %v1634
      %v1647 = vpack.c.b16 %v1637, %v1636
      %v1648 = vpack.c.b16 %v1639, %v1638
      %v1649 = vpack.c.b16 %v1641, %v1640
      %1658 = vmatpush.bf16.msra.mxu0 %v1649
      %1659 = vmatpush.bf16.msra.mxu0 %v1648
      %1660 = vmatpush.bf16.msra.mxu0 %v1647
      %1661 = vmatpush.bf16.msra.mxu0 %v1646
      %1662 = vmatpush.bf16.msra.mxu0 %v1645
      %1663 = vmatpush.bf16.msra.mxu0 %v1644
      %1664 = vmatpush.bf16.msra.mxu0 %v1643
      %1665 = vmatpush.bf16.msra.mxu0 %v1642
      %1666 = vmatmul.bf16.gmra.mxu0 %v1588
      %v1667 = vpop.f32.mrf.mxu0
      %v1668 = vadd.f32 %v1608, %v1667
      %v1669 = vpop.f32.mrf.mxu0
      %v1670 = vadd.f32 %v1608, %v1669
      %1671 = vmatmul.bf16.gmra.mxu0 %v1589
      %v1672 = vpop.f32.mrf.mxu0
      %v1673 = vadd.f32 %v1608, %v1672
      %v1674 = vpop.f32.mrf.mxu0
      %1675 = vdwg.mxu0
      %v1676 = vadd.f32 %v1432, %v1668
      %v1677 = vadd.f32 %v1433, %v1670
      %v1678 = vadd.f32 %v1434, %v1673
      %1679 = vst.msk [vmem:[%s739] sm:$0xff] %vm758, %v1676
      %1680 = vst.msk [vmem:[%s739 + $0x8] sm:$0xff] %vm758, %v1677
      %1681 = vst.msk [vmem:[%s739 + $0x10] sm:$0xff] %vm758, %v1678
      %p1682 = scmp.eq.s32.totalorder %s32, 1
      // Predicated region
      $region89: #{m3fm_forward.16} parent=83 // pred_check
        %p1683 = pneg %p1682
      $region90: #{m3fm_forward.16} parent=83 // pred_check_branch
        %1685 = sbr.rel (%p1683) target = $region92
      $region91: #{m3fm_forward.16} parent=83 // pred_region
        %v1686 = vld [vmem:[%s739] sm:$0xff]
        %v1687 = vld [vmem:[%s739 + $0x8] sm:$0xff]
        %v1688 = vld [vmem:[%s739 + $0x10] sm:$0xff]
        %v1689 = vld [vmem:[%s14] sm:$0x1]
        %v1690 = vld [vmem:[%s15] sm:$0x1]
        %v1691 = vsel %vm758, %v1686, 0.0
        %1692 = vadd.xlane.f32.xlu0 %v1691
        %v1693 = vpop.xlane.xlu0 %1692
        %v1694 = vsel %vm758, %v1687, 0.0
        %1695 = vadd.xlane.f32.xlu0 %v1694
        %v1696 = vpop.xlane.xlu0 %1695
        %v1697 = vsel %vm758, %v1688, 0.0
        %1698 = vadd.xlane.f32.xlu0 %v1697
        %v1699 = vpop.xlane.xlu0 %1698
        %v1700 = vmul.f32 %v1693, %v774
        %v1701 = vmul.f32 %v1696, %v774
        %v1702 = vmul.f32 %v1699, %v774
        %v1703 = vsub.f32 %v1686, %v1700
        %v1704 = vsub.f32 %v1687, %v1701
        %v1705 = vsub.f32 %v1688, %v1702
        %v1706 = vmul.f32 %v1703, %v1703
        %v1707 = vmul.f32 %v1704, %v1704
        %v1708 = vmul.f32 %v1705, %v1705
        %v1709 = vsel %vm758, %v1706, 0.0
        %1710 = vadd.xlane.f32.xlu0 %v1709
        %v1711 = vpop.xlane.xlu0 %1710
        %v1712 = vsel %vm758, %v1707, 0.0
        %1713 = vadd.xlane.f32.xlu0 %v1712
        %v1714 = vpop.xlane.xlu0 %1713
        %v1715 = vsel %vm758, %v1708, 0.0
        %1716 = vadd.xlane.f32.xlu0 %v1715
        %v1717 = vpop.xlane.xlu0 %1716
        %v1718 = vmul.f32 %v1711, %v774
        %v1719 = vmul.f32 %v1714, %v774
        %v1720 = vmul.f32 %v1717, %v774
        %v1721 = vadd.f32 %v1718, 1e-06
        %v1722 = vadd.f32 %v1719, 1e-06
        %v1723 = vadd.f32 %v1720, 1e-06
        %v1724 = vrsqrt.pop %v1721
        %v1725 = vmul.f32 %v1724, %v1721
        %v1726 = vmul.f32 %v1725, %v1724
        %v1727 = vmul.f32 0.5, %v1726
        %v1728 = vsub.f32 1.5, %v1727
        %v1729 = vmul.f32 %v1724, %v1728
        %vm1730 = vweird.f32 %v1721
        %vm1731 = vweird.f32 %v1724
        %vm1732 = vmor %vm1730, %vm1731
        %v1733 = vsel %vm1732, %v1724, %v1729
        %v1734 = vrsqrt.pop %v1722
        %v1735 = vmul.f32 %v1734, %v1722
        %v1736 = vmul.f32 %v1735, %v1734
        %v1737 = vmul.f32 0.5, %v1736
        %v1738 = vsub.f32 1.5, %v1737
        %v1739 = vmul.f32 %v1734, %v1738
        %vm1740 = vweird.f32 %v1722
        %vm1741 = vweird.f32 %v1734
        %vm1742 = vmor %vm1740, %vm1741
        %v1743 = vsel %vm1742, %v1734, %v1739
        %v1744 = vrsqrt.pop %v1723
        %v1745 = vmul.f32 %v1744, %v1723
        %v1746 = vmul.f32 %v1745, %v1744
        %v1747 = vmul.f32 0.5, %v1746
        %v1748 = vsub.f32 1.5, %v1747
        %v1749 = vmul.f32 %v1744, %v1748
        %vm1750 = vweird.f32 %v1723
        %vm1751 = vweird.f32 %v1744
        %vm1752 = vmor %vm1750, %vm1751
        %v1753 = vsel %vm1752, %v1744, %v1749
        %v1754 = vmul.f32 %v1703, %v1733
        %v1755 = vmul.f32 %v1704, %v1743
        %v1756 = vmul.f32 %v1705, %v1753
        %v1758 = vperm.slane %v1689, 0
        %v1760 = vmul.f32 %v1754, %v1758
        %v1761 = vmul.f32 %v1755, %v1758
        %v1762 = vmul.f32 %v1756, %v1758
        %v1764 = vperm.slane %v1690, 0
        %v1766 = vadd.f32 %v1760, %v1764
        %v1767 = vadd.f32 %v1761, %v1764
        %v1768 = vadd.f32 %v1762, %v1764
        %1769 = vst.msk [vmem:[%s739] sm:$0xff] %vm758, %v1766
        %1770 = vst.msk [vmem:[%s739 + $0x8] sm:$0xff] %vm758, %v1767
        %1771 = vst.msk [vmem:[%s739 + $0x10] sm:$0xff] %vm758, %v1768
      $region92: #{m3fm_forward.16} parent=83 // pred_fallthru
        _
      %p1772 = scmp.lt.s32.totalorder %s31, 1
      %s1773 = scalar_select %p1772, %s31, 1
      %s1774 = smul.addr %s1773, 3
      %s1775 = smul.addr %s1774, 8
      %s1776 = scalar_lea.vmem %s16, %s1775
      // Predicated region
      $region93: #{m3fm_forward.16} parent=83 // pred_check
        %p1777 = pneg %p463
      $region94: #{m3fm_forward.16} parent=83 // pred_check_branch
        %1779 = sbr.rel (%p1777) target = $region96
      $region95: #{m3fm_forward.16} parent=83 // pred_region
        _
      $region96: #{m3fm_forward.16} parent=83 // pred_fallthru
        _
    $region84: #{m3fm_forward.16} parent=5 // pred_fallthru
      _
    %p1780 = scmp.le.s32.totalorder 2, %s22
    // Predicated region
    $region97: #{m3fm_forward.16} parent=5 // pred_check
      %p1781 = pneg %p1780
    $region98: #{m3fm_forward.16} parent=5 // pred_check_branch
      %1783 = sbr.rel (%p1781) target = $region100
    $region99: #{m3fm_forward.16} parent=5 // pred_region
      %s1784 = ssub.s32 %s22, 2
      // Predicated region
      $region101: #{m3fm_forward.16} parent=99 // pred_check
        %p1785 = pneg %p469
      $region102: #{m3fm_forward.16} parent=99 // pred_check_branch
        %1787 = sbr.rel (%p1785) target = $region104
      $region103: #{m3fm_forward.16} parent=99 // pred_region
        %p1788 = scmp.lt.s32.totalorder %s33, 1
        %s1789 = scalar_select %p1788, %s33, 1
        %s1790 = smul.addr %s1789, 3
        %s1791 = smul.addr %s1790, 8
        %s1792 = scalar_lea.vmem %s16, %s1791
      $region104: #{m3fm_forward.16} parent=99 // pred_fallthru
        _
    $region100: #{m3fm_forward.16} parent=5 // pred_fallthru
      _
  $region6: #{m3fm_forward.16} parent=0 // loop_footer
    %s26 = sadd.s32 1, %s22
  $region7: #{m3fm_forward.16} parent=0 // loop_footer_branch
    %21 = sbr.rel target = $region3
  $region8: #{m3fm_forward.16} parent=0 // loop_exit
    _

</llo_original>
